<compile_context>
chip_gen: v5e
topology: v5e:2x2
jax: 0.10.0
libtpu: 0.0.40
codegen_flags: <defaults>
</compile_context>

<pallas_src>
import functools

import numpy as np
import jax
import jax.numpy as jnp
from jax.experimental import pallas as pl
from jax.experimental.pallas import tpu as pltpu

# Pin matmul precision globally so the pure-JAX reference and the kernel use
# the same (f32-accurate) MXU path; the kernel also pins it per-dot.
jax.config.update("jax_default_matmul_precision", "highest")

H_ENC = 4      # self.lstm hidden size
H_DEC = 10     # self.decoder hidden size
FC_OUT = 2     # self.forwardCalculation output features
B_PAD = 8      # batch group size = one sublane group

# Kernel gate order (i, f, o, g): the three sigmoid gates are one contiguous
# lane chunk, tanh gate last.  PyTorch order is (i, f, g, o).
_GATE_PERM = np.array([0, 1, 3, 2])


# ----------------------------------------------------------------------------
# Parameter slab layout: every packed param gets an 8-aligned row block in one
# [rows, lanes] f32 array that is passed to the kernel as a single operand.
# ----------------------------------------------------------------------------
def _param_layout(T):
    entries = [
        ("e0_bd",      (T, 16 * T)),          # block-diag x-contribution matrix
        ("e0_whh",     (H_ENC, 4 * H_ENC)),
        ("e0_b",       (1, 4 * H_ENC)),
        ("e1_stack",   (2 * H_ENC, 4 * H_ENC)),   # [[W_ih],[W_hh]]
        ("e1_b",       (1, 4 * H_ENC)),
        ("fc_w",       (H_ENC, FC_OUT)),
        ("fc_b",       (1, FC_OUT)),
        ("d0_eff_enc", (H_ENC, 4 * H_DEC)),       # mean(h_enc) folded into W_ih
        ("d0_stack",   (2 * H_DEC, 4 * H_DEC)),   # [[W_hh],[mean-folded W_ih]]
        ("d0_b",       (1, 4 * H_DEC)),
        ("d1_stack",   (2 * H_DEC, 4 * H_DEC)),   # [[W_ih],[W_hh]]
        ("d1_b",       (1, 4 * H_DEC)),
        ("fin_bd",     (H_DEC * T, T)),           # block finalFc matrix
        ("fin_b",      (1, 1)),
    ]
    layout, off, max_c = {}, 0, 0
    for name, (r, c) in entries:
        layout[name] = (off, (r, c))
        off += ((r + 7) // 8) * 8
        max_c = max(max_c, c)
    lanes = ((max_c + 127) // 128) * 128
    return layout, off, lanes


def _reorder_gates(m, hidden):
    """torch gate order (i,f,g,o) rows -> kernel order (i,f,o,g)."""
    m = np.asarray(m, np.float32)
    return m.reshape(4, hidden, -1)[_GATE_PERM].reshape(4 * hidden, -1)


def _pack_lstm_np(w_ih, w_hh, b_ih, b_hh, hidden):
    wih = _reorder_gates(w_ih, hidden).T                      # [in, 4H]
    whh = _reorder_gates(w_hh, hidden).T                      # [H, 4H]
    b = (np.asarray(b_ih, np.float32) + np.asarray(b_hh, np.float32))
    b = b.reshape(4, hidden)[_GATE_PERM].reshape(1, 4 * hidden)
    return wih.astype(np.float32), whh.astype(np.float32), b.astype(np.float32)


def pack_params(e0, e1, fc, d0, d1, fin, T):
    """Pack torch-shaped params into the single kernel slab."""
    layout, rows, lanes = _param_layout(T)
    slab = np.zeros((rows, lanes), np.float32)

    def put(name, arr):
        off, (r, c) = layout[name]
        arr = np.asarray(arr, np.float32)
        assert arr.shape == (r, c), (name, arr.shape, (r, c))
        slab[off:off + r, :c] = arr

    e0_wih, e0_whh, e0_b = _pack_lstm_np(*e0, H_ENC)          # e0_wih: [1,16]
    e1_wih, e1_whh, e1_b = _pack_lstm_np(*e1, H_ENC)
    d0_wih, d0_whh, d0_b = _pack_lstm_np(*d0, H_DEC)          # d0_wih: [1,40]
    d1_wih, d1_whh, d1_b = _pack_lstm_np(*d1, H_DEC)

    # encoder layer-0: block-diagonal so x[B,T] @ bd -> all per-step gate
    # contributions in one matmul.
    e0_bd = np.zeros((T, 16 * T), np.float32)
    for t in range(T):
        e0_bd[t, 16 * t:16 * (t + 1)] = e0_wih[0]
    put("e0_bd", e0_bd)
    put("e0_whh", e0_whh)
    put("e0_b", e0_b)
    put("e1_stack", np.vstack([e1_wih, e1_whh]))
    put("e1_b", e1_b)

    fc_w, fc_b = fc
    put("fc_w", np.asarray(fc_w, np.float32).T)
    put("fc_b", np.asarray(fc_b, np.float32).reshape(1, FC_OUT))

    # decoder layer-0: fold the "mean of last hidden state" input into the
    # weight matrix: mean(h) * w_row == h @ ((1/H) * ones[H,1] @ w_row).
    put("d0_eff_enc", np.full((H_ENC, 1), 1.0 / H_ENC, np.float32) @ d0_wih)
    d0_eff_dec = np.full((H_DEC, 1), 1.0 / H_DEC, np.float32) @ d0_wih
    put("d0_stack", np.vstack([d0_whh, d0_eff_dec]))          # [dh0 | dh1] order
    put("d0_b", d0_b)
    put("d1_stack", np.vstack([d1_wih, d1_whh]))              # [dh0_new | dh1_prev]
    put("d1_b", d1_b)

    fin_w, fin_b = fin
    fin_w = np.asarray(fin_w, np.float32).reshape(-1)         # [H_DEC]
    fin_bd = np.zeros((H_DEC * T, T), np.float32)
    for t in range(T):
        fin_bd[H_DEC * t:H_DEC * (t + 1), t] = fin_w
    put("fin_bd", fin_bd)
    put("fin_b", np.asarray(fin_b, np.float32).reshape(1, 1))
    return jnp.asarray(slab)


# ----------------------------------------------------------------------------
# Kernel factory (layout/T are static; kernel closes over them)
# ----------------------------------------------------------------------------
def _make_kernel(layout, T):
    def kernel(x_ref, p_ref, fwd_ref, noise_ref):
        def P(name):
            off, (r, c) = layout[name]
            return p_ref[off:off + r, 0:c]        # static slice from the slab

        dot = functools.partial(jnp.dot, preferred_element_type=jnp.float32,
                                precision=jax.lax.Precision.HIGHEST)

        def cell(gates, c_prev, hidden):
            # gate order (i, f, o, g): one sigmoid covers i|f|o.
            ifo = jax.nn.sigmoid(gates[:, :3 * hidden])
            g = jnp.tanh(gates[:, 3 * hidden:])
            i = ifo[:, :hidden]
            f = ifo[:, hidden:2 * hidden]
            o = ifo[:, 2 * hidden:3 * hidden]
            c_new = f * c_prev + i * g
            return o * jnp.tanh(c_new), c_new

        x = x_ref[...]                                        # [8, T]

        e0_whh = P("e0_whh"); e0_b = P("e0_b")
        e1_sw = P("e1_stack"); e1_b = P("e1_b")

        # ---- encoder: all layer-0 input contributions in ONE matmul --------
        xg0_all = dot(x, P("e0_bd"))                          # [8, 16*T]

        z = jnp.zeros((B_PAD, H_ENC), jnp.float32)
        h0 = c0 = z
        h1 = c1 = z
        for t in range(T):                                    # static unroll
            g0 = xg0_all[:, 16 * t:16 * (t + 1)] + dot(h0, e0_whh) + e0_b
            h0, c0 = cell(g0, c0, H_ENC)
            # fused input + recurrent dot for layer 1
            g1 = dot(jnp.concatenate([h0, h1], axis=1), e1_sw) + e1_b
            h1, c1 = cell(g1, c1, H_ENC)

        # ---- foward_out = forwardCalculation(h[-1]) -------------------------
        fwd_ref[...] = dot(h1, P("fc_w")) + P("fc_b")         # [8, 2]

        # ---- decoder ("noise") LSTM, autoregressive -------------------------
        d0_sw = P("d0_stack"); d0_b = P("d0_b")
        d1_sw = P("d1_stack"); d1_b = P("d1_b")

        zd = jnp.zeros((B_PAD, H_DEC), jnp.float32)
        dh0 = dc0 = zd
        dh1 = dc1 = zd
        cols = []
        for t in range(T):                                    # static unroll
            if t == 0:
                # input = mean(h1_enc), folded into d0_eff_enc; state is zero.
                g0 = dot(h1, P("d0_eff_enc")) + d0_b
            else:
                # input = mean(dh1_prev) folded + recurrent dh0_prev, one dot.
                g0 = dot(jnp.concatenate([dh0, dh1], axis=1), d0_sw) + d0_b
            dh0, dc0 = cell(g0, dc0, H_DEC)
            g1 = dot(jnp.concatenate([dh0, dh1], axis=1), d1_sw) + d1_b
            dh1, dc1 = cell(g1, dc1, H_DEC)
            cols.append(dh1)

        # ---- finalFc as ONE epilogue matmul, lane-dense batch-first store ---
        hcat = jnp.concatenate(cols, axis=1)                  # [8, H_DEC*T]
        noise_ref[...] = dot(hcat, P("fin_bd")) + P("fin_b")  # [8, T]

    return kernel


# ----------------------------------------------------------------------------
# Wrapper
# ----------------------------------------------------------------------------
def seq2seq_forward(x, slab):
    """x: [B, T, 1] float32, slab: packed params.
    Returns (final [B,T,2], fwd [B,2], noise [B,T,1])."""
    B, T, _ = x.shape
    layout, rows, lanes = _param_layout(T)
    assert slab.shape == (rows, lanes)

    n_grp = -(-B // B_PAD)                     # batch groups of 8 sublanes
    bp = n_grp * B_PAD
    x_bt = jnp.zeros((bp, T), jnp.float32).at[:B].set(x[:, :, 0])

    fwd, noise = pl.pallas_call(
        _make_kernel(layout, T),
        out_shape=(jax.ShapeDtypeStruct((bp, FC_OUT), jnp.float32),
                   jax.ShapeDtypeStruct((bp, T), jnp.float32)),
        grid_spec=pltpu.PrefetchScalarGridSpec(
            num_scalar_prefetch=0,
            grid=(n_grp,),
            in_specs=[
                pl.BlockSpec((B_PAD, T), lambda g: (g, 0)),
                # single parameter slab, resident across the whole grid
                pl.BlockSpec((rows, lanes), lambda g: (0, 0)),
            ],
            out_specs=(
                pl.BlockSpec((B_PAD, FC_OUT), lambda g: (g, 0)),
                pl.BlockSpec((B_PAD, T), lambda g: (g, 0)),
            ),
        ),
        compiler_params=pltpu.CompilerParams(
            dimension_semantics=("parallel",)),   # 2nd TC on v7x for big B
    )(x_bt, slab)

    fwd = fwd[:B]                                 # drop padded batch rows
    noise = noise[:B]
    # final = noise[B,T,1] + fwd[B,1,2]; trivial op done outside the kernel so
    # the kernel's stores stay 2-D / lane-dense.
    final = noise[:, :, None] + fwd[:, None, :]
    return final, fwd, noise[:, :, None]


# ----------------------------------------------------------------------------
# Pure-JAX reference (torch-shaped params, standard gate order) for checking.
# ----------------------------------------------------------------------------
def _ref_lstm_cell(x_t, h, c, w_ih, w_hh, b_ih, b_hh):
    hid = h.shape[1]
    gates = x_t @ w_ih.T + h @ w_hh.T + b_ih + b_hh
    i = jax.nn.sigmoid(gates[:, :hid])
    f = jax.nn.sigmoid(gates[:, hid:2 * hid])
    g = jnp.tanh(gates[:, 2 * hid:3 * hid])
    o = jax.nn.sigmoid(gates[:, 3 * hid:])
    c_new = f * c + i * g
    return o * jnp.tanh(c_new), c_new


def ref_forward(x, tparams):
    e0, e1, fc, d0, d1, fin = tparams
    B, T, _ = x.shape
    h0 = c0 = h1 = c1 = jnp.zeros((B, H_ENC), jnp.float32)
    for t in range(T):
        h0, c0 = _ref_lstm_cell(x[:, t, :], h0, c0, *e0)
        h1, c1 = _ref_lstm_cell(h0, h1, c1, *e1)
    fc_w, fc_b = fc
    fwd = h1 @ fc_w.T + fc_b
    dh0 = dc0 = dh1 = dc1 = jnp.zeros((B, H_DEC), jnp.float32)
    h_last = h1
    fin_w, fin_b = fin
    noise = []
    for t in range(T):
        inp = jnp.mean(h_last, axis=1, keepdims=True)
        dh0, dc0 = _ref_lstm_cell(inp, dh0, dc0, *d0)
        dh1, dc1 = _ref_lstm_cell(dh0, dh1, dc1, *d1)
        h_last = dh1
        noise.append(dh1 @ fin_w.T + fin_b)
    noise = jnp.stack(noise, axis=1)                     # [B, T, 1]
    final = noise + fwd[:, None, :]                      # [B, T, 2]
    return final, fwd, noise


# ----------------------------------------------------------------------------
# Deterministic torch-shaped parameter construction
# ----------------------------------------------------------------------------
def _torch_lstm_layer(key, in_size, hidden):
    bound = 1.0 / (hidden ** 0.5)
    k1, k2, k3, k4 = jax.random.split(key, 4)
    w_ih = jax.random.uniform(k1, (4 * hidden, in_size), jnp.float32, -bound, bound)
    w_hh = jax.random.uniform(k2, (4 * hidden, hidden), jnp.float32, -bound, bound)
    b_ih = jax.random.uniform(k3, (4 * hidden,), jnp.float32, -bound, bound)
    b_hh = jax.random.uniform(k4, (4 * hidden,), jnp.float32, -bound, bound)
    return w_ih, w_hh, b_ih, b_hh


def _torch_linear(key, in_f, out_f):
    bound = 1.0 / (in_f ** 0.5)
    k1, k2 = jax.random.split(key)
    w = jax.random.uniform(k1, (out_f, in_f), jnp.float32, -bound, bound)
    b = jax.random.uniform(k2, (out_f,), jnp.float32, -bound, bound)
    return w, b


if __name__ == "__main__":
    key = jax.random.PRNGKey(0)
    kx, kp = jax.random.split(key)
    ke0, ke1, kfc, kd0, kd1, kfin = jax.random.split(kp, 6)

    B, T = 2, 8
    x = jax.random.normal(kx, (B, T, 1), jnp.float32)

    e0 = _torch_lstm_layer(ke0, 1, H_ENC)
    e1 = _torch_lstm_layer(ke1, H_ENC, H_ENC)
    fc = _torch_linear(kfc, H_ENC, FC_OUT)
    d0 = _torch_lstm_layer(kd0, 1, H_DEC)
    d1 = _torch_lstm_layer(kd1, H_DEC, H_DEC)
    fin = _torch_linear(kfin, H_DEC, 1)

    slab = pack_params(e0, e1, fc, d0, d1, fin, T)

    final, fwd, noise = jax.block_until_ready(
        jax.jit(seq2seq_forward)(x, slab))

    final_r, fwd_r, noise_r = ref_forward(x, (e0, e1, fc, d0, d1, fin))
    assert final.shape == (B, T, FC_OUT)
    assert fwd.shape == (B, FC_OUT)
    assert noise.shape == (B, T, 1)
    assert np.allclose(np.asarray(fwd), np.asarray(fwd_r), atol=2e-5)
    assert np.allclose(np.asarray(noise), np.asarray(noise_r), atol=2e-5)
    assert np.allclose(np.asarray(final), np.asarray(final_r), atol=2e-5)

    print("KERNEL_OK")
</pallas_src>

<mosaic_0001>
module attributes {stable_mosaic.version = 11 : i64} {
  func.func @kernel(%arg0: i32, %arg1: memref<8x8xf32, #tpu.memory_space<vmem>>, %arg2: memref<216x128xf32, #tpu.memory_space<vmem>>, %arg3: memref<8x2xf32, #tpu.memory_space<vmem>>, %arg4: memref<8x8xf32, #tpu.memory_space<vmem>>) attributes {dimension_semantics = [#tpu.dimension_semantics<parallel>], iteration_bounds = array<i64: 1>, scalar_prefetch = 0 : i64, scratch_operands = 0 : i64, tpu.core_type = #tpu.core_type<tc>, window_params = [{transform_indices = @transform_0, window_bounds = array<i64: 8, 8>}, {pipeline_mode = #tpu.pipeline_mode<synchronous>, transform_indices = @transform_1, window_bounds = array<i64: 216, 128>}, {transform_indices = @transform_2, window_bounds = array<i64: 8, 2>}, {transform_indices = @transform_3, window_bounds = array<i64: 8, 8>}]} {
    %c0 = arith.constant 0 : index
    %c0_0 = arith.constant 0 : index
    %0 = vector.load %arg1[%c0, %c0_0] : memref<8x8xf32, #tpu.memory_space<vmem>>, vector<8x8xf32>
    %c8 = arith.constant 8 : index
    %c0_1 = arith.constant 0 : index
    %1 = vector.load %arg2[%c8, %c0_1] : memref<216x128xf32, #tpu.memory_space<vmem>>, vector<4x16xf32>
    %c16 = arith.constant 16 : index
    %c0_2 = arith.constant 0 : index
    %2 = vector.load %arg2[%c16, %c0_2] : memref<216x128xf32, #tpu.memory_space<vmem>>, vector<1x16xf32>
    %c24 = arith.constant 24 : index
    %c0_3 = arith.constant 0 : index
    %3 = vector.load %arg2[%c24, %c0_3] : memref<216x128xf32, #tpu.memory_space<vmem>>, vector<8x16xf32>
    %c32 = arith.constant 32 : index
    %c0_4 = arith.constant 0 : index
    %4 = vector.load %arg2[%c32, %c0_4] : memref<216x128xf32, #tpu.memory_space<vmem>>, vector<1x16xf32>
    %c0_5 = arith.constant 0 : index
    %c0_6 = arith.constant 0 : index
    %5 = vector.load %arg2[%c0_5, %c0_6] : memref<216x128xf32, #tpu.memory_space<vmem>>, vector<8x128xf32>
    %cst = arith.constant dense<0.000000e+00> : vector<8x128xf32>
    %6 = tpu.matmul %0, %5, %cst {dimension_numbers = #tpu.dot_dimension_numbers<[1], [0], [0], [1], [0, 0, 1, 1], [], []>, precision = #tpu.contract_precision<fp32>} : vector<8x8xf32>, vector<8x128xf32>, vector<8x128xf32> -> vector<8x128xf32>
    %cst_7 = arith.constant 0.000000e+00 : f32
    %7 = vector.broadcast %cst_7 : f32 to vector<8x4xf32>
    %8 = vector.extract_strided_slice %6 {offsets = [0, 0], sizes = [8, 16], strides = [1, 1]} : vector<8x128xf32> to vector<8x16xf32>
    %cst_8 = arith.constant dense<0.000000e+00> : vector<8x16xf32>
    %9 = tpu.matmul %7, %1, %cst_8 {dimension_numbers = #tpu.dot_dimension_numbers<[1], [0], [0], [1], [0, 0, 1, 1], [], []>, precision = #tpu.contract_precision<fp32>} : vector<8x4xf32>, vector<4x16xf32>, vector<8x16xf32> -> vector<8x16xf32>
    %10 = arith.addf %8, %9 : vector<8x16xf32>
    %11 = vector.broadcast %2 : vector<1x16xf32> to vector<8x16xf32>
    %12 = arith.addf %10, %11 : vector<8x16xf32>
    %13 = vector.extract_strided_slice %12 {offsets = [0, 0], sizes = [8, 12], strides = [1, 1]} : vector<8x16xf32> to vector<8x12xf32>
    %14 = arith.negf %13 : vector<8x12xf32>
    %15 = math.exp %14 : vector<8x12xf32>
    %cst_9 = arith.constant 1.000000e+00 : f32
    %16 = vector.broadcast %cst_9 : f32 to vector<8x12xf32>
    %17 = arith.addf %16, %15 : vector<8x12xf32>
    %18 = arith.divf %16, %17 : vector<8x12xf32>
    %19 = vector.extract_strided_slice %12 {offsets = [0, 12], sizes = [8, 4], strides = [1, 1]} : vector<8x16xf32> to vector<8x4xf32>
    %20 = math.tanh %19 : vector<8x4xf32>
    %21 = vector.extract_strided_slice %18 {offsets = [0, 0], sizes = [8, 4], strides = [1, 1]} : vector<8x12xf32> to vector<8x4xf32>
    %22 = vector.extract_strided_slice %18 {offsets = [0, 4], sizes = [8, 4], strides = [1, 1]} : vector<8x12xf32> to vector<8x4xf32>
    %23 = vector.extract_strided_slice %18 {offsets = [0, 8], sizes = [8, 4], strides = [1, 1]} : vector<8x12xf32> to vector<8x4xf32>
    %24 = arith.mulf %22, %7 : vector<8x4xf32>
    %25 = arith.mulf %21, %20 : vector<8x4xf32>
    %26 = arith.addf %24, %25 : vector<8x4xf32>
    %27 = math.tanh %26 : vector<8x4xf32>
    %28 = arith.mulf %23, %27 : vector<8x4xf32>
    %29 = tpu.concatenate %28, %7 in 1 : vector<8x4xf32>, vector<8x4xf32> -> vector<8x8xf32>
    %cst_10 = arith.constant dense<0.000000e+00> : vector<8x16xf32>
    %30 = tpu.matmul %29, %3, %cst_10 {dimension_numbers = #tpu.dot_dimension_numbers<[1], [0], [0], [1], [0, 0, 1, 1], [], []>, precision = #tpu.contract_precision<fp32>} : vector<8x8xf32>, vector<8x16xf32>, vector<8x16xf32> -> vector<8x16xf32>
    %31 = vector.broadcast %4 : vector<1x16xf32> to vector<8x16xf32>
    %32 = arith.addf %30, %31 : vector<8x16xf32>
    %33 = vector.extract_strided_slice %32 {offsets = [0, 0], sizes = [8, 12], strides = [1, 1]} : vector<8x16xf32> to vector<8x12xf32>
    %34 = arith.negf %33 : vector<8x12xf32>
    %35 = math.exp %34 : vector<8x12xf32>
    %cst_11 = arith.constant 1.000000e+00 : f32
    %36 = vector.broadcast %cst_11 : f32 to vector<8x12xf32>
    %37 = arith.addf %36, %35 : vector<8x12xf32>
    %38 = arith.divf %36, %37 : vector<8x12xf32>
    %39 = vector.extract_strided_slice %32 {offsets = [0, 12], sizes = [8, 4], strides = [1, 1]} : vector<8x16xf32> to vector<8x4xf32>
    %40 = math.tanh %39 : vector<8x4xf32>
    %41 = vector.extract_strided_slice %38 {offsets = [0, 0], sizes = [8, 4], strides = [1, 1]} : vector<8x12xf32> to vector<8x4xf32>
    %42 = vector.extract_strided_slice %38 {offsets = [0, 4], sizes = [8, 4], strides = [1, 1]} : vector<8x12xf32> to vector<8x4xf32>
    %43 = vector.extract_strided_slice %38 {offsets = [0, 8], sizes = [8, 4], strides = [1, 1]} : vector<8x12xf32> to vector<8x4xf32>
    %44 = arith.mulf %42, %7 : vector<8x4xf32>
    %45 = arith.mulf %41, %40 : vector<8x4xf32>
    %46 = arith.addf %44, %45 : vector<8x4xf32>
    %47 = math.tanh %46 : vector<8x4xf32>
    %48 = arith.mulf %43, %47 : vector<8x4xf32>
    %49 = vector.extract_strided_slice %6 {offsets = [0, 16], sizes = [8, 16], strides = [1, 1]} : vector<8x128xf32> to vector<8x16xf32>
    %cst_12 = arith.constant dense<0.000000e+00> : vector<8x16xf32>
    %50 = tpu.matmul %28, %1, %cst_12 {dimension_numbers = #tpu.dot_dimension_numbers<[1], [0], [0], [1], [0, 0, 1, 1], [], []>, precision = #tpu.contract_precision<fp32>} : vector<8x4xf32>, vector<4x16xf32>, vector<8x16xf32> -> vector<8x16xf32>
    %51 = arith.addf %49, %50 : vector<8x16xf32>
    %52 = vector.broadcast %2 : vector<1x16xf32> to vector<8x16xf32>
    %53 = arith.addf %51, %52 : vector<8x16xf32>
    %54 = vector.extract_strided_slice %53 {offsets = [0, 0], sizes = [8, 12], strides = [1, 1]} : vector<8x16xf32> to vector<8x12xf32>
    %55 = arith.negf %54 : vector<8x12xf32>
    %56 = math.exp %55 : vector<8x12xf32>
    %cst_13 = arith.constant 1.000000e+00 : f32
    %57 = vector.broadcast %cst_13 : f32 to vector<8x12xf32>
    %58 = arith.addf %57, %56 : vector<8x12xf32>
    %59 = arith.divf %57, %58 : vector<8x12xf32>
    %60 = vector.extract_strided_slice %53 {offsets = [0, 12], sizes = [8, 4], strides = [1, 1]} : vector<8x16xf32> to vector<8x4xf32>
    %61 = math.tanh %60 : vector<8x4xf32>
    %62 = vector.extract_strided_slice %59 {offsets = [0, 0], sizes = [8, 4], strides = [1, 1]} : vector<8x12xf32> to vector<8x4xf32>
    %63 = vector.extract_strided_slice %59 {offsets = [0, 4], sizes = [8, 4], strides = [1, 1]} : vector<8x12xf32> to vector<8x4xf32>
    %64 = vector.extract_strided_slice %59 {offsets = [0, 8], sizes = [8, 4], strides = [1, 1]} : vector<8x12xf32> to vector<8x4xf32>
    %65 = arith.mulf %63, %26 : vector<8x4xf32>
    %66 = arith.mulf %62, %61 : vector<8x4xf32>
    %67 = arith.addf %65, %66 : vector<8x4xf32>
    %68 = math.tanh %67 : vector<8x4xf32>
    %69 = arith.mulf %64, %68 : vector<8x4xf32>
    %70 = tpu.concatenate %69, %48 in 1 : vector<8x4xf32>, vector<8x4xf32> -> vector<8x8xf32>
    %cst_14 = arith.constant dense<0.000000e+00> : vector<8x16xf32>
    %71 = tpu.matmul %70, %3, %cst_14 {dimension_numbers = #tpu.dot_dimension_numbers<[1], [0], [0], [1], [0, 0, 1, 1], [], []>, precision = #tpu.contract_precision<fp32>} : vector<8x8xf32>, vector<8x16xf32>, vector<8x16xf32> -> vector<8x16xf32>
    %72 = vector.broadcast %4 : vector<1x16xf32> to vector<8x16xf32>
    %73 = arith.addf %71, %72 : vector<8x16xf32>
    %74 = vector.extract_strided_slice %73 {offsets = [0, 0], sizes = [8, 12], strides = [1, 1]} : vector<8x16xf32> to vector<8x12xf32>
    %75 = arith.negf %74 : vector<8x12xf32>
    %76 = math.exp %75 : vector<8x12xf32>
    %cst_15 = arith.constant 1.000000e+00 : f32
    %77 = vector.broadcast %cst_15 : f32 to vector<8x12xf32>
    %78 = arith.addf %77, %76 : vector<8x12xf32>
    %79 = arith.divf %77, %78 : vector<8x12xf32>
    %80 = vector.extract_strided_slice %73 {offsets = [0, 12], sizes = [8, 4], strides = [1, 1]} : vector<8x16xf32> to vector<8x4xf32>
    %81 = math.tanh %80 : vector<8x4xf32>
    %82 = vector.extract_strided_slice %79 {offsets = [0, 0], sizes = [8, 4], strides = [1, 1]} : vector<8x12xf32> to vector<8x4xf32>
    %83 = vector.extract_strided_slice %79 {offsets = [0, 4], sizes = [8, 4], strides = [1, 1]} : vector<8x12xf32> to vector<8x4xf32>
    %84 = vector.extract_strided_slice %79 {offsets = [0, 8], sizes = [8, 4], strides = [1, 1]} : vector<8x12xf32> to vector<8x4xf32>
    %85 = arith.mulf %83, %46 : vector<8x4xf32>
    %86 = arith.mulf %82, %81 : vector<8x4xf32>
    %87 = arith.addf %85, %86 : vector<8x4xf32>
    %88 = math.tanh %87 : vector<8x4xf32>
    %89 = arith.mulf %84, %88 : vector<8x4xf32>
    %90 = vector.extract_strided_slice %6 {offsets = [0, 32], sizes = [8, 16], strides = [1, 1]} : vector<8x128xf32> to vector<8x16xf32>
    %cst_16 = arith.constant dense<0.000000e+00> : vector<8x16xf32>
    %91 = tpu.matmul %69, %1, %cst_16 {dimension_numbers = #tpu.dot_dimension_numbers<[1], [0], [0], [1], [0, 0, 1, 1], [], []>, precision = #tpu.contract_precision<fp32>} : vector<8x4xf32>, vector<4x16xf32>, vector<8x16xf32> -> vector<8x16xf32>
    %92 = arith.addf %90, %91 : vector<8x16xf32>
    %93 = vector.broadcast %2 : vector<1x16xf32> to vector<8x16xf32>
    %94 = arith.addf %92, %93 : vector<8x16xf32>
    %95 = vector.extract_strided_slice %94 {offsets = [0, 0], sizes = [8, 12], strides = [1, 1]} : vector<8x16xf32> to vector<8x12xf32>
    %96 = arith.negf %95 : vector<8x12xf32>
    %97 = math.exp %96 : vector<8x12xf32>
    %cst_17 = arith.constant 1.000000e+00 : f32
    %98 = vector.broadcast %cst_17 : f32 to vector<8x12xf32>
    %99 = arith.addf %98, %97 : vector<8x12xf32>
    %100 = arith.divf %98, %99 : vector<8x12xf32>
    %101 = vector.extract_strided_slice %94 {offsets = [0, 12], sizes = [8, 4], strides = [1, 1]} : vector<8x16xf32> to vector<8x4xf32>
    %102 = math.tanh %101 : vector<8x4xf32>
    %103 = vector.extract_strided_slice %100 {offsets = [0, 0], sizes = [8, 4], strides = [1, 1]} : vector<8x12xf32> to vector<8x4xf32>
    %104 = vector.extract_strided_slice %100 {offsets = [0, 4], sizes = [8, 4], strides = [1, 1]} : vector<8x12xf32> to vector<8x4xf32>
    %105 = vector.extract_strided_slice %100 {offsets = [0, 8], sizes = [8, 4], strides = [1, 1]} : vector<8x12xf32> to vector<8x4xf32>
    %106 = arith.mulf %104, %67 : vector<8x4xf32>
    %107 = arith.mulf %103, %102 : vector<8x4xf32>
    %108 = arith.addf %106, %107 : vector<8x4xf32>
    %109 = math.tanh %108 : vector<8x4xf32>
    %110 = arith.mulf %105, %109 : vector<8x4xf32>
    %111 = tpu.concatenate %110, %89 in 1 : vector<8x4xf32>, vector<8x4xf32> -> vector<8x8xf32>
    %cst_18 = arith.constant dense<0.000000e+00> : vector<8x16xf32>
    %112 = tpu.matmul %111, %3, %cst_18 {dimension_numbers = #tpu.dot_dimension_numbers<[1], [0], [0], [1], [0, 0, 1, 1], [], []>, precision = #tpu.contract_precision<fp32>} : vector<8x8xf32>, vector<8x16xf32>, vector<8x16xf32> -> vector<8x16xf32>
    %113 = vector.broadcast %4 : vector<1x16xf32> to vector<8x16xf32>
    %114 = arith.addf %112, %113 : vector<8x16xf32>
    %115 = vector.extract_strided_slice %114 {offsets = [0, 0], sizes = [8, 12], strides = [1, 1]} : vector<8x16xf32> to vector<8x12xf32>
    %116 = arith.negf %115 : vector<8x12xf32>
    %117 = math.exp %116 : vector<8x12xf32>
    %cst_19 = arith.constant 1.000000e+00 : f32
    %118 = vector.broadcast %cst_19 : f32 to vector<8x12xf32>
    %119 = arith.addf %118, %117 : vector<8x12xf32>
    %120 = arith.divf %118, %119 : vector<8x12xf32>
    %121 = vector.extract_strided_slice %114 {offsets = [0, 12], sizes = [8, 4], strides = [1, 1]} : vector<8x16xf32> to vector<8x4xf32>
    %122 = math.tanh %121 : vector<8x4xf32>
    %123 = vector.extract_strided_slice %120 {offsets = [0, 0], sizes = [8, 4], strides = [1, 1]} : vector<8x12xf32> to vector<8x4xf32>
    %124 = vector.extract_strided_slice %120 {offsets = [0, 4], sizes = [8, 4], strides = [1, 1]} : vector<8x12xf32> to vector<8x4xf32>
    %125 = vector.extract_strided_slice %120 {offsets = [0, 8], sizes = [8, 4], strides = [1, 1]} : vector<8x12xf32> to vector<8x4xf32>
    %126 = arith.mulf %124, %87 : vector<8x4xf32>
    %127 = arith.mulf %123, %122 : vector<8x4xf32>
    %128 = arith.addf %126, %127 : vector<8x4xf32>
    %129 = math.tanh %128 : vector<8x4xf32>
    %130 = arith.mulf %125, %129 : vector<8x4xf32>
    %131 = vector.extract_strided_slice %6 {offsets = [0, 48], sizes = [8, 16], strides = [1, 1]} : vector<8x128xf32> to vector<8x16xf32>
    %cst_20 = arith.constant dense<0.000000e+00> : vector<8x16xf32>
    %132 = tpu.matmul %110, %1, %cst_20 {dimension_numbers = #tpu.dot_dimension_numbers<[1], [0], [0], [1], [0, 0, 1, 1], [], []>, precision = #tpu.contract_precision<fp32>} : vector<8x4xf32>, vector<4x16xf32>, vector<8x16xf32> -> vector<8x16xf32>
    %133 = arith.addf %131, %132 : vector<8x16xf32>
    %134 = vector.broadcast %2 : vector<1x16xf32> to vector<8x16xf32>
    %135 = arith.addf %133, %134 : vector<8x16xf32>
    %136 = vector.extract_strided_slice %135 {offsets = [0, 0], sizes = [8, 12], strides = [1, 1]} : vector<8x16xf32> to vector<8x12xf32>
    %137 = arith.negf %136 : vector<8x12xf32>
    %138 = math.exp %137 : vector<8x12xf32>
    %cst_21 = arith.constant 1.000000e+00 : f32
    %139 = vector.broadcast %cst_21 : f32 to vector<8x12xf32>
    %140 = arith.addf %139, %138 : vector<8x12xf32>
    %141 = arith.divf %139, %140 : vector<8x12xf32>
    %142 = vector.extract_strided_slice %135 {offsets = [0, 12], sizes = [8, 4], strides = [1, 1]} : vector<8x16xf32> to vector<8x4xf32>
    %143 = math.tanh %142 : vector<8x4xf32>
    %144 = vector.extract_strided_slice %141 {offsets = [0, 0], sizes = [8, 4], strides = [1, 1]} : vector<8x12xf32> to vector<8x4xf32>
    %145 = vector.extract_strided_slice %141 {offsets = [0, 4], sizes = [8, 4], strides = [1, 1]} : vector<8x12xf32> to vector<8x4xf32>
    %146 = vector.extract_strided_slice %141 {offsets = [0, 8], sizes = [8, 4], strides = [1, 1]} : vector<8x12xf32> to vector<8x4xf32>
    %147 = arith.mulf %145, %108 : vector<8x4xf32>
    %148 = arith.mulf %144, %143 : vector<8x4xf32>
    %149 = arith.addf %147, %148 : vector<8x4xf32>
    %150 = math.tanh %149 : vector<8x4xf32>
    %151 = arith.mulf %146, %150 : vector<8x4xf32>
    %152 = tpu.concatenate %151, %130 in 1 : vector<8x4xf32>, vector<8x4xf32> -> vector<8x8xf32>
    %cst_22 = arith.constant dense<0.000000e+00> : vector<8x16xf32>
    %153 = tpu.matmul %152, %3, %cst_22 {dimension_numbers = #tpu.dot_dimension_numbers<[1], [0], [0], [1], [0, 0, 1, 1], [], []>, precision = #tpu.contract_precision<fp32>} : vector<8x8xf32>, vector<8x16xf32>, vector<8x16xf32> -> vector<8x16xf32>
    %154 = vector.broadcast %4 : vector<1x16xf32> to vector<8x16xf32>
    %155 = arith.addf %153, %154 : vector<8x16xf32>
    %156 = vector.extract_strided_slice %155 {offsets = [0, 0], sizes = [8, 12], strides = [1, 1]} : vector<8x16xf32> to vector<8x12xf32>
    %157 = arith.negf %156 : vector<8x12xf32>
    %158 = math.exp %157 : vector<8x12xf32>
    %cst_23 = arith.constant 1.000000e+00 : f32
    %159 = vector.broadcast %cst_23 : f32 to vector<8x12xf32>
    %160 = arith.addf %159, %158 : vector<8x12xf32>
    %161 = arith.divf %159, %160 : vector<8x12xf32>
    %162 = vector.extract_strided_slice %155 {offsets = [0, 12], sizes = [8, 4], strides = [1, 1]} : vector<8x16xf32> to vector<8x4xf32>
    %163 = math.tanh %162 : vector<8x4xf32>
    %164 = vector.extract_strided_slice %161 {offsets = [0, 0], sizes = [8, 4], strides = [1, 1]} : vector<8x12xf32> to vector<8x4xf32>
    %165 = vector.extract_strided_slice %161 {offsets = [0, 4], sizes = [8, 4], strides = [1, 1]} : vector<8x12xf32> to vector<8x4xf32>
    %166 = vector.extract_strided_slice %161 {offsets = [0, 8], sizes = [8, 4], strides = [1, 1]} : vector<8x12xf32> to vector<8x4xf32>
    %167 = arith.mulf %165, %128 : vector<8x4xf32>
    %168 = arith.mulf %164, %163 : vector<8x4xf32>
    %169 = arith.addf %167, %168 : vector<8x4xf32>
    %170 = math.tanh %169 : vector<8x4xf32>
    %171 = arith.mulf %166, %170 : vector<8x4xf32>
    %172 = vector.extract_strided_slice %6 {offsets = [0, 64], sizes = [8, 16], strides = [1, 1]} : vector<8x128xf32> to vector<8x16xf32>
    %cst_24 = arith.constant dense<0.000000e+00> : vector<8x16xf32>
    %173 = tpu.matmul %151, %1, %cst_24 {dimension_numbers = #tpu.dot_dimension_numbers<[1], [0], [0], [1], [0, 0, 1, 1], [], []>, precision = #tpu.contract_precision<fp32>} : vector<8x4xf32>, vector<4x16xf32>, vector<8x16xf32> -> vector<8x16xf32>
    %174 = arith.addf %172, %173 : vector<8x16xf32>
    %175 = vector.broadcast %2 : vector<1x16xf32> to vector<8x16xf32>
    %176 = arith.addf %174, %175 : vector<8x16xf32>
    %177 = vector.extract_strided_slice %176 {offsets = [0, 0], sizes = [8, 12], strides = [1, 1]} : vector<8x16xf32> to vector<8x12xf32>
    %178 = arith.negf %177 : vector<8x12xf32>
    %179 = math.exp %178 : vector<8x12xf32>
    %cst_25 = arith.constant 1.000000e+00 : f32
    %180 = vector.broadcast %cst_25 : f32 to vector<8x12xf32>
    %181 = arith.addf %180, %179 : vector<8x12xf32>
    %182 = arith.divf %180, %181 : vector<8x12xf32>
    %183 = vector.extract_strided_slice %176 {offsets = [0, 12], sizes = [8, 4], strides = [1, 1]} : vector<8x16xf32> to vector<8x4xf32>
    %184 = math.tanh %183 : vector<8x4xf32>
    %185 = vector.extract_strided_slice %182 {offsets = [0, 0], sizes = [8, 4], strides = [1, 1]} : vector<8x12xf32> to vector<8x4xf32>
    %186 = vector.extract_strided_slice %182 {offsets = [0, 4], sizes = [8, 4], strides = [1, 1]} : vector<8x12xf32> to vector<8x4xf32>
    %187 = vector.extract_strided_slice %182 {offsets = [0, 8], sizes = [8, 4], strides = [1, 1]} : vector<8x12xf32> to vector<8x4xf32>
    %188 = arith.mulf %186, %149 : vector<8x4xf32>
    %189 = arith.mulf %185, %184 : vector<8x4xf32>
    %190 = arith.addf %188, %189 : vector<8x4xf32>
    %191 = math.tanh %190 : vector<8x4xf32>
    %192 = arith.mulf %187, %191 : vector<8x4xf32>
    %193 = tpu.concatenate %192, %171 in 1 : vector<8x4xf32>, vector<8x4xf32> -> vector<8x8xf32>
    %cst_26 = arith.constant dense<0.000000e+00> : vector<8x16xf32>
    %194 = tpu.matmul %193, %3, %cst_26 {dimension_numbers = #tpu.dot_dimension_numbers<[1], [0], [0], [1], [0, 0, 1, 1], [], []>, precision = #tpu.contract_precision<fp32>} : vector<8x8xf32>, vector<8x16xf32>, vector<8x16xf32> -> vector<8x16xf32>
    %195 = vector.broadcast %4 : vector<1x16xf32> to vector<8x16xf32>
    %196 = arith.addf %194, %195 : vector<8x16xf32>
    %197 = vector.extract_strided_slice %196 {offsets = [0, 0], sizes = [8, 12], strides = [1, 1]} : vector<8x16xf32> to vector<8x12xf32>
    %198 = arith.negf %197 : vector<8x12xf32>
    %199 = math.exp %198 : vector<8x12xf32>
    %cst_27 = arith.constant 1.000000e+00 : f32
    %200 = vector.broadcast %cst_27 : f32 to vector<8x12xf32>
    %201 = arith.addf %200, %199 : vector<8x12xf32>
    %202 = arith.divf %200, %201 : vector<8x12xf32>
    %203 = vector.extract_strided_slice %196 {offsets = [0, 12], sizes = [8, 4], strides = [1, 1]} : vector<8x16xf32> to vector<8x4xf32>
    %204 = math.tanh %203 : vector<8x4xf32>
    %205 = vector.extract_strided_slice %202 {offsets = [0, 0], sizes = [8, 4], strides = [1, 1]} : vector<8x12xf32> to vector<8x4xf32>
    %206 = vector.extract_strided_slice %202 {offsets = [0, 4], sizes = [8, 4], strides = [1, 1]} : vector<8x12xf32> to vector<8x4xf32>
    %207 = vector.extract_strided_slice %202 {offsets = [0, 8], sizes = [8, 4], strides = [1, 1]} : vector<8x12xf32> to vector<8x4xf32>
    %208 = arith.mulf %206, %169 : vector<8x4xf32>
    %209 = arith.mulf %205, %204 : vector<8x4xf32>
    %210 = arith.addf %208, %209 : vector<8x4xf32>
    %211 = math.tanh %210 : vector<8x4xf32>
    %212 = arith.mulf %207, %211 : vector<8x4xf32>
    %213 = vector.extract_strided_slice %6 {offsets = [0, 80], sizes = [8, 16], strides = [1, 1]} : vector<8x128xf32> to vector<8x16xf32>
    %cst_28 = arith.constant dense<0.000000e+00> : vector<8x16xf32>
    %214 = tpu.matmul %192, %1, %cst_28 {dimension_numbers = #tpu.dot_dimension_numbers<[1], [0], [0], [1], [0, 0, 1, 1], [], []>, precision = #tpu.contract_precision<fp32>} : vector<8x4xf32>, vector<4x16xf32>, vector<8x16xf32> -> vector<8x16xf32>
    %215 = arith.addf %213, %214 : vector<8x16xf32>
    %216 = vector.broadcast %2 : vector<1x16xf32> to vector<8x16xf32>
    %217 = arith.addf %215, %216 : vector<8x16xf32>
    %218 = vector.extract_strided_slice %217 {offsets = [0, 0], sizes = [8, 12], strides = [1, 1]} : vector<8x16xf32> to vector<8x12xf32>
    %219 = arith.negf %218 : vector<8x12xf32>
    %220 = math.exp %219 : vector<8x12xf32>
    %cst_29 = arith.constant 1.000000e+00 : f32
    %221 = vector.broadcast %cst_29 : f32 to vector<8x12xf32>
    %222 = arith.addf %221, %220 : vector<8x12xf32>
    %223 = arith.divf %221, %222 : vector<8x12xf32>
    %224 = vector.extract_strided_slice %217 {offsets = [0, 12], sizes = [8, 4], strides = [1, 1]} : vector<8x16xf32> to vector<8x4xf32>
    %225 = math.tanh %224 : vector<8x4xf32>
    %226 = vector.extract_strided_slice %223 {offsets = [0, 0], sizes = [8, 4], strides = [1, 1]} : vector<8x12xf32> to vector<8x4xf32>
    %227 = vector.extract_strided_slice %223 {offsets = [0, 4], sizes = [8, 4], strides = [1, 1]} : vector<8x12xf32> to vector<8x4xf32>
    %228 = vector.extract_strided_slice %223 {offsets = [0, 8], sizes = [8, 4], strides = [1, 1]} : vector<8x12xf32> to vector<8x4xf32>
    %229 = arith.mulf %227, %190 : vector<8x4xf32>
    %230 = arith.mulf %226, %225 : vector<8x4xf32>
    %231 = arith.addf %229, %230 : vector<8x4xf32>
    %232 = math.tanh %231 : vector<8x4xf32>
    %233 = arith.mulf %228, %232 : vector<8x4xf32>
    %234 = tpu.concatenate %233, %212 in 1 : vector<8x4xf32>, vector<8x4xf32> -> vector<8x8xf32>
    %cst_30 = arith.constant dense<0.000000e+00> : vector<8x16xf32>
    %235 = tpu.matmul %234, %3, %cst_30 {dimension_numbers = #tpu.dot_dimension_numbers<[1], [0], [0], [1], [0, 0, 1, 1], [], []>, precision = #tpu.contract_precision<fp32>} : vector<8x8xf32>, vector<8x16xf32>, vector<8x16xf32> -> vector<8x16xf32>
    %236 = vector.broadcast %4 : vector<1x16xf32> to vector<8x16xf32>
    %237 = arith.addf %235, %236 : vector<8x16xf32>
    %238 = vector.extract_strided_slice %237 {offsets = [0, 0], sizes = [8, 12], strides = [1, 1]} : vector<8x16xf32> to vector<8x12xf32>
    %239 = arith.negf %238 : vector<8x12xf32>
    %240 = math.exp %239 : vector<8x12xf32>
    %cst_31 = arith.constant 1.000000e+00 : f32
    %241 = vector.broadcast %cst_31 : f32 to vector<8x12xf32>
    %242 = arith.addf %241, %240 : vector<8x12xf32>
    %243 = arith.divf %241, %242 : vector<8x12xf32>
    %244 = vector.extract_strided_slice %237 {offsets = [0, 12], sizes = [8, 4], strides = [1, 1]} : vector<8x16xf32> to vector<8x4xf32>
    %245 = math.tanh %244 : vector<8x4xf32>
    %246 = vector.extract_strided_slice %243 {offsets = [0, 0], sizes = [8, 4], strides = [1, 1]} : vector<8x12xf32> to vector<8x4xf32>
    %247 = vector.extract_strided_slice %243 {offsets = [0, 4], sizes = [8, 4], strides = [1, 1]} : vector<8x12xf32> to vector<8x4xf32>
    %248 = vector.extract_strided_slice %243 {offsets = [0, 8], sizes = [8, 4], strides = [1, 1]} : vector<8x12xf32> to vector<8x4xf32>
    %249 = arith.mulf %247, %210 : vector<8x4xf32>
    %250 = arith.mulf %246, %245 : vector<8x4xf32>
    %251 = arith.addf %249, %250 : vector<8x4xf32>
    %252 = math.tanh %251 : vector<8x4xf32>
    %253 = arith.mulf %248, %252 : vector<8x4xf32>
    %254 = vector.extract_strided_slice %6 {offsets = [0, 96], sizes = [8, 16], strides = [1, 1]} : vector<8x128xf32> to vector<8x16xf32>
    %cst_32 = arith.constant dense<0.000000e+00> : vector<8x16xf32>
    %255 = tpu.matmul %233, %1, %cst_32 {dimension_numbers = #tpu.dot_dimension_numbers<[1], [0], [0], [1], [0, 0, 1, 1], [], []>, precision = #tpu.contract_precision<fp32>} : vector<8x4xf32>, vector<4x16xf32>, vector<8x16xf32> -> vector<8x16xf32>
    %256 = arith.addf %254, %255 : vector<8x16xf32>
    %257 = vector.broadcast %2 : vector<1x16xf32> to vector<8x16xf32>
    %258 = arith.addf %256, %257 : vector<8x16xf32>
    %259 = vector.extract_strided_slice %258 {offsets = [0, 0], sizes = [8, 12], strides = [1, 1]} : vector<8x16xf32> to vector<8x12xf32>
    %260 = arith.negf %259 : vector<8x12xf32>
    %261 = math.exp %260 : vector<8x12xf32>
    %cst_33 = arith.constant 1.000000e+00 : f32
    %262 = vector.broadcast %cst_33 : f32 to vector<8x12xf32>
    %263 = arith.addf %262, %261 : vector<8x12xf32>
    %264 = arith.divf %262, %263 : vector<8x12xf32>
    %265 = vector.extract_strided_slice %258 {offsets = [0, 12], sizes = [8, 4], strides = [1, 1]} : vector<8x16xf32> to vector<8x4xf32>
    %266 = math.tanh %265 : vector<8x4xf32>
    %267 = vector.extract_strided_slice %264 {offsets = [0, 0], sizes = [8, 4], strides = [1, 1]} : vector<8x12xf32> to vector<8x4xf32>
    %268 = vector.extract_strided_slice %264 {offsets = [0, 4], sizes = [8, 4], strides = [1, 1]} : vector<8x12xf32> to vector<8x4xf32>
    %269 = vector.extract_strided_slice %264 {offsets = [0, 8], sizes = [8, 4], strides = [1, 1]} : vector<8x12xf32> to vector<8x4xf32>
    %270 = arith.mulf %268, %231 : vector<8x4xf32>
    %271 = arith.mulf %267, %266 : vector<8x4xf32>
    %272 = arith.addf %270, %271 : vector<8x4xf32>
    %273 = math.tanh %272 : vector<8x4xf32>
    %274 = arith.mulf %269, %273 : vector<8x4xf32>
    %275 = tpu.concatenate %274, %253 in 1 : vector<8x4xf32>, vector<8x4xf32> -> vector<8x8xf32>
    %cst_34 = arith.constant dense<0.000000e+00> : vector<8x16xf32>
    %276 = tpu.matmul %275, %3, %cst_34 {dimension_numbers = #tpu.dot_dimension_numbers<[1], [0], [0], [1], [0, 0, 1, 1], [], []>, precision = #tpu.contract_precision<fp32>} : vector<8x8xf32>, vector<8x16xf32>, vector<8x16xf32> -> vector<8x16xf32>
    %277 = vector.broadcast %4 : vector<1x16xf32> to vector<8x16xf32>
    %278 = arith.addf %276, %277 : vector<8x16xf32>
    %279 = vector.extract_strided_slice %278 {offsets = [0, 0], sizes = [8, 12], strides = [1, 1]} : vector<8x16xf32> to vector<8x12xf32>
    %280 = arith.negf %279 : vector<8x12xf32>
    %281 = math.exp %280 : vector<8x12xf32>
    %cst_35 = arith.constant 1.000000e+00 : f32
    %282 = vector.broadcast %cst_35 : f32 to vector<8x12xf32>
    %283 = arith.addf %282, %281 : vector<8x12xf32>
    %284 = arith.divf %282, %283 : vector<8x12xf32>
    %285 = vector.extract_strided_slice %278 {offsets = [0, 12], sizes = [8, 4], strides = [1, 1]} : vector<8x16xf32> to vector<8x4xf32>
    %286 = math.tanh %285 : vector<8x4xf32>
    %287 = vector.extract_strided_slice %284 {offsets = [0, 0], sizes = [8, 4], strides = [1, 1]} : vector<8x12xf32> to vector<8x4xf32>
    %288 = vector.extract_strided_slice %284 {offsets = [0, 4], sizes = [8, 4], strides = [1, 1]} : vector<8x12xf32> to vector<8x4xf32>
    %289 = vector.extract_strided_slice %284 {offsets = [0, 8], sizes = [8, 4], strides = [1, 1]} : vector<8x12xf32> to vector<8x4xf32>
    %290 = arith.mulf %288, %251 : vector<8x4xf32>
    %291 = arith.mulf %287, %286 : vector<8x4xf32>
    %292 = arith.addf %290, %291 : vector<8x4xf32>
    %293 = math.tanh %292 : vector<8x4xf32>
    %294 = arith.mulf %289, %293 : vector<8x4xf32>
    %295 = vector.extract_strided_slice %6 {offsets = [0, 112], sizes = [8, 16], strides = [1, 1]} : vector<8x128xf32> to vector<8x16xf32>
    %cst_36 = arith.constant dense<0.000000e+00> : vector<8x16xf32>
    %296 = tpu.matmul %274, %1, %cst_36 {dimension_numbers = #tpu.dot_dimension_numbers<[1], [0], [0], [1], [0, 0, 1, 1], [], []>, precision = #tpu.contract_precision<fp32>} : vector<8x4xf32>, vector<4x16xf32>, vector<8x16xf32> -> vector<8x16xf32>
    %297 = arith.addf %295, %296 : vector<8x16xf32>
    %298 = vector.broadcast %2 : vector<1x16xf32> to vector<8x16xf32>
    %299 = arith.addf %297, %298 : vector<8x16xf32>
    %300 = vector.extract_strided_slice %299 {offsets = [0, 0], sizes = [8, 12], strides = [1, 1]} : vector<8x16xf32> to vector<8x12xf32>
    %301 = arith.negf %300 : vector<8x12xf32>
    %302 = math.exp %301 : vector<8x12xf32>
    %cst_37 = arith.constant 1.000000e+00 : f32
    %303 = vector.broadcast %cst_37 : f32 to vector<8x12xf32>
    %304 = arith.addf %303, %302 : vector<8x12xf32>
    %305 = arith.divf %303, %304 : vector<8x12xf32>
    %306 = vector.extract_strided_slice %299 {offsets = [0, 12], sizes = [8, 4], strides = [1, 1]} : vector<8x16xf32> to vector<8x4xf32>
    %307 = math.tanh %306 : vector<8x4xf32>
    %308 = vector.extract_strided_slice %305 {offsets = [0, 0], sizes = [8, 4], strides = [1, 1]} : vector<8x12xf32> to vector<8x4xf32>
    %309 = vector.extract_strided_slice %305 {offsets = [0, 4], sizes = [8, 4], strides = [1, 1]} : vector<8x12xf32> to vector<8x4xf32>
    %310 = vector.extract_strided_slice %305 {offsets = [0, 8], sizes = [8, 4], strides = [1, 1]} : vector<8x12xf32> to vector<8x4xf32>
    %311 = arith.mulf %309, %272 : vector<8x4xf32>
    %312 = arith.mulf %308, %307 : vector<8x4xf32>
    %313 = arith.addf %311, %312 : vector<8x4xf32>
    %314 = math.tanh %313 : vector<8x4xf32>
    %315 = arith.mulf %310, %314 : vector<8x4xf32>
    %316 = tpu.concatenate %315, %294 in 1 : vector<8x4xf32>, vector<8x4xf32> -> vector<8x8xf32>
    %cst_38 = arith.constant dense<0.000000e+00> : vector<8x16xf32>
    %317 = tpu.matmul %316, %3, %cst_38 {dimension_numbers = #tpu.dot_dimension_numbers<[1], [0], [0], [1], [0, 0, 1, 1], [], []>, precision = #tpu.contract_precision<fp32>} : vector<8x8xf32>, vector<8x16xf32>, vector<8x16xf32> -> vector<8x16xf32>
    %318 = vector.broadcast %4 : vector<1x16xf32> to vector<8x16xf32>
    %319 = arith.addf %317, %318 : vector<8x16xf32>
    %320 = vector.extract_strided_slice %319 {offsets = [0, 0], sizes = [8, 12], strides = [1, 1]} : vector<8x16xf32> to vector<8x12xf32>
    %321 = arith.negf %320 : vector<8x12xf32>
    %322 = math.exp %321 : vector<8x12xf32>
    %cst_39 = arith.constant 1.000000e+00 : f32
    %323 = vector.broadcast %cst_39 : f32 to vector<8x12xf32>
    %324 = arith.addf %323, %322 : vector<8x12xf32>
    %325 = arith.divf %323, %324 : vector<8x12xf32>
    %326 = vector.extract_strided_slice %319 {offsets = [0, 12], sizes = [8, 4], strides = [1, 1]} : vector<8x16xf32> to vector<8x4xf32>
    %327 = math.tanh %326 : vector<8x4xf32>
    %328 = vector.extract_strided_slice %325 {offsets = [0, 0], sizes = [8, 4], strides = [1, 1]} : vector<8x12xf32> to vector<8x4xf32>
    %329 = vector.extract_strided_slice %325 {offsets = [0, 4], sizes = [8, 4], strides = [1, 1]} : vector<8x12xf32> to vector<8x4xf32>
    %330 = vector.extract_strided_slice %325 {offsets = [0, 8], sizes = [8, 4], strides = [1, 1]} : vector<8x12xf32> to vector<8x4xf32>
    %331 = arith.mulf %329, %292 : vector<8x4xf32>
    %332 = arith.mulf %328, %327 : vector<8x4xf32>
    %333 = arith.addf %331, %332 : vector<8x4xf32>
    %334 = math.tanh %333 : vector<8x4xf32>
    %335 = arith.mulf %330, %334 : vector<8x4xf32>
    %c40 = arith.constant 40 : index
    %c0_40 = arith.constant 0 : index
    %336 = vector.load %arg2[%c40, %c0_40] : memref<216x128xf32, #tpu.memory_space<vmem>>, vector<4x2xf32>
    %cst_41 = arith.constant dense<0.000000e+00> : vector<8x2xf32>
    %337 = tpu.matmul %335, %336, %cst_41 {dimension_numbers = #tpu.dot_dimension_numbers<[1], [0], [0], [1], [0, 0, 1, 1], [], []>, precision = #tpu.contract_precision<fp32>} : vector<8x4xf32>, vector<4x2xf32>, vector<8x2xf32> -> vector<8x2xf32>
    %c48 = arith.constant 48 : index
    %c0_42 = arith.constant 0 : index
    %338 = vector.load %arg2[%c48, %c0_42] : memref<216x128xf32, #tpu.memory_space<vmem>>, vector<1x2xf32>
    %339 = vector.broadcast %338 : vector<1x2xf32> to vector<8x2xf32>
    %340 = arith.addf %337, %339 : vector<8x2xf32>
    %c0_43 = arith.constant 0 : index
    %c0_44 = arith.constant 0 : index
    %341 = vector.load %arg3[%c0_43, %c0_44] : memref<8x2xf32, #tpu.memory_space<vmem>>, vector<8x2xf32>
    tpu.vector_store %arg3[%c0_43, %c0_44], %340 {strides = array<i32>} : memref<8x2xf32, #tpu.memory_space<vmem>>, vector<8x2xf32>,
    %c64 = arith.constant 64 : index
    %c0_45 = arith.constant 0 : index
    %342 = vector.load %arg2[%c64, %c0_45] : memref<216x128xf32, #tpu.memory_space<vmem>>, vector<20x40xf32>
    %c88 = arith.constant 88 : index
    %c0_46 = arith.constant 0 : index
    %343 = vector.load %arg2[%c88, %c0_46] : memref<216x128xf32, #tpu.memory_space<vmem>>, vector<1x40xf32>
    %c96 = arith.constant 96 : index
    %c0_47 = arith.constant 0 : index
    %344 = vector.load %arg2[%c96, %c0_47] : memref<216x128xf32, #tpu.memory_space<vmem>>, vector<20x40xf32>
    %c120 = arith.constant 120 : index
    %c0_48 = arith.constant 0 : index
    %345 = vector.load %arg2[%c120, %c0_48] : memref<216x128xf32, #tpu.memory_space<vmem>>, vector<1x40xf32>
    %cst_49 = arith.constant 0.000000e+00 : f32
    %346 = vector.broadcast %cst_49 : f32 to vector<8x10xf32>
    %c56 = arith.constant 56 : index
    %c0_50 = arith.constant 0 : index
    %347 = vector.load %arg2[%c56, %c0_50] : memref<216x128xf32, #tpu.memory_space<vmem>>, vector<4x40xf32>
    %cst_51 = arith.constant dense<0.000000e+00> : vector<8x40xf32>
    %348 = tpu.matmul %335, %347, %cst_51 {dimension_numbers = #tpu.dot_dimension_numbers<[1], [0], [0], [1], [0, 0, 1, 1], [], []>, precision = #tpu.contract_precision<fp32>} : vector<8x4xf32>, vector<4x40xf32>, vector<8x40xf32> -> vector<8x40xf32>
    %349 = vector.broadcast %343 : vector<1x40xf32> to vector<8x40xf32>
    %350 = arith.addf %348, %349 : vector<8x40xf32>
    %351 = vector.extract_strided_slice %350 {offsets = [0, 0], sizes = [8, 30], strides = [1, 1]} : vector<8x40xf32> to vector<8x30xf32>
    %352 = arith.negf %351 : vector<8x30xf32>
    %353 = math.exp %352 : vector<8x30xf32>
    %cst_52 = arith.constant 1.000000e+00 : f32
    %354 = vector.broadcast %cst_52 : f32 to vector<8x30xf32>
    %355 = arith.addf %354, %353 : vector<8x30xf32>
    %356 = arith.divf %354, %355 : vector<8x30xf32>
    %357 = vector.extract_strided_slice %350 {offsets = [0, 30], sizes = [8, 10], strides = [1, 1]} : vector<8x40xf32> to vector<8x10xf32>
    %358 = math.tanh %357 : vector<8x10xf32>
    %359 = vector.extract_strided_slice %356 {offsets = [0, 0], sizes = [8, 10], strides = [1, 1]} : vector<8x30xf32> to vector<8x10xf32>
    %360 = vector.extract_strided_slice %356 {offsets = [0, 10], sizes = [8, 10], strides = [1, 1]} : vector<8x30xf32> to vector<8x10xf32>
    %361 = vector.extract_strided_slice %356 {offsets = [0, 20], sizes = [8, 10], strides = [1, 1]} : vector<8x30xf32> to vector<8x10xf32>
    %362 = arith.mulf %360, %346 : vector<8x10xf32>
    %363 = arith.mulf %359, %358 : vector<8x10xf32>
    %364 = arith.addf %362, %363 : vector<8x10xf32>
    %365 = math.tanh %364 : vector<8x10xf32>
    %366 = arith.mulf %361, %365 : vector<8x10xf32>
    %367 = tpu.concatenate %366, %346 in 1 : vector<8x10xf32>, vector<8x10xf32> -> vector<8x20xf32>
    %cst_53 = arith.constant dense<0.000000e+00> : vector<8x40xf32>
    %368 = tpu.matmul %367, %344, %cst_53 {dimension_numbers = #tpu.dot_dimension_numbers<[1], [0], [0], [1], [0, 0, 1, 1], [], []>, precision = #tpu.contract_precision<fp32>} : vector<8x20xf32>, vector<20x40xf32>, vector<8x40xf32> -> vector<8x40xf32>
    %369 = vector.broadcast %345 : vector<1x40xf32> to vector<8x40xf32>
    %370 = arith.addf %368, %369 : vector<8x40xf32>
    %371 = vector.extract_strided_slice %370 {offsets = [0, 0], sizes = [8, 30], strides = [1, 1]} : vector<8x40xf32> to vector<8x30xf32>
    %372 = arith.negf %371 : vector<8x30xf32>
    %373 = math.exp %372 : vector<8x30xf32>
    %cst_54 = arith.constant 1.000000e+00 : f32
    %374 = vector.broadcast %cst_54 : f32 to vector<8x30xf32>
    %375 = arith.addf %374, %373 : vector<8x30xf32>
    %376 = arith.divf %374, %375 : vector<8x30xf32>
    %377 = vector.extract_strided_slice %370 {offsets = [0, 30], sizes = [8, 10], strides = [1, 1]} : vector<8x40xf32> to vector<8x10xf32>
    %378 = math.tanh %377 : vector<8x10xf32>
    %379 = vector.extract_strided_slice %376 {offsets = [0, 0], sizes = [8, 10], strides = [1, 1]} : vector<8x30xf32> to vector<8x10xf32>
    %380 = vector.extract_strided_slice %376 {offsets = [0, 10], sizes = [8, 10], strides = [1, 1]} : vector<8x30xf32> to vector<8x10xf32>
    %381 = vector.extract_strided_slice %376 {offsets = [0, 20], sizes = [8, 10], strides = [1, 1]} : vector<8x30xf32> to vector<8x10xf32>
    %382 = arith.mulf %380, %346 : vector<8x10xf32>
    %383 = arith.mulf %379, %378 : vector<8x10xf32>
    %384 = arith.addf %382, %383 : vector<8x10xf32>
    %385 = math.tanh %384 : vector<8x10xf32>
    %386 = arith.mulf %381, %385 : vector<8x10xf32>
    %387 = tpu.concatenate %366, %386 in 1 : vector<8x10xf32>, vector<8x10xf32> -> vector<8x20xf32>
    %cst_55 = arith.constant dense<0.000000e+00> : vector<8x40xf32>
    %388 = tpu.matmul %387, %342, %cst_55 {dimension_numbers = #tpu.dot_dimension_numbers<[1], [0], [0], [1], [0, 0, 1, 1], [], []>, precision = #tpu.contract_precision<fp32>} : vector<8x20xf32>, vector<20x40xf32>, vector<8x40xf32> -> vector<8x40xf32>
    %389 = vector.broadcast %343 : vector<1x40xf32> to vector<8x40xf32>
    %390 = arith.addf %388, %389 : vector<8x40xf32>
    %391 = vector.extract_strided_slice %390 {offsets = [0, 0], sizes = [8, 30], strides = [1, 1]} : vector<8x40xf32> to vector<8x30xf32>
    %392 = arith.negf %391 : vector<8x30xf32>
    %393 = math.exp %392 : vector<8x30xf32>
    %cst_56 = arith.constant 1.000000e+00 : f32
    %394 = vector.broadcast %cst_56 : f32 to vector<8x30xf32>
    %395 = arith.addf %394, %393 : vector<8x30xf32>
    %396 = arith.divf %394, %395 : vector<8x30xf32>
    %397 = vector.extract_strided_slice %390 {offsets = [0, 30], sizes = [8, 10], strides = [1, 1]} : vector<8x40xf32> to vector<8x10xf32>
    %398 = math.tanh %397 : vector<8x10xf32>
    %399 = vector.extract_strided_slice %396 {offsets = [0, 0], sizes = [8, 10], strides = [1, 1]} : vector<8x30xf32> to vector<8x10xf32>
    %400 = vector.extract_strided_slice %396 {offsets = [0, 10], sizes = [8, 10], strides = [1, 1]} : vector<8x30xf32> to vector<8x10xf32>
    %401 = vector.extract_strided_slice %396 {offsets = [0, 20], sizes = [8, 10], strides = [1, 1]} : vector<8x30xf32> to vector<8x10xf32>
    %402 = arith.mulf %400, %364 : vector<8x10xf32>
    %403 = arith.mulf %399, %398 : vector<8x10xf32>
    %404 = arith.addf %402, %403 : vector<8x10xf32>
    %405 = math.tanh %404 : vector<8x10xf32>
    %406 = arith.mulf %401, %405 : vector<8x10xf32>
    %407 = tpu.concatenate %406, %386 in 1 : vector<8x10xf32>, vector<8x10xf32> -> vector<8x20xf32>
    %cst_57 = arith.constant dense<0.000000e+00> : vector<8x40xf32>
    %408 = tpu.matmul %407, %344, %cst_57 {dimension_numbers = #tpu.dot_dimension_numbers<[1], [0], [0], [1], [0, 0, 1, 1], [], []>, precision = #tpu.contract_precision<fp32>} : vector<8x20xf32>, vector<20x40xf32>, vector<8x40xf32> -> vector<8x40xf32>
    %409 = vector.broadcast %345 : vector<1x40xf32> to vector<8x40xf32>
    %410 = arith.addf %408, %409 : vector<8x40xf32>
    %411 = vector.extract_strided_slice %410 {offsets = [0, 0], sizes = [8, 30], strides = [1, 1]} : vector<8x40xf32> to vector<8x30xf32>
    %412 = arith.negf %411 : vector<8x30xf32>
    %413 = math.exp %412 : vector<8x30xf32>
    %cst_58 = arith.constant 1.000000e+00 : f32
    %414 = vector.broadcast %cst_58 : f32 to vector<8x30xf32>
    %415 = arith.addf %414, %413 : vector<8x30xf32>
    %416 = arith.divf %414, %415 : vector<8x30xf32>
    %417 = vector.extract_strided_slice %410 {offsets = [0, 30], sizes = [8, 10], strides = [1, 1]} : vector<8x40xf32> to vector<8x10xf32>
    %418 = math.tanh %417 : vector<8x10xf32>
    %419 = vector.extract_strided_slice %416 {offsets = [0, 0], sizes = [8, 10], strides = [1, 1]} : vector<8x30xf32> to vector<8x10xf32>
    %420 = vector.extract_strided_slice %416 {offsets = [0, 10], sizes = [8, 10], strides = [1, 1]} : vector<8x30xf32> to vector<8x10xf32>
    %421 = vector.extract_strided_slice %416 {offsets = [0, 20], sizes = [8, 10], strides = [1, 1]} : vector<8x30xf32> to vector<8x10xf32>
    %422 = arith.mulf %420, %384 : vector<8x10xf32>
    %423 = arith.mulf %419, %418 : vector<8x10xf32>
    %424 = arith.addf %422, %423 : vector<8x10xf32>
    %425 = math.tanh %424 : vector<8x10xf32>
    %426 = arith.mulf %421, %425 : vector<8x10xf32>
    %427 = tpu.concatenate %406, %426 in 1 : vector<8x10xf32>, vector<8x10xf32> -> vector<8x20xf32>
    %cst_59 = arith.constant dense<0.000000e+00> : vector<8x40xf32>
    %428 = tpu.matmul %427, %342, %cst_59 {dimension_numbers = #tpu.dot_dimension_numbers<[1], [0], [0], [1], [0, 0, 1, 1], [], []>, precision = #tpu.contract_precision<fp32>} : vector<8x20xf32>, vector<20x40xf32>, vector<8x40xf32> -> vector<8x40xf32>
    %429 = vector.broadcast %343 : vector<1x40xf32> to vector<8x40xf32>
    %430 = arith.addf %428, %429 : vector<8x40xf32>
    %431 = vector.extract_strided_slice %430 {offsets = [0, 0], sizes = [8, 30], strides = [1, 1]} : vector<8x40xf32> to vector<8x30xf32>
    %432 = arith.negf %431 : vector<8x30xf32>
    %433 = math.exp %432 : vector<8x30xf32>
    %cst_60 = arith.constant 1.000000e+00 : f32
    %434 = vector.broadcast %cst_60 : f32 to vector<8x30xf32>
    %435 = arith.addf %434, %433 : vector<8x30xf32>
    %436 = arith.divf %434, %435 : vector<8x30xf32>
    %437 = vector.extract_strided_slice %430 {offsets = [0, 30], sizes = [8, 10], strides = [1, 1]} : vector<8x40xf32> to vector<8x10xf32>
    %438 = math.tanh %437 : vector<8x10xf32>
    %439 = vector.extract_strided_slice %436 {offsets = [0, 0], sizes = [8, 10], strides = [1, 1]} : vector<8x30xf32> to vector<8x10xf32>
    %440 = vector.extract_strided_slice %436 {offsets = [0, 10], sizes = [8, 10], strides = [1, 1]} : vector<8x30xf32> to vector<8x10xf32>
    %441 = vector.extract_strided_slice %436 {offsets = [0, 20], sizes = [8, 10], strides = [1, 1]} : vector<8x30xf32> to vector<8x10xf32>
    %442 = arith.mulf %440, %404 : vector<8x10xf32>
    %443 = arith.mulf %439, %438 : vector<8x10xf32>
    %444 = arith.addf %442, %443 : vector<8x10xf32>
    %445 = math.tanh %444 : vector<8x10xf32>
    %446 = arith.mulf %441, %445 : vector<8x10xf32>
    %447 = tpu.concatenate %446, %426 in 1 : vector<8x10xf32>, vector<8x10xf32> -> vector<8x20xf32>
    %cst_61 = arith.constant dense<0.000000e+00> : vector<8x40xf32>
    %448 = tpu.matmul %447, %344, %cst_61 {dimension_numbers = #tpu.dot_dimension_numbers<[1], [0], [0], [1], [0, 0, 1, 1], [], []>, precision = #tpu.contract_precision<fp32>} : vector<8x20xf32>, vector<20x40xf32>, vector<8x40xf32> -> vector<8x40xf32>
    %449 = vector.broadcast %345 : vector<1x40xf32> to vector<8x40xf32>
    %450 = arith.addf %448, %449 : vector<8x40xf32>
    %451 = vector.extract_strided_slice %450 {offsets = [0, 0], sizes = [8, 30], strides = [1, 1]} : vector<8x40xf32> to vector<8x30xf32>
    %452 = arith.negf %451 : vector<8x30xf32>
    %453 = math.exp %452 : vector<8x30xf32>
    %cst_62 = arith.constant 1.000000e+00 : f32
    %454 = vector.broadcast %cst_62 : f32 to vector<8x30xf32>
    %455 = arith.addf %454, %453 : vector<8x30xf32>
    %456 = arith.divf %454, %455 : vector<8x30xf32>
    %457 = vector.extract_strided_slice %450 {offsets = [0, 30], sizes = [8, 10], strides = [1, 1]} : vector<8x40xf32> to vector<8x10xf32>
    %458 = math.tanh %457 : vector<8x10xf32>
    %459 = vector.extract_strided_slice %456 {offsets = [0, 0], sizes = [8, 10], strides = [1, 1]} : vector<8x30xf32> to vector<8x10xf32>
    %460 = vector.extract_strided_slice %456 {offsets = [0, 10], sizes = [8, 10], strides = [1, 1]} : vector<8x30xf32> to vector<8x10xf32>
    %461 = vector.extract_strided_slice %456 {offsets = [0, 20], sizes = [8, 10], strides = [1, 1]} : vector<8x30xf32> to vector<8x10xf32>
    %462 = arith.mulf %460, %424 : vector<8x10xf32>
    %463 = arith.mulf %459, %458 : vector<8x10xf32>
    %464 = arith.addf %462, %463 : vector<8x10xf32>
    %465 = math.tanh %464 : vector<8x10xf32>
    %466 = arith.mulf %461, %465 : vector<8x10xf32>
    %467 = tpu.concatenate %446, %466 in 1 : vector<8x10xf32>, vector<8x10xf32> -> vector<8x20xf32>
    %cst_63 = arith.constant dense<0.000000e+00> : vector<8x40xf32>
    %468 = tpu.matmul %467, %342, %cst_63 {dimension_numbers = #tpu.dot_dimension_numbers<[1], [0], [0], [1], [0, 0, 1, 1], [], []>, precision = #tpu.contract_precision<fp32>} : vector<8x20xf32>, vector<20x40xf32>, vector<8x40xf32> -> vector<8x40xf32>
    %469 = vector.broadcast %343 : vector<1x40xf32> to vector<8x40xf32>
    %470 = arith.addf %468, %469 : vector<8x40xf32>
    %471 = vector.extract_strided_slice %470 {offsets = [0, 0], sizes = [8, 30], strides = [1, 1]} : vector<8x40xf32> to vector<8x30xf32>
    %472 = arith.negf %471 : vector<8x30xf32>
    %473 = math.exp %472 : vector<8x30xf32>
    %cst_64 = arith.constant 1.000000e+00 : f32
    %474 = vector.broadcast %cst_64 : f32 to vector<8x30xf32>
    %475 = arith.addf %474, %473 : vector<8x30xf32>
    %476 = arith.divf %474, %475 : vector<8x30xf32>
    %477 = vector.extract_strided_slice %470 {offsets = [0, 30], sizes = [8, 10], strides = [1, 1]} : vector<8x40xf32> to vector<8x10xf32>
    %478 = math.tanh %477 : vector<8x10xf32>
    %479 = vector.extract_strided_slice %476 {offsets = [0, 0], sizes = [8, 10], strides = [1, 1]} : vector<8x30xf32> to vector<8x10xf32>
    %480 = vector.extract_strided_slice %476 {offsets = [0, 10], sizes = [8, 10], strides = [1, 1]} : vector<8x30xf32> to vector<8x10xf32>
    %481 = vector.extract_strided_slice %476 {offsets = [0, 20], sizes = [8, 10], strides = [1, 1]} : vector<8x30xf32> to vector<8x10xf32>
    %482 = arith.mulf %480, %444 : vector<8x10xf32>
    %483 = arith.mulf %479, %478 : vector<8x10xf32>
    %484 = arith.addf %482, %483 : vector<8x10xf32>
    %485 = math.tanh %484 : vector<8x10xf32>
    %486 = arith.mulf %481, %485 : vector<8x10xf32>
    %487 = tpu.concatenate %486, %466 in 1 : vector<8x10xf32>, vector<8x10xf32> -> vector<8x20xf32>
    %cst_65 = arith.constant dense<0.000000e+00> : vector<8x40xf32>
    %488 = tpu.matmul %487, %344, %cst_65 {dimension_numbers = #tpu.dot_dimension_numbers<[1], [0], [0], [1], [0, 0, 1, 1], [], []>, precision = #tpu.contract_precision<fp32>} : vector<8x20xf32>, vector<20x40xf32>, vector<8x40xf32> -> vector<8x40xf32>
    %489 = vector.broadcast %345 : vector<1x40xf32> to vector<8x40xf32>
    %490 = arith.addf %488, %489 : vector<8x40xf32>
    %491 = vector.extract_strided_slice %490 {offsets = [0, 0], sizes = [8, 30], strides = [1, 1]} : vector<8x40xf32> to vector<8x30xf32>
    %492 = arith.negf %491 : vector<8x30xf32>
    %493 = math.exp %492 : vector<8x30xf32>
    %cst_66 = arith.constant 1.000000e+00 : f32
    %494 = vector.broadcast %cst_66 : f32 to vector<8x30xf32>
    %495 = arith.addf %494, %493 : vector<8x30xf32>
    %496 = arith.divf %494, %495 : vector<8x30xf32>
    %497 = vector.extract_strided_slice %490 {offsets = [0, 30], sizes = [8, 10], strides = [1, 1]} : vector<8x40xf32> to vector<8x10xf32>
    %498 = math.tanh %497 : vector<8x10xf32>
    %499 = vector.extract_strided_slice %496 {offsets = [0, 0], sizes = [8, 10], strides = [1, 1]} : vector<8x30xf32> to vector<8x10xf32>
    %500 = vector.extract_strided_slice %496 {offsets = [0, 10], sizes = [8, 10], strides = [1, 1]} : vector<8x30xf32> to vector<8x10xf32>
    %501 = vector.extract_strided_slice %496 {offsets = [0, 20], sizes = [8, 10], strides = [1, 1]} : vector<8x30xf32> to vector<8x10xf32>
    %502 = arith.mulf %500, %464 : vector<8x10xf32>
    %503 = arith.mulf %499, %498 : vector<8x10xf32>
    %504 = arith.addf %502, %503 : vector<8x10xf32>
    %505 = math.tanh %504 : vector<8x10xf32>
    %506 = arith.mulf %501, %505 : vector<8x10xf32>
    %507 = tpu.concatenate %486, %506 in 1 : vector<8x10xf32>, vector<8x10xf32> -> vector<8x20xf32>
    %cst_67 = arith.constant dense<0.000000e+00> : vector<8x40xf32>
    %508 = tpu.matmul %507, %342, %cst_67 {dimension_numbers = #tpu.dot_dimension_numbers<[1], [0], [0], [1], [0, 0, 1, 1], [], []>, precision = #tpu.contract_precision<fp32>} : vector<8x20xf32>, vector<20x40xf32>, vector<8x40xf32> -> vector<8x40xf32>
    %509 = vector.broadcast %343 : vector<1x40xf32> to vector<8x40xf32>
    %510 = arith.addf %508, %509 : vector<8x40xf32>
    %511 = vector.extract_strided_slice %510 {offsets = [0, 0], sizes = [8, 30], strides = [1, 1]} : vector<8x40xf32> to vector<8x30xf32>
    %512 = arith.negf %511 : vector<8x30xf32>
    %513 = math.exp %512 : vector<8x30xf32>
    %cst_68 = arith.constant 1.000000e+00 : f32
    %514 = vector.broadcast %cst_68 : f32 to vector<8x30xf32>
    %515 = arith.addf %514, %513 : vector<8x30xf32>
    %516 = arith.divf %514, %515 : vector<8x30xf32>
    %517 = vector.extract_strided_slice %510 {offsets = [0, 30], sizes = [8, 10], strides = [1, 1]} : vector<8x40xf32> to vector<8x10xf32>
    %518 = math.tanh %517 : vector<8x10xf32>
    %519 = vector.extract_strided_slice %516 {offsets = [0, 0], sizes = [8, 10], strides = [1, 1]} : vector<8x30xf32> to vector<8x10xf32>
    %520 = vector.extract_strided_slice %516 {offsets = [0, 10], sizes = [8, 10], strides = [1, 1]} : vector<8x30xf32> to vector<8x10xf32>
    %521 = vector.extract_strided_slice %516 {offsets = [0, 20], sizes = [8, 10], strides = [1, 1]} : vector<8x30xf32> to vector<8x10xf32>
    %522 = arith.mulf %520, %484 : vector<8x10xf32>
    %523 = arith.mulf %519, %518 : vector<8x10xf32>
    %524 = arith.addf %522, %523 : vector<8x10xf32>
    %525 = math.tanh %524 : vector<8x10xf32>
    %526 = arith.mulf %521, %525 : vector<8x10xf32>
    %527 = tpu.concatenate %526, %506 in 1 : vector<8x10xf32>, vector<8x10xf32> -> vector<8x20xf32>
    %cst_69 = arith.constant dense<0.000000e+00> : vector<8x40xf32>
    %528 = tpu.matmul %527, %344, %cst_69 {dimension_numbers = #tpu.dot_dimension_numbers<[1], [0], [0], [1], [0, 0, 1, 1], [], []>, precision = #tpu.contract_precision<fp32>} : vector<8x20xf32>, vector<20x40xf32>, vector<8x40xf32> -> vector<8x40xf32>
    %529 = vector.broadcast %345 : vector<1x40xf32> to vector<8x40xf32>
    %530 = arith.addf %528, %529 : vector<8x40xf32>
    %531 = vector.extract_strided_slice %530 {offsets = [0, 0], sizes = [8, 30], strides = [1, 1]} : vector<8x40xf32> to vector<8x30xf32>
    %532 = arith.negf %531 : vector<8x30xf32>
    %533 = math.exp %532 : vector<8x30xf32>
    %cst_70 = arith.constant 1.000000e+00 : f32
    %534 = vector.broadcast %cst_70 : f32 to vector<8x30xf32>
    %535 = arith.addf %534, %533 : vector<8x30xf32>
    %536 = arith.divf %534, %535 : vector<8x30xf32>
    %537 = vector.extract_strided_slice %530 {offsets = [0, 30], sizes = [8, 10], strides = [1, 1]} : vector<8x40xf32> to vector<8x10xf32>
    %538 = math.tanh %537 : vector<8x10xf32>
    %539 = vector.extract_strided_slice %536 {offsets = [0, 0], sizes = [8, 10], strides = [1, 1]} : vector<8x30xf32> to vector<8x10xf32>
    %540 = vector.extract_strided_slice %536 {offsets = [0, 10], sizes = [8, 10], strides = [1, 1]} : vector<8x30xf32> to vector<8x10xf32>
    %541 = vector.extract_strided_slice %536 {offsets = [0, 20], sizes = [8, 10], strides = [1, 1]} : vector<8x30xf32> to vector<8x10xf32>
    %542 = arith.mulf %540, %504 : vector<8x10xf32>
    %543 = arith.mulf %539, %538 : vector<8x10xf32>
    %544 = arith.addf %542, %543 : vector<8x10xf32>
    %545 = math.tanh %544 : vector<8x10xf32>
    %546 = arith.mulf %541, %545 : vector<8x10xf32>
    %547 = tpu.concatenate %526, %546 in 1 : vector<8x10xf32>, vector<8x10xf32> -> vector<8x20xf32>
    %cst_71 = arith.constant dense<0.000000e+00> : vector<8x40xf32>
    %548 = tpu.matmul %547, %342, %cst_71 {dimension_numbers = #tpu.dot_dimension_numbers<[1], [0], [0], [1], [0, 0, 1, 1], [], []>, precision = #tpu.contract_precision<fp32>} : vector<8x20xf32>, vector<20x40xf32>, vector<8x40xf32> -> vector<8x40xf32>
    %549 = vector.broadcast %343 : vector<1x40xf32> to vector<8x40xf32>
    %550 = arith.addf %548, %549 : vector<8x40xf32>
    %551 = vector.extract_strided_slice %550 {offsets = [0, 0], sizes = [8, 30], strides = [1, 1]} : vector<8x40xf32> to vector<8x30xf32>
    %552 = arith.negf %551 : vector<8x30xf32>
    %553 = math.exp %552 : vector<8x30xf32>
    %cst_72 = arith.constant 1.000000e+00 : f32
    %554 = vector.broadcast %cst_72 : f32 to vector<8x30xf32>
    %555 = arith.addf %554, %553 : vector<8x30xf32>
    %556 = arith.divf %554, %555 : vector<8x30xf32>
    %557 = vector.extract_strided_slice %550 {offsets = [0, 30], sizes = [8, 10], strides = [1, 1]} : vector<8x40xf32> to vector<8x10xf32>
    %558 = math.tanh %557 : vector<8x10xf32>
    %559 = vector.extract_strided_slice %556 {offsets = [0, 0], sizes = [8, 10], strides = [1, 1]} : vector<8x30xf32> to vector<8x10xf32>
    %560 = vector.extract_strided_slice %556 {offsets = [0, 10], sizes = [8, 10], strides = [1, 1]} : vector<8x30xf32> to vector<8x10xf32>
    %561 = vector.extract_strided_slice %556 {offsets = [0, 20], sizes = [8, 10], strides = [1, 1]} : vector<8x30xf32> to vector<8x10xf32>
    %562 = arith.mulf %560, %524 : vector<8x10xf32>
    %563 = arith.mulf %559, %558 : vector<8x10xf32>
    %564 = arith.addf %562, %563 : vector<8x10xf32>
    %565 = math.tanh %564 : vector<8x10xf32>
    %566 = arith.mulf %561, %565 : vector<8x10xf32>
    %567 = tpu.concatenate %566, %546 in 1 : vector<8x10xf32>, vector<8x10xf32> -> vector<8x20xf32>
    %cst_73 = arith.constant dense<0.000000e+00> : vector<8x40xf32>
    %568 = tpu.matmul %567, %344, %cst_73 {dimension_numbers = #tpu.dot_dimension_numbers<[1], [0], [0], [1], [0, 0, 1, 1], [], []>, precision = #tpu.contract_precision<fp32>} : vector<8x20xf32>, vector<20x40xf32>, vector<8x40xf32> -> vector<8x40xf32>
    %569 = vector.broadcast %345 : vector<1x40xf32> to vector<8x40xf32>
    %570 = arith.addf %568, %569 : vector<8x40xf32>
    %571 = vector.extract_strided_slice %570 {offsets = [0, 0], sizes = [8, 30], strides = [1, 1]} : vector<8x40xf32> to vector<8x30xf32>
    %572 = arith.negf %571 : vector<8x30xf32>
    %573 = math.exp %572 : vector<8x30xf32>
    %cst_74 = arith.constant 1.000000e+00 : f32
    %574 = vector.broadcast %cst_74 : f32 to vector<8x30xf32>
    %575 = arith.addf %574, %573 : vector<8x30xf32>
    %576 = arith.divf %574, %575 : vector<8x30xf32>
    %577 = vector.extract_strided_slice %570 {offsets = [0, 30], sizes = [8, 10], strides = [1, 1]} : vector<8x40xf32> to vector<8x10xf32>
    %578 = math.tanh %577 : vector<8x10xf32>
    %579 = vector.extract_strided_slice %576 {offsets = [0, 0], sizes = [8, 10], strides = [1, 1]} : vector<8x30xf32> to vector<8x10xf32>
    %580 = vector.extract_strided_slice %576 {offsets = [0, 10], sizes = [8, 10], strides = [1, 1]} : vector<8x30xf32> to vector<8x10xf32>
    %581 = vector.extract_strided_slice %576 {offsets = [0, 20], sizes = [8, 10], strides = [1, 1]} : vector<8x30xf32> to vector<8x10xf32>
    %582 = arith.mulf %580, %544 : vector<8x10xf32>
    %583 = arith.mulf %579, %578 : vector<8x10xf32>
    %584 = arith.addf %582, %583 : vector<8x10xf32>
    %585 = math.tanh %584 : vector<8x10xf32>
    %586 = arith.mulf %581, %585 : vector<8x10xf32>
    %587 = tpu.concatenate %566, %586 in 1 : vector<8x10xf32>, vector<8x10xf32> -> vector<8x20xf32>
    %cst_75 = arith.constant dense<0.000000e+00> : vector<8x40xf32>
    %588 = tpu.matmul %587, %342, %cst_75 {dimension_numbers = #tpu.dot_dimension_numbers<[1], [0], [0], [1], [0, 0, 1, 1], [], []>, precision = #tpu.contract_precision<fp32>} : vector<8x20xf32>, vector<20x40xf32>, vector<8x40xf32> -> vector<8x40xf32>
    %589 = vector.broadcast %343 : vector<1x40xf32> to vector<8x40xf32>
    %590 = arith.addf %588, %589 : vector<8x40xf32>
    %591 = vector.extract_strided_slice %590 {offsets = [0, 0], sizes = [8, 30], strides = [1, 1]} : vector<8x40xf32> to vector<8x30xf32>
    %592 = arith.negf %591 : vector<8x30xf32>
    %593 = math.exp %592 : vector<8x30xf32>
    %cst_76 = arith.constant 1.000000e+00 : f32
    %594 = vector.broadcast %cst_76 : f32 to vector<8x30xf32>
    %595 = arith.addf %594, %593 : vector<8x30xf32>
    %596 = arith.divf %594, %595 : vector<8x30xf32>
    %597 = vector.extract_strided_slice %590 {offsets = [0, 30], sizes = [8, 10], strides = [1, 1]} : vector<8x40xf32> to vector<8x10xf32>
    %598 = math.tanh %597 : vector<8x10xf32>
    %599 = vector.extract_strided_slice %596 {offsets = [0, 0], sizes = [8, 10], strides = [1, 1]} : vector<8x30xf32> to vector<8x10xf32>
    %600 = vector.extract_strided_slice %596 {offsets = [0, 10], sizes = [8, 10], strides = [1, 1]} : vector<8x30xf32> to vector<8x10xf32>
    %601 = vector.extract_strided_slice %596 {offsets = [0, 20], sizes = [8, 10], strides = [1, 1]} : vector<8x30xf32> to vector<8x10xf32>
    %602 = arith.mulf %600, %564 : vector<8x10xf32>
    %603 = arith.mulf %599, %598 : vector<8x10xf32>
    %604 = arith.addf %602, %603 : vector<8x10xf32>
    %605 = math.tanh %604 : vector<8x10xf32>
    %606 = arith.mulf %601, %605 : vector<8x10xf32>
    %607 = tpu.concatenate %606, %586 in 1 : vector<8x10xf32>, vector<8x10xf32> -> vector<8x20xf32>
    %cst_77 = arith.constant dense<0.000000e+00> : vector<8x40xf32>
    %608 = tpu.matmul %607, %344, %cst_77 {dimension_numbers = #tpu.dot_dimension_numbers<[1], [0], [0], [1], [0, 0, 1, 1], [], []>, precision = #tpu.contract_precision<fp32>} : vector<8x20xf32>, vector<20x40xf32>, vector<8x40xf32> -> vector<8x40xf32>
    %609 = vector.broadcast %345 : vector<1x40xf32> to vector<8x40xf32>
    %610 = arith.addf %608, %609 : vector<8x40xf32>
    %611 = vector.extract_strided_slice %610 {offsets = [0, 0], sizes = [8, 30], strides = [1, 1]} : vector<8x40xf32> to vector<8x30xf32>
    %612 = arith.negf %611 : vector<8x30xf32>
    %613 = math.exp %612 : vector<8x30xf32>
    %cst_78 = arith.constant 1.000000e+00 : f32
    %614 = vector.broadcast %cst_78 : f32 to vector<8x30xf32>
    %615 = arith.addf %614, %613 : vector<8x30xf32>
    %616 = arith.divf %614, %615 : vector<8x30xf32>
    %617 = vector.extract_strided_slice %610 {offsets = [0, 30], sizes = [8, 10], strides = [1, 1]} : vector<8x40xf32> to vector<8x10xf32>
    %618 = math.tanh %617 : vector<8x10xf32>
    %619 = vector.extract_strided_slice %616 {offsets = [0, 0], sizes = [8, 10], strides = [1, 1]} : vector<8x30xf32> to vector<8x10xf32>
    %620 = vector.extract_strided_slice %616 {offsets = [0, 10], sizes = [8, 10], strides = [1, 1]} : vector<8x30xf32> to vector<8x10xf32>
    %621 = vector.extract_strided_slice %616 {offsets = [0, 20], sizes = [8, 10], strides = [1, 1]} : vector<8x30xf32> to vector<8x10xf32>
    %622 = arith.mulf %620, %584 : vector<8x10xf32>
    %623 = arith.mulf %619, %618 : vector<8x10xf32>
    %624 = arith.addf %622, %623 : vector<8x10xf32>
    %625 = math.tanh %624 : vector<8x10xf32>
    %626 = arith.mulf %621, %625 : vector<8x10xf32>
    %627 = tpu.concatenate %606, %626 in 1 : vector<8x10xf32>, vector<8x10xf32> -> vector<8x20xf32>
    %cst_79 = arith.constant dense<0.000000e+00> : vector<8x40xf32>
    %628 = tpu.matmul %627, %342, %cst_79 {dimension_numbers = #tpu.dot_dimension_numbers<[1], [0], [0], [1], [0, 0, 1, 1], [], []>, precision = #tpu.contract_precision<fp32>} : vector<8x20xf32>, vector<20x40xf32>, vector<8x40xf32> -> vector<8x40xf32>
    %629 = vector.broadcast %343 : vector<1x40xf32> to vector<8x40xf32>
    %630 = arith.addf %628, %629 : vector<8x40xf32>
    %631 = vector.extract_strided_slice %630 {offsets = [0, 0], sizes = [8, 30], strides = [1, 1]} : vector<8x40xf32> to vector<8x30xf32>
    %632 = arith.negf %631 : vector<8x30xf32>
    %633 = math.exp %632 : vector<8x30xf32>
    %cst_80 = arith.constant 1.000000e+00 : f32
    %634 = vector.broadcast %cst_80 : f32 to vector<8x30xf32>
    %635 = arith.addf %634, %633 : vector<8x30xf32>
    %636 = arith.divf %634, %635 : vector<8x30xf32>
    %637 = vector.extract_strided_slice %630 {offsets = [0, 30], sizes = [8, 10], strides = [1, 1]} : vector<8x40xf32> to vector<8x10xf32>
    %638 = math.tanh %637 : vector<8x10xf32>
    %639 = vector.extract_strided_slice %636 {offsets = [0, 0], sizes = [8, 10], strides = [1, 1]} : vector<8x30xf32> to vector<8x10xf32>
    %640 = vector.extract_strided_slice %636 {offsets = [0, 10], sizes = [8, 10], strides = [1, 1]} : vector<8x30xf32> to vector<8x10xf32>
    %641 = vector.extract_strided_slice %636 {offsets = [0, 20], sizes = [8, 10], strides = [1, 1]} : vector<8x30xf32> to vector<8x10xf32>
    %642 = arith.mulf %640, %604 : vector<8x10xf32>
    %643 = arith.mulf %639, %638 : vector<8x10xf32>
    %644 = arith.addf %642, %643 : vector<8x10xf32>
    %645 = math.tanh %644 : vector<8x10xf32>
    %646 = arith.mulf %641, %645 : vector<8x10xf32>
    %647 = tpu.concatenate %646, %626 in 1 : vector<8x10xf32>, vector<8x10xf32> -> vector<8x20xf32>
    %cst_81 = arith.constant dense<0.000000e+00> : vector<8x40xf32>
    %648 = tpu.matmul %647, %344, %cst_81 {dimension_numbers = #tpu.dot_dimension_numbers<[1], [0], [0], [1], [0, 0, 1, 1], [], []>, precision = #tpu.contract_precision<fp32>} : vector<8x20xf32>, vector<20x40xf32>, vector<8x40xf32> -> vector<8x40xf32>
    %649 = vector.broadcast %345 : vector<1x40xf32> to vector<8x40xf32>
    %650 = arith.addf %648, %649 : vector<8x40xf32>
    %651 = vector.extract_strided_slice %650 {offsets = [0, 0], sizes = [8, 30], strides = [1, 1]} : vector<8x40xf32> to vector<8x30xf32>
    %652 = arith.negf %651 : vector<8x30xf32>
    %653 = math.exp %652 : vector<8x30xf32>
    %cst_82 = arith.constant 1.000000e+00 : f32
    %654 = vector.broadcast %cst_82 : f32 to vector<8x30xf32>
    %655 = arith.addf %654, %653 : vector<8x30xf32>
    %656 = arith.divf %654, %655 : vector<8x30xf32>
    %657 = vector.extract_strided_slice %650 {offsets = [0, 30], sizes = [8, 10], strides = [1, 1]} : vector<8x40xf32> to vector<8x10xf32>
    %658 = math.tanh %657 : vector<8x10xf32>
    %659 = vector.extract_strided_slice %656 {offsets = [0, 0], sizes = [8, 10], strides = [1, 1]} : vector<8x30xf32> to vector<8x10xf32>
    %660 = vector.extract_strided_slice %656 {offsets = [0, 10], sizes = [8, 10], strides = [1, 1]} : vector<8x30xf32> to vector<8x10xf32>
    %661 = vector.extract_strided_slice %656 {offsets = [0, 20], sizes = [8, 10], strides = [1, 1]} : vector<8x30xf32> to vector<8x10xf32>
    %662 = arith.mulf %660, %624 : vector<8x10xf32>
    %663 = arith.mulf %659, %658 : vector<8x10xf32>
    %664 = arith.addf %662, %663 : vector<8x10xf32>
    %665 = math.tanh %664 : vector<8x10xf32>
    %666 = arith.mulf %661, %665 : vector<8x10xf32>
    %667 = tpu.concatenate %386, %426, %466, %506, %546, %586, %626, %666 in 1 : vector<8x10xf32>, vector<8x10xf32>, vector<8x10xf32>, vector<8x10xf32>, vector<8x10xf32>, vector<8x10xf32>, vector<8x10xf32>, vector<8x10xf32> -> vector<8x80xf32>
    %c128 = arith.constant 128 : index
    %c0_83 = arith.constant 0 : index
    %668 = vector.load %arg2[%c128, %c0_83] : memref<216x128xf32, #tpu.memory_space<vmem>>, vector<80x8xf32>
    %cst_84 = arith.constant dense<0.000000e+00> : vector<8x8xf32>
    %669 = tpu.matmul %667, %668, %cst_84 {dimension_numbers = #tpu.dot_dimension_numbers<[1], [0], [0], [1], [0, 0, 1, 1], [], []>, precision = #tpu.contract_precision<fp32>} : vector<8x80xf32>, vector<80x8xf32>, vector<8x8xf32> -> vector<8x8xf32>
    %c208 = arith.constant 208 : index
    %c0_85 = arith.constant 0 : index
    %670 = vector.load %arg2[%c208, %c0_85] : memref<216x128xf32, #tpu.memory_space<vmem>>, vector<1x1xf32>
    %671 = vector.broadcast %670 : vector<1x1xf32> to vector<8x8xf32>
    %672 = arith.addf %669, %671 : vector<8x8xf32>
    %c0_86 = arith.constant 0 : index
    %c0_87 = arith.constant 0 : index
    %673 = vector.load %arg4[%c0_86, %c0_87] : memref<8x8xf32, #tpu.memory_space<vmem>>, vector<8x8xf32>
    tpu.vector_store %arg4[%c0_86, %c0_87], %672 {strides = array<i32>} : memref<8x8xf32, #tpu.memory_space<vmem>>, vector<8x8xf32>,
    return
  }
  func.func @transform_0(%arg0: i32) -> (i32, i32) {
    %c0_i32 = arith.constant 0 : i32
    %c0_i32_0 = arith.constant 0 : i32
    return %arg0, %c0_i32 : i32, i32
  }
  func.func @transform_1(%arg0: i32) -> (i32, i32) {
    %c0_i32 = arith.constant 0 : i32
    %c0_i32_0 = arith.constant 0 : i32
    %c0_i32_1 = arith.constant 0 : i32
    return %c0_i32, %c0_i32_0 : i32, i32
  }
  func.func @transform_2(%arg0: i32) -> (i32, i32) {
    %c0_i32 = arith.constant 0 : i32
    %c0_i32_0 = arith.constant 0 : i32
    return %arg0, %c0_i32 : i32, i32
  }
  func.func @transform_3(%arg0: i32) -> (i32, i32) {
    %c0_i32 = arith.constant 0 : i32
    %c0_i32_0 = arith.constant 0 : i32
    return %arg0, %c0_i32 : i32, i32
  }
}

</mosaic_0001>

<llo_original>
// kernel: seq2seq_forward.1
$region0: #{seq2seq_forward.1}
  #allocation0 [shape = 'u32[]', space=smem, size = 0x4, offset = 0x4, fixed_abs, tag = 'smem constant byte address 0x4 - core index']
  #allocation1 [shape = 'u32[72,128]{1,0:T(1,128)}', space=vmem, size = 0x9000, scoped, tag = 'internal scratch']
  %s0 = inlined_call_operand.vmem [shape: f32[8,8], index: 0, kind: input, shape index: {}]
  %s1 = inlined_call_operand.hbm [shape: f32[216,128], index: 1, kind: input, shape index: {}]
  %s2 = inlined_call_operand.vmem [shape: f32[8,2], index: 2, kind: output, shape index: {0}]
  %s3 = inlined_call_operand.vmem [shape: f32[8,8], index: 3, kind: output, shape index: {1}]
  %4 = xla_tuple %s2, %s3
  %s5 = sld [smem:[#allocation0]]
  $region30: #{seq2seq_forward.1} parent=0
    _
  %s7 = ssub.s32 1, %s5
  %s8 = scalar_select 0, %s7, %s5
  $region1: #{seq2seq_forward.1} parent=0
    #allocation2 [shape = 'u8[110592]{0}', space=vmem, size = 0x1b000, scoped, tag = 'input window, operand 1, single buffered']
    #allocation3 [shape = 's32[1]{0}', space=sflag, size = 0x4, scoped, tag = 'scoped memory for seq2seq_forward.1']
    %9 = vsyncpa [#allocation3], 0
    // Predicated region
    $region2: #{seq2seq_forward.1} parent=1 // pred_check
      _
    $region3: #{seq2seq_forward.1} parent=1 // pred_check_branch
      %11 = sbr.rel (0) target = $region5
    $region4: #{seq2seq_forward.1} parent=1 // pred_region
      _
    $region5: #{seq2seq_forward.1} parent=1 // pred_fallthru
      _
    // Predicated region
    $region6: #{seq2seq_forward.1} parent=1 // pred_check
      _
    $region7: #{seq2seq_forward.1} parent=1 // pred_check_branch
      %13 = sbr.rel (0) target = $region9
    $region8: #{seq2seq_forward.1} parent=1 // pred_region
      %15 = vsyncadd [#allocation3], 0
      %s16 = sshll.u32 %s1, 4
      %s17 = int_to_ptr.hbm [resolvable:$true] %s16
      %s18 = sshll.u32 [#allocation2], 4
      %s19 = int_to_ptr.vmem [resolvable:$true] %s18
      %24 = dma.hbm_to_vmem [thread:$0]  %s17, 3456, %s19, [#allocation3], 128, 128, 8
    $region9: #{seq2seq_forward.1} parent=1 // pred_fallthru
      _
    // Predicated region
    $region10: #{seq2seq_forward.1} parent=1 // pred_check
      _
    $region11: #{seq2seq_forward.1} parent=1 // pred_check_branch
      %26 = sbr.rel (0) target = $region13
    $region12: #{seq2seq_forward.1} parent=1 // pred_region
      %28 = dma.done [#allocation3], 3456
    $region13: #{seq2seq_forward.1} parent=1 // pred_fallthru
      _
    %v29 = vld [vmem:[%s0] sm:$0xff]
    %v30 = vld [vmem:[#allocation2 + $0x8] sm:$0xf]
    %v31 = vld [vmem:[#allocation2 + $0x10] sm:$0x1]
    %v32 = vld [vmem:[#allocation2 + $0x18] sm:$0xff]
    %v33 = vld [vmem:[#allocation2 + $0x20] sm:$0x1]
    %v34 = vld [vmem:[#allocation2] sm:$0xff]
    %vm35 = vcmask 64512
    %v37 = vsel %vm35, %v29, 0
    %39 = vmatpush.msra.mxu0 0.0
    %40 = vmatpush.msra.mxu0 0.0
    %41 = vmatpush.msra.mxu0 0.0
    %42 = vmatpush.msra.mxu0 0.0
    %43 = vmatpush.msra.mxu0 0.0
    %44 = vmatpush.msra.mxu0 0.0
    %45 = vmatpush.msra.mxu0 0.0
    %46 = vmatpush.msra.mxu0 0.0
    %47 = vmatpush.msra.mxu0 0.0
    %48 = vmatpush.msra.mxu0 0.0
    %49 = vmatpush.msra.mxu0 0.0
    %50 = vmatpush.msra.mxu0 0.0
    %51 = vmatpush.msra.mxu0 0.0
    %52 = vmatpush.msra.mxu0 0.0
    %53 = vmatpush.msra.mxu0 0.0
    %v54 = vand.u32 %v34, 4294901760
    %55 = vmatpush.msra.mxu0 %v54
    %v56 = vand.u32 %v37, 4294901760
    %v57 = vsub.f32 %v37, %v56
    %v58 = vand.u32 %v57, 4294901760
    %v59 = vsub.f32 %v57, %v58
    %v60 = vand.u32 %v59, 4294901760
    %61 = vmatmul.f32.gmra.mxu0 %v60
    %v62 = vpop.f32.mrf.mxu0
    %v63 = vadd.f32 0.0, %v62
    %64 = vdwg.mxu0
    %65 = vmatpush.msra.mxu0 0.0
    %66 = vmatpush.msra.mxu0 0.0
    %67 = vmatpush.msra.mxu0 0.0
    %68 = vmatpush.msra.mxu0 0.0
    %69 = vmatpush.msra.mxu0 0.0
    %70 = vmatpush.msra.mxu0 0.0
    %71 = vmatpush.msra.mxu0 0.0
    %72 = vmatpush.msra.mxu0 0.0
    %73 = vmatpush.msra.mxu0 0.0
    %74 = vmatpush.msra.mxu0 0.0
    %75 = vmatpush.msra.mxu0 0.0
    %76 = vmatpush.msra.mxu0 0.0
    %77 = vmatpush.msra.mxu0 0.0
    %78 = vmatpush.msra.mxu0 0.0
    %79 = vmatpush.msra.mxu0 0.0
    %v80 = vand.u32 %v34, 4294901760
    %v81 = vsub.f32 %v34, %v80
    %v82 = vand.u32 %v81, 4294901760
    %v83 = vsub.f32 %v81, %v82
    %v84 = vand.u32 %v83, 4294901760
    %85 = vmatpush.msra.mxu0 %v84
    %v86 = vand.u32 %v37, 4294901760
    %87 = vmatmul.f32.gmra.mxu0 %v86
    %v88 = vpop.f32.mrf.mxu0
    %v89 = vadd.f32 %v63, %v88
    %90 = vdwg.mxu0
    %91 = vmatpush.msra.mxu0 0.0
    %92 = vmatpush.msra.mxu0 0.0
    %93 = vmatpush.msra.mxu0 0.0
    %94 = vmatpush.msra.mxu0 0.0
    %95 = vmatpush.msra.mxu0 0.0
    %96 = vmatpush.msra.mxu0 0.0
    %97 = vmatpush.msra.mxu0 0.0
    %98 = vmatpush.msra.mxu0 0.0
    %99 = vmatpush.msra.mxu0 0.0
    %100 = vmatpush.msra.mxu0 0.0
    %101 = vmatpush.msra.mxu0 0.0
    %102 = vmatpush.msra.mxu0 0.0
    %103 = vmatpush.msra.mxu0 0.0
    %104 = vmatpush.msra.mxu0 0.0
    %105 = vmatpush.msra.mxu0 0.0
    %v106 = vand.u32 %v34, 4294901760
    %v107 = vsub.f32 %v34, %v106
    %108 = vmatpush.msra.mxu0 %v107
    %v109 = vand.u32 %v37, 4294901760
    %v110 = vsub.f32 %v37, %v109
    %111 = vmatmul.f32.gmra.mxu0 %v110
    %v112 = vpop.f32.mrf.mxu0
    %v113 = vadd.f32 %v89, %v112
    %114 = vdwg.mxu0
    %115 = vmatpush.msra.mxu0 0.0
    %116 = vmatpush.msra.mxu0 0.0
    %117 = vmatpush.msra.mxu0 0.0
    %118 = vmatpush.msra.mxu0 0.0
    %119 = vmatpush.msra.mxu0 0.0
    %120 = vmatpush.msra.mxu0 0.0
    %121 = vmatpush.msra.mxu0 0.0
    %122 = vmatpush.msra.mxu0 0.0
    %123 = vmatpush.msra.mxu0 0.0
    %124 = vmatpush.msra.mxu0 0.0
    %125 = vmatpush.msra.mxu0 0.0
    %126 = vmatpush.msra.mxu0 0.0
    %127 = vmatpush.msra.mxu0 0.0
    %128 = vmatpush.msra.mxu0 0.0
    %129 = vmatpush.msra.mxu0 0.0
    %v130 = vand.u32 %v34, 4294901760
    %131 = vmatpush.msra.mxu0 %v130
    %v132 = vand.u32 %v37, 4294901760
    %v133 = vsub.f32 %v37, %v132
    %v134 = vand.u32 %v133, 4294901760
    %135 = vmatmul.f32.gmra.mxu0 %v134
    %v136 = vpop.f32.mrf.mxu0
    %v137 = vadd.f32 %v113, %v136
    %138 = vdwg.mxu0
    %139 = vmatpush.msra.mxu0 0.0
    %140 = vmatpush.msra.mxu0 0.0
    %141 = vmatpush.msra.mxu0 0.0
    %142 = vmatpush.msra.mxu0 0.0
    %143 = vmatpush.msra.mxu0 0.0
    %144 = vmatpush.msra.mxu0 0.0
    %145 = vmatpush.msra.mxu0 0.0
    %146 = vmatpush.msra.mxu0 0.0
    %147 = vmatpush.msra.mxu0 0.0
    %148 = vmatpush.msra.mxu0 0.0
    %149 = vmatpush.msra.mxu0 0.0
    %150 = vmatpush.msra.mxu0 0.0
    %151 = vmatpush.msra.mxu0 0.0
    %152 = vmatpush.msra.mxu0 0.0
    %153 = vmatpush.msra.mxu0 0.0
    %v154 = vand.u32 %v34, 4294901760
    %v155 = vsub.f32 %v34, %v154
    %v156 = vand.u32 %v155, 4294901760
    %157 = vmatpush.msra.mxu0 %v156
    %v158 = vand.u32 %v37, 4294901760
    %159 = vmatmul.f32.gmra.mxu0 %v158
    %v160 = vpop.f32.mrf.mxu0
    %v161 = vadd.f32 %v137, %v160
    %162 = vdwg.mxu0
    %163 = vmatpush.msra.mxu0 0.0
    %164 = vmatpush.msra.mxu0 0.0
    %165 = vmatpush.msra.mxu0 0.0
    %166 = vmatpush.msra.mxu0 0.0
    %167 = vmatpush.msra.mxu0 0.0
    %168 = vmatpush.msra.mxu0 0.0
    %169 = vmatpush.msra.mxu0 0.0
    %170 = vmatpush.msra.mxu0 0.0
    %171 = vmatpush.msra.mxu0 0.0
    %172 = vmatpush.msra.mxu0 0.0
    %173 = vmatpush.msra.mxu0 0.0
    %174 = vmatpush.msra.mxu0 0.0
    %175 = vmatpush.msra.mxu0 0.0
    %176 = vmatpush.msra.mxu0 0.0
    %177 = vmatpush.msra.mxu0 0.0
    %v178 = vand.u32 %v34, 4294901760
    %179 = vmatpush.msra.mxu0 %v178
    %v180 = vand.u32 %v37, 4294901760
    %181 = vmatmul.f32.gmra.mxu0 %v180
    %v182 = vpop.f32.mrf.mxu0
    %v183 = vadd.f32 %v161, %v182
    %184 = vdwg.mxu0
    %vm185 = vcmask 31744
    %v187 = vsel %vm185, 0.0, 0
    %vm189 = vcmask 1043456
    %v191 = vsel %vm189, %v30, 0
    %193 = vmatpush.msra.mxu0 0.0
    %194 = vmatpush.msra.mxu0 0.0
    %195 = vmatpush.msra.mxu0 0.0
    %196 = vmatpush.msra.mxu0 0.0
    %197 = vmatpush.msra.mxu0 0.0
    %198 = vmatpush.msra.mxu0 0.0
    %199 = vmatpush.msra.mxu0 0.0
    %200 = vmatpush.msra.mxu0 0.0
    %201 = vmatpush.msra.mxu0 0.0
    %202 = vmatpush.msra.mxu0 0.0
    %203 = vmatpush.msra.mxu0 0.0
    %204 = vmatpush.msra.mxu0 0.0
    %205 = vmatpush.msra.mxu0 0.0
    %206 = vmatpush.msra.mxu0 0.0
    %207 = vmatpush.msra.mxu0 0.0
    %v208 = vand.u32 %v191, 4294901760
    %209 = vmatpush.msra.mxu0 %v208
    %v210 = vand.u32 %v187, 4294901760
    %v211 = vsub.f32 %v187, %v210
    %v212 = vand.u32 %v211, 4294901760
    %v213 = vsub.f32 %v211, %v212
    %v214 = vand.u32 %v213, 4294901760
    %215 = vmatmul.f32.gmra.mxu0 %v214
    %v216 = vpop.f32.mrf.mxu0
    %v217 = vadd.f32 0.0, %v216
    %218 = vdwg.mxu0
    %219 = vmatpush.msra.mxu0 0.0
    %220 = vmatpush.msra.mxu0 0.0
    %221 = vmatpush.msra.mxu0 0.0
    %222 = vmatpush.msra.mxu0 0.0
    %223 = vmatpush.msra.mxu0 0.0
    %224 = vmatpush.msra.mxu0 0.0
    %225 = vmatpush.msra.mxu0 0.0
    %226 = vmatpush.msra.mxu0 0.0
    %227 = vmatpush.msra.mxu0 0.0
    %228 = vmatpush.msra.mxu0 0.0
    %229 = vmatpush.msra.mxu0 0.0
    %230 = vmatpush.msra.mxu0 0.0
    %231 = vmatpush.msra.mxu0 0.0
    %232 = vmatpush.msra.mxu0 0.0
    %233 = vmatpush.msra.mxu0 0.0
    %v234 = vand.u32 %v191, 4294901760
    %v235 = vsub.f32 %v191, %v234
    %v236 = vand.u32 %v235, 4294901760
    %v237 = vsub.f32 %v235, %v236
    %v238 = vand.u32 %v237, 4294901760
    %239 = vmatpush.msra.mxu0 %v238
    %v240 = vand.u32 %v187, 4294901760
    %241 = vmatmul.f32.gmra.mxu0 %v240
    %v242 = vpop.f32.mrf.mxu0
    %v243 = vadd.f32 %v217, %v242
    %244 = vdwg.mxu0
    %245 = vmatpush.msra.mxu0 0.0
    %246 = vmatpush.msra.mxu0 0.0
    %247 = vmatpush.msra.mxu0 0.0
    %248 = vmatpush.msra.mxu0 0.0
    %249 = vmatpush.msra.mxu0 0.0
    %250 = vmatpush.msra.mxu0 0.0
    %251 = vmatpush.msra.mxu0 0.0
    %252 = vmatpush.msra.mxu0 0.0
    %253 = vmatpush.msra.mxu0 0.0
    %254 = vmatpush.msra.mxu0 0.0
    %255 = vmatpush.msra.mxu0 0.0
    %256 = vmatpush.msra.mxu0 0.0
    %257 = vmatpush.msra.mxu0 0.0
    %258 = vmatpush.msra.mxu0 0.0
    %259 = vmatpush.msra.mxu0 0.0
    %v260 = vand.u32 %v191, 4294901760
    %v261 = vsub.f32 %v191, %v260
    %262 = vmatpush.msra.mxu0 %v261
    %v263 = vand.u32 %v187, 4294901760
    %v264 = vsub.f32 %v187, %v263
    %265 = vmatmul.f32.gmra.mxu0 %v264
    %v266 = vpop.f32.mrf.mxu0
    %v267 = vadd.f32 %v243, %v266
    %268 = vdwg.mxu0
    %269 = vmatpush.msra.mxu0 0.0
    %270 = vmatpush.msra.mxu0 0.0
    %271 = vmatpush.msra.mxu0 0.0
    %272 = vmatpush.msra.mxu0 0.0
    %273 = vmatpush.msra.mxu0 0.0
    %274 = vmatpush.msra.mxu0 0.0
    %275 = vmatpush.msra.mxu0 0.0
    %276 = vmatpush.msra.mxu0 0.0
    %277 = vmatpush.msra.mxu0 0.0
    %278 = vmatpush.msra.mxu0 0.0
    %279 = vmatpush.msra.mxu0 0.0
    %280 = vmatpush.msra.mxu0 0.0
    %281 = vmatpush.msra.mxu0 0.0
    %282 = vmatpush.msra.mxu0 0.0
    %283 = vmatpush.msra.mxu0 0.0
    %v284 = vand.u32 %v191, 4294901760
    %285 = vmatpush.msra.mxu0 %v284
    %v286 = vand.u32 %v187, 4294901760
    %v287 = vsub.f32 %v187, %v286
    %v288 = vand.u32 %v287, 4294901760
    %289 = vmatmul.f32.gmra.mxu0 %v288
    %v290 = vpop.f32.mrf.mxu0
    %v291 = vadd.f32 %v267, %v290
    %292 = vdwg.mxu0
    %293 = vmatpush.msra.mxu0 0.0
    %294 = vmatpush.msra.mxu0 0.0
    %295 = vmatpush.msra.mxu0 0.0
    %296 = vmatpush.msra.mxu0 0.0
    %297 = vmatpush.msra.mxu0 0.0
    %298 = vmatpush.msra.mxu0 0.0
    %299 = vmatpush.msra.mxu0 0.0
    %300 = vmatpush.msra.mxu0 0.0
    %301 = vmatpush.msra.mxu0 0.0
    %302 = vmatpush.msra.mxu0 0.0
    %303 = vmatpush.msra.mxu0 0.0
    %304 = vmatpush.msra.mxu0 0.0
    %305 = vmatpush.msra.mxu0 0.0
    %306 = vmatpush.msra.mxu0 0.0
    %307 = vmatpush.msra.mxu0 0.0
    %v308 = vand.u32 %v191, 4294901760
    %v309 = vsub.f32 %v191, %v308
    %v310 = vand.u32 %v309, 4294901760
    %311 = vmatpush.msra.mxu0 %v310
    %v312 = vand.u32 %v187, 4294901760
    %313 = vmatmul.f32.gmra.mxu0 %v312
    %v314 = vpop.f32.mrf.mxu0
    %v315 = vadd.f32 %v291, %v314
    %316 = vdwg.mxu0
    %317 = vmatpush.msra.mxu0 0.0
    %318 = vmatpush.msra.mxu0 0.0
    %319 = vmatpush.msra.mxu0 0.0
    %320 = vmatpush.msra.mxu0 0.0
    %321 = vmatpush.msra.mxu0 0.0
    %322 = vmatpush.msra.mxu0 0.0
    %323 = vmatpush.msra.mxu0 0.0
    %324 = vmatpush.msra.mxu0 0.0
    %325 = vmatpush.msra.mxu0 0.0
    %326 = vmatpush.msra.mxu0 0.0
    %327 = vmatpush.msra.mxu0 0.0
    %328 = vmatpush.msra.mxu0 0.0
    %329 = vmatpush.msra.mxu0 0.0
    %330 = vmatpush.msra.mxu0 0.0
    %331 = vmatpush.msra.mxu0 0.0
    %v332 = vand.u32 %v191, 4294901760
    %333 = vmatpush.msra.mxu0 %v332
    %v334 = vand.u32 %v187, 4294901760
    %335 = vmatmul.f32.gmra.mxu0 %v334
    %v336 = vpop.f32.mrf.mxu0
    %v337 = vadd.f32 %v315, %v336
    %338 = vdwg.mxu0
    %v339 = vadd.f32 %v183, %v337
    %v340 = vperm.slane %v31, 0
    %v341 = vadd.f32 %v339, %v340
    %v342 = vxor.u32 %v341, 2147483648
    %v343 = vmul.f32 %v342, 1.442695
    %v344 = vpow.pop %v343
    %v345 = vadd.f32 %v344, 1.0
    %v346 = vrcp.pop %v345
    %v347 = vmul.f32 %v345, %v346
    %v348 = vsub.f32 1.0, %v347
    %v349 = vmul.f32 %v346, %v348
    %v350 = vadd.f32 %v346, %v349
    %vm351 = vweird.f32 %v345
    %vm352 = vweird.f32 %v346
    %vm353 = vmor %vm351, %vm352
    %v354 = vsel %vm353, %v346, %v350
    %v355 = vand.u32 2147483647, %v345
    %vm356 = vcmp.eq.f32.partialorder %v355, 8.507059e+37
    %v357 = vand.u32 %v345, 2147483648
    %v358 = vor.u32 1.1754944e-38, %v357
    %v359 = vsel %vm356, %v358, %v354
    %v360 = vmul.f32 1.0, %v359
    %v361 = vtanh.pop %v341
    %v362 = vmul.f32 %v360, 0.0
    %364 = vrot.lane.b32.xlu0 %v361, 116
    %v365 = vpop.permute.xlu0 %364
    %v367 = vmul.f32 %v360, %v365
    %369 = vrot.lane.b32.xlu0 %v367, 4
    %v370 = vpop.permute.xlu0 %369
    %v372 = vadd.f32 %v362, %v370
    %v373 = vtanh.pop %v372
    %375 = vrot.lane.b32.xlu0 %v373, 4
    %v376 = vpop.permute.xlu0 %375
    %v378 = vmul.f32 %v360, %v376
    %380 = vrot.lane.b32.xlu0 %v378, 120
    %v381 = vpop.permute.xlu0 %380
    %v383 = vsel %vm185, %v381, 0.0
    %v384 = vperm.slane %v33, 0
    %v386 = vsel %vm35, %v383, 0
    %388 = vmatpush.msra.mxu0 0.0
    %389 = vmatpush.msra.mxu0 0.0
    %390 = vmatpush.msra.mxu0 0.0
    %391 = vmatpush.msra.mxu0 0.0
    %392 = vmatpush.msra.mxu0 0.0
    %393 = vmatpush.msra.mxu0 0.0
    %394 = vmatpush.msra.mxu0 0.0
    %395 = vmatpush.msra.mxu0 0.0
    %396 = vmatpush.msra.mxu0 0.0
    %397 = vmatpush.msra.mxu0 0.0
    %398 = vmatpush.msra.mxu0 0.0
    %399 = vmatpush.msra.mxu0 0.0
    %400 = vmatpush.msra.mxu0 0.0
    %401 = vmatpush.msra.mxu0 0.0
    %402 = vmatpush.msra.mxu0 0.0
    %v403 = vand.u32 %v32, 4294901760
    %404 = vmatpush.msra.mxu0 %v403
    %v405 = vand.u32 %v386, 4294901760
    %v406 = vsub.f32 %v386, %v405
    %v407 = vand.u32 %v406, 4294901760
    %v408 = vsub.f32 %v406, %v407
    %v409 = vand.u32 %v408, 4294901760
    %410 = vmatmul.f32.gmra.mxu0 %v409
    %v411 = vpop.f32.mrf.mxu0
    %v412 = vadd.f32 %v384, %v411
    %413 = vdwg.mxu0
    %414 = vmatpush.msra.mxu0 0.0
    %415 = vmatpush.msra.mxu0 0.0
    %416 = vmatpush.msra.mxu0 0.0
    %417 = vmatpush.msra.mxu0 0.0
    %418 = vmatpush.msra.mxu0 0.0
    %419 = vmatpush.msra.mxu0 0.0
    %420 = vmatpush.msra.mxu0 0.0
    %421 = vmatpush.msra.mxu0 0.0
    %422 = vmatpush.msra.mxu0 0.0
    %423 = vmatpush.msra.mxu0 0.0
    %424 = vmatpush.msra.mxu0 0.0
    %425 = vmatpush.msra.mxu0 0.0
    %426 = vmatpush.msra.mxu0 0.0
    %427 = vmatpush.msra.mxu0 0.0
    %428 = vmatpush.msra.mxu0 0.0
    %v429 = vand.u32 %v32, 4294901760
    %v430 = vsub.f32 %v32, %v429
    %v431 = vand.u32 %v430, 4294901760
    %v432 = vsub.f32 %v430, %v431
    %v433 = vand.u32 %v432, 4294901760
    %434 = vmatpush.msra.mxu0 %v433
    %v435 = vand.u32 %v386, 4294901760
    %436 = vmatmul.f32.gmra.mxu0 %v435
    %v437 = vpop.f32.mrf.mxu0
    %v438 = vadd.f32 %v412, %v437
    %439 = vdwg.mxu0
    %440 = vmatpush.msra.mxu0 0.0
    %441 = vmatpush.msra.mxu0 0.0
    %442 = vmatpush.msra.mxu0 0.0
    %443 = vmatpush.msra.mxu0 0.0
    %444 = vmatpush.msra.mxu0 0.0
    %445 = vmatpush.msra.mxu0 0.0
    %446 = vmatpush.msra.mxu0 0.0
    %447 = vmatpush.msra.mxu0 0.0
    %448 = vmatpush.msra.mxu0 0.0
    %449 = vmatpush.msra.mxu0 0.0
    %450 = vmatpush.msra.mxu0 0.0
    %451 = vmatpush.msra.mxu0 0.0
    %452 = vmatpush.msra.mxu0 0.0
    %453 = vmatpush.msra.mxu0 0.0
    %454 = vmatpush.msra.mxu0 0.0
    %v455 = vand.u32 %v32, 4294901760
    %v456 = vsub.f32 %v32, %v455
    %457 = vmatpush.msra.mxu0 %v456
    %v458 = vand.u32 %v386, 4294901760
    %v459 = vsub.f32 %v386, %v458
    %460 = vmatmul.f32.gmra.mxu0 %v459
    %v461 = vpop.f32.mrf.mxu0
    %v462 = vadd.f32 %v438, %v461
    %463 = vdwg.mxu0
    %464 = vmatpush.msra.mxu0 0.0
    %465 = vmatpush.msra.mxu0 0.0
    %466 = vmatpush.msra.mxu0 0.0
    %467 = vmatpush.msra.mxu0 0.0
    %468 = vmatpush.msra.mxu0 0.0
    %469 = vmatpush.msra.mxu0 0.0
    %470 = vmatpush.msra.mxu0 0.0
    %471 = vmatpush.msra.mxu0 0.0
    %472 = vmatpush.msra.mxu0 0.0
    %473 = vmatpush.msra.mxu0 0.0
    %474 = vmatpush.msra.mxu0 0.0
    %475 = vmatpush.msra.mxu0 0.0
    %476 = vmatpush.msra.mxu0 0.0
    %477 = vmatpush.msra.mxu0 0.0
    %478 = vmatpush.msra.mxu0 0.0
    %v479 = vand.u32 %v32, 4294901760
    %480 = vmatpush.msra.mxu0 %v479
    %v481 = vand.u32 %v386, 4294901760
    %v482 = vsub.f32 %v386, %v481
    %v483 = vand.u32 %v482, 4294901760
    %484 = vmatmul.f32.gmra.mxu0 %v483
    %v485 = vpop.f32.mrf.mxu0
    %v486 = vadd.f32 %v462, %v485
    %487 = vdwg.mxu0
    %488 = vmatpush.msra.mxu0 0.0
    %489 = vmatpush.msra.mxu0 0.0
    %490 = vmatpush.msra.mxu0 0.0
    %491 = vmatpush.msra.mxu0 0.0
    %492 = vmatpush.msra.mxu0 0.0
    %493 = vmatpush.msra.mxu0 0.0
    %494 = vmatpush.msra.mxu0 0.0
    %495 = vmatpush.msra.mxu0 0.0
    %496 = vmatpush.msra.mxu0 0.0
    %497 = vmatpush.msra.mxu0 0.0
    %498 = vmatpush.msra.mxu0 0.0
    %499 = vmatpush.msra.mxu0 0.0
    %500 = vmatpush.msra.mxu0 0.0
    %501 = vmatpush.msra.mxu0 0.0
    %502 = vmatpush.msra.mxu0 0.0
    %v503 = vand.u32 %v32, 4294901760
    %v504 = vsub.f32 %v32, %v503
    %v505 = vand.u32 %v504, 4294901760
    %506 = vmatpush.msra.mxu0 %v505
    %v507 = vand.u32 %v386, 4294901760
    %508 = vmatmul.f32.gmra.mxu0 %v507
    %v509 = vpop.f32.mrf.mxu0
    %v510 = vadd.f32 %v486, %v509
    %511 = vdwg.mxu0
    %512 = vmatpush.msra.mxu0 0.0
    %513 = vmatpush.msra.mxu0 0.0
    %514 = vmatpush.msra.mxu0 0.0
    %515 = vmatpush.msra.mxu0 0.0
    %516 = vmatpush.msra.mxu0 0.0
    %517 = vmatpush.msra.mxu0 0.0
    %518 = vmatpush.msra.mxu0 0.0
    %519 = vmatpush.msra.mxu0 0.0
    %520 = vmatpush.msra.mxu0 0.0
    %521 = vmatpush.msra.mxu0 0.0
    %522 = vmatpush.msra.mxu0 0.0
    %523 = vmatpush.msra.mxu0 0.0
    %524 = vmatpush.msra.mxu0 0.0
    %525 = vmatpush.msra.mxu0 0.0
    %526 = vmatpush.msra.mxu0 0.0
    %v527 = vand.u32 %v32, 4294901760
    %528 = vmatpush.msra.mxu0 %v527
    %v529 = vand.u32 %v386, 4294901760
    %530 = vmatmul.f32.gmra.mxu0 %v529
    %v531 = vpop.f32.mrf.mxu0
    %v532 = vadd.f32 %v510, %v531
    %533 = vdwg.mxu0
    %v534 = vxor.u32 %v532, 2147483648
    %v535 = vmul.f32 %v534, 1.442695
    %v536 = vpow.pop %v535
    %v537 = vadd.f32 %v536, 1.0
    %v538 = vrcp.pop %v537
    %v539 = vmul.f32 %v537, %v538
    %v540 = vsub.f32 1.0, %v539
    %v541 = vmul.f32 %v538, %v540
    %v542 = vadd.f32 %v538, %v541
    %vm543 = vweird.f32 %v537
    %vm544 = vweird.f32 %v538
    %vm545 = vmor %vm543, %vm544
    %v546 = vsel %vm545, %v538, %v542
    %v547 = vand.u32 2147483647, %v537
    %vm548 = vcmp.eq.f32.partialorder %v547, 8.507059e+37
    %v549 = vand.u32 %v537, 2147483648
    %v550 = vor.u32 1.1754944e-38, %v549
    %v551 = vsel %vm548, %v550, %v546
    %v552 = vmul.f32 1.0, %v551
    %v553 = vtanh.pop %v532
    %v554 = vmul.f32 %v552, 0.0
    %556 = vrot.lane.b32.xlu0 %v553, 116
    %v557 = vpop.permute.xlu0 %556
    %v559 = vmul.f32 %v552, %v557
    %561 = vrot.lane.b32.xlu0 %v559, 4
    %v562 = vpop.permute.xlu0 %561
    %v564 = vadd.f32 %v554, %v562
    %v565 = vtanh.pop %v564
    %567 = vrot.lane.b32.xlu0 %v565, 4
    %v568 = vpop.permute.xlu0 %567
    %v570 = vmul.f32 %v552, %v568
    %v571 = vsel %vm185, %v381, 0
    %573 = vmatpush.msra.mxu0 0.0
    %574 = vmatpush.msra.mxu0 0.0
    %575 = vmatpush.msra.mxu0 0.0
    %576 = vmatpush.msra.mxu0 0.0
    %577 = vmatpush.msra.mxu0 0.0
    %578 = vmatpush.msra.mxu0 0.0
    %579 = vmatpush.msra.mxu0 0.0
    %580 = vmatpush.msra.mxu0 0.0
    %581 = vmatpush.msra.mxu0 0.0
    %582 = vmatpush.msra.mxu0 0.0
    %583 = vmatpush.msra.mxu0 0.0
    %584 = vmatpush.msra.mxu0 0.0
    %585 = vmatpush.msra.mxu0 0.0
    %586 = vmatpush.msra.mxu0 0.0
    %587 = vmatpush.msra.mxu0 0.0
    %v588 = vand.u32 %v191, 4294901760
    %589 = vmatpush.msra.mxu0 %v588
    %v590 = vand.u32 %v571, 4294901760
    %v591 = vsub.f32 %v571, %v590
    %v592 = vand.u32 %v591, 4294901760
    %v593 = vsub.f32 %v591, %v592
    %v594 = vand.u32 %v593, 4294901760
    %595 = vmatmul.f32.gmra.mxu0 %v594
    %v596 = vpop.f32.mrf.mxu0
    %v597 = vadd.f32 0.0, %v596
    %598 = vdwg.mxu0
    %599 = vmatpush.msra.mxu0 0.0
    %600 = vmatpush.msra.mxu0 0.0
    %601 = vmatpush.msra.mxu0 0.0
    %602 = vmatpush.msra.mxu0 0.0
    %603 = vmatpush.msra.mxu0 0.0
    %604 = vmatpush.msra.mxu0 0.0
    %605 = vmatpush.msra.mxu0 0.0
    %606 = vmatpush.msra.mxu0 0.0
    %607 = vmatpush.msra.mxu0 0.0
    %608 = vmatpush.msra.mxu0 0.0
    %609 = vmatpush.msra.mxu0 0.0
    %610 = vmatpush.msra.mxu0 0.0
    %611 = vmatpush.msra.mxu0 0.0
    %612 = vmatpush.msra.mxu0 0.0
    %613 = vmatpush.msra.mxu0 0.0
    %v614 = vand.u32 %v191, 4294901760
    %v615 = vsub.f32 %v191, %v614
    %v616 = vand.u32 %v615, 4294901760
    %v617 = vsub.f32 %v615, %v616
    %v618 = vand.u32 %v617, 4294901760
    %619 = vmatpush.msra.mxu0 %v618
    %v620 = vand.u32 %v571, 4294901760
    %621 = vmatmul.f32.gmra.mxu0 %v620
    %v622 = vpop.f32.mrf.mxu0
    %v623 = vadd.f32 %v597, %v622
    %624 = vdwg.mxu0
    %625 = vmatpush.msra.mxu0 0.0
    %626 = vmatpush.msra.mxu0 0.0
    %627 = vmatpush.msra.mxu0 0.0
    %628 = vmatpush.msra.mxu0 0.0
    %629 = vmatpush.msra.mxu0 0.0
    %630 = vmatpush.msra.mxu0 0.0
    %631 = vmatpush.msra.mxu0 0.0
    %632 = vmatpush.msra.mxu0 0.0
    %633 = vmatpush.msra.mxu0 0.0
    %634 = vmatpush.msra.mxu0 0.0
    %635 = vmatpush.msra.mxu0 0.0
    %636 = vmatpush.msra.mxu0 0.0
    %637 = vmatpush.msra.mxu0 0.0
    %638 = vmatpush.msra.mxu0 0.0
    %639 = vmatpush.msra.mxu0 0.0
    %v640 = vand.u32 %v191, 4294901760
    %v641 = vsub.f32 %v191, %v640
    %642 = vmatpush.msra.mxu0 %v641
    %v643 = vand.u32 %v571, 4294901760
    %v644 = vsub.f32 %v571, %v643
    %645 = vmatmul.f32.gmra.mxu0 %v644
    %v646 = vpop.f32.mrf.mxu0
    %v647 = vadd.f32 %v623, %v646
    %648 = vdwg.mxu0
    %649 = vmatpush.msra.mxu0 0.0
    %650 = vmatpush.msra.mxu0 0.0
    %651 = vmatpush.msra.mxu0 0.0
    %652 = vmatpush.msra.mxu0 0.0
    %653 = vmatpush.msra.mxu0 0.0
    %654 = vmatpush.msra.mxu0 0.0
    %655 = vmatpush.msra.mxu0 0.0
    %656 = vmatpush.msra.mxu0 0.0
    %657 = vmatpush.msra.mxu0 0.0
    %658 = vmatpush.msra.mxu0 0.0
    %659 = vmatpush.msra.mxu0 0.0
    %660 = vmatpush.msra.mxu0 0.0
    %661 = vmatpush.msra.mxu0 0.0
    %662 = vmatpush.msra.mxu0 0.0
    %663 = vmatpush.msra.mxu0 0.0
    %v664 = vand.u32 %v191, 4294901760
    %665 = vmatpush.msra.mxu0 %v664
    %v666 = vand.u32 %v571, 4294901760
    %v667 = vsub.f32 %v571, %v666
    %v668 = vand.u32 %v667, 4294901760
    %669 = vmatmul.f32.gmra.mxu0 %v668
    %v670 = vpop.f32.mrf.mxu0
    %v671 = vadd.f32 %v647, %v670
    %672 = vdwg.mxu0
    %673 = vmatpush.msra.mxu0 0.0
    %674 = vmatpush.msra.mxu0 0.0
    %675 = vmatpush.msra.mxu0 0.0
    %676 = vmatpush.msra.mxu0 0.0
    %677 = vmatpush.msra.mxu0 0.0
    %678 = vmatpush.msra.mxu0 0.0
    %679 = vmatpush.msra.mxu0 0.0
    %680 = vmatpush.msra.mxu0 0.0
    %681 = vmatpush.msra.mxu0 0.0
    %682 = vmatpush.msra.mxu0 0.0
    %683 = vmatpush.msra.mxu0 0.0
    %684 = vmatpush.msra.mxu0 0.0
    %685 = vmatpush.msra.mxu0 0.0
    %686 = vmatpush.msra.mxu0 0.0
    %687 = vmatpush.msra.mxu0 0.0
    %v688 = vand.u32 %v191, 4294901760
    %v689 = vsub.f32 %v191, %v688
    %v690 = vand.u32 %v689, 4294901760
    %691 = vmatpush.msra.mxu0 %v690
    %v692 = vand.u32 %v571, 4294901760
    %693 = vmatmul.f32.gmra.mxu0 %v692
    %v694 = vpop.f32.mrf.mxu0
    %v695 = vadd.f32 %v671, %v694
    %696 = vdwg.mxu0
    %697 = vmatpush.msra.mxu0 0.0
    %698 = vmatpush.msra.mxu0 0.0
    %699 = vmatpush.msra.mxu0 0.0
    %700 = vmatpush.msra.mxu0 0.0
    %701 = vmatpush.msra.mxu0 0.0
    %702 = vmatpush.msra.mxu0 0.0
    %703 = vmatpush.msra.mxu0 0.0
    %704 = vmatpush.msra.mxu0 0.0
    %705 = vmatpush.msra.mxu0 0.0
    %706 = vmatpush.msra.mxu0 0.0
    %707 = vmatpush.msra.mxu0 0.0
    %708 = vmatpush.msra.mxu0 0.0
    %709 = vmatpush.msra.mxu0 0.0
    %710 = vmatpush.msra.mxu0 0.0
    %711 = vmatpush.msra.mxu0 0.0
    %v712 = vand.u32 %v191, 4294901760
    %713 = vmatpush.msra.mxu0 %v712
    %v714 = vand.u32 %v571, 4294901760
    %715 = vmatmul.f32.gmra.mxu0 %v714
    %v716 = vpop.f32.mrf.mxu0
    %v717 = vadd.f32 %v695, %v716
    %718 = vdwg.mxu0
    %720 = vrot.lane.b32.xlu0 %v717, 16
    %v721 = vpop.permute.xlu0 %720
    %v723 = vadd.f32 %v183, %v721
    %725 = vrot.lane.b32.xlu0 %v340, 16
    %v726 = vpop.permute.xlu0 %725
    %v728 = vadd.f32 %v723, %v726
    %v729 = vxor.u32 %v728, 2147483648
    %v730 = vmul.f32 %v729, 1.442695
    %v731 = vpow.pop %v730
    %v732 = vadd.f32 %v731, 1.0
    %v733 = vrcp.pop %v732
    %v734 = vmul.f32 %v732, %v733
    %v735 = vsub.f32 1.0, %v734
    %v736 = vmul.f32 %v733, %v735
    %v737 = vadd.f32 %v733, %v736
    %vm738 = vweird.f32 %v732
    %vm739 = vweird.f32 %v733
    %vm740 = vmor %vm738, %vm739
    %v741 = vsel %vm740, %v733, %v737
    %v742 = vand.u32 2147483647, %v732
    %vm743 = vcmp.eq.f32.partialorder %v742, 8.507059e+37
    %v744 = vand.u32 %v732, 2147483648
    %v745 = vor.u32 1.1754944e-38, %v744
    %v746 = vsel %vm743, %v745, %v741
    %v747 = vmul.f32 1.0, %v746
    %v748 = vtanh.pop %v728
    %750 = vrot.lane.b32.xlu0 %v372, 16
    %v751 = vpop.permute.xlu0 %750
    %v753 = vmul.f32 %v747, %v751
    %755 = vrot.lane.b32.xlu0 %v748, 116
    %v756 = vpop.permute.xlu0 %755
    %v758 = vmul.f32 %v747, %v756
    %760 = vrot.lane.b32.xlu0 %v758, 4
    %v761 = vpop.permute.xlu0 %760
    %v763 = vadd.f32 %v753, %v761
    %v764 = vtanh.pop %v763
    %766 = vrot.lane.b32.xlu0 %v764, 4
    %v767 = vpop.permute.xlu0 %766
    %v769 = vmul.f32 %v747, %v767
    %771 = vrot.lane.b32.xlu0 %v769, 104
    %v772 = vpop.permute.xlu0 %771
    %775 = vrot.lane.b32.xlu0 %v570, 124
    %v776 = vpop.permute.xlu0 %775
    %v778 = vsel %vm185, %v772, %v776
    %v780 = vsel %vm35, %v778, 0
    %782 = vmatpush.msra.mxu0 0.0
    %783 = vmatpush.msra.mxu0 0.0
    %784 = vmatpush.msra.mxu0 0.0
    %785 = vmatpush.msra.mxu0 0.0
    %786 = vmatpush.msra.mxu0 0.0
    %787 = vmatpush.msra.mxu0 0.0
    %788 = vmatpush.msra.mxu0 0.0
    %789 = vmatpush.msra.mxu0 0.0
    %790 = vmatpush.msra.mxu0 0.0
    %791 = vmatpush.msra.mxu0 0.0
    %792 = vmatpush.msra.mxu0 0.0
    %793 = vmatpush.msra.mxu0 0.0
    %794 = vmatpush.msra.mxu0 0.0
    %795 = vmatpush.msra.mxu0 0.0
    %796 = vmatpush.msra.mxu0 0.0
    %v797 = vand.u32 %v32, 4294901760
    %798 = vmatpush.msra.mxu0 %v797
    %v799 = vand.u32 %v780, 4294901760
    %v800 = vsub.f32 %v780, %v799
    %v801 = vand.u32 %v800, 4294901760
    %v802 = vsub.f32 %v800, %v801
    %v803 = vand.u32 %v802, 4294901760
    %804 = vmatmul.f32.gmra.mxu0 %v803
    %v805 = vpop.f32.mrf.mxu0
    %v806 = vadd.f32 %v384, %v805
    %807 = vdwg.mxu0
    %808 = vmatpush.msra.mxu0 0.0
    %809 = vmatpush.msra.mxu0 0.0
    %810 = vmatpush.msra.mxu0 0.0
    %811 = vmatpush.msra.mxu0 0.0
    %812 = vmatpush.msra.mxu0 0.0
    %813 = vmatpush.msra.mxu0 0.0
    %814 = vmatpush.msra.mxu0 0.0
    %815 = vmatpush.msra.mxu0 0.0
    %816 = vmatpush.msra.mxu0 0.0
    %817 = vmatpush.msra.mxu0 0.0
    %818 = vmatpush.msra.mxu0 0.0
    %819 = vmatpush.msra.mxu0 0.0
    %820 = vmatpush.msra.mxu0 0.0
    %821 = vmatpush.msra.mxu0 0.0
    %822 = vmatpush.msra.mxu0 0.0
    %v823 = vand.u32 %v32, 4294901760
    %v824 = vsub.f32 %v32, %v823
    %v825 = vand.u32 %v824, 4294901760
    %v826 = vsub.f32 %v824, %v825
    %v827 = vand.u32 %v826, 4294901760
    %828 = vmatpush.msra.mxu0 %v827
    %v829 = vand.u32 %v780, 4294901760
    %830 = vmatmul.f32.gmra.mxu0 %v829
    %v831 = vpop.f32.mrf.mxu0
    %v832 = vadd.f32 %v806, %v831
    %833 = vdwg.mxu0
    %834 = vmatpush.msra.mxu0 0.0
    %835 = vmatpush.msra.mxu0 0.0
    %836 = vmatpush.msra.mxu0 0.0
    %837 = vmatpush.msra.mxu0 0.0
    %838 = vmatpush.msra.mxu0 0.0
    %839 = vmatpush.msra.mxu0 0.0
    %840 = vmatpush.msra.mxu0 0.0
    %841 = vmatpush.msra.mxu0 0.0
    %842 = vmatpush.msra.mxu0 0.0
    %843 = vmatpush.msra.mxu0 0.0
    %844 = vmatpush.msra.mxu0 0.0
    %845 = vmatpush.msra.mxu0 0.0
    %846 = vmatpush.msra.mxu0 0.0
    %847 = vmatpush.msra.mxu0 0.0
    %848 = vmatpush.msra.mxu0 0.0
    %v849 = vand.u32 %v32, 4294901760
    %v850 = vsub.f32 %v32, %v849
    %851 = vmatpush.msra.mxu0 %v850
    %v852 = vand.u32 %v780, 4294901760
    %v853 = vsub.f32 %v780, %v852
    %854 = vmatmul.f32.gmra.mxu0 %v853
    %v855 = vpop.f32.mrf.mxu0
    %v856 = vadd.f32 %v832, %v855
    %857 = vdwg.mxu0
    %858 = vmatpush.msra.mxu0 0.0
    %859 = vmatpush.msra.mxu0 0.0
    %860 = vmatpush.msra.mxu0 0.0
    %861 = vmatpush.msra.mxu0 0.0
    %862 = vmatpush.msra.mxu0 0.0
    %863 = vmatpush.msra.mxu0 0.0
    %864 = vmatpush.msra.mxu0 0.0
    %865 = vmatpush.msra.mxu0 0.0
    %866 = vmatpush.msra.mxu0 0.0
    %867 = vmatpush.msra.mxu0 0.0
    %868 = vmatpush.msra.mxu0 0.0
    %869 = vmatpush.msra.mxu0 0.0
    %870 = vmatpush.msra.mxu0 0.0
    %871 = vmatpush.msra.mxu0 0.0
    %872 = vmatpush.msra.mxu0 0.0
    %v873 = vand.u32 %v32, 4294901760
    %874 = vmatpush.msra.mxu0 %v873
    %v875 = vand.u32 %v780, 4294901760
    %v876 = vsub.f32 %v780, %v875
    %v877 = vand.u32 %v876, 4294901760
    %878 = vmatmul.f32.gmra.mxu0 %v877
    %v879 = vpop.f32.mrf.mxu0
    %v880 = vadd.f32 %v856, %v879
    %881 = vdwg.mxu0
    %882 = vmatpush.msra.mxu0 0.0
    %883 = vmatpush.msra.mxu0 0.0
    %884 = vmatpush.msra.mxu0 0.0
    %885 = vmatpush.msra.mxu0 0.0
    %886 = vmatpush.msra.mxu0 0.0
    %887 = vmatpush.msra.mxu0 0.0
    %888 = vmatpush.msra.mxu0 0.0
    %889 = vmatpush.msra.mxu0 0.0
    %890 = vmatpush.msra.mxu0 0.0
    %891 = vmatpush.msra.mxu0 0.0
    %892 = vmatpush.msra.mxu0 0.0
    %893 = vmatpush.msra.mxu0 0.0
    %894 = vmatpush.msra.mxu0 0.0
    %895 = vmatpush.msra.mxu0 0.0
    %896 = vmatpush.msra.mxu0 0.0
    %v897 = vand.u32 %v32, 4294901760
    %v898 = vsub.f32 %v32, %v897
    %v899 = vand.u32 %v898, 4294901760
    %900 = vmatpush.msra.mxu0 %v899
    %v901 = vand.u32 %v780, 4294901760
    %902 = vmatmul.f32.gmra.mxu0 %v901
    %v903 = vpop.f32.mrf.mxu0
    %v904 = vadd.f32 %v880, %v903
    %905 = vdwg.mxu0
    %906 = vmatpush.msra.mxu0 0.0
    %907 = vmatpush.msra.mxu0 0.0
    %908 = vmatpush.msra.mxu0 0.0
    %909 = vmatpush.msra.mxu0 0.0
    %910 = vmatpush.msra.mxu0 0.0
    %911 = vmatpush.msra.mxu0 0.0
    %912 = vmatpush.msra.mxu0 0.0
    %913 = vmatpush.msra.mxu0 0.0
    %914 = vmatpush.msra.mxu0 0.0
    %915 = vmatpush.msra.mxu0 0.0
    %916 = vmatpush.msra.mxu0 0.0
    %917 = vmatpush.msra.mxu0 0.0
    %918 = vmatpush.msra.mxu0 0.0
    %919 = vmatpush.msra.mxu0 0.0
    %920 = vmatpush.msra.mxu0 0.0
    %v921 = vand.u32 %v32, 4294901760
    %922 = vmatpush.msra.mxu0 %v921
    %v923 = vand.u32 %v780, 4294901760
    %924 = vmatmul.f32.gmra.mxu0 %v923
    %v925 = vpop.f32.mrf.mxu0
    %v926 = vadd.f32 %v904, %v925
    %927 = vdwg.mxu0
    %v928 = vxor.u32 %v926, 2147483648
    %v929 = vmul.f32 %v928, 1.442695
    %v930 = vpow.pop %v929
    %v931 = vadd.f32 %v930, 1.0
    %v932 = vrcp.pop %v931
    %v933 = vmul.f32 %v931, %v932
    %v934 = vsub.f32 1.0, %v933
    %v935 = vmul.f32 %v932, %v934
    %v936 = vadd.f32 %v932, %v935
    %vm937 = vweird.f32 %v931
    %vm938 = vweird.f32 %v932
    %vm939 = vmor %vm937, %vm938
    %v940 = vsel %vm939, %v932, %v936
    %v941 = vand.u32 2147483647, %v931
    %vm942 = vcmp.eq.f32.partialorder %v941, 8.507059e+37
    %v943 = vand.u32 %v931, 2147483648
    %v944 = vor.u32 1.1754944e-38, %v943
    %v945 = vsel %vm942, %v944, %v940
    %v946 = vmul.f32 1.0, %v945
    %v947 = vtanh.pop %v926
    %v948 = vmul.f32 %v946, %v564
    %950 = vrot.lane.b32.xlu0 %v947, 116
    %v951 = vpop.permute.xlu0 %950
    %v953 = vmul.f32 %v946, %v951
    %955 = vrot.lane.b32.xlu0 %v953, 4
    %v956 = vpop.permute.xlu0 %955
    %v958 = vadd.f32 %v948, %v956
    %v959 = vtanh.pop %v958
    %961 = vrot.lane.b32.xlu0 %v959, 4
    %v962 = vpop.permute.xlu0 %961
    %v964 = vmul.f32 %v946, %v962
    %v965 = vsel %vm185, %v772, 0
    %967 = vmatpush.msra.mxu0 0.0
    %968 = vmatpush.msra.mxu0 0.0
    %969 = vmatpush.msra.mxu0 0.0
    %970 = vmatpush.msra.mxu0 0.0
    %971 = vmatpush.msra.mxu0 0.0
    %972 = vmatpush.msra.mxu0 0.0
    %973 = vmatpush.msra.mxu0 0.0
    %974 = vmatpush.msra.mxu0 0.0
    %975 = vmatpush.msra.mxu0 0.0
    %976 = vmatpush.msra.mxu0 0.0
    %977 = vmatpush.msra.mxu0 0.0
    %978 = vmatpush.msra.mxu0 0.0
    %979 = vmatpush.msra.mxu0 0.0
    %980 = vmatpush.msra.mxu0 0.0
    %981 = vmatpush.msra.mxu0 0.0
    %v982 = vand.u32 %v191, 4294901760
    %983 = vmatpush.msra.mxu0 %v982
    %v984 = vand.u32 %v965, 4294901760
    %v985 = vsub.f32 %v965, %v984
    %v986 = vand.u32 %v985, 4294901760
    %v987 = vsub.f32 %v985, %v986
    %v988 = vand.u32 %v987, 4294901760
    %989 = vmatmul.f32.gmra.mxu0 %v988
    %v990 = vpop.f32.mrf.mxu0
    %v991 = vadd.f32 0.0, %v990
    %992 = vdwg.mxu0
    %993 = vmatpush.msra.mxu0 0.0
    %994 = vmatpush.msra.mxu0 0.0
    %995 = vmatpush.msra.mxu0 0.0
    %996 = vmatpush.msra.mxu0 0.0
    %997 = vmatpush.msra.mxu0 0.0
    %998 = vmatpush.msra.mxu0 0.0
    %999 = vmatpush.msra.mxu0 0.0
    %1000 = vmatpush.msra.mxu0 0.0
    %1001 = vmatpush.msra.mxu0 0.0
    %1002 = vmatpush.msra.mxu0 0.0
    %1003 = vmatpush.msra.mxu0 0.0
    %1004 = vmatpush.msra.mxu0 0.0
    %1005 = vmatpush.msra.mxu0 0.0
    %1006 = vmatpush.msra.mxu0 0.0
    %1007 = vmatpush.msra.mxu0 0.0
    %v1008 = vand.u32 %v191, 4294901760
    %v1009 = vsub.f32 %v191, %v1008
    %v1010 = vand.u32 %v1009, 4294901760
    %v1011 = vsub.f32 %v1009, %v1010
    %v1012 = vand.u32 %v1011, 4294901760
    %1013 = vmatpush.msra.mxu0 %v1012
    %v1014 = vand.u32 %v965, 4294901760
    %1015 = vmatmul.f32.gmra.mxu0 %v1014
    %v1016 = vpop.f32.mrf.mxu0
    %v1017 = vadd.f32 %v991, %v1016
    %1018 = vdwg.mxu0
    %1019 = vmatpush.msra.mxu0 0.0
    %1020 = vmatpush.msra.mxu0 0.0
    %1021 = vmatpush.msra.mxu0 0.0
    %1022 = vmatpush.msra.mxu0 0.0
    %1023 = vmatpush.msra.mxu0 0.0
    %1024 = vmatpush.msra.mxu0 0.0
    %1025 = vmatpush.msra.mxu0 0.0
    %1026 = vmatpush.msra.mxu0 0.0
    %1027 = vmatpush.msra.mxu0 0.0
    %1028 = vmatpush.msra.mxu0 0.0
    %1029 = vmatpush.msra.mxu0 0.0
    %1030 = vmatpush.msra.mxu0 0.0
    %1031 = vmatpush.msra.mxu0 0.0
    %1032 = vmatpush.msra.mxu0 0.0
    %1033 = vmatpush.msra.mxu0 0.0
    %v1034 = vand.u32 %v191, 4294901760
    %v1035 = vsub.f32 %v191, %v1034
    %1036 = vmatpush.msra.mxu0 %v1035
    %v1037 = vand.u32 %v965, 4294901760
    %v1038 = vsub.f32 %v965, %v1037
    %1039 = vmatmul.f32.gmra.mxu0 %v1038
    %v1040 = vpop.f32.mrf.mxu0
    %v1041 = vadd.f32 %v1017, %v1040
    %1042 = vdwg.mxu0
    %1043 = vmatpush.msra.mxu0 0.0
    %1044 = vmatpush.msra.mxu0 0.0
    %1045 = vmatpush.msra.mxu0 0.0
    %1046 = vmatpush.msra.mxu0 0.0
    %1047 = vmatpush.msra.mxu0 0.0
    %1048 = vmatpush.msra.mxu0 0.0
    %1049 = vmatpush.msra.mxu0 0.0
    %1050 = vmatpush.msra.mxu0 0.0
    %1051 = vmatpush.msra.mxu0 0.0
    %1052 = vmatpush.msra.mxu0 0.0
    %1053 = vmatpush.msra.mxu0 0.0
    %1054 = vmatpush.msra.mxu0 0.0
    %1055 = vmatpush.msra.mxu0 0.0
    %1056 = vmatpush.msra.mxu0 0.0
    %1057 = vmatpush.msra.mxu0 0.0
    %v1058 = vand.u32 %v191, 4294901760
    %1059 = vmatpush.msra.mxu0 %v1058
    %v1060 = vand.u32 %v965, 4294901760
    %v1061 = vsub.f32 %v965, %v1060
    %v1062 = vand.u32 %v1061, 4294901760
    %1063 = vmatmul.f32.gmra.mxu0 %v1062
    %v1064 = vpop.f32.mrf.mxu0
    %v1065 = vadd.f32 %v1041, %v1064
    %1066 = vdwg.mxu0
    %1067 = vmatpush.msra.mxu0 0.0
    %1068 = vmatpush.msra.mxu0 0.0
    %1069 = vmatpush.msra.mxu0 0.0
    %1070 = vmatpush.msra.mxu0 0.0
    %1071 = vmatpush.msra.mxu0 0.0
    %1072 = vmatpush.msra.mxu0 0.0
    %1073 = vmatpush.msra.mxu0 0.0
    %1074 = vmatpush.msra.mxu0 0.0
    %1075 = vmatpush.msra.mxu0 0.0
    %1076 = vmatpush.msra.mxu0 0.0
    %1077 = vmatpush.msra.mxu0 0.0
    %1078 = vmatpush.msra.mxu0 0.0
    %1079 = vmatpush.msra.mxu0 0.0
    %1080 = vmatpush.msra.mxu0 0.0
    %1081 = vmatpush.msra.mxu0 0.0
    %v1082 = vand.u32 %v191, 4294901760
    %v1083 = vsub.f32 %v191, %v1082
    %v1084 = vand.u32 %v1083, 4294901760
    %1085 = vmatpush.msra.mxu0 %v1084
    %v1086 = vand.u32 %v965, 4294901760
    %1087 = vmatmul.f32.gmra.mxu0 %v1086
    %v1088 = vpop.f32.mrf.mxu0
    %v1089 = vadd.f32 %v1065, %v1088
    %1090 = vdwg.mxu0
    %1091 = vmatpush.msra.mxu0 0.0
    %1092 = vmatpush.msra.mxu0 0.0
    %1093 = vmatpush.msra.mxu0 0.0
    %1094 = vmatpush.msra.mxu0 0.0
    %1095 = vmatpush.msra.mxu0 0.0
    %1096 = vmatpush.msra.mxu0 0.0
    %1097 = vmatpush.msra.mxu0 0.0
    %1098 = vmatpush.msra.mxu0 0.0
    %1099 = vmatpush.msra.mxu0 0.0
    %1100 = vmatpush.msra.mxu0 0.0
    %1101 = vmatpush.msra.mxu0 0.0
    %1102 = vmatpush.msra.mxu0 0.0
    %1103 = vmatpush.msra.mxu0 0.0
    %1104 = vmatpush.msra.mxu0 0.0
    %1105 = vmatpush.msra.mxu0 0.0
    %v1106 = vand.u32 %v191, 4294901760
    %1107 = vmatpush.msra.mxu0 %v1106
    %v1108 = vand.u32 %v965, 4294901760
    %1109 = vmatmul.f32.gmra.mxu0 %v1108
    %v1110 = vpop.f32.mrf.mxu0
    %v1111 = vadd.f32 %v1089, %v1110
    %1112 = vdwg.mxu0
    %1114 = vrot.lane.b32.xlu0 %v1111, 32
    %v1115 = vpop.permute.xlu0 %1114
    %v1117 = vadd.f32 %v183, %v1115
    %1118 = vrot.lane.b32.xlu0 %v340, 32
    %v1119 = vpop.permute.xlu0 %1118
    %v1121 = vadd.f32 %v1117, %v1119
    %v1122 = vxor.u32 %v1121, 2147483648
    %v1123 = vmul.f32 %v1122, 1.442695
    %v1124 = vpow.pop %v1123
    %v1125 = vadd.f32 %v1124, 1.0
    %v1126 = vrcp.pop %v1125
    %v1127 = vmul.f32 %v1125, %v1126
    %v1128 = vsub.f32 1.0, %v1127
    %v1129 = vmul.f32 %v1126, %v1128
    %v1130 = vadd.f32 %v1126, %v1129
    %vm1131 = vweird.f32 %v1125
    %vm1132 = vweird.f32 %v1126
    %vm1133 = vmor %vm1131, %vm1132
    %v1134 = vsel %vm1133, %v1126, %v1130
    %v1135 = vand.u32 2147483647, %v1125
    %vm1136 = vcmp.eq.f32.partialorder %v1135, 8.507059e+37
    %v1137 = vand.u32 %v1125, 2147483648
    %v1138 = vor.u32 1.1754944e-38, %v1137
    %v1139 = vsel %vm1136, %v1138, %v1134
    %v1140 = vmul.f32 1.0, %v1139
    %v1141 = vtanh.pop %v1121
    %1143 = vrot.lane.b32.xlu0 %v763, 16
    %v1144 = vpop.permute.xlu0 %1143
    %v1146 = vmul.f32 %v1140, %v1144
    %1148 = vrot.lane.b32.xlu0 %v1141, 116
    %v1149 = vpop.permute.xlu0 %1148
    %v1151 = vmul.f32 %v1140, %v1149
    %1153 = vrot.lane.b32.xlu0 %v1151, 4
    %v1154 = vpop.permute.xlu0 %1153
    %v1156 = vadd.f32 %v1146, %v1154
    %v1157 = vtanh.pop %v1156
    %1159 = vrot.lane.b32.xlu0 %v1157, 4
    %v1160 = vpop.permute.xlu0 %1159
    %v1162 = vmul.f32 %v1140, %v1160
    %1164 = vrot.lane.b32.xlu0 %v1162, 88
    %v1165 = vpop.permute.xlu0 %1164
    %1168 = vrot.lane.b32.xlu0 %v964, 124
    %v1169 = vpop.permute.xlu0 %1168
    %v1171 = vsel %vm185, %v1165, %v1169
    %v1173 = vsel %vm35, %v1171, 0
    %1175 = vmatpush.msra.mxu0 0.0
    %1176 = vmatpush.msra.mxu0 0.0
    %1177 = vmatpush.msra.mxu0 0.0
    %1178 = vmatpush.msra.mxu0 0.0
    %1179 = vmatpush.msra.mxu0 0.0
    %1180 = vmatpush.msra.mxu0 0.0
    %1181 = vmatpush.msra.mxu0 0.0
    %1182 = vmatpush.msra.mxu0 0.0
    %1183 = vmatpush.msra.mxu0 0.0
    %1184 = vmatpush.msra.mxu0 0.0
    %1185 = vmatpush.msra.mxu0 0.0
    %1186 = vmatpush.msra.mxu0 0.0
    %1187 = vmatpush.msra.mxu0 0.0
    %1188 = vmatpush.msra.mxu0 0.0
    %1189 = vmatpush.msra.mxu0 0.0
    %v1190 = vand.u32 %v32, 4294901760
    %1191 = vmatpush.msra.mxu0 %v1190
    %v1192 = vand.u32 %v1173, 4294901760
    %v1193 = vsub.f32 %v1173, %v1192
    %v1194 = vand.u32 %v1193, 4294901760
    %v1195 = vsub.f32 %v1193, %v1194
    %v1196 = vand.u32 %v1195, 4294901760
    %1197 = vmatmul.f32.gmra.mxu0 %v1196
    %v1198 = vpop.f32.mrf.mxu0
    %v1199 = vadd.f32 %v384, %v1198
    %1200 = vdwg.mxu0
    %1201 = vmatpush.msra.mxu0 0.0
    %1202 = vmatpush.msra.mxu0 0.0
    %1203 = vmatpush.msra.mxu0 0.0
    %1204 = vmatpush.msra.mxu0 0.0
    %1205 = vmatpush.msra.mxu0 0.0
    %1206 = vmatpush.msra.mxu0 0.0
    %1207 = vmatpush.msra.mxu0 0.0
    %1208 = vmatpush.msra.mxu0 0.0
    %1209 = vmatpush.msra.mxu0 0.0
    %1210 = vmatpush.msra.mxu0 0.0
    %1211 = vmatpush.msra.mxu0 0.0
    %1212 = vmatpush.msra.mxu0 0.0
    %1213 = vmatpush.msra.mxu0 0.0
    %1214 = vmatpush.msra.mxu0 0.0
    %1215 = vmatpush.msra.mxu0 0.0
    %v1216 = vand.u32 %v32, 4294901760
    %v1217 = vsub.f32 %v32, %v1216
    %v1218 = vand.u32 %v1217, 4294901760
    %v1219 = vsub.f32 %v1217, %v1218
    %v1220 = vand.u32 %v1219, 4294901760
    %1221 = vmatpush.msra.mxu0 %v1220
    %v1222 = vand.u32 %v1173, 4294901760
    %1223 = vmatmul.f32.gmra.mxu0 %v1222
    %v1224 = vpop.f32.mrf.mxu0
    %v1225 = vadd.f32 %v1199, %v1224
    %1226 = vdwg.mxu0
    %1227 = vmatpush.msra.mxu0 0.0
    %1228 = vmatpush.msra.mxu0 0.0
    %1229 = vmatpush.msra.mxu0 0.0
    %1230 = vmatpush.msra.mxu0 0.0
    %1231 = vmatpush.msra.mxu0 0.0
    %1232 = vmatpush.msra.mxu0 0.0
    %1233 = vmatpush.msra.mxu0 0.0
    %1234 = vmatpush.msra.mxu0 0.0
    %1235 = vmatpush.msra.mxu0 0.0
    %1236 = vmatpush.msra.mxu0 0.0
    %1237 = vmatpush.msra.mxu0 0.0
    %1238 = vmatpush.msra.mxu0 0.0
    %1239 = vmatpush.msra.mxu0 0.0
    %1240 = vmatpush.msra.mxu0 0.0
    %1241 = vmatpush.msra.mxu0 0.0
    %v1242 = vand.u32 %v32, 4294901760
    %v1243 = vsub.f32 %v32, %v1242
    %1244 = vmatpush.msra.mxu0 %v1243
    %v1245 = vand.u32 %v1173, 4294901760
    %v1246 = vsub.f32 %v1173, %v1245
    %1247 = vmatmul.f32.gmra.mxu0 %v1246
    %v1248 = vpop.f32.mrf.mxu0
    %v1249 = vadd.f32 %v1225, %v1248
    %1250 = vdwg.mxu0
    %1251 = vmatpush.msra.mxu0 0.0
    %1252 = vmatpush.msra.mxu0 0.0
    %1253 = vmatpush.msra.mxu0 0.0
    %1254 = vmatpush.msra.mxu0 0.0
    %1255 = vmatpush.msra.mxu0 0.0
    %1256 = vmatpush.msra.mxu0 0.0
    %1257 = vmatpush.msra.mxu0 0.0
    %1258 = vmatpush.msra.mxu0 0.0
    %1259 = vmatpush.msra.mxu0 0.0
    %1260 = vmatpush.msra.mxu0 0.0
    %1261 = vmatpush.msra.mxu0 0.0
    %1262 = vmatpush.msra.mxu0 0.0
    %1263 = vmatpush.msra.mxu0 0.0
    %1264 = vmatpush.msra.mxu0 0.0
    %1265 = vmatpush.msra.mxu0 0.0
    %v1266 = vand.u32 %v32, 4294901760
    %1267 = vmatpush.msra.mxu0 %v1266
    %v1268 = vand.u32 %v1173, 4294901760
    %v1269 = vsub.f32 %v1173, %v1268
    %v1270 = vand.u32 %v1269, 4294901760
    %1271 = vmatmul.f32.gmra.mxu0 %v1270
    %v1272 = vpop.f32.mrf.mxu0
    %v1273 = vadd.f32 %v1249, %v1272
    %1274 = vdwg.mxu0
    %1275 = vmatpush.msra.mxu0 0.0
    %1276 = vmatpush.msra.mxu0 0.0
    %1277 = vmatpush.msra.mxu0 0.0
    %1278 = vmatpush.msra.mxu0 0.0
    %1279 = vmatpush.msra.mxu0 0.0
    %1280 = vmatpush.msra.mxu0 0.0
    %1281 = vmatpush.msra.mxu0 0.0
    %1282 = vmatpush.msra.mxu0 0.0
    %1283 = vmatpush.msra.mxu0 0.0
    %1284 = vmatpush.msra.mxu0 0.0
    %1285 = vmatpush.msra.mxu0 0.0
    %1286 = vmatpush.msra.mxu0 0.0
    %1287 = vmatpush.msra.mxu0 0.0
    %1288 = vmatpush.msra.mxu0 0.0
    %1289 = vmatpush.msra.mxu0 0.0
    %v1290 = vand.u32 %v32, 4294901760
    %v1291 = vsub.f32 %v32, %v1290
    %v1292 = vand.u32 %v1291, 4294901760
    %1293 = vmatpush.msra.mxu0 %v1292
    %v1294 = vand.u32 %v1173, 4294901760
    %1295 = vmatmul.f32.gmra.mxu0 %v1294
    %v1296 = vpop.f32.mrf.mxu0
    %v1297 = vadd.f32 %v1273, %v1296
    %1298 = vdwg.mxu0
    %1299 = vmatpush.msra.mxu0 0.0
    %1300 = vmatpush.msra.mxu0 0.0
    %1301 = vmatpush.msra.mxu0 0.0
    %1302 = vmatpush.msra.mxu0 0.0
    %1303 = vmatpush.msra.mxu0 0.0
    %1304 = vmatpush.msra.mxu0 0.0
    %1305 = vmatpush.msra.mxu0 0.0
    %1306 = vmatpush.msra.mxu0 0.0
    %1307 = vmatpush.msra.mxu0 0.0
    %1308 = vmatpush.msra.mxu0 0.0
    %1309 = vmatpush.msra.mxu0 0.0
    %1310 = vmatpush.msra.mxu0 0.0
    %1311 = vmatpush.msra.mxu0 0.0
    %1312 = vmatpush.msra.mxu0 0.0
    %1313 = vmatpush.msra.mxu0 0.0
    %v1314 = vand.u32 %v32, 4294901760
    %1315 = vmatpush.msra.mxu0 %v1314
    %v1316 = vand.u32 %v1173, 4294901760
    %1317 = vmatmul.f32.gmra.mxu0 %v1316
    %v1318 = vpop.f32.mrf.mxu0
    %v1319 = vadd.f32 %v1297, %v1318
    %1320 = vdwg.mxu0
    %v1321 = vxor.u32 %v1319, 2147483648
    %v1322 = vmul.f32 %v1321, 1.442695
    %v1323 = vpow.pop %v1322
    %v1324 = vadd.f32 %v1323, 1.0
    %v1325 = vrcp.pop %v1324
    %v1326 = vmul.f32 %v1324, %v1325
    %v1327 = vsub.f32 1.0, %v1326
    %v1328 = vmul.f32 %v1325, %v1327
    %v1329 = vadd.f32 %v1325, %v1328
    %vm1330 = vweird.f32 %v1324
    %vm1331 = vweird.f32 %v1325
    %vm1332 = vmor %vm1330, %vm1331
    %v1333 = vsel %vm1332, %v1325, %v1329
    %v1334 = vand.u32 2147483647, %v1324
    %vm1335 = vcmp.eq.f32.partialorder %v1334, 8.507059e+37
    %v1336 = vand.u32 %v1324, 2147483648
    %v1337 = vor.u32 1.1754944e-38, %v1336
    %v1338 = vsel %vm1335, %v1337, %v1333
    %v1339 = vmul.f32 1.0, %v1338
    %v1340 = vtanh.pop %v1319
    %v1341 = vmul.f32 %v1339, %v958
    %1343 = vrot.lane.b32.xlu0 %v1340, 116
    %v1344 = vpop.permute.xlu0 %1343
    %v1346 = vmul.f32 %v1339, %v1344
    %1348 = vrot.lane.b32.xlu0 %v1346, 4
    %v1349 = vpop.permute.xlu0 %1348
    %v1351 = vadd.f32 %v1341, %v1349
    %v1352 = vtanh.pop %v1351
    %1354 = vrot.lane.b32.xlu0 %v1352, 4
    %v1355 = vpop.permute.xlu0 %1354
    %v1357 = vmul.f32 %v1339, %v1355
    %v1358 = vsel %vm185, %v1165, 0
    %1360 = vmatpush.msra.mxu0 0.0
    %1361 = vmatpush.msra.mxu0 0.0
    %1362 = vmatpush.msra.mxu0 0.0
    %1363 = vmatpush.msra.mxu0 0.0
    %1364 = vmatpush.msra.mxu0 0.0
    %1365 = vmatpush.msra.mxu0 0.0
    %1366 = vmatpush.msra.mxu0 0.0
    %1367 = vmatpush.msra.mxu0 0.0
    %1368 = vmatpush.msra.mxu0 0.0
    %1369 = vmatpush.msra.mxu0 0.0
    %1370 = vmatpush.msra.mxu0 0.0
    %1371 = vmatpush.msra.mxu0 0.0
    %1372 = vmatpush.msra.mxu0 0.0
    %1373 = vmatpush.msra.mxu0 0.0
    %1374 = vmatpush.msra.mxu0 0.0
    %v1375 = vand.u32 %v191, 4294901760
    %1376 = vmatpush.msra.mxu0 %v1375
    %v1377 = vand.u32 %v1358, 4294901760
    %v1378 = vsub.f32 %v1358, %v1377
    %v1379 = vand.u32 %v1378, 4294901760
    %v1380 = vsub.f32 %v1378, %v1379
    %v1381 = vand.u32 %v1380, 4294901760
    %1382 = vmatmul.f32.gmra.mxu0 %v1381
    %v1383 = vpop.f32.mrf.mxu0
    %v1384 = vadd.f32 0.0, %v1383
    %1385 = vdwg.mxu0
    %1386 = vmatpush.msra.mxu0 0.0
    %1387 = vmatpush.msra.mxu0 0.0
    %1388 = vmatpush.msra.mxu0 0.0
    %1389 = vmatpush.msra.mxu0 0.0
    %1390 = vmatpush.msra.mxu0 0.0
    %1391 = vmatpush.msra.mxu0 0.0
    %1392 = vmatpush.msra.mxu0 0.0
    %1393 = vmatpush.msra.mxu0 0.0
    %1394 = vmatpush.msra.mxu0 0.0
    %1395 = vmatpush.msra.mxu0 0.0
    %1396 = vmatpush.msra.mxu0 0.0
    %1397 = vmatpush.msra.mxu0 0.0
    %1398 = vmatpush.msra.mxu0 0.0
    %1399 = vmatpush.msra.mxu0 0.0
    %1400 = vmatpush.msra.mxu0 0.0
    %v1401 = vand.u32 %v191, 4294901760
    %v1402 = vsub.f32 %v191, %v1401
    %v1403 = vand.u32 %v1402, 4294901760
    %v1404 = vsub.f32 %v1402, %v1403
    %v1405 = vand.u32 %v1404, 4294901760
    %1406 = vmatpush.msra.mxu0 %v1405
    %v1407 = vand.u32 %v1358, 4294901760
    %1408 = vmatmul.f32.gmra.mxu0 %v1407
    %v1409 = vpop.f32.mrf.mxu0
    %v1410 = vadd.f32 %v1384, %v1409
    %1411 = vdwg.mxu0
    %1412 = vmatpush.msra.mxu0 0.0
    %1413 = vmatpush.msra.mxu0 0.0
    %1414 = vmatpush.msra.mxu0 0.0
    %1415 = vmatpush.msra.mxu0 0.0
    %1416 = vmatpush.msra.mxu0 0.0
    %1417 = vmatpush.msra.mxu0 0.0
    %1418 = vmatpush.msra.mxu0 0.0
    %1419 = vmatpush.msra.mxu0 0.0
    %1420 = vmatpush.msra.mxu0 0.0
    %1421 = vmatpush.msra.mxu0 0.0
    %1422 = vmatpush.msra.mxu0 0.0
    %1423 = vmatpush.msra.mxu0 0.0
    %1424 = vmatpush.msra.mxu0 0.0
    %1425 = vmatpush.msra.mxu0 0.0
    %1426 = vmatpush.msra.mxu0 0.0
    %v1427 = vand.u32 %v191, 4294901760
    %v1428 = vsub.f32 %v191, %v1427
    %1429 = vmatpush.msra.mxu0 %v1428
    %v1430 = vand.u32 %v1358, 4294901760
    %v1431 = vsub.f32 %v1358, %v1430
    %1432 = vmatmul.f32.gmra.mxu0 %v1431
    %v1433 = vpop.f32.mrf.mxu0
    %v1434 = vadd.f32 %v1410, %v1433
    %1435 = vdwg.mxu0
    %1436 = vmatpush.msra.mxu0 0.0
    %1437 = vmatpush.msra.mxu0 0.0
    %1438 = vmatpush.msra.mxu0 0.0
    %1439 = vmatpush.msra.mxu0 0.0
    %1440 = vmatpush.msra.mxu0 0.0
    %1441 = vmatpush.msra.mxu0 0.0
    %1442 = vmatpush.msra.mxu0 0.0
    %1443 = vmatpush.msra.mxu0 0.0
    %1444 = vmatpush.msra.mxu0 0.0
    %1445 = vmatpush.msra.mxu0 0.0
    %1446 = vmatpush.msra.mxu0 0.0
    %1447 = vmatpush.msra.mxu0 0.0
    %1448 = vmatpush.msra.mxu0 0.0
    %1449 = vmatpush.msra.mxu0 0.0
    %1450 = vmatpush.msra.mxu0 0.0
    %v1451 = vand.u32 %v191, 4294901760
    %1452 = vmatpush.msra.mxu0 %v1451
    %v1453 = vand.u32 %v1358, 4294901760
    %v1454 = vsub.f32 %v1358, %v1453
    %v1455 = vand.u32 %v1454, 4294901760
    %1456 = vmatmul.f32.gmra.mxu0 %v1455
    %v1457 = vpop.f32.mrf.mxu0
    %v1458 = vadd.f32 %v1434, %v1457
    %1459 = vdwg.mxu0
    %1460 = vmatpush.msra.mxu0 0.0
    %1461 = vmatpush.msra.mxu0 0.0
    %1462 = vmatpush.msra.mxu0 0.0
    %1463 = vmatpush.msra.mxu0 0.0
    %1464 = vmatpush.msra.mxu0 0.0
    %1465 = vmatpush.msra.mxu0 0.0
    %1466 = vmatpush.msra.mxu0 0.0
    %1467 = vmatpush.msra.mxu0 0.0
    %1468 = vmatpush.msra.mxu0 0.0
    %1469 = vmatpush.msra.mxu0 0.0
    %1470 = vmatpush.msra.mxu0 0.0
    %1471 = vmatpush.msra.mxu0 0.0
    %1472 = vmatpush.msra.mxu0 0.0
    %1473 = vmatpush.msra.mxu0 0.0
    %1474 = vmatpush.msra.mxu0 0.0
    %v1475 = vand.u32 %v191, 4294901760
    %v1476 = vsub.f32 %v191, %v1475
    %v1477 = vand.u32 %v1476, 4294901760
    %1478 = vmatpush.msra.mxu0 %v1477
    %v1479 = vand.u32 %v1358, 4294901760
    %1480 = vmatmul.f32.gmra.mxu0 %v1479
    %v1481 = vpop.f32.mrf.mxu0
    %v1482 = vadd.f32 %v1458, %v1481
    %1483 = vdwg.mxu0
    %1484 = vmatpush.msra.mxu0 0.0
    %1485 = vmatpush.msra.mxu0 0.0
    %1486 = vmatpush.msra.mxu0 0.0
    %1487 = vmatpush.msra.mxu0 0.0
    %1488 = vmatpush.msra.mxu0 0.0
    %1489 = vmatpush.msra.mxu0 0.0
    %1490 = vmatpush.msra.mxu0 0.0
    %1491 = vmatpush.msra.mxu0 0.0
    %1492 = vmatpush.msra.mxu0 0.0
    %1493 = vmatpush.msra.mxu0 0.0
    %1494 = vmatpush.msra.mxu0 0.0
    %1495 = vmatpush.msra.mxu0 0.0
    %1496 = vmatpush.msra.mxu0 0.0
    %1497 = vmatpush.msra.mxu0 0.0
    %1498 = vmatpush.msra.mxu0 0.0
    %v1499 = vand.u32 %v191, 4294901760
    %1500 = vmatpush.msra.mxu0 %v1499
    %v1501 = vand.u32 %v1358, 4294901760
    %1502 = vmatmul.f32.gmra.mxu0 %v1501
    %v1503 = vpop.f32.mrf.mxu0
    %v1504 = vadd.f32 %v1482, %v1503
    %1505 = vdwg.mxu0
    %1507 = vrot.lane.b32.xlu0 %v1504, 48
    %v1508 = vpop.permute.xlu0 %1507
    %v1510 = vadd.f32 %v183, %v1508
    %1511 = vrot.lane.b32.xlu0 %v340, 48
    %v1512 = vpop.permute.xlu0 %1511
    %v1514 = vadd.f32 %v1510, %v1512
    %v1515 = vxor.u32 %v1514, 2147483648
    %v1516 = vmul.f32 %v1515, 1.442695
    %v1517 = vpow.pop %v1516
    %v1518 = vadd.f32 %v1517, 1.0
    %v1519 = vrcp.pop %v1518
    %v1520 = vmul.f32 %v1518, %v1519
    %v1521 = vsub.f32 1.0, %v1520
    %v1522 = vmul.f32 %v1519, %v1521
    %v1523 = vadd.f32 %v1519, %v1522
    %vm1524 = vweird.f32 %v1518
    %vm1525 = vweird.f32 %v1519
    %vm1526 = vmor %vm1524, %vm1525
    %v1527 = vsel %vm1526, %v1519, %v1523
    %v1528 = vand.u32 2147483647, %v1518
    %vm1529 = vcmp.eq.f32.partialorder %v1528, 8.507059e+37
    %v1530 = vand.u32 %v1518, 2147483648
    %v1531 = vor.u32 1.1754944e-38, %v1530
    %v1532 = vsel %vm1529, %v1531, %v1527
    %v1533 = vmul.f32 1.0, %v1532
    %v1534 = vtanh.pop %v1514
    %1536 = vrot.lane.b32.xlu0 %v1156, 16
    %v1537 = vpop.permute.xlu0 %1536
    %v1539 = vmul.f32 %v1533, %v1537
    %1541 = vrot.lane.b32.xlu0 %v1534, 116
    %v1542 = vpop.permute.xlu0 %1541
    %v1544 = vmul.f32 %v1533, %v1542
    %1546 = vrot.lane.b32.xlu0 %v1544, 4
    %v1547 = vpop.permute.xlu0 %1546
    %v1549 = vadd.f32 %v1539, %v1547
    %v1550 = vtanh.pop %v1549
    %1552 = vrot.lane.b32.xlu0 %v1550, 4
    %v1553 = vpop.permute.xlu0 %1552
    %v1555 = vmul.f32 %v1533, %v1553
    %1557 = vrot.lane.b32.xlu0 %v1555, 72
    %v1558 = vpop.permute.xlu0 %1557
    %1561 = vrot.lane.b32.xlu0 %v1357, 124
    %v1562 = vpop.permute.xlu0 %1561
    %v1564 = vsel %vm185, %v1558, %v1562
    %v1566 = vsel %vm35, %v1564, 0
    %1568 = vmatpush.msra.mxu0 0.0
    %1569 = vmatpush.msra.mxu0 0.0
    %1570 = vmatpush.msra.mxu0 0.0
    %1571 = vmatpush.msra.mxu0 0.0
    %1572 = vmatpush.msra.mxu0 0.0
    %1573 = vmatpush.msra.mxu0 0.0
    %1574 = vmatpush.msra.mxu0 0.0
    %1575 = vmatpush.msra.mxu0 0.0
    %1576 = vmatpush.msra.mxu0 0.0
    %1577 = vmatpush.msra.mxu0 0.0
    %1578 = vmatpush.msra.mxu0 0.0
    %1579 = vmatpush.msra.mxu0 0.0
    %1580 = vmatpush.msra.mxu0 0.0
    %1581 = vmatpush.msra.mxu0 0.0
    %1582 = vmatpush.msra.mxu0 0.0
    %v1583 = vand.u32 %v32, 4294901760
    %1584 = vmatpush.msra.mxu0 %v1583
    %v1585 = vand.u32 %v1566, 4294901760
    %v1586 = vsub.f32 %v1566, %v1585
    %v1587 = vand.u32 %v1586, 4294901760
    %v1588 = vsub.f32 %v1586, %v1587
    %v1589 = vand.u32 %v1588, 4294901760
    %1590 = vmatmul.f32.gmra.mxu0 %v1589
    %v1591 = vpop.f32.mrf.mxu0
    %v1592 = vadd.f32 %v384, %v1591
    %1593 = vdwg.mxu0
    %1594 = vmatpush.msra.mxu0 0.0
    %1595 = vmatpush.msra.mxu0 0.0
    %1596 = vmatpush.msra.mxu0 0.0
    %1597 = vmatpush.msra.mxu0 0.0
    %1598 = vmatpush.msra.mxu0 0.0
    %1599 = vmatpush.msra.mxu0 0.0
    %1600 = vmatpush.msra.mxu0 0.0
    %1601 = vmatpush.msra.mxu0 0.0
    %1602 = vmatpush.msra.mxu0 0.0
    %1603 = vmatpush.msra.mxu0 0.0
    %1604 = vmatpush.msra.mxu0 0.0
    %1605 = vmatpush.msra.mxu0 0.0
    %1606 = vmatpush.msra.mxu0 0.0
    %1607 = vmatpush.msra.mxu0 0.0
    %1608 = vmatpush.msra.mxu0 0.0
    %v1609 = vand.u32 %v32, 4294901760
    %v1610 = vsub.f32 %v32, %v1609
    %v1611 = vand.u32 %v1610, 4294901760
    %v1612 = vsub.f32 %v1610, %v1611
    %v1613 = vand.u32 %v1612, 4294901760
    %1614 = vmatpush.msra.mxu0 %v1613
    %v1615 = vand.u32 %v1566, 4294901760
    %1616 = vmatmul.f32.gmra.mxu0 %v1615
    %v1617 = vpop.f32.mrf.mxu0
    %v1618 = vadd.f32 %v1592, %v1617
    %1619 = vdwg.mxu0
    %1620 = vmatpush.msra.mxu0 0.0
    %1621 = vmatpush.msra.mxu0 0.0
    %1622 = vmatpush.msra.mxu0 0.0
    %1623 = vmatpush.msra.mxu0 0.0
    %1624 = vmatpush.msra.mxu0 0.0
    %1625 = vmatpush.msra.mxu0 0.0
    %1626 = vmatpush.msra.mxu0 0.0
    %1627 = vmatpush.msra.mxu0 0.0
    %1628 = vmatpush.msra.mxu0 0.0
    %1629 = vmatpush.msra.mxu0 0.0
    %1630 = vmatpush.msra.mxu0 0.0
    %1631 = vmatpush.msra.mxu0 0.0
    %1632 = vmatpush.msra.mxu0 0.0
    %1633 = vmatpush.msra.mxu0 0.0
    %1634 = vmatpush.msra.mxu0 0.0
    %v1635 = vand.u32 %v32, 4294901760
    %v1636 = vsub.f32 %v32, %v1635
    %1637 = vmatpush.msra.mxu0 %v1636
    %v1638 = vand.u32 %v1566, 4294901760
    %v1639 = vsub.f32 %v1566, %v1638
    %1640 = vmatmul.f32.gmra.mxu0 %v1639
    %v1641 = vpop.f32.mrf.mxu0
    %v1642 = vadd.f32 %v1618, %v1641
    %1643 = vdwg.mxu0
    %1644 = vmatpush.msra.mxu0 0.0
    %1645 = vmatpush.msra.mxu0 0.0
    %1646 = vmatpush.msra.mxu0 0.0
    %1647 = vmatpush.msra.mxu0 0.0
    %1648 = vmatpush.msra.mxu0 0.0
    %1649 = vmatpush.msra.mxu0 0.0
    %1650 = vmatpush.msra.mxu0 0.0
    %1651 = vmatpush.msra.mxu0 0.0
    %1652 = vmatpush.msra.mxu0 0.0
    %1653 = vmatpush.msra.mxu0 0.0
    %1654 = vmatpush.msra.mxu0 0.0
    %1655 = vmatpush.msra.mxu0 0.0
    %1656 = vmatpush.msra.mxu0 0.0
    %1657 = vmatpush.msra.mxu0 0.0
    %1658 = vmatpush.msra.mxu0 0.0
    %v1659 = vand.u32 %v32, 4294901760
    %1660 = vmatpush.msra.mxu0 %v1659
    %v1661 = vand.u32 %v1566, 4294901760
    %v1662 = vsub.f32 %v1566, %v1661
    %v1663 = vand.u32 %v1662, 4294901760
    %1664 = vmatmul.f32.gmra.mxu0 %v1663
    %v1665 = vpop.f32.mrf.mxu0
    %v1666 = vadd.f32 %v1642, %v1665
    %1667 = vdwg.mxu0
    %1668 = vmatpush.msra.mxu0 0.0
    %1669 = vmatpush.msra.mxu0 0.0
    %1670 = vmatpush.msra.mxu0 0.0
    %1671 = vmatpush.msra.mxu0 0.0
    %1672 = vmatpush.msra.mxu0 0.0
    %1673 = vmatpush.msra.mxu0 0.0
    %1674 = vmatpush.msra.mxu0 0.0
    %1675 = vmatpush.msra.mxu0 0.0
    %1676 = vmatpush.msra.mxu0 0.0
    %1677 = vmatpush.msra.mxu0 0.0
    %1678 = vmatpush.msra.mxu0 0.0
    %1679 = vmatpush.msra.mxu0 0.0
    %1680 = vmatpush.msra.mxu0 0.0
    %1681 = vmatpush.msra.mxu0 0.0
    %1682 = vmatpush.msra.mxu0 0.0
    %v1683 = vand.u32 %v32, 4294901760
    %v1684 = vsub.f32 %v32, %v1683
    %v1685 = vand.u32 %v1684, 4294901760
    %1686 = vmatpush.msra.mxu0 %v1685
    %v1687 = vand.u32 %v1566, 4294901760
    %1688 = vmatmul.f32.gmra.mxu0 %v1687
    %v1689 = vpop.f32.mrf.mxu0
    %v1690 = vadd.f32 %v1666, %v1689
    %1691 = vdwg.mxu0
    %1692 = vmatpush.msra.mxu0 0.0
    %1693 = vmatpush.msra.mxu0 0.0
    %1694 = vmatpush.msra.mxu0 0.0
    %1695 = vmatpush.msra.mxu0 0.0
    %1696 = vmatpush.msra.mxu0 0.0
    %1697 = vmatpush.msra.mxu0 0.0
    %1698 = vmatpush.msra.mxu0 0.0
    %1699 = vmatpush.msra.mxu0 0.0
    %1700 = vmatpush.msra.mxu0 0.0
    %1701 = vmatpush.msra.mxu0 0.0
    %1702 = vmatpush.msra.mxu0 0.0
    %1703 = vmatpush.msra.mxu0 0.0
    %1704 = vmatpush.msra.mxu0 0.0
    %1705 = vmatpush.msra.mxu0 0.0
    %1706 = vmatpush.msra.mxu0 0.0
    %v1707 = vand.u32 %v32, 4294901760
    %1708 = vmatpush.msra.mxu0 %v1707
    %v1709 = vand.u32 %v1566, 4294901760
    %1710 = vmatmul.f32.gmra.mxu0 %v1709
    %v1711 = vpop.f32.mrf.mxu0
    %v1712 = vadd.f32 %v1690, %v1711
    %1713 = vdwg.mxu0
    %v1714 = vxor.u32 %v1712, 2147483648
    %v1715 = vmul.f32 %v1714, 1.442695
    %v1716 = vpow.pop %v1715
    %v1717 = vadd.f32 %v1716, 1.0
    %v1718 = vrcp.pop %v1717
    %v1719 = vmul.f32 %v1717, %v1718
    %v1720 = vsub.f32 1.0, %v1719
    %v1721 = vmul.f32 %v1718, %v1720
    %v1722 = vadd.f32 %v1718, %v1721
    %vm1723 = vweird.f32 %v1717
    %vm1724 = vweird.f32 %v1718
    %vm1725 = vmor %vm1723, %vm1724
    %v1726 = vsel %vm1725, %v1718, %v1722
    %v1727 = vand.u32 2147483647, %v1717
    %vm1728 = vcmp.eq.f32.partialorder %v1727, 8.507059e+37
    %v1729 = vand.u32 %v1717, 2147483648
    %v1730 = vor.u32 1.1754944e-38, %v1729
    %v1731 = vsel %vm1728, %v1730, %v1726
    %v1732 = vmul.f32 1.0, %v1731
    %v1733 = vtanh.pop %v1712
    %v1734 = vmul.f32 %v1732, %v1351
    %1736 = vrot.lane.b32.xlu0 %v1733, 116
    %v1737 = vpop.permute.xlu0 %1736
    %v1739 = vmul.f32 %v1732, %v1737
    %1741 = vrot.lane.b32.xlu0 %v1739, 4
    %v1742 = vpop.permute.xlu0 %1741
    %v1744 = vadd.f32 %v1734, %v1742
    %v1745 = vtanh.pop %v1744
    %1747 = vrot.lane.b32.xlu0 %v1745, 4
    %v1748 = vpop.permute.xlu0 %1747
    %v1750 = vmul.f32 %v1732, %v1748
    %v1751 = vsel %vm185, %v1558, 0
    %1753 = vmatpush.msra.mxu0 0.0
    %1754 = vmatpush.msra.mxu0 0.0
    %1755 = vmatpush.msra.mxu0 0.0
    %1756 = vmatpush.msra.mxu0 0.0
    %1757 = vmatpush.msra.mxu0 0.0
    %1758 = vmatpush.msra.mxu0 0.0
    %1759 = vmatpush.msra.mxu0 0.0
    %1760 = vmatpush.msra.mxu0 0.0
    %1761 = vmatpush.msra.mxu0 0.0
    %1762 = vmatpush.msra.mxu0 0.0
    %1763 = vmatpush.msra.mxu0 0.0
    %1764 = vmatpush.msra.mxu0 0.0
    %1765 = vmatpush.msra.mxu0 0.0
    %1766 = vmatpush.msra.mxu0 0.0
    %1767 = vmatpush.msra.mxu0 0.0
    %v1768 = vand.u32 %v191, 4294901760
    %1769 = vmatpush.msra.mxu0 %v1768
    %v1770 = vand.u32 %v1751, 4294901760
    %v1771 = vsub.f32 %v1751, %v1770
    %v1772 = vand.u32 %v1771, 4294901760
    %v1773 = vsub.f32 %v1771, %v1772
    %v1774 = vand.u32 %v1773, 4294901760
    %1775 = vmatmul.f32.gmra.mxu0 %v1774
    %v1776 = vpop.f32.mrf.mxu0
    %v1777 = vadd.f32 0.0, %v1776
    %1778 = vdwg.mxu0
    %1779 = vmatpush.msra.mxu0 0.0
    %1780 = vmatpush.msra.mxu0 0.0
    %1781 = vmatpush.msra.mxu0 0.0
    %1782 = vmatpush.msra.mxu0 0.0
    %1783 = vmatpush.msra.mxu0 0.0
    %1784 = vmatpush.msra.mxu0 0.0
    %1785 = vmatpush.msra.mxu0 0.0
    %1786 = vmatpush.msra.mxu0 0.0
    %1787 = vmatpush.msra.mxu0 0.0
    %1788 = vmatpush.msra.mxu0 0.0
    %1789 = vmatpush.msra.mxu0 0.0
    %1790 = vmatpush.msra.mxu0 0.0
    %1791 = vmatpush.msra.mxu0 0.0
    %1792 = vmatpush.msra.mxu0 0.0
    %1793 = vmatpush.msra.mxu0 0.0
    %v1794 = vand.u32 %v191, 4294901760
    %v1795 = vsub.f32 %v191, %v1794
    %v1796 = vand.u32 %v1795, 4294901760
    %v1797 = vsub.f32 %v1795, %v1796
    %v1798 = vand.u32 %v1797, 4294901760
    %1799 = vmatpush.msra.mxu0 %v1798
    %v1800 = vand.u32 %v1751, 4294901760
    %1801 = vmatmul.f32.gmra.mxu0 %v1800
    %v1802 = vpop.f32.mrf.mxu0
    %v1803 = vadd.f32 %v1777, %v1802
    %1804 = vdwg.mxu0
    %1805 = vmatpush.msra.mxu0 0.0
    %1806 = vmatpush.msra.mxu0 0.0
    %1807 = vmatpush.msra.mxu0 0.0
    %1808 = vmatpush.msra.mxu0 0.0
    %1809 = vmatpush.msra.mxu0 0.0
    %1810 = vmatpush.msra.mxu0 0.0
    %1811 = vmatpush.msra.mxu0 0.0
    %1812 = vmatpush.msra.mxu0 0.0
    %1813 = vmatpush.msra.mxu0 0.0
    %1814 = vmatpush.msra.mxu0 0.0
    %1815 = vmatpush.msra.mxu0 0.0
    %1816 = vmatpush.msra.mxu0 0.0
    %1817 = vmatpush.msra.mxu0 0.0
    %1818 = vmatpush.msra.mxu0 0.0
    %1819 = vmatpush.msra.mxu0 0.0
    %v1820 = vand.u32 %v191, 4294901760
    %v1821 = vsub.f32 %v191, %v1820
    %1822 = vmatpush.msra.mxu0 %v1821
    %v1823 = vand.u32 %v1751, 4294901760
    %v1824 = vsub.f32 %v1751, %v1823
    %1825 = vmatmul.f32.gmra.mxu0 %v1824
    %v1826 = vpop.f32.mrf.mxu0
    %v1827 = vadd.f32 %v1803, %v1826
    %1828 = vdwg.mxu0
    %1829 = vmatpush.msra.mxu0 0.0
    %1830 = vmatpush.msra.mxu0 0.0
    %1831 = vmatpush.msra.mxu0 0.0
    %1832 = vmatpush.msra.mxu0 0.0
    %1833 = vmatpush.msra.mxu0 0.0
    %1834 = vmatpush.msra.mxu0 0.0
    %1835 = vmatpush.msra.mxu0 0.0
    %1836 = vmatpush.msra.mxu0 0.0
    %1837 = vmatpush.msra.mxu0 0.0
    %1838 = vmatpush.msra.mxu0 0.0
    %1839 = vmatpush.msra.mxu0 0.0
    %1840 = vmatpush.msra.mxu0 0.0
    %1841 = vmatpush.msra.mxu0 0.0
    %1842 = vmatpush.msra.mxu0 0.0
    %1843 = vmatpush.msra.mxu0 0.0
    %v1844 = vand.u32 %v191, 4294901760
    %1845 = vmatpush.msra.mxu0 %v1844
    %v1846 = vand.u32 %v1751, 4294901760
    %v1847 = vsub.f32 %v1751, %v1846
    %v1848 = vand.u32 %v1847, 4294901760
    %1849 = vmatmul.f32.gmra.mxu0 %v1848
    %v1850 = vpop.f32.mrf.mxu0
    %v1851 = vadd.f32 %v1827, %v1850
    %1852 = vdwg.mxu0
    %1853 = vmatpush.msra.mxu0 0.0
    %1854 = vmatpush.msra.mxu0 0.0
    %1855 = vmatpush.msra.mxu0 0.0
    %1856 = vmatpush.msra.mxu0 0.0
    %1857 = vmatpush.msra.mxu0 0.0
    %1858 = vmatpush.msra.mxu0 0.0
    %1859 = vmatpush.msra.mxu0 0.0
    %1860 = vmatpush.msra.mxu0 0.0
    %1861 = vmatpush.msra.mxu0 0.0
    %1862 = vmatpush.msra.mxu0 0.0
    %1863 = vmatpush.msra.mxu0 0.0
    %1864 = vmatpush.msra.mxu0 0.0
    %1865 = vmatpush.msra.mxu0 0.0
    %1866 = vmatpush.msra.mxu0 0.0
    %1867 = vmatpush.msra.mxu0 0.0
    %v1868 = vand.u32 %v191, 4294901760
    %v1869 = vsub.f32 %v191, %v1868
    %v1870 = vand.u32 %v1869, 4294901760
    %1871 = vmatpush.msra.mxu0 %v1870
    %v1872 = vand.u32 %v1751, 4294901760
    %1873 = vmatmul.f32.gmra.mxu0 %v1872
    %v1874 = vpop.f32.mrf.mxu0
    %v1875 = vadd.f32 %v1851, %v1874
    %1876 = vdwg.mxu0
    %1877 = vmatpush.msra.mxu0 0.0
    %1878 = vmatpush.msra.mxu0 0.0
    %1879 = vmatpush.msra.mxu0 0.0
    %1880 = vmatpush.msra.mxu0 0.0
    %1881 = vmatpush.msra.mxu0 0.0
    %1882 = vmatpush.msra.mxu0 0.0
    %1883 = vmatpush.msra.mxu0 0.0
    %1884 = vmatpush.msra.mxu0 0.0
    %1885 = vmatpush.msra.mxu0 0.0
    %1886 = vmatpush.msra.mxu0 0.0
    %1887 = vmatpush.msra.mxu0 0.0
    %1888 = vmatpush.msra.mxu0 0.0
    %1889 = vmatpush.msra.mxu0 0.0
    %1890 = vmatpush.msra.mxu0 0.0
    %1891 = vmatpush.msra.mxu0 0.0
    %v1892 = vand.u32 %v191, 4294901760
    %1893 = vmatpush.msra.mxu0 %v1892
    %v1894 = vand.u32 %v1751, 4294901760
    %1895 = vmatmul.f32.gmra.mxu0 %v1894
    %v1896 = vpop.f32.mrf.mxu0
    %v1897 = vadd.f32 %v1875, %v1896
    %1898 = vdwg.mxu0
    %1900 = vrot.lane.b32.xlu0 %v1897, 64
    %v1901 = vpop.permute.xlu0 %1900
    %v1903 = vadd.f32 %v183, %v1901
    %1904 = vrot.lane.b32.xlu0 %v340, 64
    %v1905 = vpop.permute.xlu0 %1904
    %v1907 = vadd.f32 %v1903, %v1905
    %v1908 = vxor.u32 %v1907, 2147483648
    %v1909 = vmul.f32 %v1908, 1.442695
    %v1910 = vpow.pop %v1909
    %v1911 = vadd.f32 %v1910, 1.0
    %v1912 = vrcp.pop %v1911
    %v1913 = vmul.f32 %v1911, %v1912
    %v1914 = vsub.f32 1.0, %v1913
    %v1915 = vmul.f32 %v1912, %v1914
    %v1916 = vadd.f32 %v1912, %v1915
    %vm1917 = vweird.f32 %v1911
    %vm1918 = vweird.f32 %v1912
    %vm1919 = vmor %vm1917, %vm1918
    %v1920 = vsel %vm1919, %v1912, %v1916
    %v1921 = vand.u32 2147483647, %v1911
    %vm1922 = vcmp.eq.f32.partialorder %v1921, 8.507059e+37
    %v1923 = vand.u32 %v1911, 2147483648
    %v1924 = vor.u32 1.1754944e-38, %v1923
    %v1925 = vsel %vm1922, %v1924, %v1920
    %v1926 = vmul.f32 1.0, %v1925
    %v1927 = vtanh.pop %v1907
    %1929 = vrot.lane.b32.xlu0 %v1549, 16
    %v1930 = vpop.permute.xlu0 %1929
    %v1932 = vmul.f32 %v1926, %v1930
    %1934 = vrot.lane.b32.xlu0 %v1927, 116
    %v1935 = vpop.permute.xlu0 %1934
    %v1937 = vmul.f32 %v1926, %v1935
    %1939 = vrot.lane.b32.xlu0 %v1937, 4
    %v1940 = vpop.permute.xlu0 %1939
    %v1942 = vadd.f32 %v1932, %v1940
    %v1943 = vtanh.pop %v1942
    %1945 = vrot.lane.b32.xlu0 %v1943, 4
    %v1946 = vpop.permute.xlu0 %1945
    %v1948 = vmul.f32 %v1926, %v1946
    %1950 = vrot.lane.b32.xlu0 %v1948, 56
    %v1951 = vpop.permute.xlu0 %1950
    %1954 = vrot.lane.b32.xlu0 %v1750, 124
    %v1955 = vpop.permute.xlu0 %1954
    %v1957 = vsel %vm185, %v1951, %v1955
    %v1959 = vsel %vm35, %v1957, 0
    %1961 = vmatpush.msra.mxu0 0.0
    %1962 = vmatpush.msra.mxu0 0.0
    %1963 = vmatpush.msra.mxu0 0.0
    %1964 = vmatpush.msra.mxu0 0.0
    %1965 = vmatpush.msra.mxu0 0.0
    %1966 = vmatpush.msra.mxu0 0.0
    %1967 = vmatpush.msra.mxu0 0.0
    %1968 = vmatpush.msra.mxu0 0.0
    %1969 = vmatpush.msra.mxu0 0.0
    %1970 = vmatpush.msra.mxu0 0.0
    %1971 = vmatpush.msra.mxu0 0.0
    %1972 = vmatpush.msra.mxu0 0.0
    %1973 = vmatpush.msra.mxu0 0.0
    %1974 = vmatpush.msra.mxu0 0.0
    %1975 = vmatpush.msra.mxu0 0.0
    %v1976 = vand.u32 %v32, 4294901760
    %1977 = vmatpush.msra.mxu0 %v1976
    %v1978 = vand.u32 %v1959, 4294901760
    %v1979 = vsub.f32 %v1959, %v1978
    %v1980 = vand.u32 %v1979, 4294901760
    %v1981 = vsub.f32 %v1979, %v1980
    %v1982 = vand.u32 %v1981, 4294901760
    %1983 = vmatmul.f32.gmra.mxu0 %v1982
    %v1984 = vpop.f32.mrf.mxu0
    %v1985 = vadd.f32 %v384, %v1984
    %1986 = vdwg.mxu0
    %1987 = vmatpush.msra.mxu0 0.0
    %1988 = vmatpush.msra.mxu0 0.0
    %1989 = vmatpush.msra.mxu0 0.0
    %1990 = vmatpush.msra.mxu0 0.0
    %1991 = vmatpush.msra.mxu0 0.0
    %1992 = vmatpush.msra.mxu0 0.0
    %1993 = vmatpush.msra.mxu0 0.0
    %1994 = vmatpush.msra.mxu0 0.0
    %1995 = vmatpush.msra.mxu0 0.0
    %1996 = vmatpush.msra.mxu0 0.0
    %1997 = vmatpush.msra.mxu0 0.0
    %1998 = vmatpush.msra.mxu0 0.0
    %1999 = vmatpush.msra.mxu0 0.0
    %2000 = vmatpush.msra.mxu0 0.0
    %2001 = vmatpush.msra.mxu0 0.0
    %v2002 = vand.u32 %v32, 4294901760
    %v2003 = vsub.f32 %v32, %v2002
    %v2004 = vand.u32 %v2003, 4294901760
    %v2005 = vsub.f32 %v2003, %v2004
    %v2006 = vand.u32 %v2005, 4294901760
    %2007 = vmatpush.msra.mxu0 %v2006
    %v2008 = vand.u32 %v1959, 4294901760
    %2009 = vmatmul.f32.gmra.mxu0 %v2008
    %v2010 = vpop.f32.mrf.mxu0
    %v2011 = vadd.f32 %v1985, %v2010
    %2012 = vdwg.mxu0
    %2013 = vmatpush.msra.mxu0 0.0
    %2014 = vmatpush.msra.mxu0 0.0
    %2015 = vmatpush.msra.mxu0 0.0
    %2016 = vmatpush.msra.mxu0 0.0
    %2017 = vmatpush.msra.mxu0 0.0
    %2018 = vmatpush.msra.mxu0 0.0
    %2019 = vmatpush.msra.mxu0 0.0
    %2020 = vmatpush.msra.mxu0 0.0
    %2021 = vmatpush.msra.mxu0 0.0
    %2022 = vmatpush.msra.mxu0 0.0
    %2023 = vmatpush.msra.mxu0 0.0
    %2024 = vmatpush.msra.mxu0 0.0
    %2025 = vmatpush.msra.mxu0 0.0
    %2026 = vmatpush.msra.mxu0 0.0
    %2027 = vmatpush.msra.mxu0 0.0
    %v2028 = vand.u32 %v32, 4294901760
    %v2029 = vsub.f32 %v32, %v2028
    %2030 = vmatpush.msra.mxu0 %v2029
    %v2031 = vand.u32 %v1959, 4294901760
    %v2032 = vsub.f32 %v1959, %v2031
    %2033 = vmatmul.f32.gmra.mxu0 %v2032
    %v2034 = vpop.f32.mrf.mxu0
    %v2035 = vadd.f32 %v2011, %v2034
    %2036 = vdwg.mxu0
    %2037 = vmatpush.msra.mxu0 0.0
    %2038 = vmatpush.msra.mxu0 0.0
    %2039 = vmatpush.msra.mxu0 0.0
    %2040 = vmatpush.msra.mxu0 0.0
    %2041 = vmatpush.msra.mxu0 0.0
    %2042 = vmatpush.msra.mxu0 0.0
    %2043 = vmatpush.msra.mxu0 0.0
    %2044 = vmatpush.msra.mxu0 0.0
    %2045 = vmatpush.msra.mxu0 0.0
    %2046 = vmatpush.msra.mxu0 0.0
    %2047 = vmatpush.msra.mxu0 0.0
    %2048 = vmatpush.msra.mxu0 0.0
    %2049 = vmatpush.msra.mxu0 0.0
    %2050 = vmatpush.msra.mxu0 0.0
    %2051 = vmatpush.msra.mxu0 0.0
    %v2052 = vand.u32 %v32, 4294901760
    %2053 = vmatpush.msra.mxu0 %v2052
    %v2054 = vand.u32 %v1959, 4294901760
    %v2055 = vsub.f32 %v1959, %v2054
    %v2056 = vand.u32 %v2055, 4294901760
    %2057 = vmatmul.f32.gmra.mxu0 %v2056
    %v2058 = vpop.f32.mrf.mxu0
    %v2059 = vadd.f32 %v2035, %v2058
    %2060 = vdwg.mxu0
    %2061 = vmatpush.msra.mxu0 0.0
    %2062 = vmatpush.msra.mxu0 0.0
    %2063 = vmatpush.msra.mxu0 0.0
    %2064 = vmatpush.msra.mxu0 0.0
    %2065 = vmatpush.msra.mxu0 0.0
    %2066 = vmatpush.msra.mxu0 0.0
    %2067 = vmatpush.msra.mxu0 0.0
    %2068 = vmatpush.msra.mxu0 0.0
    %2069 = vmatpush.msra.mxu0 0.0
    %2070 = vmatpush.msra.mxu0 0.0
    %2071 = vmatpush.msra.mxu0 0.0
    %2072 = vmatpush.msra.mxu0 0.0
    %2073 = vmatpush.msra.mxu0 0.0
    %2074 = vmatpush.msra.mxu0 0.0
    %2075 = vmatpush.msra.mxu0 0.0
    %v2076 = vand.u32 %v32, 4294901760
    %v2077 = vsub.f32 %v32, %v2076
    %v2078 = vand.u32 %v2077, 4294901760
    %2079 = vmatpush.msra.mxu0 %v2078
    %v2080 = vand.u32 %v1959, 4294901760
    %2081 = vmatmul.f32.gmra.mxu0 %v2080
    %v2082 = vpop.f32.mrf.mxu0
    %v2083 = vadd.f32 %v2059, %v2082
    %2084 = vdwg.mxu0
    %2085 = vmatpush.msra.mxu0 0.0
    %2086 = vmatpush.msra.mxu0 0.0
    %2087 = vmatpush.msra.mxu0 0.0
    %2088 = vmatpush.msra.mxu0 0.0
    %2089 = vmatpush.msra.mxu0 0.0
    %2090 = vmatpush.msra.mxu0 0.0
    %2091 = vmatpush.msra.mxu0 0.0
    %2092 = vmatpush.msra.mxu0 0.0
    %2093 = vmatpush.msra.mxu0 0.0
    %2094 = vmatpush.msra.mxu0 0.0
    %2095 = vmatpush.msra.mxu0 0.0
    %2096 = vmatpush.msra.mxu0 0.0
    %2097 = vmatpush.msra.mxu0 0.0
    %2098 = vmatpush.msra.mxu0 0.0
    %2099 = vmatpush.msra.mxu0 0.0
    %v2100 = vand.u32 %v32, 4294901760
    %2101 = vmatpush.msra.mxu0 %v2100
    %v2102 = vand.u32 %v1959, 4294901760
    %2103 = vmatmul.f32.gmra.mxu0 %v2102
    %v2104 = vpop.f32.mrf.mxu0
    %v2105 = vadd.f32 %v2083, %v2104
    %2106 = vdwg.mxu0
    %v2107 = vxor.u32 %v2105, 2147483648
    %v2108 = vmul.f32 %v2107, 1.442695
    %v2109 = vpow.pop %v2108
    %v2110 = vadd.f32 %v2109, 1.0
    %v2111 = vrcp.pop %v2110
    %v2112 = vmul.f32 %v2110, %v2111
    %v2113 = vsub.f32 1.0, %v2112
    %v2114 = vmul.f32 %v2111, %v2113
    %v2115 = vadd.f32 %v2111, %v2114
    %vm2116 = vweird.f32 %v2110
    %vm2117 = vweird.f32 %v2111
    %vm2118 = vmor %vm2116, %vm2117
    %v2119 = vsel %vm2118, %v2111, %v2115
    %v2120 = vand.u32 2147483647, %v2110
    %vm2121 = vcmp.eq.f32.partialorder %v2120, 8.507059e+37
    %v2122 = vand.u32 %v2110, 2147483648
    %v2123 = vor.u32 1.1754944e-38, %v2122
    %v2124 = vsel %vm2121, %v2123, %v2119
    %v2125 = vmul.f32 1.0, %v2124
    %v2126 = vtanh.pop %v2105
    %v2127 = vmul.f32 %v2125, %v1744
    %2129 = vrot.lane.b32.xlu0 %v2126, 116
    %v2130 = vpop.permute.xlu0 %2129
    %v2132 = vmul.f32 %v2125, %v2130
    %2134 = vrot.lane.b32.xlu0 %v2132, 4
    %v2135 = vpop.permute.xlu0 %2134
    %v2137 = vadd.f32 %v2127, %v2135
    %v2138 = vtanh.pop %v2137
    %2140 = vrot.lane.b32.xlu0 %v2138, 4
    %v2141 = vpop.permute.xlu0 %2140
    %v2143 = vmul.f32 %v2125, %v2141
    %v2144 = vsel %vm185, %v1951, 0
    %2146 = vmatpush.msra.mxu0 0.0
    %2147 = vmatpush.msra.mxu0 0.0
    %2148 = vmatpush.msra.mxu0 0.0
    %2149 = vmatpush.msra.mxu0 0.0
    %2150 = vmatpush.msra.mxu0 0.0
    %2151 = vmatpush.msra.mxu0 0.0
    %2152 = vmatpush.msra.mxu0 0.0
    %2153 = vmatpush.msra.mxu0 0.0
    %2154 = vmatpush.msra.mxu0 0.0
    %2155 = vmatpush.msra.mxu0 0.0
    %2156 = vmatpush.msra.mxu0 0.0
    %2157 = vmatpush.msra.mxu0 0.0
    %2158 = vmatpush.msra.mxu0 0.0
    %2159 = vmatpush.msra.mxu0 0.0
    %2160 = vmatpush.msra.mxu0 0.0
    %v2161 = vand.u32 %v191, 4294901760
    %2162 = vmatpush.msra.mxu0 %v2161
    %v2163 = vand.u32 %v2144, 4294901760
    %v2164 = vsub.f32 %v2144, %v2163
    %v2165 = vand.u32 %v2164, 4294901760
    %v2166 = vsub.f32 %v2164, %v2165
    %v2167 = vand.u32 %v2166, 4294901760
    %2168 = vmatmul.f32.gmra.mxu0 %v2167
    %v2169 = vpop.f32.mrf.mxu0
    %v2170 = vadd.f32 0.0, %v2169
    %2171 = vdwg.mxu0
    %2172 = vmatpush.msra.mxu0 0.0
    %2173 = vmatpush.msra.mxu0 0.0
    %2174 = vmatpush.msra.mxu0 0.0
    %2175 = vmatpush.msra.mxu0 0.0
    %2176 = vmatpush.msra.mxu0 0.0
    %2177 = vmatpush.msra.mxu0 0.0
    %2178 = vmatpush.msra.mxu0 0.0
    %2179 = vmatpush.msra.mxu0 0.0
    %2180 = vmatpush.msra.mxu0 0.0
    %2181 = vmatpush.msra.mxu0 0.0
    %2182 = vmatpush.msra.mxu0 0.0
    %2183 = vmatpush.msra.mxu0 0.0
    %2184 = vmatpush.msra.mxu0 0.0
    %2185 = vmatpush.msra.mxu0 0.0
    %2186 = vmatpush.msra.mxu0 0.0
    %v2187 = vand.u32 %v191, 4294901760
    %v2188 = vsub.f32 %v191, %v2187
    %v2189 = vand.u32 %v2188, 4294901760
    %v2190 = vsub.f32 %v2188, %v2189
    %v2191 = vand.u32 %v2190, 4294901760
    %2192 = vmatpush.msra.mxu0 %v2191
    %v2193 = vand.u32 %v2144, 4294901760
    %2194 = vmatmul.f32.gmra.mxu0 %v2193
    %v2195 = vpop.f32.mrf.mxu0
    %v2196 = vadd.f32 %v2170, %v2195
    %2197 = vdwg.mxu0
    %2198 = vmatpush.msra.mxu0 0.0
    %2199 = vmatpush.msra.mxu0 0.0
    %2200 = vmatpush.msra.mxu0 0.0
    %2201 = vmatpush.msra.mxu0 0.0
    %2202 = vmatpush.msra.mxu0 0.0
    %2203 = vmatpush.msra.mxu0 0.0
    %2204 = vmatpush.msra.mxu0 0.0
    %2205 = vmatpush.msra.mxu0 0.0
    %2206 = vmatpush.msra.mxu0 0.0
    %2207 = vmatpush.msra.mxu0 0.0
    %2208 = vmatpush.msra.mxu0 0.0
    %2209 = vmatpush.msra.mxu0 0.0
    %2210 = vmatpush.msra.mxu0 0.0
    %2211 = vmatpush.msra.mxu0 0.0
    %2212 = vmatpush.msra.mxu0 0.0
    %v2213 = vand.u32 %v191, 4294901760
    %v2214 = vsub.f32 %v191, %v2213
    %2215 = vmatpush.msra.mxu0 %v2214
    %v2216 = vand.u32 %v2144, 4294901760
    %v2217 = vsub.f32 %v2144, %v2216
    %2218 = vmatmul.f32.gmra.mxu0 %v2217
    %v2219 = vpop.f32.mrf.mxu0
    %v2220 = vadd.f32 %v2196, %v2219
    %2221 = vdwg.mxu0
    %2222 = vmatpush.msra.mxu0 0.0
    %2223 = vmatpush.msra.mxu0 0.0
    %2224 = vmatpush.msra.mxu0 0.0
    %2225 = vmatpush.msra.mxu0 0.0
    %2226 = vmatpush.msra.mxu0 0.0
    %2227 = vmatpush.msra.mxu0 0.0
    %2228 = vmatpush.msra.mxu0 0.0
    %2229 = vmatpush.msra.mxu0 0.0
    %2230 = vmatpush.msra.mxu0 0.0
    %2231 = vmatpush.msra.mxu0 0.0
    %2232 = vmatpush.msra.mxu0 0.0
    %2233 = vmatpush.msra.mxu0 0.0
    %2234 = vmatpush.msra.mxu0 0.0
    %2235 = vmatpush.msra.mxu0 0.0
    %2236 = vmatpush.msra.mxu0 0.0
    %v2237 = vand.u32 %v191, 4294901760
    %2238 = vmatpush.msra.mxu0 %v2237
    %v2239 = vand.u32 %v2144, 4294901760
    %v2240 = vsub.f32 %v2144, %v2239
    %v2241 = vand.u32 %v2240, 4294901760
    %2242 = vmatmul.f32.gmra.mxu0 %v2241
    %v2243 = vpop.f32.mrf.mxu0
    %v2244 = vadd.f32 %v2220, %v2243
    %2245 = vdwg.mxu0
    %2246 = vmatpush.msra.mxu0 0.0
    %2247 = vmatpush.msra.mxu0 0.0
    %2248 = vmatpush.msra.mxu0 0.0
    %2249 = vmatpush.msra.mxu0 0.0
    %2250 = vmatpush.msra.mxu0 0.0
    %2251 = vmatpush.msra.mxu0 0.0
    %2252 = vmatpush.msra.mxu0 0.0
    %2253 = vmatpush.msra.mxu0 0.0
    %2254 = vmatpush.msra.mxu0 0.0
    %2255 = vmatpush.msra.mxu0 0.0
    %2256 = vmatpush.msra.mxu0 0.0
    %2257 = vmatpush.msra.mxu0 0.0
    %2258 = vmatpush.msra.mxu0 0.0
    %2259 = vmatpush.msra.mxu0 0.0
    %2260 = vmatpush.msra.mxu0 0.0
    %v2261 = vand.u32 %v191, 4294901760
    %v2262 = vsub.f32 %v191, %v2261
    %v2263 = vand.u32 %v2262, 4294901760
    %2264 = vmatpush.msra.mxu0 %v2263
    %v2265 = vand.u32 %v2144, 4294901760
    %2266 = vmatmul.f32.gmra.mxu0 %v2265
    %v2267 = vpop.f32.mrf.mxu0
    %v2268 = vadd.f32 %v2244, %v2267
    %2269 = vdwg.mxu0
    %2270 = vmatpush.msra.mxu0 0.0
    %2271 = vmatpush.msra.mxu0 0.0
    %2272 = vmatpush.msra.mxu0 0.0
    %2273 = vmatpush.msra.mxu0 0.0
    %2274 = vmatpush.msra.mxu0 0.0
    %2275 = vmatpush.msra.mxu0 0.0
    %2276 = vmatpush.msra.mxu0 0.0
    %2277 = vmatpush.msra.mxu0 0.0
    %2278 = vmatpush.msra.mxu0 0.0
    %2279 = vmatpush.msra.mxu0 0.0
    %2280 = vmatpush.msra.mxu0 0.0
    %2281 = vmatpush.msra.mxu0 0.0
    %2282 = vmatpush.msra.mxu0 0.0
    %2283 = vmatpush.msra.mxu0 0.0
    %2284 = vmatpush.msra.mxu0 0.0
    %v2285 = vand.u32 %v191, 4294901760
    %2286 = vmatpush.msra.mxu0 %v2285
    %v2287 = vand.u32 %v2144, 4294901760
    %2288 = vmatmul.f32.gmra.mxu0 %v2287
    %v2289 = vpop.f32.mrf.mxu0
    %v2290 = vadd.f32 %v2268, %v2289
    %2291 = vdwg.mxu0
    %2293 = vrot.lane.b32.xlu0 %v2290, 80
    %v2294 = vpop.permute.xlu0 %2293
    %v2296 = vadd.f32 %v183, %v2294
    %2297 = vrot.lane.b32.xlu0 %v340, 80
    %v2298 = vpop.permute.xlu0 %2297
    %v2300 = vadd.f32 %v2296, %v2298
    %v2301 = vxor.u32 %v2300, 2147483648
    %v2302 = vmul.f32 %v2301, 1.442695
    %v2303 = vpow.pop %v2302
    %v2304 = vadd.f32 %v2303, 1.0
    %v2305 = vrcp.pop %v2304
    %v2306 = vmul.f32 %v2304, %v2305
    %v2307 = vsub.f32 1.0, %v2306
    %v2308 = vmul.f32 %v2305, %v2307
    %v2309 = vadd.f32 %v2305, %v2308
    %vm2310 = vweird.f32 %v2304
    %vm2311 = vweird.f32 %v2305
    %vm2312 = vmor %vm2310, %vm2311
    %v2313 = vsel %vm2312, %v2305, %v2309
    %v2314 = vand.u32 2147483647, %v2304
    %vm2315 = vcmp.eq.f32.partialorder %v2314, 8.507059e+37
    %v2316 = vand.u32 %v2304, 2147483648
    %v2317 = vor.u32 1.1754944e-38, %v2316
    %v2318 = vsel %vm2315, %v2317, %v2313
    %v2319 = vmul.f32 1.0, %v2318
    %v2320 = vtanh.pop %v2300
    %2322 = vrot.lane.b32.xlu0 %v1942, 16
    %v2323 = vpop.permute.xlu0 %2322
    %v2325 = vmul.f32 %v2319, %v2323
    %2327 = vrot.lane.b32.xlu0 %v2320, 116
    %v2328 = vpop.permute.xlu0 %2327
    %v2330 = vmul.f32 %v2319, %v2328
    %2332 = vrot.lane.b32.xlu0 %v2330, 4
    %v2333 = vpop.permute.xlu0 %2332
    %v2335 = vadd.f32 %v2325, %v2333
    %v2336 = vtanh.pop %v2335
    %2338 = vrot.lane.b32.xlu0 %v2336, 4
    %v2339 = vpop.permute.xlu0 %2338
    %v2341 = vmul.f32 %v2319, %v2339
    %2343 = vrot.lane.b32.xlu0 %v2341, 40
    %v2344 = vpop.permute.xlu0 %2343
    %2347 = vrot.lane.b32.xlu0 %v2143, 124
    %v2348 = vpop.permute.xlu0 %2347
    %v2350 = vsel %vm185, %v2344, %v2348
    %v2352 = vsel %vm35, %v2350, 0
    %2354 = vmatpush.msra.mxu0 0.0
    %2355 = vmatpush.msra.mxu0 0.0
    %2356 = vmatpush.msra.mxu0 0.0
    %2357 = vmatpush.msra.mxu0 0.0
    %2358 = vmatpush.msra.mxu0 0.0
    %2359 = vmatpush.msra.mxu0 0.0
    %2360 = vmatpush.msra.mxu0 0.0
    %2361 = vmatpush.msra.mxu0 0.0
    %2362 = vmatpush.msra.mxu0 0.0
    %2363 = vmatpush.msra.mxu0 0.0
    %2364 = vmatpush.msra.mxu0 0.0
    %2365 = vmatpush.msra.mxu0 0.0
    %2366 = vmatpush.msra.mxu0 0.0
    %2367 = vmatpush.msra.mxu0 0.0
    %2368 = vmatpush.msra.mxu0 0.0
    %v2369 = vand.u32 %v32, 4294901760
    %2370 = vmatpush.msra.mxu0 %v2369
    %v2371 = vand.u32 %v2352, 4294901760
    %v2372 = vsub.f32 %v2352, %v2371
    %v2373 = vand.u32 %v2372, 4294901760
    %v2374 = vsub.f32 %v2372, %v2373
    %v2375 = vand.u32 %v2374, 4294901760
    %2376 = vmatmul.f32.gmra.mxu0 %v2375
    %v2377 = vpop.f32.mrf.mxu0
    %v2378 = vadd.f32 %v384, %v2377
    %2379 = vdwg.mxu0
    %2380 = vmatpush.msra.mxu0 0.0
    %2381 = vmatpush.msra.mxu0 0.0
    %2382 = vmatpush.msra.mxu0 0.0
    %2383 = vmatpush.msra.mxu0 0.0
    %2384 = vmatpush.msra.mxu0 0.0
    %2385 = vmatpush.msra.mxu0 0.0
    %2386 = vmatpush.msra.mxu0 0.0
    %2387 = vmatpush.msra.mxu0 0.0
    %2388 = vmatpush.msra.mxu0 0.0
    %2389 = vmatpush.msra.mxu0 0.0
    %2390 = vmatpush.msra.mxu0 0.0
    %2391 = vmatpush.msra.mxu0 0.0
    %2392 = vmatpush.msra.mxu0 0.0
    %2393 = vmatpush.msra.mxu0 0.0
    %2394 = vmatpush.msra.mxu0 0.0
    %v2395 = vand.u32 %v32, 4294901760
    %v2396 = vsub.f32 %v32, %v2395
    %v2397 = vand.u32 %v2396, 4294901760
    %v2398 = vsub.f32 %v2396, %v2397
    %v2399 = vand.u32 %v2398, 4294901760
    %2400 = vmatpush.msra.mxu0 %v2399
    %v2401 = vand.u32 %v2352, 4294901760
    %2402 = vmatmul.f32.gmra.mxu0 %v2401
    %v2403 = vpop.f32.mrf.mxu0
    %v2404 = vadd.f32 %v2378, %v2403
    %2405 = vdwg.mxu0
    %2406 = vmatpush.msra.mxu0 0.0
    %2407 = vmatpush.msra.mxu0 0.0
    %2408 = vmatpush.msra.mxu0 0.0
    %2409 = vmatpush.msra.mxu0 0.0
    %2410 = vmatpush.msra.mxu0 0.0
    %2411 = vmatpush.msra.mxu0 0.0
    %2412 = vmatpush.msra.mxu0 0.0
    %2413 = vmatpush.msra.mxu0 0.0
    %2414 = vmatpush.msra.mxu0 0.0
    %2415 = vmatpush.msra.mxu0 0.0
    %2416 = vmatpush.msra.mxu0 0.0
    %2417 = vmatpush.msra.mxu0 0.0
    %2418 = vmatpush.msra.mxu0 0.0
    %2419 = vmatpush.msra.mxu0 0.0
    %2420 = vmatpush.msra.mxu0 0.0
    %v2421 = vand.u32 %v32, 4294901760
    %v2422 = vsub.f32 %v32, %v2421
    %2423 = vmatpush.msra.mxu0 %v2422
    %v2424 = vand.u32 %v2352, 4294901760
    %v2425 = vsub.f32 %v2352, %v2424
    %2426 = vmatmul.f32.gmra.mxu0 %v2425
    %v2427 = vpop.f32.mrf.mxu0
    %v2428 = vadd.f32 %v2404, %v2427
    %2429 = vdwg.mxu0
    %2430 = vmatpush.msra.mxu0 0.0
    %2431 = vmatpush.msra.mxu0 0.0
    %2432 = vmatpush.msra.mxu0 0.0
    %2433 = vmatpush.msra.mxu0 0.0
    %2434 = vmatpush.msra.mxu0 0.0
    %2435 = vmatpush.msra.mxu0 0.0
    %2436 = vmatpush.msra.mxu0 0.0
    %2437 = vmatpush.msra.mxu0 0.0
    %2438 = vmatpush.msra.mxu0 0.0
    %2439 = vmatpush.msra.mxu0 0.0
    %2440 = vmatpush.msra.mxu0 0.0
    %2441 = vmatpush.msra.mxu0 0.0
    %2442 = vmatpush.msra.mxu0 0.0
    %2443 = vmatpush.msra.mxu0 0.0
    %2444 = vmatpush.msra.mxu0 0.0
    %v2445 = vand.u32 %v32, 4294901760
    %2446 = vmatpush.msra.mxu0 %v2445
    %v2447 = vand.u32 %v2352, 4294901760
    %v2448 = vsub.f32 %v2352, %v2447
    %v2449 = vand.u32 %v2448, 4294901760
    %2450 = vmatmul.f32.gmra.mxu0 %v2449
    %v2451 = vpop.f32.mrf.mxu0
    %v2452 = vadd.f32 %v2428, %v2451
    %2453 = vdwg.mxu0
    %2454 = vmatpush.msra.mxu0 0.0
    %2455 = vmatpush.msra.mxu0 0.0
    %2456 = vmatpush.msra.mxu0 0.0
    %2457 = vmatpush.msra.mxu0 0.0
    %2458 = vmatpush.msra.mxu0 0.0
    %2459 = vmatpush.msra.mxu0 0.0
    %2460 = vmatpush.msra.mxu0 0.0
    %2461 = vmatpush.msra.mxu0 0.0
    %2462 = vmatpush.msra.mxu0 0.0
    %2463 = vmatpush.msra.mxu0 0.0
    %2464 = vmatpush.msra.mxu0 0.0
    %2465 = vmatpush.msra.mxu0 0.0
    %2466 = vmatpush.msra.mxu0 0.0
    %2467 = vmatpush.msra.mxu0 0.0
    %2468 = vmatpush.msra.mxu0 0.0
    %v2469 = vand.u32 %v32, 4294901760
    %v2470 = vsub.f32 %v32, %v2469
    %v2471 = vand.u32 %v2470, 4294901760
    %2472 = vmatpush.msra.mxu0 %v2471
    %v2473 = vand.u32 %v2352, 4294901760
    %2474 = vmatmul.f32.gmra.mxu0 %v2473
    %v2475 = vpop.f32.mrf.mxu0
    %v2476 = vadd.f32 %v2452, %v2475
    %2477 = vdwg.mxu0
    %2478 = vmatpush.msra.mxu0 0.0
    %2479 = vmatpush.msra.mxu0 0.0
    %2480 = vmatpush.msra.mxu0 0.0
    %2481 = vmatpush.msra.mxu0 0.0
    %2482 = vmatpush.msra.mxu0 0.0
    %2483 = vmatpush.msra.mxu0 0.0
    %2484 = vmatpush.msra.mxu0 0.0
    %2485 = vmatpush.msra.mxu0 0.0
    %2486 = vmatpush.msra.mxu0 0.0
    %2487 = vmatpush.msra.mxu0 0.0
    %2488 = vmatpush.msra.mxu0 0.0
    %2489 = vmatpush.msra.mxu0 0.0
    %2490 = vmatpush.msra.mxu0 0.0
    %2491 = vmatpush.msra.mxu0 0.0
    %2492 = vmatpush.msra.mxu0 0.0
    %v2493 = vand.u32 %v32, 4294901760
    %2494 = vmatpush.msra.mxu0 %v2493
    %v2495 = vand.u32 %v2352, 4294901760
    %2496 = vmatmul.f32.gmra.mxu0 %v2495
    %v2497 = vpop.f32.mrf.mxu0
    %v2498 = vadd.f32 %v2476, %v2497
    %2499 = vdwg.mxu0
    %v2500 = vxor.u32 %v2498, 2147483648
    %v2501 = vmul.f32 %v2500, 1.442695
    %v2502 = vpow.pop %v2501
    %v2503 = vadd.f32 %v2502, 1.0
    %v2504 = vrcp.pop %v2503
    %v2505 = vmul.f32 %v2503, %v2504
    %v2506 = vsub.f32 1.0, %v2505
    %v2507 = vmul.f32 %v2504, %v2506
    %v2508 = vadd.f32 %v2504, %v2507
    %vm2509 = vweird.f32 %v2503
    %vm2510 = vweird.f32 %v2504
    %vm2511 = vmor %vm2509, %vm2510
    %v2512 = vsel %vm2511, %v2504, %v2508
    %v2513 = vand.u32 2147483647, %v2503
    %vm2514 = vcmp.eq.f32.partialorder %v2513, 8.507059e+37
    %v2515 = vand.u32 %v2503, 2147483648
    %v2516 = vor.u32 1.1754944e-38, %v2515
    %v2517 = vsel %vm2514, %v2516, %v2512
    %v2518 = vmul.f32 1.0, %v2517
    %v2519 = vtanh.pop %v2498
    %v2520 = vmul.f32 %v2518, %v2137
    %2522 = vrot.lane.b32.xlu0 %v2519, 116
    %v2523 = vpop.permute.xlu0 %2522
    %v2525 = vmul.f32 %v2518, %v2523
    %2527 = vrot.lane.b32.xlu0 %v2525, 4
    %v2528 = vpop.permute.xlu0 %2527
    %v2530 = vadd.f32 %v2520, %v2528
    %v2531 = vtanh.pop %v2530
    %2533 = vrot.lane.b32.xlu0 %v2531, 4
    %v2534 = vpop.permute.xlu0 %2533
    %v2536 = vmul.f32 %v2518, %v2534
    %v2537 = vsel %vm185, %v2344, 0
    %2539 = vmatpush.msra.mxu0 0.0
    %2540 = vmatpush.msra.mxu0 0.0
    %2541 = vmatpush.msra.mxu0 0.0
    %2542 = vmatpush.msra.mxu0 0.0
    %2543 = vmatpush.msra.mxu0 0.0
    %2544 = vmatpush.msra.mxu0 0.0
    %2545 = vmatpush.msra.mxu0 0.0
    %2546 = vmatpush.msra.mxu0 0.0
    %2547 = vmatpush.msra.mxu0 0.0
    %2548 = vmatpush.msra.mxu0 0.0
    %2549 = vmatpush.msra.mxu0 0.0
    %2550 = vmatpush.msra.mxu0 0.0
    %2551 = vmatpush.msra.mxu0 0.0
    %2552 = vmatpush.msra.mxu0 0.0
    %2553 = vmatpush.msra.mxu0 0.0
    %v2554 = vand.u32 %v191, 4294901760
    %2555 = vmatpush.msra.mxu0 %v2554
    %v2556 = vand.u32 %v2537, 4294901760
    %v2557 = vsub.f32 %v2537, %v2556
    %v2558 = vand.u32 %v2557, 4294901760
    %v2559 = vsub.f32 %v2557, %v2558
    %v2560 = vand.u32 %v2559, 4294901760
    %2561 = vmatmul.f32.gmra.mxu0 %v2560
    %v2562 = vpop.f32.mrf.mxu0
    %v2563 = vadd.f32 0.0, %v2562
    %2564 = vdwg.mxu0
    %2565 = vmatpush.msra.mxu0 0.0
    %2566 = vmatpush.msra.mxu0 0.0
    %2567 = vmatpush.msra.mxu0 0.0
    %2568 = vmatpush.msra.mxu0 0.0
    %2569 = vmatpush.msra.mxu0 0.0
    %2570 = vmatpush.msra.mxu0 0.0
    %2571 = vmatpush.msra.mxu0 0.0
    %2572 = vmatpush.msra.mxu0 0.0
    %2573 = vmatpush.msra.mxu0 0.0
    %2574 = vmatpush.msra.mxu0 0.0
    %2575 = vmatpush.msra.mxu0 0.0
    %2576 = vmatpush.msra.mxu0 0.0
    %2577 = vmatpush.msra.mxu0 0.0
    %2578 = vmatpush.msra.mxu0 0.0
    %2579 = vmatpush.msra.mxu0 0.0
    %v2580 = vand.u32 %v191, 4294901760
    %v2581 = vsub.f32 %v191, %v2580
    %v2582 = vand.u32 %v2581, 4294901760
    %v2583 = vsub.f32 %v2581, %v2582
    %v2584 = vand.u32 %v2583, 4294901760
    %2585 = vmatpush.msra.mxu0 %v2584
    %v2586 = vand.u32 %v2537, 4294901760
    %2587 = vmatmul.f32.gmra.mxu0 %v2586
    %v2588 = vpop.f32.mrf.mxu0
    %v2589 = vadd.f32 %v2563, %v2588
    %2590 = vdwg.mxu0
    %2591 = vmatpush.msra.mxu0 0.0
    %2592 = vmatpush.msra.mxu0 0.0
    %2593 = vmatpush.msra.mxu0 0.0
    %2594 = vmatpush.msra.mxu0 0.0
    %2595 = vmatpush.msra.mxu0 0.0
    %2596 = vmatpush.msra.mxu0 0.0
    %2597 = vmatpush.msra.mxu0 0.0
    %2598 = vmatpush.msra.mxu0 0.0
    %2599 = vmatpush.msra.mxu0 0.0
    %2600 = vmatpush.msra.mxu0 0.0
    %2601 = vmatpush.msra.mxu0 0.0
    %2602 = vmatpush.msra.mxu0 0.0
    %2603 = vmatpush.msra.mxu0 0.0
    %2604 = vmatpush.msra.mxu0 0.0
    %2605 = vmatpush.msra.mxu0 0.0
    %v2606 = vand.u32 %v191, 4294901760
    %v2607 = vsub.f32 %v191, %v2606
    %2608 = vmatpush.msra.mxu0 %v2607
    %v2609 = vand.u32 %v2537, 4294901760
    %v2610 = vsub.f32 %v2537, %v2609
    %2611 = vmatmul.f32.gmra.mxu0 %v2610
    %v2612 = vpop.f32.mrf.mxu0
    %v2613 = vadd.f32 %v2589, %v2612
    %2614 = vdwg.mxu0
    %2615 = vmatpush.msra.mxu0 0.0
    %2616 = vmatpush.msra.mxu0 0.0
    %2617 = vmatpush.msra.mxu0 0.0
    %2618 = vmatpush.msra.mxu0 0.0
    %2619 = vmatpush.msra.mxu0 0.0
    %2620 = vmatpush.msra.mxu0 0.0
    %2621 = vmatpush.msra.mxu0 0.0
    %2622 = vmatpush.msra.mxu0 0.0
    %2623 = vmatpush.msra.mxu0 0.0
    %2624 = vmatpush.msra.mxu0 0.0
    %2625 = vmatpush.msra.mxu0 0.0
    %2626 = vmatpush.msra.mxu0 0.0
    %2627 = vmatpush.msra.mxu0 0.0
    %2628 = vmatpush.msra.mxu0 0.0
    %2629 = vmatpush.msra.mxu0 0.0
    %v2630 = vand.u32 %v191, 4294901760
    %2631 = vmatpush.msra.mxu0 %v2630
    %v2632 = vand.u32 %v2537, 4294901760
    %v2633 = vsub.f32 %v2537, %v2632
    %v2634 = vand.u32 %v2633, 4294901760
    %2635 = vmatmul.f32.gmra.mxu0 %v2634
    %v2636 = vpop.f32.mrf.mxu0
    %v2637 = vadd.f32 %v2613, %v2636
    %2638 = vdwg.mxu0
    %2639 = vmatpush.msra.mxu0 0.0
    %2640 = vmatpush.msra.mxu0 0.0
    %2641 = vmatpush.msra.mxu0 0.0
    %2642 = vmatpush.msra.mxu0 0.0
    %2643 = vmatpush.msra.mxu0 0.0
    %2644 = vmatpush.msra.mxu0 0.0
    %2645 = vmatpush.msra.mxu0 0.0
    %2646 = vmatpush.msra.mxu0 0.0
    %2647 = vmatpush.msra.mxu0 0.0
    %2648 = vmatpush.msra.mxu0 0.0
    %2649 = vmatpush.msra.mxu0 0.0
    %2650 = vmatpush.msra.mxu0 0.0
    %2651 = vmatpush.msra.mxu0 0.0
    %2652 = vmatpush.msra.mxu0 0.0
    %2653 = vmatpush.msra.mxu0 0.0
    %v2654 = vand.u32 %v191, 4294901760
    %v2655 = vsub.f32 %v191, %v2654
    %v2656 = vand.u32 %v2655, 4294901760
    %2657 = vmatpush.msra.mxu0 %v2656
    %v2658 = vand.u32 %v2537, 4294901760
    %2659 = vmatmul.f32.gmra.mxu0 %v2658
    %v2660 = vpop.f32.mrf.mxu0
    %v2661 = vadd.f32 %v2637, %v2660
    %2662 = vdwg.mxu0
    %2663 = vmatpush.msra.mxu0 0.0
    %2664 = vmatpush.msra.mxu0 0.0
    %2665 = vmatpush.msra.mxu0 0.0
    %2666 = vmatpush.msra.mxu0 0.0
    %2667 = vmatpush.msra.mxu0 0.0
    %2668 = vmatpush.msra.mxu0 0.0
    %2669 = vmatpush.msra.mxu0 0.0
    %2670 = vmatpush.msra.mxu0 0.0
    %2671 = vmatpush.msra.mxu0 0.0
    %2672 = vmatpush.msra.mxu0 0.0
    %2673 = vmatpush.msra.mxu0 0.0
    %2674 = vmatpush.msra.mxu0 0.0
    %2675 = vmatpush.msra.mxu0 0.0
    %2676 = vmatpush.msra.mxu0 0.0
    %2677 = vmatpush.msra.mxu0 0.0
    %v2678 = vand.u32 %v191, 4294901760
    %2679 = vmatpush.msra.mxu0 %v2678
    %v2680 = vand.u32 %v2537, 4294901760
    %2681 = vmatmul.f32.gmra.mxu0 %v2680
    %v2682 = vpop.f32.mrf.mxu0
    %v2683 = vadd.f32 %v2661, %v2682
    %2684 = vdwg.mxu0
    %2686 = vrot.lane.b32.xlu0 %v2683, 96
    %v2687 = vpop.permute.xlu0 %2686
    %v2689 = vadd.f32 %v183, %v2687
    %2690 = vrot.lane.b32.xlu0 %v340, 96
    %v2691 = vpop.permute.xlu0 %2690
    %v2693 = vadd.f32 %v2689, %v2691
    %v2694 = vxor.u32 %v2693, 2147483648
    %v2695 = vmul.f32 %v2694, 1.442695
    %v2696 = vpow.pop %v2695
    %v2697 = vadd.f32 %v2696, 1.0
    %v2698 = vrcp.pop %v2697
    %v2699 = vmul.f32 %v2697, %v2698
    %v2700 = vsub.f32 1.0, %v2699
    %v2701 = vmul.f32 %v2698, %v2700
    %v2702 = vadd.f32 %v2698, %v2701
    %vm2703 = vweird.f32 %v2697
    %vm2704 = vweird.f32 %v2698
    %vm2705 = vmor %vm2703, %vm2704
    %v2706 = vsel %vm2705, %v2698, %v2702
    %v2707 = vand.u32 2147483647, %v2697
    %vm2708 = vcmp.eq.f32.partialorder %v2707, 8.507059e+37
    %v2709 = vand.u32 %v2697, 2147483648
    %v2710 = vor.u32 1.1754944e-38, %v2709
    %v2711 = vsel %vm2708, %v2710, %v2706
    %v2712 = vmul.f32 1.0, %v2711
    %v2713 = vtanh.pop %v2693
    %2715 = vrot.lane.b32.xlu0 %v2335, 16
    %v2716 = vpop.permute.xlu0 %2715
    %v2718 = vmul.f32 %v2712, %v2716
    %2720 = vrot.lane.b32.xlu0 %v2713, 116
    %v2721 = vpop.permute.xlu0 %2720
    %v2723 = vmul.f32 %v2712, %v2721
    %2725 = vrot.lane.b32.xlu0 %v2723, 4
    %v2726 = vpop.permute.xlu0 %2725
    %v2728 = vadd.f32 %v2718, %v2726
    %v2729 = vtanh.pop %v2728
    %2731 = vrot.lane.b32.xlu0 %v2729, 4
    %v2732 = vpop.permute.xlu0 %2731
    %v2734 = vmul.f32 %v2712, %v2732
    %2736 = vrot.lane.b32.xlu0 %v2734, 24
    %v2737 = vpop.permute.xlu0 %2736
    %2740 = vrot.lane.b32.xlu0 %v2536, 124
    %v2741 = vpop.permute.xlu0 %2740
    %v2743 = vsel %vm185, %v2737, %v2741
    %v2745 = vsel %vm35, %v2743, 0
    %2747 = vmatpush.msra.mxu0 0.0
    %2748 = vmatpush.msra.mxu0 0.0
    %2749 = vmatpush.msra.mxu0 0.0
    %2750 = vmatpush.msra.mxu0 0.0
    %2751 = vmatpush.msra.mxu0 0.0
    %2752 = vmatpush.msra.mxu0 0.0
    %2753 = vmatpush.msra.mxu0 0.0
    %2754 = vmatpush.msra.mxu0 0.0
    %2755 = vmatpush.msra.mxu0 0.0
    %2756 = vmatpush.msra.mxu0 0.0
    %2757 = vmatpush.msra.mxu0 0.0
    %2758 = vmatpush.msra.mxu0 0.0
    %2759 = vmatpush.msra.mxu0 0.0
    %2760 = vmatpush.msra.mxu0 0.0
    %2761 = vmatpush.msra.mxu0 0.0
    %v2762 = vand.u32 %v32, 4294901760
    %2763 = vmatpush.msra.mxu0 %v2762
    %v2764 = vand.u32 %v2745, 4294901760
    %v2765 = vsub.f32 %v2745, %v2764
    %v2766 = vand.u32 %v2765, 4294901760
    %v2767 = vsub.f32 %v2765, %v2766
    %v2768 = vand.u32 %v2767, 4294901760
    %2769 = vmatmul.f32.gmra.mxu0 %v2768
    %v2770 = vpop.f32.mrf.mxu0
    %v2771 = vadd.f32 %v384, %v2770
    %2772 = vdwg.mxu0
    %2773 = vmatpush.msra.mxu0 0.0
    %2774 = vmatpush.msra.mxu0 0.0
    %2775 = vmatpush.msra.mxu0 0.0
    %2776 = vmatpush.msra.mxu0 0.0
    %2777 = vmatpush.msra.mxu0 0.0
    %2778 = vmatpush.msra.mxu0 0.0
    %2779 = vmatpush.msra.mxu0 0.0
    %2780 = vmatpush.msra.mxu0 0.0
    %2781 = vmatpush.msra.mxu0 0.0
    %2782 = vmatpush.msra.mxu0 0.0
    %2783 = vmatpush.msra.mxu0 0.0
    %2784 = vmatpush.msra.mxu0 0.0
    %2785 = vmatpush.msra.mxu0 0.0
    %2786 = vmatpush.msra.mxu0 0.0
    %2787 = vmatpush.msra.mxu0 0.0
    %v2788 = vand.u32 %v32, 4294901760
    %v2789 = vsub.f32 %v32, %v2788
    %v2790 = vand.u32 %v2789, 4294901760
    %v2791 = vsub.f32 %v2789, %v2790
    %v2792 = vand.u32 %v2791, 4294901760
    %2793 = vmatpush.msra.mxu0 %v2792
    %v2794 = vand.u32 %v2745, 4294901760
    %2795 = vmatmul.f32.gmra.mxu0 %v2794
    %v2796 = vpop.f32.mrf.mxu0
    %v2797 = vadd.f32 %v2771, %v2796
    %2798 = vdwg.mxu0
    %2799 = vmatpush.msra.mxu0 0.0
    %2800 = vmatpush.msra.mxu0 0.0
    %2801 = vmatpush.msra.mxu0 0.0
    %2802 = vmatpush.msra.mxu0 0.0
    %2803 = vmatpush.msra.mxu0 0.0
    %2804 = vmatpush.msra.mxu0 0.0
    %2805 = vmatpush.msra.mxu0 0.0
    %2806 = vmatpush.msra.mxu0 0.0
    %2807 = vmatpush.msra.mxu0 0.0
    %2808 = vmatpush.msra.mxu0 0.0
    %2809 = vmatpush.msra.mxu0 0.0
    %2810 = vmatpush.msra.mxu0 0.0
    %2811 = vmatpush.msra.mxu0 0.0
    %2812 = vmatpush.msra.mxu0 0.0
    %2813 = vmatpush.msra.mxu0 0.0
    %v2814 = vand.u32 %v32, 4294901760
    %v2815 = vsub.f32 %v32, %v2814
    %2816 = vmatpush.msra.mxu0 %v2815
    %v2817 = vand.u32 %v2745, 4294901760
    %v2818 = vsub.f32 %v2745, %v2817
    %2819 = vmatmul.f32.gmra.mxu0 %v2818
    %v2820 = vpop.f32.mrf.mxu0
    %v2821 = vadd.f32 %v2797, %v2820
    %2822 = vdwg.mxu0
    %2823 = vmatpush.msra.mxu0 0.0
    %2824 = vmatpush.msra.mxu0 0.0
    %2825 = vmatpush.msra.mxu0 0.0
    %2826 = vmatpush.msra.mxu0 0.0
    %2827 = vmatpush.msra.mxu0 0.0
    %2828 = vmatpush.msra.mxu0 0.0
    %2829 = vmatpush.msra.mxu0 0.0
    %2830 = vmatpush.msra.mxu0 0.0
    %2831 = vmatpush.msra.mxu0 0.0
    %2832 = vmatpush.msra.mxu0 0.0
    %2833 = vmatpush.msra.mxu0 0.0
    %2834 = vmatpush.msra.mxu0 0.0
    %2835 = vmatpush.msra.mxu0 0.0
    %2836 = vmatpush.msra.mxu0 0.0
    %2837 = vmatpush.msra.mxu0 0.0
    %v2838 = vand.u32 %v32, 4294901760
    %2839 = vmatpush.msra.mxu0 %v2838
    %v2840 = vand.u32 %v2745, 4294901760
    %v2841 = vsub.f32 %v2745, %v2840
    %v2842 = vand.u32 %v2841, 4294901760
    %2843 = vmatmul.f32.gmra.mxu0 %v2842
    %v2844 = vpop.f32.mrf.mxu0
    %v2845 = vadd.f32 %v2821, %v2844
    %2846 = vdwg.mxu0
    %2847 = vmatpush.msra.mxu0 0.0
    %2848 = vmatpush.msra.mxu0 0.0
    %2849 = vmatpush.msra.mxu0 0.0
    %2850 = vmatpush.msra.mxu0 0.0
    %2851 = vmatpush.msra.mxu0 0.0
    %2852 = vmatpush.msra.mxu0 0.0
    %2853 = vmatpush.msra.mxu0 0.0
    %2854 = vmatpush.msra.mxu0 0.0
    %2855 = vmatpush.msra.mxu0 0.0
    %2856 = vmatpush.msra.mxu0 0.0
    %2857 = vmatpush.msra.mxu0 0.0
    %2858 = vmatpush.msra.mxu0 0.0
    %2859 = vmatpush.msra.mxu0 0.0
    %2860 = vmatpush.msra.mxu0 0.0
    %2861 = vmatpush.msra.mxu0 0.0
    %v2862 = vand.u32 %v32, 4294901760
    %v2863 = vsub.f32 %v32, %v2862
    %v2864 = vand.u32 %v2863, 4294901760
    %2865 = vmatpush.msra.mxu0 %v2864
    %v2866 = vand.u32 %v2745, 4294901760
    %2867 = vmatmul.f32.gmra.mxu0 %v2866
    %v2868 = vpop.f32.mrf.mxu0
    %v2869 = vadd.f32 %v2845, %v2868
    %2870 = vdwg.mxu0
    %2871 = vmatpush.msra.mxu0 0.0
    %2872 = vmatpush.msra.mxu0 0.0
    %2873 = vmatpush.msra.mxu0 0.0
    %2874 = vmatpush.msra.mxu0 0.0
    %2875 = vmatpush.msra.mxu0 0.0
    %2876 = vmatpush.msra.mxu0 0.0
    %2877 = vmatpush.msra.mxu0 0.0
    %2878 = vmatpush.msra.mxu0 0.0
    %2879 = vmatpush.msra.mxu0 0.0
    %2880 = vmatpush.msra.mxu0 0.0
    %2881 = vmatpush.msra.mxu0 0.0
    %2882 = vmatpush.msra.mxu0 0.0
    %2883 = vmatpush.msra.mxu0 0.0
    %2884 = vmatpush.msra.mxu0 0.0
    %2885 = vmatpush.msra.mxu0 0.0
    %v2886 = vand.u32 %v32, 4294901760
    %2887 = vmatpush.msra.mxu0 %v2886
    %v2888 = vand.u32 %v2745, 4294901760
    %2889 = vmatmul.f32.gmra.mxu0 %v2888
    %v2890 = vpop.f32.mrf.mxu0
    %v2891 = vadd.f32 %v2869, %v2890
    %2892 = vdwg.mxu0
    %v2893 = vxor.u32 %v2891, 2147483648
    %v2894 = vmul.f32 %v2893, 1.442695
    %v2895 = vpow.pop %v2894
    %v2896 = vadd.f32 %v2895, 1.0
    %v2897 = vrcp.pop %v2896
    %v2898 = vmul.f32 %v2896, %v2897
    %v2899 = vsub.f32 1.0, %v2898
    %v2900 = vmul.f32 %v2897, %v2899
    %v2901 = vadd.f32 %v2897, %v2900
    %vm2902 = vweird.f32 %v2896
    %vm2903 = vweird.f32 %v2897
    %vm2904 = vmor %vm2902, %vm2903
    %v2905 = vsel %vm2904, %v2897, %v2901
    %v2906 = vand.u32 2147483647, %v2896
    %vm2907 = vcmp.eq.f32.partialorder %v2906, 8.507059e+37
    %v2908 = vand.u32 %v2896, 2147483648
    %v2909 = vor.u32 1.1754944e-38, %v2908
    %v2910 = vsel %vm2907, %v2909, %v2905
    %v2911 = vmul.f32 1.0, %v2910
    %v2912 = vtanh.pop %v2891
    %v2913 = vmul.f32 %v2911, %v2530
    %2915 = vrot.lane.b32.xlu0 %v2912, 116
    %v2916 = vpop.permute.xlu0 %2915
    %v2918 = vmul.f32 %v2911, %v2916
    %2920 = vrot.lane.b32.xlu0 %v2918, 4
    %v2921 = vpop.permute.xlu0 %2920
    %v2923 = vadd.f32 %v2913, %v2921
    %v2924 = vtanh.pop %v2923
    %2926 = vrot.lane.b32.xlu0 %v2924, 4
    %v2927 = vpop.permute.xlu0 %2926
    %v2929 = vmul.f32 %v2911, %v2927
    %v2930 = vsel %vm185, %v2737, 0
    %2932 = vmatpush.msra.mxu0 0.0
    %2933 = vmatpush.msra.mxu0 0.0
    %2934 = vmatpush.msra.mxu0 0.0
    %2935 = vmatpush.msra.mxu0 0.0
    %2936 = vmatpush.msra.mxu0 0.0
    %2937 = vmatpush.msra.mxu0 0.0
    %2938 = vmatpush.msra.mxu0 0.0
    %2939 = vmatpush.msra.mxu0 0.0
    %2940 = vmatpush.msra.mxu0 0.0
    %2941 = vmatpush.msra.mxu0 0.0
    %2942 = vmatpush.msra.mxu0 0.0
    %2943 = vmatpush.msra.mxu0 0.0
    %2944 = vmatpush.msra.mxu0 0.0
    %2945 = vmatpush.msra.mxu0 0.0
    %2946 = vmatpush.msra.mxu0 0.0
    %v2947 = vand.u32 %v191, 4294901760
    %2948 = vmatpush.msra.mxu0 %v2947
    %v2949 = vand.u32 %v2930, 4294901760
    %v2950 = vsub.f32 %v2930, %v2949
    %v2951 = vand.u32 %v2950, 4294901760
    %v2952 = vsub.f32 %v2950, %v2951
    %v2953 = vand.u32 %v2952, 4294901760
    %2954 = vmatmul.f32.gmra.mxu0 %v2953
    %v2955 = vpop.f32.mrf.mxu0
    %v2956 = vadd.f32 0.0, %v2955
    %2957 = vdwg.mxu0
    %2958 = vmatpush.msra.mxu0 0.0
    %2959 = vmatpush.msra.mxu0 0.0
    %2960 = vmatpush.msra.mxu0 0.0
    %2961 = vmatpush.msra.mxu0 0.0
    %2962 = vmatpush.msra.mxu0 0.0
    %2963 = vmatpush.msra.mxu0 0.0
    %2964 = vmatpush.msra.mxu0 0.0
    %2965 = vmatpush.msra.mxu0 0.0
    %2966 = vmatpush.msra.mxu0 0.0
    %2967 = vmatpush.msra.mxu0 0.0
    %2968 = vmatpush.msra.mxu0 0.0
    %2969 = vmatpush.msra.mxu0 0.0
    %2970 = vmatpush.msra.mxu0 0.0
    %2971 = vmatpush.msra.mxu0 0.0
    %2972 = vmatpush.msra.mxu0 0.0
    %v2973 = vand.u32 %v191, 4294901760
    %v2974 = vsub.f32 %v191, %v2973
    %v2975 = vand.u32 %v2974, 4294901760
    %v2976 = vsub.f32 %v2974, %v2975
    %v2977 = vand.u32 %v2976, 4294901760
    %2978 = vmatpush.msra.mxu0 %v2977
    %v2979 = vand.u32 %v2930, 4294901760
    %2980 = vmatmul.f32.gmra.mxu0 %v2979
    %v2981 = vpop.f32.mrf.mxu0
    %v2982 = vadd.f32 %v2956, %v2981
    %2983 = vdwg.mxu0
    %2984 = vmatpush.msra.mxu0 0.0
    %2985 = vmatpush.msra.mxu0 0.0
    %2986 = vmatpush.msra.mxu0 0.0
    %2987 = vmatpush.msra.mxu0 0.0
    %2988 = vmatpush.msra.mxu0 0.0
    %2989 = vmatpush.msra.mxu0 0.0
    %2990 = vmatpush.msra.mxu0 0.0
    %2991 = vmatpush.msra.mxu0 0.0
    %2992 = vmatpush.msra.mxu0 0.0
    %2993 = vmatpush.msra.mxu0 0.0
    %2994 = vmatpush.msra.mxu0 0.0
    %2995 = vmatpush.msra.mxu0 0.0
    %2996 = vmatpush.msra.mxu0 0.0
    %2997 = vmatpush.msra.mxu0 0.0
    %2998 = vmatpush.msra.mxu0 0.0
    %v2999 = vand.u32 %v191, 4294901760
    %v3000 = vsub.f32 %v191, %v2999
    %3001 = vmatpush.msra.mxu0 %v3000
    %v3002 = vand.u32 %v2930, 4294901760
    %v3003 = vsub.f32 %v2930, %v3002
    %3004 = vmatmul.f32.gmra.mxu0 %v3003
    %v3005 = vpop.f32.mrf.mxu0
    %v3006 = vadd.f32 %v2982, %v3005
    %3007 = vdwg.mxu0
    %3008 = vmatpush.msra.mxu0 0.0
    %3009 = vmatpush.msra.mxu0 0.0
    %3010 = vmatpush.msra.mxu0 0.0
    %3011 = vmatpush.msra.mxu0 0.0
    %3012 = vmatpush.msra.mxu0 0.0
    %3013 = vmatpush.msra.mxu0 0.0
    %3014 = vmatpush.msra.mxu0 0.0
    %3015 = vmatpush.msra.mxu0 0.0
    %3016 = vmatpush.msra.mxu0 0.0
    %3017 = vmatpush.msra.mxu0 0.0
    %3018 = vmatpush.msra.mxu0 0.0
    %3019 = vmatpush.msra.mxu0 0.0
    %3020 = vmatpush.msra.mxu0 0.0
    %3021 = vmatpush.msra.mxu0 0.0
    %3022 = vmatpush.msra.mxu0 0.0
    %v3023 = vand.u32 %v191, 4294901760
    %3024 = vmatpush.msra.mxu0 %v3023
    %v3025 = vand.u32 %v2930, 4294901760
    %v3026 = vsub.f32 %v2930, %v3025
    %v3027 = vand.u32 %v3026, 4294901760
    %3028 = vmatmul.f32.gmra.mxu0 %v3027
    %v3029 = vpop.f32.mrf.mxu0
    %v3030 = vadd.f32 %v3006, %v3029
    %3031 = vdwg.mxu0
    %3032 = vmatpush.msra.mxu0 0.0
    %3033 = vmatpush.msra.mxu0 0.0
    %3034 = vmatpush.msra.mxu0 0.0
    %3035 = vmatpush.msra.mxu0 0.0
    %3036 = vmatpush.msra.mxu0 0.0
    %3037 = vmatpush.msra.mxu0 0.0
    %3038 = vmatpush.msra.mxu0 0.0
    %3039 = vmatpush.msra.mxu0 0.0
    %3040 = vmatpush.msra.mxu0 0.0
    %3041 = vmatpush.msra.mxu0 0.0
    %3042 = vmatpush.msra.mxu0 0.0
    %3043 = vmatpush.msra.mxu0 0.0
    %3044 = vmatpush.msra.mxu0 0.0
    %3045 = vmatpush.msra.mxu0 0.0
    %3046 = vmatpush.msra.mxu0 0.0
    %v3047 = vand.u32 %v191, 4294901760
    %v3048 = vsub.f32 %v191, %v3047
    %v3049 = vand.u32 %v3048, 4294901760
    %3050 = vmatpush.msra.mxu0 %v3049
    %v3051 = vand.u32 %v2930, 4294901760
    %3052 = vmatmul.f32.gmra.mxu0 %v3051
    %v3053 = vpop.f32.mrf.mxu0
    %v3054 = vadd.f32 %v3030, %v3053
    %3055 = vdwg.mxu0
    %3056 = vmatpush.msra.mxu0 0.0
    %3057 = vmatpush.msra.mxu0 0.0
    %3058 = vmatpush.msra.mxu0 0.0
    %3059 = vmatpush.msra.mxu0 0.0
    %3060 = vmatpush.msra.mxu0 0.0
    %3061 = vmatpush.msra.mxu0 0.0
    %3062 = vmatpush.msra.mxu0 0.0
    %3063 = vmatpush.msra.mxu0 0.0
    %3064 = vmatpush.msra.mxu0 0.0
    %3065 = vmatpush.msra.mxu0 0.0
    %3066 = vmatpush.msra.mxu0 0.0
    %3067 = vmatpush.msra.mxu0 0.0
    %3068 = vmatpush.msra.mxu0 0.0
    %3069 = vmatpush.msra.mxu0 0.0
    %3070 = vmatpush.msra.mxu0 0.0
    %v3071 = vand.u32 %v191, 4294901760
    %3072 = vmatpush.msra.mxu0 %v3071
    %v3073 = vand.u32 %v2930, 4294901760
    %3074 = vmatmul.f32.gmra.mxu0 %v3073
    %v3075 = vpop.f32.mrf.mxu0
    %v3076 = vadd.f32 %v3054, %v3075
    %3077 = vdwg.mxu0
    %3079 = vrot.lane.b32.xlu0 %v3076, 112
    %v3080 = vpop.permute.xlu0 %3079
    %v3082 = vadd.f32 %v183, %v3080
    %3083 = vrot.lane.b32.xlu0 %v340, 112
    %v3084 = vpop.permute.xlu0 %3083
    %v3086 = vadd.f32 %v3082, %v3084
    %v3087 = vxor.u32 %v3086, 2147483648
    %v3088 = vmul.f32 %v3087, 1.442695
    %v3089 = vpow.pop %v3088
    %v3090 = vadd.f32 %v3089, 1.0
    %v3091 = vrcp.pop %v3090
    %v3092 = vmul.f32 %v3090, %v3091
    %v3093 = vsub.f32 1.0, %v3092
    %v3094 = vmul.f32 %v3091, %v3093
    %v3095 = vadd.f32 %v3091, %v3094
    %vm3096 = vweird.f32 %v3090
    %vm3097 = vweird.f32 %v3091
    %vm3098 = vmor %vm3096, %vm3097
    %v3099 = vsel %vm3098, %v3091, %v3095
    %v3100 = vand.u32 2147483647, %v3090
    %vm3101 = vcmp.eq.f32.partialorder %v3100, 8.507059e+37
    %v3102 = vand.u32 %v3090, 2147483648
    %v3103 = vor.u32 1.1754944e-38, %v3102
    %v3104 = vsel %vm3101, %v3103, %v3099
    %v3105 = vmul.f32 1.0, %v3104
    %v3106 = vtanh.pop %v3086
    %3108 = vrot.lane.b32.xlu0 %v2728, 16
    %v3109 = vpop.permute.xlu0 %3108
    %v3111 = vmul.f32 %v3105, %v3109
    %3113 = vrot.lane.b32.xlu0 %v3106, 116
    %v3114 = vpop.permute.xlu0 %3113
    %v3116 = vmul.f32 %v3105, %v3114
    %3118 = vrot.lane.b32.xlu0 %v3116, 4
    %v3119 = vpop.permute.xlu0 %3118
    %v3121 = vadd.f32 %v3111, %v3119
    %v3122 = vtanh.pop %v3121
    %3124 = vrot.lane.b32.xlu0 %v3122, 4
    %v3125 = vpop.permute.xlu0 %3124
    %v3127 = vmul.f32 %v3105, %v3125
    %3129 = vrot.lane.b32.xlu0 %v3127, 8
    %v3130 = vpop.permute.xlu0 %3129
    %3133 = vrot.lane.b32.xlu0 %v2929, 124
    %v3134 = vpop.permute.xlu0 %3133
    %v3136 = vsel %vm185, %v3130, %v3134
    %v3138 = vsel %vm35, %v3136, 0
    %3140 = vmatpush.msra.mxu0 0.0
    %3141 = vmatpush.msra.mxu0 0.0
    %3142 = vmatpush.msra.mxu0 0.0
    %3143 = vmatpush.msra.mxu0 0.0
    %3144 = vmatpush.msra.mxu0 0.0
    %3145 = vmatpush.msra.mxu0 0.0
    %3146 = vmatpush.msra.mxu0 0.0
    %3147 = vmatpush.msra.mxu0 0.0
    %3148 = vmatpush.msra.mxu0 0.0
    %3149 = vmatpush.msra.mxu0 0.0
    %3150 = vmatpush.msra.mxu0 0.0
    %3151 = vmatpush.msra.mxu0 0.0
    %3152 = vmatpush.msra.mxu0 0.0
    %3153 = vmatpush.msra.mxu0 0.0
    %3154 = vmatpush.msra.mxu0 0.0
    %v3155 = vand.u32 %v32, 4294901760
    %3156 = vmatpush.msra.mxu0 %v3155
    %v3157 = vand.u32 %v3138, 4294901760
    %v3158 = vsub.f32 %v3138, %v3157
    %v3159 = vand.u32 %v3158, 4294901760
    %v3160 = vsub.f32 %v3158, %v3159
    %v3161 = vand.u32 %v3160, 4294901760
    %3162 = vmatmul.f32.gmra.mxu0 %v3161
    %v3163 = vpop.f32.mrf.mxu0
    %v3164 = vadd.f32 %v384, %v3163
    %3165 = vdwg.mxu0
    %3166 = vmatpush.msra.mxu0 0.0
    %3167 = vmatpush.msra.mxu0 0.0
    %3168 = vmatpush.msra.mxu0 0.0
    %3169 = vmatpush.msra.mxu0 0.0
    %3170 = vmatpush.msra.mxu0 0.0
    %3171 = vmatpush.msra.mxu0 0.0
    %3172 = vmatpush.msra.mxu0 0.0
    %3173 = vmatpush.msra.mxu0 0.0
    %3174 = vmatpush.msra.mxu0 0.0
    %3175 = vmatpush.msra.mxu0 0.0
    %3176 = vmatpush.msra.mxu0 0.0
    %3177 = vmatpush.msra.mxu0 0.0
    %3178 = vmatpush.msra.mxu0 0.0
    %3179 = vmatpush.msra.mxu0 0.0
    %3180 = vmatpush.msra.mxu0 0.0
    %v3181 = vand.u32 %v32, 4294901760
    %v3182 = vsub.f32 %v32, %v3181
    %v3183 = vand.u32 %v3182, 4294901760
    %v3184 = vsub.f32 %v3182, %v3183
    %v3185 = vand.u32 %v3184, 4294901760
    %3186 = vmatpush.msra.mxu0 %v3185
    %v3187 = vand.u32 %v3138, 4294901760
    %3188 = vmatmul.f32.gmra.mxu0 %v3187
    %v3189 = vpop.f32.mrf.mxu0
    %v3190 = vadd.f32 %v3164, %v3189
    %3191 = vdwg.mxu0
    %3192 = vmatpush.msra.mxu0 0.0
    %3193 = vmatpush.msra.mxu0 0.0
    %3194 = vmatpush.msra.mxu0 0.0
    %3195 = vmatpush.msra.mxu0 0.0
    %3196 = vmatpush.msra.mxu0 0.0
    %3197 = vmatpush.msra.mxu0 0.0
    %3198 = vmatpush.msra.mxu0 0.0
    %3199 = vmatpush.msra.mxu0 0.0
    %3200 = vmatpush.msra.mxu0 0.0
    %3201 = vmatpush.msra.mxu0 0.0
    %3202 = vmatpush.msra.mxu0 0.0
    %3203 = vmatpush.msra.mxu0 0.0
    %3204 = vmatpush.msra.mxu0 0.0
    %3205 = vmatpush.msra.mxu0 0.0
    %3206 = vmatpush.msra.mxu0 0.0
    %v3207 = vand.u32 %v32, 4294901760
    %v3208 = vsub.f32 %v32, %v3207
    %3209 = vmatpush.msra.mxu0 %v3208
    %v3210 = vand.u32 %v3138, 4294901760
    %v3211 = vsub.f32 %v3138, %v3210
    %3212 = vmatmul.f32.gmra.mxu0 %v3211
    %v3213 = vpop.f32.mrf.mxu0
    %v3214 = vadd.f32 %v3190, %v3213
    %3215 = vdwg.mxu0
    %3216 = vmatpush.msra.mxu0 0.0
    %3217 = vmatpush.msra.mxu0 0.0
    %3218 = vmatpush.msra.mxu0 0.0
    %3219 = vmatpush.msra.mxu0 0.0
    %3220 = vmatpush.msra.mxu0 0.0
    %3221 = vmatpush.msra.mxu0 0.0
    %3222 = vmatpush.msra.mxu0 0.0
    %3223 = vmatpush.msra.mxu0 0.0
    %3224 = vmatpush.msra.mxu0 0.0
    %3225 = vmatpush.msra.mxu0 0.0
    %3226 = vmatpush.msra.mxu0 0.0
    %3227 = vmatpush.msra.mxu0 0.0
    %3228 = vmatpush.msra.mxu0 0.0
    %3229 = vmatpush.msra.mxu0 0.0
    %3230 = vmatpush.msra.mxu0 0.0
    %v3231 = vand.u32 %v32, 4294901760
    %3232 = vmatpush.msra.mxu0 %v3231
    %v3233 = vand.u32 %v3138, 4294901760
    %v3234 = vsub.f32 %v3138, %v3233
    %v3235 = vand.u32 %v3234, 4294901760
    %3236 = vmatmul.f32.gmra.mxu0 %v3235
    %v3237 = vpop.f32.mrf.mxu0
    %v3238 = vadd.f32 %v3214, %v3237
    %3239 = vdwg.mxu0
    %3240 = vmatpush.msra.mxu0 0.0
    %3241 = vmatpush.msra.mxu0 0.0
    %3242 = vmatpush.msra.mxu0 0.0
    %3243 = vmatpush.msra.mxu0 0.0
    %3244 = vmatpush.msra.mxu0 0.0
    %3245 = vmatpush.msra.mxu0 0.0
    %3246 = vmatpush.msra.mxu0 0.0
    %3247 = vmatpush.msra.mxu0 0.0
    %3248 = vmatpush.msra.mxu0 0.0
    %3249 = vmatpush.msra.mxu0 0.0
    %3250 = vmatpush.msra.mxu0 0.0
    %3251 = vmatpush.msra.mxu0 0.0
    %3252 = vmatpush.msra.mxu0 0.0
    %3253 = vmatpush.msra.mxu0 0.0
    %3254 = vmatpush.msra.mxu0 0.0
    %v3255 = vand.u32 %v32, 4294901760
    %v3256 = vsub.f32 %v32, %v3255
    %v3257 = vand.u32 %v3256, 4294901760
    %3258 = vmatpush.msra.mxu0 %v3257
    %v3259 = vand.u32 %v3138, 4294901760
    %3260 = vmatmul.f32.gmra.mxu0 %v3259
    %v3261 = vpop.f32.mrf.mxu0
    %v3262 = vadd.f32 %v3238, %v3261
    %3263 = vdwg.mxu0
    %3264 = vmatpush.msra.mxu0 0.0
    %3265 = vmatpush.msra.mxu0 0.0
    %3266 = vmatpush.msra.mxu0 0.0
    %3267 = vmatpush.msra.mxu0 0.0
    %3268 = vmatpush.msra.mxu0 0.0
    %3269 = vmatpush.msra.mxu0 0.0
    %3270 = vmatpush.msra.mxu0 0.0
    %3271 = vmatpush.msra.mxu0 0.0
    %3272 = vmatpush.msra.mxu0 0.0
    %3273 = vmatpush.msra.mxu0 0.0
    %3274 = vmatpush.msra.mxu0 0.0
    %3275 = vmatpush.msra.mxu0 0.0
    %3276 = vmatpush.msra.mxu0 0.0
    %3277 = vmatpush.msra.mxu0 0.0
    %3278 = vmatpush.msra.mxu0 0.0
    %v3279 = vand.u32 %v32, 4294901760
    %3280 = vmatpush.msra.mxu0 %v3279
    %v3281 = vand.u32 %v3138, 4294901760
    %3282 = vmatmul.f32.gmra.mxu0 %v3281
    %v3283 = vpop.f32.mrf.mxu0
    %v3284 = vadd.f32 %v3262, %v3283
    %3285 = vdwg.mxu0
    %v3286 = vxor.u32 %v3284, 2147483648
    %v3287 = vmul.f32 %v3286, 1.442695
    %v3288 = vpow.pop %v3287
    %v3289 = vadd.f32 %v3288, 1.0
    %v3290 = vrcp.pop %v3289
    %v3291 = vmul.f32 %v3289, %v3290
    %v3292 = vsub.f32 1.0, %v3291
    %v3293 = vmul.f32 %v3290, %v3292
    %v3294 = vadd.f32 %v3290, %v3293
    %vm3295 = vweird.f32 %v3289
    %vm3296 = vweird.f32 %v3290
    %vm3297 = vmor %vm3295, %vm3296
    %v3298 = vsel %vm3297, %v3290, %v3294
    %v3299 = vand.u32 2147483647, %v3289
    %vm3300 = vcmp.eq.f32.partialorder %v3299, 8.507059e+37
    %v3301 = vand.u32 %v3289, 2147483648
    %v3302 = vor.u32 1.1754944e-38, %v3301
    %v3303 = vsel %vm3300, %v3302, %v3298
    %v3304 = vmul.f32 1.0, %v3303
    %v3305 = vtanh.pop %v3284
    %v3306 = vmul.f32 %v3304, %v2923
    %3308 = vrot.lane.b32.xlu0 %v3305, 116
    %v3309 = vpop.permute.xlu0 %3308
    %v3311 = vmul.f32 %v3304, %v3309
    %3313 = vrot.lane.b32.xlu0 %v3311, 4
    %v3314 = vpop.permute.xlu0 %3313
    %v3316 = vadd.f32 %v3306, %v3314
    %v3317 = vtanh.pop %v3316
    %3319 = vrot.lane.b32.xlu0 %v3317, 4
    %v3320 = vpop.permute.xlu0 %3319
    %v3322 = vmul.f32 %v3304, %v3320
    %v3323 = vld [vmem:[#allocation2 + $0x28] sm:$0xf]
    %v3324 = vld [vmem:[#allocation2 + $0x30] sm:$0x1]
    %v3325 = vperm.slane %v3324, 0
    %3327 = vrot.lane.b32.xlu0 %v3322, 120
    %v3328 = vpop.permute.xlu0 %3327
    %v3329 = vsel %vm185, %v3328, 0
    %v3332 = vsel %vm189, %v3323, 0
    %3334 = vmatpush.msra.mxu0 0.0
    %3335 = vmatpush.msra.mxu0 0.0
    %3336 = vmatpush.msra.mxu0 0.0
    %3337 = vmatpush.msra.mxu0 0.0
    %3338 = vmatpush.msra.mxu0 0.0
    %3339 = vmatpush.msra.mxu0 0.0
    %3340 = vmatpush.msra.mxu0 0.0
    %3341 = vmatpush.msra.mxu0 0.0
    %3342 = vmatpush.msra.mxu0 0.0
    %3343 = vmatpush.msra.mxu0 0.0
    %3344 = vmatpush.msra.mxu0 0.0
    %3345 = vmatpush.msra.mxu0 0.0
    %3346 = vmatpush.msra.mxu0 0.0
    %3347 = vmatpush.msra.mxu0 0.0
    %3348 = vmatpush.msra.mxu0 0.0
    %v3349 = vand.u32 %v3332, 4294901760
    %3350 = vmatpush.msra.mxu0 %v3349
    %v3351 = vand.u32 %v3329, 4294901760
    %v3352 = vsub.f32 %v3329, %v3351
    %v3353 = vand.u32 %v3352, 4294901760
    %v3354 = vsub.f32 %v3352, %v3353
    %v3355 = vand.u32 %v3354, 4294901760
    %3356 = vmatmul.f32.gmra.mxu0 %v3355
    %v3357 = vpop.f32.mrf.mxu0
    %v3358 = vadd.f32 %v3325, %v3357
    %3359 = vdwg.mxu0
    %3360 = vmatpush.msra.mxu0 0.0
    %3361 = vmatpush.msra.mxu0 0.0
    %3362 = vmatpush.msra.mxu0 0.0
    %3363 = vmatpush.msra.mxu0 0.0
    %3364 = vmatpush.msra.mxu0 0.0
    %3365 = vmatpush.msra.mxu0 0.0
    %3366 = vmatpush.msra.mxu0 0.0
    %3367 = vmatpush.msra.mxu0 0.0
    %3368 = vmatpush.msra.mxu0 0.0
    %3369 = vmatpush.msra.mxu0 0.0
    %3370 = vmatpush.msra.mxu0 0.0
    %3371 = vmatpush.msra.mxu0 0.0
    %3372 = vmatpush.msra.mxu0 0.0
    %3373 = vmatpush.msra.mxu0 0.0
    %3374 = vmatpush.msra.mxu0 0.0
    %v3375 = vand.u32 %v3332, 4294901760
    %v3376 = vsub.f32 %v3332, %v3375
    %v3377 = vand.u32 %v3376, 4294901760
    %v3378 = vsub.f32 %v3376, %v3377
    %v3379 = vand.u32 %v3378, 4294901760
    %3380 = vmatpush.msra.mxu0 %v3379
    %v3381 = vand.u32 %v3329, 4294901760
    %3382 = vmatmul.f32.gmra.mxu0 %v3381
    %v3383 = vpop.f32.mrf.mxu0
    %v3384 = vadd.f32 %v3358, %v3383
    %3385 = vdwg.mxu0
    %3386 = vmatpush.msra.mxu0 0.0
    %3387 = vmatpush.msra.mxu0 0.0
    %3388 = vmatpush.msra.mxu0 0.0
    %3389 = vmatpush.msra.mxu0 0.0
    %3390 = vmatpush.msra.mxu0 0.0
    %3391 = vmatpush.msra.mxu0 0.0
    %3392 = vmatpush.msra.mxu0 0.0
    %3393 = vmatpush.msra.mxu0 0.0
    %3394 = vmatpush.msra.mxu0 0.0
    %3395 = vmatpush.msra.mxu0 0.0
    %3396 = vmatpush.msra.mxu0 0.0
    %3397 = vmatpush.msra.mxu0 0.0
    %3398 = vmatpush.msra.mxu0 0.0
    %3399 = vmatpush.msra.mxu0 0.0
    %3400 = vmatpush.msra.mxu0 0.0
    %v3401 = vand.u32 %v3332, 4294901760
    %v3402 = vsub.f32 %v3332, %v3401
    %3403 = vmatpush.msra.mxu0 %v3402
    %v3404 = vand.u32 %v3329, 4294901760
    %v3405 = vsub.f32 %v3329, %v3404
    %3406 = vmatmul.f32.gmra.mxu0 %v3405
    %v3407 = vpop.f32.mrf.mxu0
    %v3408 = vadd.f32 %v3384, %v3407
    %3409 = vdwg.mxu0
    %3410 = vmatpush.msra.mxu0 0.0
    %3411 = vmatpush.msra.mxu0 0.0
    %3412 = vmatpush.msra.mxu0 0.0
    %3413 = vmatpush.msra.mxu0 0.0
    %3414 = vmatpush.msra.mxu0 0.0
    %3415 = vmatpush.msra.mxu0 0.0
    %3416 = vmatpush.msra.mxu0 0.0
    %3417 = vmatpush.msra.mxu0 0.0
    %3418 = vmatpush.msra.mxu0 0.0
    %3419 = vmatpush.msra.mxu0 0.0
    %3420 = vmatpush.msra.mxu0 0.0
    %3421 = vmatpush.msra.mxu0 0.0
    %3422 = vmatpush.msra.mxu0 0.0
    %3423 = vmatpush.msra.mxu0 0.0
    %3424 = vmatpush.msra.mxu0 0.0
    %v3425 = vand.u32 %v3332, 4294901760
    %3426 = vmatpush.msra.mxu0 %v3425
    %v3427 = vand.u32 %v3329, 4294901760
    %v3428 = vsub.f32 %v3329, %v3427
    %v3429 = vand.u32 %v3428, 4294901760
    %3430 = vmatmul.f32.gmra.mxu0 %v3429
    %v3431 = vpop.f32.mrf.mxu0
    %v3432 = vadd.f32 %v3408, %v3431
    %3433 = vdwg.mxu0
    %3434 = vmatpush.msra.mxu0 0.0
    %3435 = vmatpush.msra.mxu0 0.0
    %3436 = vmatpush.msra.mxu0 0.0
    %3437 = vmatpush.msra.mxu0 0.0
    %3438 = vmatpush.msra.mxu0 0.0
    %3439 = vmatpush.msra.mxu0 0.0
    %3440 = vmatpush.msra.mxu0 0.0
    %3441 = vmatpush.msra.mxu0 0.0
    %3442 = vmatpush.msra.mxu0 0.0
    %3443 = vmatpush.msra.mxu0 0.0
    %3444 = vmatpush.msra.mxu0 0.0
    %3445 = vmatpush.msra.mxu0 0.0
    %3446 = vmatpush.msra.mxu0 0.0
    %3447 = vmatpush.msra.mxu0 0.0
    %3448 = vmatpush.msra.mxu0 0.0
    %v3449 = vand.u32 %v3332, 4294901760
    %v3450 = vsub.f32 %v3332, %v3449
    %v3451 = vand.u32 %v3450, 4294901760
    %3452 = vmatpush.msra.mxu0 %v3451
    %v3453 = vand.u32 %v3329, 4294901760
    %3454 = vmatmul.f32.gmra.mxu0 %v3453
    %v3455 = vpop.f32.mrf.mxu0
    %v3456 = vadd.f32 %v3432, %v3455
    %3457 = vdwg.mxu0
    %3458 = vmatpush.msra.mxu0 0.0
    %3459 = vmatpush.msra.mxu0 0.0
    %3460 = vmatpush.msra.mxu0 0.0
    %3461 = vmatpush.msra.mxu0 0.0
    %3462 = vmatpush.msra.mxu0 0.0
    %3463 = vmatpush.msra.mxu0 0.0
    %3464 = vmatpush.msra.mxu0 0.0
    %3465 = vmatpush.msra.mxu0 0.0
    %3466 = vmatpush.msra.mxu0 0.0
    %3467 = vmatpush.msra.mxu0 0.0
    %3468 = vmatpush.msra.mxu0 0.0
    %3469 = vmatpush.msra.mxu0 0.0
    %3470 = vmatpush.msra.mxu0 0.0
    %3471 = vmatpush.msra.mxu0 0.0
    %3472 = vmatpush.msra.mxu0 0.0
    %v3473 = vand.u32 %v3332, 4294901760
    %3474 = vmatpush.msra.mxu0 %v3473
    %v3475 = vand.u32 %v3329, 4294901760
    %3476 = vmatmul.f32.gmra.mxu0 %v3475
    %v3477 = vpop.f32.mrf.mxu0
    %v3478 = vadd.f32 %v3456, %v3477
    %3479 = vdwg.mxu0
    %vm3480 = vcmask 15360
    %3481 = vst.msk [vmem:[%s2] sm:$0xff] %vm3480, %v3478
    %v3482 = vld [vmem:[#allocation2 + $0x40] sm:$0xff]
    %v3483 = vld [vmem:[#allocation2 + $0x48] sm:$0xff]
    %v3484 = vld [vmem:[#allocation2 + $0x50] sm:$0xf]
    %v3485 = vld [vmem:[#allocation2 + $0x58] sm:$0x1]
    %v3486 = vld [vmem:[#allocation2 + $0x60] sm:$0xff]
    %v3487 = vld [vmem:[#allocation2 + $0x68] sm:$0xff]
    %v3488 = vld [vmem:[#allocation2 + $0x70] sm:$0xf]
    %v3489 = vld [vmem:[#allocation2 + $0x78] sm:$0x1]
    %v3490 = vld [vmem:[#allocation2 + $0x38] sm:$0xf]
    %v3491 = vperm.slane %v3485, 0
    %v3493 = vsel %vm189, %v3490, 0
    %3495 = vmatpush.msra.mxu0 0.0
    %3496 = vmatpush.msra.mxu0 0.0
    %3497 = vmatpush.msra.mxu0 0.0
    %3498 = vmatpush.msra.mxu0 0.0
    %3499 = vmatpush.msra.mxu0 0.0
    %3500 = vmatpush.msra.mxu0 0.0
    %3501 = vmatpush.msra.mxu0 0.0
    %3502 = vmatpush.msra.mxu0 0.0
    %3503 = vmatpush.msra.mxu0 0.0
    %3504 = vmatpush.msra.mxu0 0.0
    %3505 = vmatpush.msra.mxu0 0.0
    %3506 = vmatpush.msra.mxu0 0.0
    %3507 = vmatpush.msra.mxu0 0.0
    %3508 = vmatpush.msra.mxu0 0.0
    %3509 = vmatpush.msra.mxu0 0.0
    %v3510 = vand.u32 %v3493, 4294901760
    %3511 = vmatpush.msra.mxu0 %v3510
    %v3512 = vand.u32 %v3329, 4294901760
    %v3513 = vsub.f32 %v3329, %v3512
    %v3514 = vand.u32 %v3513, 4294901760
    %v3515 = vsub.f32 %v3513, %v3514
    %v3516 = vand.u32 %v3515, 4294901760
    %3517 = vmatmul.f32.gmra.mxu0 %v3516
    %v3518 = vpop.f32.mrf.mxu0
    %v3519 = vadd.f32 %v3491, %v3518
    %3520 = vdwg.mxu0
    %3521 = vmatpush.msra.mxu0 0.0
    %3522 = vmatpush.msra.mxu0 0.0
    %3523 = vmatpush.msra.mxu0 0.0
    %3524 = vmatpush.msra.mxu0 0.0
    %3525 = vmatpush.msra.mxu0 0.0
    %3526 = vmatpush.msra.mxu0 0.0
    %3527 = vmatpush.msra.mxu0 0.0
    %3528 = vmatpush.msra.mxu0 0.0
    %3529 = vmatpush.msra.mxu0 0.0
    %3530 = vmatpush.msra.mxu0 0.0
    %3531 = vmatpush.msra.mxu0 0.0
    %3532 = vmatpush.msra.mxu0 0.0
    %3533 = vmatpush.msra.mxu0 0.0
    %3534 = vmatpush.msra.mxu0 0.0
    %3535 = vmatpush.msra.mxu0 0.0
    %v3536 = vand.u32 %v3493, 4294901760
    %v3537 = vsub.f32 %v3493, %v3536
    %v3538 = vand.u32 %v3537, 4294901760
    %v3539 = vsub.f32 %v3537, %v3538
    %v3540 = vand.u32 %v3539, 4294901760
    %3541 = vmatpush.msra.mxu0 %v3540
    %v3542 = vand.u32 %v3329, 4294901760
    %3543 = vmatmul.f32.gmra.mxu0 %v3542
    %v3544 = vpop.f32.mrf.mxu0
    %v3545 = vadd.f32 %v3519, %v3544
    %3546 = vdwg.mxu0
    %3547 = vmatpush.msra.mxu0 0.0
    %3548 = vmatpush.msra.mxu0 0.0
    %3549 = vmatpush.msra.mxu0 0.0
    %3550 = vmatpush.msra.mxu0 0.0
    %3551 = vmatpush.msra.mxu0 0.0
    %3552 = vmatpush.msra.mxu0 0.0
    %3553 = vmatpush.msra.mxu0 0.0
    %3554 = vmatpush.msra.mxu0 0.0
    %3555 = vmatpush.msra.mxu0 0.0
    %3556 = vmatpush.msra.mxu0 0.0
    %3557 = vmatpush.msra.mxu0 0.0
    %3558 = vmatpush.msra.mxu0 0.0
    %3559 = vmatpush.msra.mxu0 0.0
    %3560 = vmatpush.msra.mxu0 0.0
    %3561 = vmatpush.msra.mxu0 0.0
    %v3562 = vand.u32 %v3493, 4294901760
    %v3563 = vsub.f32 %v3493, %v3562
    %3564 = vmatpush.msra.mxu0 %v3563
    %v3565 = vand.u32 %v3329, 4294901760
    %v3566 = vsub.f32 %v3329, %v3565
    %3567 = vmatmul.f32.gmra.mxu0 %v3566
    %v3568 = vpop.f32.mrf.mxu0
    %v3569 = vadd.f32 %v3545, %v3568
    %3570 = vdwg.mxu0
    %3571 = vmatpush.msra.mxu0 0.0
    %3572 = vmatpush.msra.mxu0 0.0
    %3573 = vmatpush.msra.mxu0 0.0
    %3574 = vmatpush.msra.mxu0 0.0
    %3575 = vmatpush.msra.mxu0 0.0
    %3576 = vmatpush.msra.mxu0 0.0
    %3577 = vmatpush.msra.mxu0 0.0
    %3578 = vmatpush.msra.mxu0 0.0
    %3579 = vmatpush.msra.mxu0 0.0
    %3580 = vmatpush.msra.mxu0 0.0
    %3581 = vmatpush.msra.mxu0 0.0
    %3582 = vmatpush.msra.mxu0 0.0
    %3583 = vmatpush.msra.mxu0 0.0
    %3584 = vmatpush.msra.mxu0 0.0
    %3585 = vmatpush.msra.mxu0 0.0
    %v3586 = vand.u32 %v3493, 4294901760
    %3587 = vmatpush.msra.mxu0 %v3586
    %v3588 = vand.u32 %v3329, 4294901760
    %v3589 = vsub.f32 %v3329, %v3588
    %v3590 = vand.u32 %v3589, 4294901760
    %3591 = vmatmul.f32.gmra.mxu0 %v3590
    %v3592 = vpop.f32.mrf.mxu0
    %v3593 = vadd.f32 %v3569, %v3592
    %3594 = vdwg.mxu0
    %3595 = vmatpush.msra.mxu0 0.0
    %3596 = vmatpush.msra.mxu0 0.0
    %3597 = vmatpush.msra.mxu0 0.0
    %3598 = vmatpush.msra.mxu0 0.0
    %3599 = vmatpush.msra.mxu0 0.0
    %3600 = vmatpush.msra.mxu0 0.0
    %3601 = vmatpush.msra.mxu0 0.0
    %3602 = vmatpush.msra.mxu0 0.0
    %3603 = vmatpush.msra.mxu0 0.0
    %3604 = vmatpush.msra.mxu0 0.0
    %3605 = vmatpush.msra.mxu0 0.0
    %3606 = vmatpush.msra.mxu0 0.0
    %3607 = vmatpush.msra.mxu0 0.0
    %3608 = vmatpush.msra.mxu0 0.0
    %3609 = vmatpush.msra.mxu0 0.0
    %v3610 = vand.u32 %v3493, 4294901760
    %v3611 = vsub.f32 %v3493, %v3610
    %v3612 = vand.u32 %v3611, 4294901760
    %3613 = vmatpush.msra.mxu0 %v3612
    %v3614 = vand.u32 %v3329, 4294901760
    %3615 = vmatmul.f32.gmra.mxu0 %v3614
    %v3616 = vpop.f32.mrf.mxu0
    %v3617 = vadd.f32 %v3593, %v3616
    %3618 = vdwg.mxu0
    %3619 = vmatpush.msra.mxu0 0.0
    %3620 = vmatpush.msra.mxu0 0.0
    %3621 = vmatpush.msra.mxu0 0.0
    %3622 = vmatpush.msra.mxu0 0.0
    %3623 = vmatpush.msra.mxu0 0.0
    %3624 = vmatpush.msra.mxu0 0.0
    %3625 = vmatpush.msra.mxu0 0.0
    %3626 = vmatpush.msra.mxu0 0.0
    %3627 = vmatpush.msra.mxu0 0.0
    %3628 = vmatpush.msra.mxu0 0.0
    %3629 = vmatpush.msra.mxu0 0.0
    %3630 = vmatpush.msra.mxu0 0.0
    %3631 = vmatpush.msra.mxu0 0.0
    %3632 = vmatpush.msra.mxu0 0.0
    %3633 = vmatpush.msra.mxu0 0.0
    %v3634 = vand.u32 %v3493, 4294901760
    %3635 = vmatpush.msra.mxu0 %v3634
    %v3636 = vand.u32 %v3329, 4294901760
    %3637 = vmatmul.f32.gmra.mxu0 %v3636
    %v3638 = vpop.f32.mrf.mxu0
    %v3639 = vadd.f32 %v3617, %v3638
    %3640 = vdwg.mxu0
    %v3641 = vxor.u32 %v3639, 2147483648
    %v3642 = vmul.f32 %v3641, 1.442695
    %v3643 = vpow.pop %v3642
    %v3644 = vadd.f32 %v3643, 1.0
    %v3645 = vrcp.pop %v3644
    %v3646 = vmul.f32 %v3644, %v3645
    %v3647 = vsub.f32 1.0, %v3646
    %v3648 = vmul.f32 %v3645, %v3647
    %v3649 = vadd.f32 %v3645, %v3648
    %vm3650 = vweird.f32 %v3644
    %vm3651 = vweird.f32 %v3645
    %vm3652 = vmor %vm3650, %vm3651
    %v3653 = vsel %vm3652, %v3645, %v3649
    %v3654 = vand.u32 2147483647, %v3644
    %vm3655 = vcmp.eq.f32.partialorder %v3654, 8.507059e+37
    %v3656 = vand.u32 %v3644, 2147483648
    %v3657 = vor.u32 1.1754944e-38, %v3656
    %v3658 = vsel %vm3655, %v3657, %v3653
    %v3659 = vmul.f32 1.0, %v3658
    %v3660 = vtanh.pop %v3639
    %v3661 = vmul.f32 %v3659, 0.0
    %3663 = vrot.lane.b32.xlu0 %v3660, 98
    %v3664 = vpop.permute.xlu0 %3663
    %v3666 = vmul.f32 %v3659, %v3664
    %3668 = vrot.lane.b32.xlu0 %v3666, 10
    %v3669 = vpop.permute.xlu0 %3668
    %v3671 = vadd.f32 %v3661, %v3669
    %v3672 = vtanh.pop %v3671
    %3674 = vrot.lane.b32.xlu0 %v3672, 10
    %v3675 = vpop.permute.xlu0 %3674
    %v3677 = vmul.f32 %v3659, %v3675
    %3679 = vrot.lane.b32.xlu0 %v3677, 108
    %v3680 = vpop.permute.xlu0 %3679
    %vm3682 = vcmask 80896
    %v3683 = vsel %vm3682, %v3680, 0.0
    %v3684 = vperm.slane %v3489, 0
    %vm3685 = vcmask 162816
    %v3687 = vsel %vm3685, %v3683, 0
    %v3690 = vsel %vm189, %v3488, 0
    %3692 = vmatpush.msra.mxu0 0.0
    %3693 = vmatpush.msra.mxu0 0.0
    %3694 = vmatpush.msra.mxu0 0.0
    %3695 = vmatpush.msra.mxu0 0.0
    %3696 = vmatpush.msra.mxu0 0.0
    %3697 = vmatpush.msra.mxu0 0.0
    %3698 = vmatpush.msra.mxu0 0.0
    %3699 = vmatpush.msra.mxu0 0.0
    %3700 = vmatpush.msra.mxu0 0.0
    %3701 = vmatpush.msra.mxu0 0.0
    %3702 = vmatpush.msra.mxu0 0.0
    %3703 = vmatpush.msra.mxu0 0.0
    %3704 = vmatpush.msra.mxu0 0.0
    %v3705 = vand.u32 %v3690, 4294901760
    %3706 = vmatpush.msra.mxu0 %v3705
    %v3707 = vand.u32 %v3487, 4294901760
    %3708 = vmatpush.msra.mxu0 %v3707
    %v3709 = vand.u32 %v3486, 4294901760
    %3710 = vmatpush.msra.mxu0 %v3709
    %v3711 = vand.u32 %v3687, 4294901760
    %v3712 = vsub.f32 %v3687, %v3711
    %v3713 = vand.u32 %v3712, 4294901760
    %v3714 = vsub.f32 %v3712, %v3713
    %v3715 = vand.u32 %v3714, 4294901760
    %3716 = vmatmul.f32.gmra.mxu0 %v3715
    %v3717 = vpop.f32.mrf.mxu0
    %v3718 = vadd.f32 %v3684, %v3717
    %3719 = vdwg.mxu0
    %3720 = vmatpush.msra.mxu0 0.0
    %3721 = vmatpush.msra.mxu0 0.0
    %3722 = vmatpush.msra.mxu0 0.0
    %3723 = vmatpush.msra.mxu0 0.0
    %3724 = vmatpush.msra.mxu0 0.0
    %3725 = vmatpush.msra.mxu0 0.0
    %3726 = vmatpush.msra.mxu0 0.0
    %3727 = vmatpush.msra.mxu0 0.0
    %3728 = vmatpush.msra.mxu0 0.0
    %3729 = vmatpush.msra.mxu0 0.0
    %3730 = vmatpush.msra.mxu0 0.0
    %3731 = vmatpush.msra.mxu0 0.0
    %3732 = vmatpush.msra.mxu0 0.0
    %v3733 = vand.u32 %v3690, 4294901760
    %v3734 = vsub.f32 %v3690, %v3733
    %v3735 = vand.u32 %v3734, 4294901760
    %v3736 = vsub.f32 %v3734, %v3735
    %v3737 = vand.u32 %v3736, 4294901760
    %3738 = vmatpush.msra.mxu0 %v3737
    %v3739 = vand.u32 %v3487, 4294901760
    %v3740 = vsub.f32 %v3487, %v3739
    %v3741 = vand.u32 %v3740, 4294901760
    %v3742 = vsub.f32 %v3740, %v3741
    %v3743 = vand.u32 %v3742, 4294901760
    %3744 = vmatpush.msra.mxu0 %v3743
    %v3745 = vand.u32 %v3486, 4294901760
    %v3746 = vsub.f32 %v3486, %v3745
    %v3747 = vand.u32 %v3746, 4294901760
    %v3748 = vsub.f32 %v3746, %v3747
    %v3749 = vand.u32 %v3748, 4294901760
    %3750 = vmatpush.msra.mxu0 %v3749
    %v3751 = vand.u32 %v3687, 4294901760
    %3752 = vmatmul.f32.gmra.mxu0 %v3751
    %v3753 = vpop.f32.mrf.mxu0
    %v3754 = vadd.f32 %v3718, %v3753
    %3755 = vdwg.mxu0
    %3756 = vmatpush.msra.mxu0 0.0
    %3757 = vmatpush.msra.mxu0 0.0
    %3758 = vmatpush.msra.mxu0 0.0
    %3759 = vmatpush.msra.mxu0 0.0
    %3760 = vmatpush.msra.mxu0 0.0
    %3761 = vmatpush.msra.mxu0 0.0
    %3762 = vmatpush.msra.mxu0 0.0
    %3763 = vmatpush.msra.mxu0 0.0
    %3764 = vmatpush.msra.mxu0 0.0
    %3765 = vmatpush.msra.mxu0 0.0
    %3766 = vmatpush.msra.mxu0 0.0
    %3767 = vmatpush.msra.mxu0 0.0
    %3768 = vmatpush.msra.mxu0 0.0
    %v3769 = vand.u32 %v3690, 4294901760
    %v3770 = vsub.f32 %v3690, %v3769
    %3771 = vmatpush.msra.mxu0 %v3770
    %v3772 = vand.u32 %v3487, 4294901760
    %v3773 = vsub.f32 %v3487, %v3772
    %3774 = vmatpush.msra.mxu0 %v3773
    %v3775 = vand.u32 %v3486, 4294901760
    %v3776 = vsub.f32 %v3486, %v3775
    %3777 = vmatpush.msra.mxu0 %v3776
    %v3778 = vand.u32 %v3687, 4294901760
    %v3779 = vsub.f32 %v3687, %v3778
    %3780 = vmatmul.f32.gmra.mxu0 %v3779
    %v3781 = vpop.f32.mrf.mxu0
    %v3782 = vadd.f32 %v3754, %v3781
    %3783 = vdwg.mxu0
    %3784 = vmatpush.msra.mxu0 0.0
    %3785 = vmatpush.msra.mxu0 0.0
    %3786 = vmatpush.msra.mxu0 0.0
    %3787 = vmatpush.msra.mxu0 0.0
    %3788 = vmatpush.msra.mxu0 0.0
    %3789 = vmatpush.msra.mxu0 0.0
    %3790 = vmatpush.msra.mxu0 0.0
    %3791 = vmatpush.msra.mxu0 0.0
    %3792 = vmatpush.msra.mxu0 0.0
    %3793 = vmatpush.msra.mxu0 0.0
    %3794 = vmatpush.msra.mxu0 0.0
    %3795 = vmatpush.msra.mxu0 0.0
    %3796 = vmatpush.msra.mxu0 0.0
    %v3797 = vand.u32 %v3690, 4294901760
    %3798 = vmatpush.msra.mxu0 %v3797
    %v3799 = vand.u32 %v3487, 4294901760
    %3800 = vmatpush.msra.mxu0 %v3799
    %v3801 = vand.u32 %v3486, 4294901760
    %3802 = vmatpush.msra.mxu0 %v3801
    %v3803 = vand.u32 %v3687, 4294901760
    %v3804 = vsub.f32 %v3687, %v3803
    %v3805 = vand.u32 %v3804, 4294901760
    %3806 = vmatmul.f32.gmra.mxu0 %v3805
    %v3807 = vpop.f32.mrf.mxu0
    %v3808 = vadd.f32 %v3782, %v3807
    %3809 = vdwg.mxu0
    %3810 = vmatpush.msra.mxu0 0.0
    %3811 = vmatpush.msra.mxu0 0.0
    %3812 = vmatpush.msra.mxu0 0.0
    %3813 = vmatpush.msra.mxu0 0.0
    %3814 = vmatpush.msra.mxu0 0.0
    %3815 = vmatpush.msra.mxu0 0.0
    %3816 = vmatpush.msra.mxu0 0.0
    %3817 = vmatpush.msra.mxu0 0.0
    %3818 = vmatpush.msra.mxu0 0.0
    %3819 = vmatpush.msra.mxu0 0.0
    %3820 = vmatpush.msra.mxu0 0.0
    %3821 = vmatpush.msra.mxu0 0.0
    %3822 = vmatpush.msra.mxu0 0.0
    %v3823 = vand.u32 %v3690, 4294901760
    %v3824 = vsub.f32 %v3690, %v3823
    %v3825 = vand.u32 %v3824, 4294901760
    %3826 = vmatpush.msra.mxu0 %v3825
    %v3827 = vand.u32 %v3487, 4294901760
    %v3828 = vsub.f32 %v3487, %v3827
    %v3829 = vand.u32 %v3828, 4294901760
    %3830 = vmatpush.msra.mxu0 %v3829
    %v3831 = vand.u32 %v3486, 4294901760
    %v3832 = vsub.f32 %v3486, %v3831
    %v3833 = vand.u32 %v3832, 4294901760
    %3834 = vmatpush.msra.mxu0 %v3833
    %v3835 = vand.u32 %v3687, 4294901760
    %3836 = vmatmul.f32.gmra.mxu0 %v3835
    %v3837 = vpop.f32.mrf.mxu0
    %v3838 = vadd.f32 %v3808, %v3837
    %3839 = vdwg.mxu0
    %3840 = vmatpush.msra.mxu0 0.0
    %3841 = vmatpush.msra.mxu0 0.0
    %3842 = vmatpush.msra.mxu0 0.0
    %3843 = vmatpush.msra.mxu0 0.0
    %3844 = vmatpush.msra.mxu0 0.0
    %3845 = vmatpush.msra.mxu0 0.0
    %3846 = vmatpush.msra.mxu0 0.0
    %3847 = vmatpush.msra.mxu0 0.0
    %3848 = vmatpush.msra.mxu0 0.0
    %3849 = vmatpush.msra.mxu0 0.0
    %3850 = vmatpush.msra.mxu0 0.0
    %3851 = vmatpush.msra.mxu0 0.0
    %3852 = vmatpush.msra.mxu0 0.0
    %v3853 = vand.u32 %v3690, 4294901760
    %3854 = vmatpush.msra.mxu0 %v3853
    %v3855 = vand.u32 %v3487, 4294901760
    %3856 = vmatpush.msra.mxu0 %v3855
    %v3857 = vand.u32 %v3486, 4294901760
    %3858 = vmatpush.msra.mxu0 %v3857
    %v3859 = vand.u32 %v3687, 4294901760
    %3860 = vmatmul.f32.gmra.mxu0 %v3859
    %v3861 = vpop.f32.mrf.mxu0
    %v3862 = vadd.f32 %v3838, %v3861
    %3863 = vdwg.mxu0
    %v3864 = vxor.u32 %v3862, 2147483648
    %v3865 = vmul.f32 %v3864, 1.442695
    %v3866 = vpow.pop %v3865
    %v3867 = vadd.f32 %v3866, 1.0
    %v3868 = vrcp.pop %v3867
    %v3869 = vmul.f32 %v3867, %v3868
    %v3870 = vsub.f32 1.0, %v3869
    %v3871 = vmul.f32 %v3868, %v3870
    %v3872 = vadd.f32 %v3868, %v3871
    %vm3873 = vweird.f32 %v3867
    %vm3874 = vweird.f32 %v3868
    %vm3875 = vmor %vm3873, %vm3874
    %v3876 = vsel %vm3875, %v3868, %v3872
    %v3877 = vand.u32 2147483647, %v3867
    %vm3878 = vcmp.eq.f32.partialorder %v3877, 8.507059e+37
    %v3879 = vand.u32 %v3867, 2147483648
    %v3880 = vor.u32 1.1754944e-38, %v3879
    %v3881 = vsel %vm3878, %v3880, %v3876
    %v3882 = vmul.f32 1.0, %v3881
    %v3883 = vtanh.pop %v3862
    %v3884 = vmul.f32 %v3882, 0.0
    %3886 = vrot.lane.b32.xlu0 %v3883, 98
    %v3887 = vpop.permute.xlu0 %3886
    %v3889 = vmul.f32 %v3882, %v3887
    %3891 = vrot.lane.b32.xlu0 %v3889, 10
    %v3892 = vpop.permute.xlu0 %3891
    %v3894 = vadd.f32 %v3884, %v3892
    %v3895 = vtanh.pop %v3894
    %3897 = vrot.lane.b32.xlu0 %v3895, 10
    %v3898 = vpop.permute.xlu0 %3897
    %v3900 = vmul.f32 %v3882, %v3898
    %3902 = vrot.lane.b32.xlu0 %v3900, 118
    %v3903 = vpop.permute.xlu0 %3902
    %v3905 = vsel %vm3682, %v3680, %v3903
    %v3907 = vsel %vm3685, %v3905, 0
    %v3910 = vsel %vm189, %v3484, 0
    %3912 = vmatpush.msra.mxu0 0.0
    %3913 = vmatpush.msra.mxu0 0.0
    %3914 = vmatpush.msra.mxu0 0.0
    %3915 = vmatpush.msra.mxu0 0.0
    %3916 = vmatpush.msra.mxu0 0.0
    %3917 = vmatpush.msra.mxu0 0.0
    %3918 = vmatpush.msra.mxu0 0.0
    %3919 = vmatpush.msra.mxu0 0.0
    %3920 = vmatpush.msra.mxu0 0.0
    %3921 = vmatpush.msra.mxu0 0.0
    %3922 = vmatpush.msra.mxu0 0.0
    %3923 = vmatpush.msra.mxu0 0.0
    %3924 = vmatpush.msra.mxu0 0.0
    %v3925 = vand.u32 %v3910, 4294901760
    %3926 = vmatpush.msra.mxu0 %v3925
    %v3927 = vand.u32 %v3483, 4294901760
    %3928 = vmatpush.msra.mxu0 %v3927
    %v3929 = vand.u32 %v3482, 4294901760
    %3930 = vmatpush.msra.mxu0 %v3929
    %v3931 = vand.u32 %v3907, 4294901760
    %v3932 = vsub.f32 %v3907, %v3931
    %v3933 = vand.u32 %v3932, 4294901760
    %v3934 = vsub.f32 %v3932, %v3933
    %v3935 = vand.u32 %v3934, 4294901760
    %3936 = vmatmul.f32.gmra.mxu0 %v3935
    %v3937 = vpop.f32.mrf.mxu0
    %v3938 = vadd.f32 %v3491, %v3937
    %3939 = vdwg.mxu0
    %3940 = vmatpush.msra.mxu0 0.0
    %3941 = vmatpush.msra.mxu0 0.0
    %3942 = vmatpush.msra.mxu0 0.0
    %3943 = vmatpush.msra.mxu0 0.0
    %3944 = vmatpush.msra.mxu0 0.0
    %3945 = vmatpush.msra.mxu0 0.0
    %3946 = vmatpush.msra.mxu0 0.0
    %3947 = vmatpush.msra.mxu0 0.0
    %3948 = vmatpush.msra.mxu0 0.0
    %3949 = vmatpush.msra.mxu0 0.0
    %3950 = vmatpush.msra.mxu0 0.0
    %3951 = vmatpush.msra.mxu0 0.0
    %3952 = vmatpush.msra.mxu0 0.0
    %v3953 = vand.u32 %v3910, 4294901760
    %v3954 = vsub.f32 %v3910, %v3953
    %v3955 = vand.u32 %v3954, 4294901760
    %v3956 = vsub.f32 %v3954, %v3955
    %v3957 = vand.u32 %v3956, 4294901760
    %3958 = vmatpush.msra.mxu0 %v3957
    %v3959 = vand.u32 %v3483, 4294901760
    %v3960 = vsub.f32 %v3483, %v3959
    %v3961 = vand.u32 %v3960, 4294901760
    %v3962 = vsub.f32 %v3960, %v3961
    %v3963 = vand.u32 %v3962, 4294901760
    %3964 = vmatpush.msra.mxu0 %v3963
    %v3965 = vand.u32 %v3482, 4294901760
    %v3966 = vsub.f32 %v3482, %v3965
    %v3967 = vand.u32 %v3966, 4294901760
    %v3968 = vsub.f32 %v3966, %v3967
    %v3969 = vand.u32 %v3968, 4294901760
    %3970 = vmatpush.msra.mxu0 %v3969
    %v3971 = vand.u32 %v3907, 4294901760
    %3972 = vmatmul.f32.gmra.mxu0 %v3971
    %v3973 = vpop.f32.mrf.mxu0
    %v3974 = vadd.f32 %v3938, %v3973
    %3975 = vdwg.mxu0
    %3976 = vmatpush.msra.mxu0 0.0
    %3977 = vmatpush.msra.mxu0 0.0
    %3978 = vmatpush.msra.mxu0 0.0
    %3979 = vmatpush.msra.mxu0 0.0
    %3980 = vmatpush.msra.mxu0 0.0
    %3981 = vmatpush.msra.mxu0 0.0
    %3982 = vmatpush.msra.mxu0 0.0
    %3983 = vmatpush.msra.mxu0 0.0
    %3984 = vmatpush.msra.mxu0 0.0
    %3985 = vmatpush.msra.mxu0 0.0
    %3986 = vmatpush.msra.mxu0 0.0
    %3987 = vmatpush.msra.mxu0 0.0
    %3988 = vmatpush.msra.mxu0 0.0
    %v3989 = vand.u32 %v3910, 4294901760
    %v3990 = vsub.f32 %v3910, %v3989
    %3991 = vmatpush.msra.mxu0 %v3990
    %v3992 = vand.u32 %v3483, 4294901760
    %v3993 = vsub.f32 %v3483, %v3992
    %3994 = vmatpush.msra.mxu0 %v3993
    %v3995 = vand.u32 %v3482, 4294901760
    %v3996 = vsub.f32 %v3482, %v3995
    %3997 = vmatpush.msra.mxu0 %v3996
    %v3998 = vand.u32 %v3907, 4294901760
    %v3999 = vsub.f32 %v3907, %v3998
    %4000 = vmatmul.f32.gmra.mxu0 %v3999
    %v4001 = vpop.f32.mrf.mxu0
    %v4002 = vadd.f32 %v3974, %v4001
    %4003 = vdwg.mxu0
    %4004 = vmatpush.msra.mxu0 0.0
    %4005 = vmatpush.msra.mxu0 0.0
    %4006 = vmatpush.msra.mxu0 0.0
    %4007 = vmatpush.msra.mxu0 0.0
    %4008 = vmatpush.msra.mxu0 0.0
    %4009 = vmatpush.msra.mxu0 0.0
    %4010 = vmatpush.msra.mxu0 0.0
    %4011 = vmatpush.msra.mxu0 0.0
    %4012 = vmatpush.msra.mxu0 0.0
    %4013 = vmatpush.msra.mxu0 0.0
    %4014 = vmatpush.msra.mxu0 0.0
    %4015 = vmatpush.msra.mxu0 0.0
    %4016 = vmatpush.msra.mxu0 0.0
    %v4017 = vand.u32 %v3910, 4294901760
    %4018 = vmatpush.msra.mxu0 %v4017
    %v4019 = vand.u32 %v3483, 4294901760
    %4020 = vmatpush.msra.mxu0 %v4019
    %v4021 = vand.u32 %v3482, 4294901760
    %4022 = vmatpush.msra.mxu0 %v4021
    %v4023 = vand.u32 %v3907, 4294901760
    %v4024 = vsub.f32 %v3907, %v4023
    %v4025 = vand.u32 %v4024, 4294901760
    %4026 = vmatmul.f32.gmra.mxu0 %v4025
    %v4027 = vpop.f32.mrf.mxu0
    %v4028 = vadd.f32 %v4002, %v4027
    %4029 = vdwg.mxu0
    %4030 = vmatpush.msra.mxu0 0.0
    %4031 = vmatpush.msra.mxu0 0.0
    %4032 = vmatpush.msra.mxu0 0.0
    %4033 = vmatpush.msra.mxu0 0.0
    %4034 = vmatpush.msra.mxu0 0.0
    %4035 = vmatpush.msra.mxu0 0.0
    %4036 = vmatpush.msra.mxu0 0.0
    %4037 = vmatpush.msra.mxu0 0.0
    %4038 = vmatpush.msra.mxu0 0.0
    %4039 = vmatpush.msra.mxu0 0.0
    %4040 = vmatpush.msra.mxu0 0.0
    %4041 = vmatpush.msra.mxu0 0.0
    %4042 = vmatpush.msra.mxu0 0.0
    %v4043 = vand.u32 %v3910, 4294901760
    %v4044 = vsub.f32 %v3910, %v4043
    %v4045 = vand.u32 %v4044, 4294901760
    %4046 = vmatpush.msra.mxu0 %v4045
    %v4047 = vand.u32 %v3483, 4294901760
    %v4048 = vsub.f32 %v3483, %v4047
    %v4049 = vand.u32 %v4048, 4294901760
    %4050 = vmatpush.msra.mxu0 %v4049
    %v4051 = vand.u32 %v3482, 4294901760
    %v4052 = vsub.f32 %v3482, %v4051
    %v4053 = vand.u32 %v4052, 4294901760
    %4054 = vmatpush.msra.mxu0 %v4053
    %v4055 = vand.u32 %v3907, 4294901760
    %4056 = vmatmul.f32.gmra.mxu0 %v4055
    %v4057 = vpop.f32.mrf.mxu0
    %v4058 = vadd.f32 %v4028, %v4057
    %4059 = vdwg.mxu0
    %4060 = vmatpush.msra.mxu0 0.0
    %4061 = vmatpush.msra.mxu0 0.0
    %4062 = vmatpush.msra.mxu0 0.0
    %4063 = vmatpush.msra.mxu0 0.0
    %4064 = vmatpush.msra.mxu0 0.0
    %4065 = vmatpush.msra.mxu0 0.0
    %4066 = vmatpush.msra.mxu0 0.0
    %4067 = vmatpush.msra.mxu0 0.0
    %4068 = vmatpush.msra.mxu0 0.0
    %4069 = vmatpush.msra.mxu0 0.0
    %4070 = vmatpush.msra.mxu0 0.0
    %4071 = vmatpush.msra.mxu0 0.0
    %4072 = vmatpush.msra.mxu0 0.0
    %v4073 = vand.u32 %v3910, 4294901760
    %4074 = vmatpush.msra.mxu0 %v4073
    %v4075 = vand.u32 %v3483, 4294901760
    %4076 = vmatpush.msra.mxu0 %v4075
    %v4077 = vand.u32 %v3482, 4294901760
    %4078 = vmatpush.msra.mxu0 %v4077
    %v4079 = vand.u32 %v3907, 4294901760
    %4080 = vmatmul.f32.gmra.mxu0 %v4079
    %v4081 = vpop.f32.mrf.mxu0
    %v4082 = vadd.f32 %v4058, %v4081
    %4083 = vdwg.mxu0
    %v4084 = vxor.u32 %v4082, 2147483648
    %v4085 = vmul.f32 %v4084, 1.442695
    %v4086 = vpow.pop %v4085
    %v4087 = vadd.f32 %v4086, 1.0
    %v4088 = vrcp.pop %v4087
    %v4089 = vmul.f32 %v4087, %v4088
    %v4090 = vsub.f32 1.0, %v4089
    %v4091 = vmul.f32 %v4088, %v4090
    %v4092 = vadd.f32 %v4088, %v4091
    %vm4093 = vweird.f32 %v4087
    %vm4094 = vweird.f32 %v4088
    %vm4095 = vmor %vm4093, %vm4094
    %v4096 = vsel %vm4095, %v4088, %v4092
    %v4097 = vand.u32 2147483647, %v4087
    %vm4098 = vcmp.eq.f32.partialorder %v4097, 8.507059e+37
    %v4099 = vand.u32 %v4087, 2147483648
    %v4100 = vor.u32 1.1754944e-38, %v4099
    %v4101 = vsel %vm4098, %v4100, %v4096
    %v4102 = vmul.f32 1.0, %v4101
    %v4103 = vtanh.pop %v4082
    %v4104 = vmul.f32 %v4102, %v3671
    %4106 = vrot.lane.b32.xlu0 %v4103, 98
    %v4107 = vpop.permute.xlu0 %4106
    %v4109 = vmul.f32 %v4102, %v4107
    %4111 = vrot.lane.b32.xlu0 %v4109, 10
    %v4112 = vpop.permute.xlu0 %4111
    %v4114 = vadd.f32 %v4104, %v4112
    %v4115 = vtanh.pop %v4114
    %4117 = vrot.lane.b32.xlu0 %v4115, 10
    %v4118 = vpop.permute.xlu0 %4117
    %v4120 = vmul.f32 %v4102, %v4118
    %4122 = vrot.lane.b32.xlu0 %v4120, 108
    %v4123 = vpop.permute.xlu0 %4122
    %v4125 = vsel %vm3682, %v4123, %v3903
    %v4127 = vsel %vm3685, %v4125, 0
    %4129 = vmatpush.msra.mxu0 0.0
    %4130 = vmatpush.msra.mxu0 0.0
    %4131 = vmatpush.msra.mxu0 0.0
    %4132 = vmatpush.msra.mxu0 0.0
    %4133 = vmatpush.msra.mxu0 0.0
    %4134 = vmatpush.msra.mxu0 0.0
    %4135 = vmatpush.msra.mxu0 0.0
    %4136 = vmatpush.msra.mxu0 0.0
    %4137 = vmatpush.msra.mxu0 0.0
    %4138 = vmatpush.msra.mxu0 0.0
    %4139 = vmatpush.msra.mxu0 0.0
    %4140 = vmatpush.msra.mxu0 0.0
    %4141 = vmatpush.msra.mxu0 0.0
    %v4142 = vand.u32 %v3690, 4294901760
    %4143 = vmatpush.msra.mxu0 %v4142
    %v4144 = vand.u32 %v3487, 4294901760
    %4145 = vmatpush.msra.mxu0 %v4144
    %v4146 = vand.u32 %v3486, 4294901760
    %4147 = vmatpush.msra.mxu0 %v4146
    %v4148 = vand.u32 %v4127, 4294901760
    %v4149 = vsub.f32 %v4127, %v4148
    %v4150 = vand.u32 %v4149, 4294901760
    %v4151 = vsub.f32 %v4149, %v4150
    %v4152 = vand.u32 %v4151, 4294901760
    %4153 = vmatmul.f32.gmra.mxu0 %v4152
    %v4154 = vpop.f32.mrf.mxu0
    %v4155 = vadd.f32 %v3684, %v4154
    %4156 = vdwg.mxu0
    %4157 = vmatpush.msra.mxu0 0.0
    %4158 = vmatpush.msra.mxu0 0.0
    %4159 = vmatpush.msra.mxu0 0.0
    %4160 = vmatpush.msra.mxu0 0.0
    %4161 = vmatpush.msra.mxu0 0.0
    %4162 = vmatpush.msra.mxu0 0.0
    %4163 = vmatpush.msra.mxu0 0.0
    %4164 = vmatpush.msra.mxu0 0.0
    %4165 = vmatpush.msra.mxu0 0.0
    %4166 = vmatpush.msra.mxu0 0.0
    %4167 = vmatpush.msra.mxu0 0.0
    %4168 = vmatpush.msra.mxu0 0.0
    %4169 = vmatpush.msra.mxu0 0.0
    %v4170 = vand.u32 %v3690, 4294901760
    %v4171 = vsub.f32 %v3690, %v4170
    %v4172 = vand.u32 %v4171, 4294901760
    %v4173 = vsub.f32 %v4171, %v4172
    %v4174 = vand.u32 %v4173, 4294901760
    %4175 = vmatpush.msra.mxu0 %v4174
    %v4176 = vand.u32 %v3487, 4294901760
    %v4177 = vsub.f32 %v3487, %v4176
    %v4178 = vand.u32 %v4177, 4294901760
    %v4179 = vsub.f32 %v4177, %v4178
    %v4180 = vand.u32 %v4179, 4294901760
    %4181 = vmatpush.msra.mxu0 %v4180
    %v4182 = vand.u32 %v3486, 4294901760
    %v4183 = vsub.f32 %v3486, %v4182
    %v4184 = vand.u32 %v4183, 4294901760
    %v4185 = vsub.f32 %v4183, %v4184
    %v4186 = vand.u32 %v4185, 4294901760
    %4187 = vmatpush.msra.mxu0 %v4186
    %v4188 = vand.u32 %v4127, 4294901760
    %4189 = vmatmul.f32.gmra.mxu0 %v4188
    %v4190 = vpop.f32.mrf.mxu0
    %v4191 = vadd.f32 %v4155, %v4190
    %4192 = vdwg.mxu0
    %4193 = vmatpush.msra.mxu0 0.0
    %4194 = vmatpush.msra.mxu0 0.0
    %4195 = vmatpush.msra.mxu0 0.0
    %4196 = vmatpush.msra.mxu0 0.0
    %4197 = vmatpush.msra.mxu0 0.0
    %4198 = vmatpush.msra.mxu0 0.0
    %4199 = vmatpush.msra.mxu0 0.0
    %4200 = vmatpush.msra.mxu0 0.0
    %4201 = vmatpush.msra.mxu0 0.0
    %4202 = vmatpush.msra.mxu0 0.0
    %4203 = vmatpush.msra.mxu0 0.0
    %4204 = vmatpush.msra.mxu0 0.0
    %4205 = vmatpush.msra.mxu0 0.0
    %v4206 = vand.u32 %v3690, 4294901760
    %v4207 = vsub.f32 %v3690, %v4206
    %4208 = vmatpush.msra.mxu0 %v4207
    %v4209 = vand.u32 %v3487, 4294901760
    %v4210 = vsub.f32 %v3487, %v4209
    %4211 = vmatpush.msra.mxu0 %v4210
    %v4212 = vand.u32 %v3486, 4294901760
    %v4213 = vsub.f32 %v3486, %v4212
    %4214 = vmatpush.msra.mxu0 %v4213
    %v4215 = vand.u32 %v4127, 4294901760
    %v4216 = vsub.f32 %v4127, %v4215
    %4217 = vmatmul.f32.gmra.mxu0 %v4216
    %v4218 = vpop.f32.mrf.mxu0
    %v4219 = vadd.f32 %v4191, %v4218
    %4220 = vdwg.mxu0
    %4221 = vmatpush.msra.mxu0 0.0
    %4222 = vmatpush.msra.mxu0 0.0
    %4223 = vmatpush.msra.mxu0 0.0
    %4224 = vmatpush.msra.mxu0 0.0
    %4225 = vmatpush.msra.mxu0 0.0
    %4226 = vmatpush.msra.mxu0 0.0
    %4227 = vmatpush.msra.mxu0 0.0
    %4228 = vmatpush.msra.mxu0 0.0
    %4229 = vmatpush.msra.mxu0 0.0
    %4230 = vmatpush.msra.mxu0 0.0
    %4231 = vmatpush.msra.mxu0 0.0
    %4232 = vmatpush.msra.mxu0 0.0
    %4233 = vmatpush.msra.mxu0 0.0
    %v4234 = vand.u32 %v3690, 4294901760
    %4235 = vmatpush.msra.mxu0 %v4234
    %v4236 = vand.u32 %v3487, 4294901760
    %4237 = vmatpush.msra.mxu0 %v4236
    %v4238 = vand.u32 %v3486, 4294901760
    %4239 = vmatpush.msra.mxu0 %v4238
    %v4240 = vand.u32 %v4127, 4294901760
    %v4241 = vsub.f32 %v4127, %v4240
    %v4242 = vand.u32 %v4241, 4294901760
    %4243 = vmatmul.f32.gmra.mxu0 %v4242
    %v4244 = vpop.f32.mrf.mxu0
    %v4245 = vadd.f32 %v4219, %v4244
    %4246 = vdwg.mxu0
    %4247 = vmatpush.msra.mxu0 0.0
    %4248 = vmatpush.msra.mxu0 0.0
    %4249 = vmatpush.msra.mxu0 0.0
    %4250 = vmatpush.msra.mxu0 0.0
    %4251 = vmatpush.msra.mxu0 0.0
    %4252 = vmatpush.msra.mxu0 0.0
    %4253 = vmatpush.msra.mxu0 0.0
    %4254 = vmatpush.msra.mxu0 0.0
    %4255 = vmatpush.msra.mxu0 0.0
    %4256 = vmatpush.msra.mxu0 0.0
    %4257 = vmatpush.msra.mxu0 0.0
    %4258 = vmatpush.msra.mxu0 0.0
    %4259 = vmatpush.msra.mxu0 0.0
    %v4260 = vand.u32 %v3690, 4294901760
    %v4261 = vsub.f32 %v3690, %v4260
    %v4262 = vand.u32 %v4261, 4294901760
    %4263 = vmatpush.msra.mxu0 %v4262
    %v4264 = vand.u32 %v3487, 4294901760
    %v4265 = vsub.f32 %v3487, %v4264
    %v4266 = vand.u32 %v4265, 4294901760
    %4267 = vmatpush.msra.mxu0 %v4266
    %v4268 = vand.u32 %v3486, 4294901760
    %v4269 = vsub.f32 %v3486, %v4268
    %v4270 = vand.u32 %v4269, 4294901760
    %4271 = vmatpush.msra.mxu0 %v4270
    %v4272 = vand.u32 %v4127, 4294901760
    %4273 = vmatmul.f32.gmra.mxu0 %v4272
    %v4274 = vpop.f32.mrf.mxu0
    %v4275 = vadd.f32 %v4245, %v4274
    %4276 = vdwg.mxu0
    %4277 = vmatpush.msra.mxu0 0.0
    %4278 = vmatpush.msra.mxu0 0.0
    %4279 = vmatpush.msra.mxu0 0.0
    %4280 = vmatpush.msra.mxu0 0.0
    %4281 = vmatpush.msra.mxu0 0.0
    %4282 = vmatpush.msra.mxu0 0.0
    %4283 = vmatpush.msra.mxu0 0.0
    %4284 = vmatpush.msra.mxu0 0.0
    %4285 = vmatpush.msra.mxu0 0.0
    %4286 = vmatpush.msra.mxu0 0.0
    %4287 = vmatpush.msra.mxu0 0.0
    %4288 = vmatpush.msra.mxu0 0.0
    %4289 = vmatpush.msra.mxu0 0.0
    %v4290 = vand.u32 %v3690, 4294901760
    %4291 = vmatpush.msra.mxu0 %v4290
    %v4292 = vand.u32 %v3487, 4294901760
    %4293 = vmatpush.msra.mxu0 %v4292
    %v4294 = vand.u32 %v3486, 4294901760
    %4295 = vmatpush.msra.mxu0 %v4294
    %v4296 = vand.u32 %v4127, 4294901760
    %4297 = vmatmul.f32.gmra.mxu0 %v4296
    %v4298 = vpop.f32.mrf.mxu0
    %v4299 = vadd.f32 %v4275, %v4298
    %4300 = vdwg.mxu0
    %v4301 = vxor.u32 %v4299, 2147483648
    %v4302 = vmul.f32 %v4301, 1.442695
    %v4303 = vpow.pop %v4302
    %v4304 = vadd.f32 %v4303, 1.0
    %v4305 = vrcp.pop %v4304
    %v4306 = vmul.f32 %v4304, %v4305
    %v4307 = vsub.f32 1.0, %v4306
    %v4308 = vmul.f32 %v4305, %v4307
    %v4309 = vadd.f32 %v4305, %v4308
    %vm4310 = vweird.f32 %v4304
    %vm4311 = vweird.f32 %v4305
    %vm4312 = vmor %vm4310, %vm4311
    %v4313 = vsel %vm4312, %v4305, %v4309
    %v4314 = vand.u32 2147483647, %v4304
    %vm4315 = vcmp.eq.f32.partialorder %v4314, 8.507059e+37
    %v4316 = vand.u32 %v4304, 2147483648
    %v4317 = vor.u32 1.1754944e-38, %v4316
    %v4318 = vsel %vm4315, %v4317, %v4313
    %v4319 = vmul.f32 1.0, %v4318
    %v4320 = vtanh.pop %v4299
    %v4321 = vmul.f32 %v4319, %v3894
    %4323 = vrot.lane.b32.xlu0 %v4320, 98
    %v4324 = vpop.permute.xlu0 %4323
    %v4326 = vmul.f32 %v4319, %v4324
    %4328 = vrot.lane.b32.xlu0 %v4326, 10
    %v4329 = vpop.permute.xlu0 %4328
    %v4331 = vadd.f32 %v4321, %v4329
    %v4332 = vtanh.pop %v4331
    %4334 = vrot.lane.b32.xlu0 %v4332, 10
    %v4335 = vpop.permute.xlu0 %4334
    %v4337 = vmul.f32 %v4319, %v4335
    %4339 = vrot.lane.b32.xlu0 %v4337, 118
    %v4340 = vpop.permute.xlu0 %4339
    %v4342 = vsel %vm3682, %v4123, %v4340
    %v4344 = vsel %vm3685, %v4342, 0
    %4346 = vmatpush.msra.mxu0 0.0
    %4347 = vmatpush.msra.mxu0 0.0
    %4348 = vmatpush.msra.mxu0 0.0
    %4349 = vmatpush.msra.mxu0 0.0
    %4350 = vmatpush.msra.mxu0 0.0
    %4351 = vmatpush.msra.mxu0 0.0
    %4352 = vmatpush.msra.mxu0 0.0
    %4353 = vmatpush.msra.mxu0 0.0
    %4354 = vmatpush.msra.mxu0 0.0
    %4355 = vmatpush.msra.mxu0 0.0
    %4356 = vmatpush.msra.mxu0 0.0
    %4357 = vmatpush.msra.mxu0 0.0
    %4358 = vmatpush.msra.mxu0 0.0
    %v4359 = vand.u32 %v3910, 4294901760
    %4360 = vmatpush.msra.mxu0 %v4359
    %v4361 = vand.u32 %v3483, 4294901760
    %4362 = vmatpush.msra.mxu0 %v4361
    %v4363 = vand.u32 %v3482, 4294901760
    %4364 = vmatpush.msra.mxu0 %v4363
    %v4365 = vand.u32 %v4344, 4294901760
    %v4366 = vsub.f32 %v4344, %v4365
    %v4367 = vand.u32 %v4366, 4294901760
    %v4368 = vsub.f32 %v4366, %v4367
    %v4369 = vand.u32 %v4368, 4294901760
    %4370 = vmatmul.f32.gmra.mxu0 %v4369
    %v4371 = vpop.f32.mrf.mxu0
    %v4372 = vadd.f32 %v3491, %v4371
    %4373 = vdwg.mxu0
    %4374 = vmatpush.msra.mxu0 0.0
    %4375 = vmatpush.msra.mxu0 0.0
    %4376 = vmatpush.msra.mxu0 0.0
    %4377 = vmatpush.msra.mxu0 0.0
    %4378 = vmatpush.msra.mxu0 0.0
    %4379 = vmatpush.msra.mxu0 0.0
    %4380 = vmatpush.msra.mxu0 0.0
    %4381 = vmatpush.msra.mxu0 0.0
    %4382 = vmatpush.msra.mxu0 0.0
    %4383 = vmatpush.msra.mxu0 0.0
    %4384 = vmatpush.msra.mxu0 0.0
    %4385 = vmatpush.msra.mxu0 0.0
    %4386 = vmatpush.msra.mxu0 0.0
    %v4387 = vand.u32 %v3910, 4294901760
    %v4388 = vsub.f32 %v3910, %v4387
    %v4389 = vand.u32 %v4388, 4294901760
    %v4390 = vsub.f32 %v4388, %v4389
    %v4391 = vand.u32 %v4390, 4294901760
    %4392 = vmatpush.msra.mxu0 %v4391
    %v4393 = vand.u32 %v3483, 4294901760
    %v4394 = vsub.f32 %v3483, %v4393
    %v4395 = vand.u32 %v4394, 4294901760
    %v4396 = vsub.f32 %v4394, %v4395
    %v4397 = vand.u32 %v4396, 4294901760
    %4398 = vmatpush.msra.mxu0 %v4397
    %v4399 = vand.u32 %v3482, 4294901760
    %v4400 = vsub.f32 %v3482, %v4399
    %v4401 = vand.u32 %v4400, 4294901760
    %v4402 = vsub.f32 %v4400, %v4401
    %v4403 = vand.u32 %v4402, 4294901760
    %4404 = vmatpush.msra.mxu0 %v4403
    %v4405 = vand.u32 %v4344, 4294901760
    %4406 = vmatmul.f32.gmra.mxu0 %v4405
    %v4407 = vpop.f32.mrf.mxu0
    %v4408 = vadd.f32 %v4372, %v4407
    %4409 = vdwg.mxu0
    %4410 = vmatpush.msra.mxu0 0.0
    %4411 = vmatpush.msra.mxu0 0.0
    %4412 = vmatpush.msra.mxu0 0.0
    %4413 = vmatpush.msra.mxu0 0.0
    %4414 = vmatpush.msra.mxu0 0.0
    %4415 = vmatpush.msra.mxu0 0.0
    %4416 = vmatpush.msra.mxu0 0.0
    %4417 = vmatpush.msra.mxu0 0.0
    %4418 = vmatpush.msra.mxu0 0.0
    %4419 = vmatpush.msra.mxu0 0.0
    %4420 = vmatpush.msra.mxu0 0.0
    %4421 = vmatpush.msra.mxu0 0.0
    %4422 = vmatpush.msra.mxu0 0.0
    %v4423 = vand.u32 %v3910, 4294901760
    %v4424 = vsub.f32 %v3910, %v4423
    %4425 = vmatpush.msra.mxu0 %v4424
    %v4426 = vand.u32 %v3483, 4294901760
    %v4427 = vsub.f32 %v3483, %v4426
    %4428 = vmatpush.msra.mxu0 %v4427
    %v4429 = vand.u32 %v3482, 4294901760
    %v4430 = vsub.f32 %v3482, %v4429
    %4431 = vmatpush.msra.mxu0 %v4430
    %v4432 = vand.u32 %v4344, 4294901760
    %v4433 = vsub.f32 %v4344, %v4432
    %4434 = vmatmul.f32.gmra.mxu0 %v4433
    %v4435 = vpop.f32.mrf.mxu0
    %v4436 = vadd.f32 %v4408, %v4435
    %4437 = vdwg.mxu0
    %4438 = vmatpush.msra.mxu0 0.0
    %4439 = vmatpush.msra.mxu0 0.0
    %4440 = vmatpush.msra.mxu0 0.0
    %4441 = vmatpush.msra.mxu0 0.0
    %4442 = vmatpush.msra.mxu0 0.0
    %4443 = vmatpush.msra.mxu0 0.0
    %4444 = vmatpush.msra.mxu0 0.0
    %4445 = vmatpush.msra.mxu0 0.0
    %4446 = vmatpush.msra.mxu0 0.0
    %4447 = vmatpush.msra.mxu0 0.0
    %4448 = vmatpush.msra.mxu0 0.0
    %4449 = vmatpush.msra.mxu0 0.0
    %4450 = vmatpush.msra.mxu0 0.0
    %v4451 = vand.u32 %v3910, 4294901760
    %4452 = vmatpush.msra.mxu0 %v4451
    %v4453 = vand.u32 %v3483, 4294901760
    %4454 = vmatpush.msra.mxu0 %v4453
    %v4455 = vand.u32 %v3482, 4294901760
    %4456 = vmatpush.msra.mxu0 %v4455
    %v4457 = vand.u32 %v4344, 4294901760
    %v4458 = vsub.f32 %v4344, %v4457
    %v4459 = vand.u32 %v4458, 4294901760
    %4460 = vmatmul.f32.gmra.mxu0 %v4459
    %v4461 = vpop.f32.mrf.mxu0
    %v4462 = vadd.f32 %v4436, %v4461
    %4463 = vdwg.mxu0
    %4464 = vmatpush.msra.mxu0 0.0
    %4465 = vmatpush.msra.mxu0 0.0
    %4466 = vmatpush.msra.mxu0 0.0
    %4467 = vmatpush.msra.mxu0 0.0
    %4468 = vmatpush.msra.mxu0 0.0
    %4469 = vmatpush.msra.mxu0 0.0
    %4470 = vmatpush.msra.mxu0 0.0
    %4471 = vmatpush.msra.mxu0 0.0
    %4472 = vmatpush.msra.mxu0 0.0
    %4473 = vmatpush.msra.mxu0 0.0
    %4474 = vmatpush.msra.mxu0 0.0
    %4475 = vmatpush.msra.mxu0 0.0
    %4476 = vmatpush.msra.mxu0 0.0
    %v4477 = vand.u32 %v3910, 4294901760
    %v4478 = vsub.f32 %v3910, %v4477
    %v4479 = vand.u32 %v4478, 4294901760
    %4480 = vmatpush.msra.mxu0 %v4479
    %v4481 = vand.u32 %v3483, 4294901760
    %v4482 = vsub.f32 %v3483, %v4481
    %v4483 = vand.u32 %v4482, 4294901760
    %4484 = vmatpush.msra.mxu0 %v4483
    %v4485 = vand.u32 %v3482, 4294901760
    %v4486 = vsub.f32 %v3482, %v4485
    %v4487 = vand.u32 %v4486, 4294901760
    %4488 = vmatpush.msra.mxu0 %v4487
    %v4489 = vand.u32 %v4344, 4294901760
    %4490 = vmatmul.f32.gmra.mxu0 %v4489
    %v4491 = vpop.f32.mrf.mxu0
    %v4492 = vadd.f32 %v4462, %v4491
    %4493 = vdwg.mxu0
    %4494 = vmatpush.msra.mxu0 0.0
    %4495 = vmatpush.msra.mxu0 0.0
    %4496 = vmatpush.msra.mxu0 0.0
    %4497 = vmatpush.msra.mxu0 0.0
    %4498 = vmatpush.msra.mxu0 0.0
    %4499 = vmatpush.msra.mxu0 0.0
    %4500 = vmatpush.msra.mxu0 0.0
    %4501 = vmatpush.msra.mxu0 0.0
    %4502 = vmatpush.msra.mxu0 0.0
    %4503 = vmatpush.msra.mxu0 0.0
    %4504 = vmatpush.msra.mxu0 0.0
    %4505 = vmatpush.msra.mxu0 0.0
    %4506 = vmatpush.msra.mxu0 0.0
    %v4507 = vand.u32 %v3910, 4294901760
    %4508 = vmatpush.msra.mxu0 %v4507
    %v4509 = vand.u32 %v3483, 4294901760
    %4510 = vmatpush.msra.mxu0 %v4509
    %v4511 = vand.u32 %v3482, 4294901760
    %4512 = vmatpush.msra.mxu0 %v4511
    %v4513 = vand.u32 %v4344, 4294901760
    %4514 = vmatmul.f32.gmra.mxu0 %v4513
    %v4515 = vpop.f32.mrf.mxu0
    %v4516 = vadd.f32 %v4492, %v4515
    %4517 = vdwg.mxu0
    %v4518 = vxor.u32 %v4516, 2147483648
    %v4519 = vmul.f32 %v4518, 1.442695
    %v4520 = vpow.pop %v4519
    %v4521 = vadd.f32 %v4520, 1.0
    %v4522 = vrcp.pop %v4521
    %v4523 = vmul.f32 %v4521, %v4522
    %v4524 = vsub.f32 1.0, %v4523
    %v4525 = vmul.f32 %v4522, %v4524
    %v4526 = vadd.f32 %v4522, %v4525
    %vm4527 = vweird.f32 %v4521
    %vm4528 = vweird.f32 %v4522
    %vm4529 = vmor %vm4527, %vm4528
    %v4530 = vsel %vm4529, %v4522, %v4526
    %v4531 = vand.u32 2147483647, %v4521
    %vm4532 = vcmp.eq.f32.partialorder %v4531, 8.507059e+37
    %v4533 = vand.u32 %v4521, 2147483648
    %v4534 = vor.u32 1.1754944e-38, %v4533
    %v4535 = vsel %vm4532, %v4534, %v4530
    %v4536 = vmul.f32 1.0, %v4535
    %v4537 = vtanh.pop %v4516
    %v4538 = vmul.f32 %v4536, %v4114
    %4540 = vrot.lane.b32.xlu0 %v4537, 98
    %v4541 = vpop.permute.xlu0 %4540
    %v4543 = vmul.f32 %v4536, %v4541
    %4545 = vrot.lane.b32.xlu0 %v4543, 10
    %v4546 = vpop.permute.xlu0 %4545
    %v4548 = vadd.f32 %v4538, %v4546
    %v4549 = vtanh.pop %v4548
    %4551 = vrot.lane.b32.xlu0 %v4549, 10
    %v4552 = vpop.permute.xlu0 %4551
    %v4554 = vmul.f32 %v4536, %v4552
    %4556 = vrot.lane.b32.xlu0 %v4554, 108
    %v4557 = vpop.permute.xlu0 %4556
    %v4559 = vsel %vm3682, %v4557, %v4340
    %v4561 = vsel %vm3685, %v4559, 0
    %4563 = vmatpush.msra.mxu0 0.0
    %4564 = vmatpush.msra.mxu0 0.0
    %4565 = vmatpush.msra.mxu0 0.0
    %4566 = vmatpush.msra.mxu0 0.0
    %4567 = vmatpush.msra.mxu0 0.0
    %4568 = vmatpush.msra.mxu0 0.0
    %4569 = vmatpush.msra.mxu0 0.0
    %4570 = vmatpush.msra.mxu0 0.0
    %4571 = vmatpush.msra.mxu0 0.0
    %4572 = vmatpush.msra.mxu0 0.0
    %4573 = vmatpush.msra.mxu0 0.0
    %4574 = vmatpush.msra.mxu0 0.0
    %4575 = vmatpush.msra.mxu0 0.0
    %v4576 = vand.u32 %v3690, 4294901760
    %4577 = vmatpush.msra.mxu0 %v4576
    %v4578 = vand.u32 %v3487, 4294901760
    %4579 = vmatpush.msra.mxu0 %v4578
    %v4580 = vand.u32 %v3486, 4294901760
    %4581 = vmatpush.msra.mxu0 %v4580
    %v4582 = vand.u32 %v4561, 4294901760
    %v4583 = vsub.f32 %v4561, %v4582
    %v4584 = vand.u32 %v4583, 4294901760
    %v4585 = vsub.f32 %v4583, %v4584
    %v4586 = vand.u32 %v4585, 4294901760
    %4587 = vmatmul.f32.gmra.mxu0 %v4586
    %v4588 = vpop.f32.mrf.mxu0
    %v4589 = vadd.f32 %v3684, %v4588
    %4590 = vdwg.mxu0
    %4591 = vmatpush.msra.mxu0 0.0
    %4592 = vmatpush.msra.mxu0 0.0
    %4593 = vmatpush.msra.mxu0 0.0
    %4594 = vmatpush.msra.mxu0 0.0
    %4595 = vmatpush.msra.mxu0 0.0
    %4596 = vmatpush.msra.mxu0 0.0
    %4597 = vmatpush.msra.mxu0 0.0
    %4598 = vmatpush.msra.mxu0 0.0
    %4599 = vmatpush.msra.mxu0 0.0
    %4600 = vmatpush.msra.mxu0 0.0
    %4601 = vmatpush.msra.mxu0 0.0
    %4602 = vmatpush.msra.mxu0 0.0
    %4603 = vmatpush.msra.mxu0 0.0
    %v4604 = vand.u32 %v3690, 4294901760
    %v4605 = vsub.f32 %v3690, %v4604
    %v4606 = vand.u32 %v4605, 4294901760
    %v4607 = vsub.f32 %v4605, %v4606
    %v4608 = vand.u32 %v4607, 4294901760
    %4609 = vmatpush.msra.mxu0 %v4608
    %v4610 = vand.u32 %v3487, 4294901760
    %v4611 = vsub.f32 %v3487, %v4610
    %v4612 = vand.u32 %v4611, 4294901760
    %v4613 = vsub.f32 %v4611, %v4612
    %v4614 = vand.u32 %v4613, 4294901760
    %4615 = vmatpush.msra.mxu0 %v4614
    %v4616 = vand.u32 %v3486, 4294901760
    %v4617 = vsub.f32 %v3486, %v4616
    %v4618 = vand.u32 %v4617, 4294901760
    %v4619 = vsub.f32 %v4617, %v4618
    %v4620 = vand.u32 %v4619, 4294901760
    %4621 = vmatpush.msra.mxu0 %v4620
    %v4622 = vand.u32 %v4561, 4294901760
    %4623 = vmatmul.f32.gmra.mxu0 %v4622
    %v4624 = vpop.f32.mrf.mxu0
    %v4625 = vadd.f32 %v4589, %v4624
    %4626 = vdwg.mxu0
    %4627 = vmatpush.msra.mxu0 0.0
    %4628 = vmatpush.msra.mxu0 0.0
    %4629 = vmatpush.msra.mxu0 0.0
    %4630 = vmatpush.msra.mxu0 0.0
    %4631 = vmatpush.msra.mxu0 0.0
    %4632 = vmatpush.msra.mxu0 0.0
    %4633 = vmatpush.msra.mxu0 0.0
    %4634 = vmatpush.msra.mxu0 0.0
    %4635 = vmatpush.msra.mxu0 0.0
    %4636 = vmatpush.msra.mxu0 0.0
    %4637 = vmatpush.msra.mxu0 0.0
    %4638 = vmatpush.msra.mxu0 0.0
    %4639 = vmatpush.msra.mxu0 0.0
    %v4640 = vand.u32 %v3690, 4294901760
    %v4641 = vsub.f32 %v3690, %v4640
    %4642 = vmatpush.msra.mxu0 %v4641
    %v4643 = vand.u32 %v3487, 4294901760
    %v4644 = vsub.f32 %v3487, %v4643
    %4645 = vmatpush.msra.mxu0 %v4644
    %v4646 = vand.u32 %v3486, 4294901760
    %v4647 = vsub.f32 %v3486, %v4646
    %4648 = vmatpush.msra.mxu0 %v4647
    %v4649 = vand.u32 %v4561, 4294901760
    %v4650 = vsub.f32 %v4561, %v4649
    %4651 = vmatmul.f32.gmra.mxu0 %v4650
    %v4652 = vpop.f32.mrf.mxu0
    %v4653 = vadd.f32 %v4625, %v4652
    %4654 = vdwg.mxu0
    %4655 = vmatpush.msra.mxu0 0.0
    %4656 = vmatpush.msra.mxu0 0.0
    %4657 = vmatpush.msra.mxu0 0.0
    %4658 = vmatpush.msra.mxu0 0.0
    %4659 = vmatpush.msra.mxu0 0.0
    %4660 = vmatpush.msra.mxu0 0.0
    %4661 = vmatpush.msra.mxu0 0.0
    %4662 = vmatpush.msra.mxu0 0.0
    %4663 = vmatpush.msra.mxu0 0.0
    %4664 = vmatpush.msra.mxu0 0.0
    %4665 = vmatpush.msra.mxu0 0.0
    %4666 = vmatpush.msra.mxu0 0.0
    %4667 = vmatpush.msra.mxu0 0.0
    %v4668 = vand.u32 %v3690, 4294901760
    %4669 = vmatpush.msra.mxu0 %v4668
    %v4670 = vand.u32 %v3487, 4294901760
    %4671 = vmatpush.msra.mxu0 %v4670
    %v4672 = vand.u32 %v3486, 4294901760
    %4673 = vmatpush.msra.mxu0 %v4672
    %v4674 = vand.u32 %v4561, 4294901760
    %v4675 = vsub.f32 %v4561, %v4674
    %v4676 = vand.u32 %v4675, 4294901760
    %4677 = vmatmul.f32.gmra.mxu0 %v4676
    %v4678 = vpop.f32.mrf.mxu0
    %v4679 = vadd.f32 %v4653, %v4678
    %4680 = vdwg.mxu0
    %4681 = vmatpush.msra.mxu0 0.0
    %4682 = vmatpush.msra.mxu0 0.0
    %4683 = vmatpush.msra.mxu0 0.0
    %4684 = vmatpush.msra.mxu0 0.0
    %4685 = vmatpush.msra.mxu0 0.0
    %4686 = vmatpush.msra.mxu0 0.0
    %4687 = vmatpush.msra.mxu0 0.0
    %4688 = vmatpush.msra.mxu0 0.0
    %4689 = vmatpush.msra.mxu0 0.0
    %4690 = vmatpush.msra.mxu0 0.0
    %4691 = vmatpush.msra.mxu0 0.0
    %4692 = vmatpush.msra.mxu0 0.0
    %4693 = vmatpush.msra.mxu0 0.0
    %v4694 = vand.u32 %v3690, 4294901760
    %v4695 = vsub.f32 %v3690, %v4694
    %v4696 = vand.u32 %v4695, 4294901760
    %4697 = vmatpush.msra.mxu0 %v4696
    %v4698 = vand.u32 %v3487, 4294901760
    %v4699 = vsub.f32 %v3487, %v4698
    %v4700 = vand.u32 %v4699, 4294901760
    %4701 = vmatpush.msra.mxu0 %v4700
    %v4702 = vand.u32 %v3486, 4294901760
    %v4703 = vsub.f32 %v3486, %v4702
    %v4704 = vand.u32 %v4703, 4294901760
    %4705 = vmatpush.msra.mxu0 %v4704
    %v4706 = vand.u32 %v4561, 4294901760
    %4707 = vmatmul.f32.gmra.mxu0 %v4706
    %v4708 = vpop.f32.mrf.mxu0
    %v4709 = vadd.f32 %v4679, %v4708
    %4710 = vdwg.mxu0
    %4711 = vmatpush.msra.mxu0 0.0
    %4712 = vmatpush.msra.mxu0 0.0
    %4713 = vmatpush.msra.mxu0 0.0
    %4714 = vmatpush.msra.mxu0 0.0
    %4715 = vmatpush.msra.mxu0 0.0
    %4716 = vmatpush.msra.mxu0 0.0
    %4717 = vmatpush.msra.mxu0 0.0
    %4718 = vmatpush.msra.mxu0 0.0
    %4719 = vmatpush.msra.mxu0 0.0
    %4720 = vmatpush.msra.mxu0 0.0
    %4721 = vmatpush.msra.mxu0 0.0
    %4722 = vmatpush.msra.mxu0 0.0
    %4723 = vmatpush.msra.mxu0 0.0
    %v4724 = vand.u32 %v3690, 4294901760
    %4725 = vmatpush.msra.mxu0 %v4724
    %v4726 = vand.u32 %v3487, 4294901760
    %4727 = vmatpush.msra.mxu0 %v4726
    %v4728 = vand.u32 %v3486, 4294901760
    %4729 = vmatpush.msra.mxu0 %v4728
    %v4730 = vand.u32 %v4561, 4294901760
    %4731 = vmatmul.f32.gmra.mxu0 %v4730
    %v4732 = vpop.f32.mrf.mxu0
    %v4733 = vadd.f32 %v4709, %v4732
    %4734 = vdwg.mxu0
    %v4735 = vxor.u32 %v4733, 2147483648
    %v4736 = vmul.f32 %v4735, 1.442695
    %v4737 = vpow.pop %v4736
    %v4738 = vadd.f32 %v4737, 1.0
    %v4739 = vrcp.pop %v4738
    %v4740 = vmul.f32 %v4738, %v4739
    %v4741 = vsub.f32 1.0, %v4740
    %v4742 = vmul.f32 %v4739, %v4741
    %v4743 = vadd.f32 %v4739, %v4742
    %vm4744 = vweird.f32 %v4738
    %vm4745 = vweird.f32 %v4739
    %vm4746 = vmor %vm4744, %vm4745
    %v4747 = vsel %vm4746, %v4739, %v4743
    %v4748 = vand.u32 2147483647, %v4738
    %vm4749 = vcmp.eq.f32.partialorder %v4748, 8.507059e+37
    %v4750 = vand.u32 %v4738, 2147483648
    %v4751 = vor.u32 1.1754944e-38, %v4750
    %v4752 = vsel %vm4749, %v4751, %v4747
    %v4753 = vmul.f32 1.0, %v4752
    %v4754 = vtanh.pop %v4733
    %v4755 = vmul.f32 %v4753, %v4331
    %4757 = vrot.lane.b32.xlu0 %v4754, 98
    %v4758 = vpop.permute.xlu0 %4757
    %v4760 = vmul.f32 %v4753, %v4758
    %4762 = vrot.lane.b32.xlu0 %v4760, 10
    %v4763 = vpop.permute.xlu0 %4762
    %v4765 = vadd.f32 %v4755, %v4763
    %v4766 = vtanh.pop %v4765
    %4768 = vrot.lane.b32.xlu0 %v4766, 10
    %v4769 = vpop.permute.xlu0 %4768
    %v4771 = vmul.f32 %v4753, %v4769
    %4773 = vrot.lane.b32.xlu0 %v4771, 118
    %v4774 = vpop.permute.xlu0 %4773
    %v4776 = vsel %vm3682, %v4557, %v4774
    %v4778 = vsel %vm3685, %v4776, 0
    %4780 = vmatpush.msra.mxu0 0.0
    %4781 = vmatpush.msra.mxu0 0.0
    %4782 = vmatpush.msra.mxu0 0.0
    %4783 = vmatpush.msra.mxu0 0.0
    %4784 = vmatpush.msra.mxu0 0.0
    %4785 = vmatpush.msra.mxu0 0.0
    %4786 = vmatpush.msra.mxu0 0.0
    %4787 = vmatpush.msra.mxu0 0.0
    %4788 = vmatpush.msra.mxu0 0.0
    %4789 = vmatpush.msra.mxu0 0.0
    %4790 = vmatpush.msra.mxu0 0.0
    %4791 = vmatpush.msra.mxu0 0.0
    %4792 = vmatpush.msra.mxu0 0.0
    %v4793 = vand.u32 %v3910, 4294901760
    %4794 = vmatpush.msra.mxu0 %v4793
    %v4795 = vand.u32 %v3483, 4294901760
    %4796 = vmatpush.msra.mxu0 %v4795
    %v4797 = vand.u32 %v3482, 4294901760
    %4798 = vmatpush.msra.mxu0 %v4797
    %v4799 = vand.u32 %v4778, 4294901760
    %v4800 = vsub.f32 %v4778, %v4799
    %v4801 = vand.u32 %v4800, 4294901760
    %v4802 = vsub.f32 %v4800, %v4801
    %v4803 = vand.u32 %v4802, 4294901760
    %4804 = vmatmul.f32.gmra.mxu0 %v4803
    %v4805 = vpop.f32.mrf.mxu0
    %v4806 = vadd.f32 %v3491, %v4805
    %4807 = vdwg.mxu0
    %4808 = vmatpush.msra.mxu0 0.0
    %4809 = vmatpush.msra.mxu0 0.0
    %4810 = vmatpush.msra.mxu0 0.0
    %4811 = vmatpush.msra.mxu0 0.0
    %4812 = vmatpush.msra.mxu0 0.0
    %4813 = vmatpush.msra.mxu0 0.0
    %4814 = vmatpush.msra.mxu0 0.0
    %4815 = vmatpush.msra.mxu0 0.0
    %4816 = vmatpush.msra.mxu0 0.0
    %4817 = vmatpush.msra.mxu0 0.0
    %4818 = vmatpush.msra.mxu0 0.0
    %4819 = vmatpush.msra.mxu0 0.0
    %4820 = vmatpush.msra.mxu0 0.0
    %v4821 = vand.u32 %v3910, 4294901760
    %v4822 = vsub.f32 %v3910, %v4821
    %v4823 = vand.u32 %v4822, 4294901760
    %v4824 = vsub.f32 %v4822, %v4823
    %v4825 = vand.u32 %v4824, 4294901760
    %4826 = vmatpush.msra.mxu0 %v4825
    %v4827 = vand.u32 %v3483, 4294901760
    %v4828 = vsub.f32 %v3483, %v4827
    %v4829 = vand.u32 %v4828, 4294901760
    %v4830 = vsub.f32 %v4828, %v4829
    %v4831 = vand.u32 %v4830, 4294901760
    %4832 = vmatpush.msra.mxu0 %v4831
    %v4833 = vand.u32 %v3482, 4294901760
    %v4834 = vsub.f32 %v3482, %v4833
    %v4835 = vand.u32 %v4834, 4294901760
    %v4836 = vsub.f32 %v4834, %v4835
    %v4837 = vand.u32 %v4836, 4294901760
    %4838 = vmatpush.msra.mxu0 %v4837
    %v4839 = vand.u32 %v4778, 4294901760
    %4840 = vmatmul.f32.gmra.mxu0 %v4839
    %v4841 = vpop.f32.mrf.mxu0
    %v4842 = vadd.f32 %v4806, %v4841
    %4843 = vdwg.mxu0
    %4844 = vmatpush.msra.mxu0 0.0
    %4845 = vmatpush.msra.mxu0 0.0
    %4846 = vmatpush.msra.mxu0 0.0
    %4847 = vmatpush.msra.mxu0 0.0
    %4848 = vmatpush.msra.mxu0 0.0
    %4849 = vmatpush.msra.mxu0 0.0
    %4850 = vmatpush.msra.mxu0 0.0
    %4851 = vmatpush.msra.mxu0 0.0
    %4852 = vmatpush.msra.mxu0 0.0
    %4853 = vmatpush.msra.mxu0 0.0
    %4854 = vmatpush.msra.mxu0 0.0
    %4855 = vmatpush.msra.mxu0 0.0
    %4856 = vmatpush.msra.mxu0 0.0
    %v4857 = vand.u32 %v3910, 4294901760
    %v4858 = vsub.f32 %v3910, %v4857
    %4859 = vmatpush.msra.mxu0 %v4858
    %v4860 = vand.u32 %v3483, 4294901760
    %v4861 = vsub.f32 %v3483, %v4860
    %4862 = vmatpush.msra.mxu0 %v4861
    %v4863 = vand.u32 %v3482, 4294901760
    %v4864 = vsub.f32 %v3482, %v4863
    %4865 = vmatpush.msra.mxu0 %v4864
    %v4866 = vand.u32 %v4778, 4294901760
    %v4867 = vsub.f32 %v4778, %v4866
    %4868 = vmatmul.f32.gmra.mxu0 %v4867
    %v4869 = vpop.f32.mrf.mxu0
    %v4870 = vadd.f32 %v4842, %v4869
    %4871 = vdwg.mxu0
    %4872 = vmatpush.msra.mxu0 0.0
    %4873 = vmatpush.msra.mxu0 0.0
    %4874 = vmatpush.msra.mxu0 0.0
    %4875 = vmatpush.msra.mxu0 0.0
    %4876 = vmatpush.msra.mxu0 0.0
    %4877 = vmatpush.msra.mxu0 0.0
    %4878 = vmatpush.msra.mxu0 0.0
    %4879 = vmatpush.msra.mxu0 0.0
    %4880 = vmatpush.msra.mxu0 0.0
    %4881 = vmatpush.msra.mxu0 0.0
    %4882 = vmatpush.msra.mxu0 0.0
    %4883 = vmatpush.msra.mxu0 0.0
    %4884 = vmatpush.msra.mxu0 0.0
    %v4885 = vand.u32 %v3910, 4294901760
    %4886 = vmatpush.msra.mxu0 %v4885
    %v4887 = vand.u32 %v3483, 4294901760
    %4888 = vmatpush.msra.mxu0 %v4887
    %v4889 = vand.u32 %v3482, 4294901760
    %4890 = vmatpush.msra.mxu0 %v4889
    %v4891 = vand.u32 %v4778, 4294901760
    %v4892 = vsub.f32 %v4778, %v4891
    %v4893 = vand.u32 %v4892, 4294901760
    %4894 = vmatmul.f32.gmra.mxu0 %v4893
    %v4895 = vpop.f32.mrf.mxu0
    %v4896 = vadd.f32 %v4870, %v4895
    %4897 = vdwg.mxu0
    %4898 = vmatpush.msra.mxu0 0.0
    %4899 = vmatpush.msra.mxu0 0.0
    %4900 = vmatpush.msra.mxu0 0.0
    %4901 = vmatpush.msra.mxu0 0.0
    %4902 = vmatpush.msra.mxu0 0.0
    %4903 = vmatpush.msra.mxu0 0.0
    %4904 = vmatpush.msra.mxu0 0.0
    %4905 = vmatpush.msra.mxu0 0.0
    %4906 = vmatpush.msra.mxu0 0.0
    %4907 = vmatpush.msra.mxu0 0.0
    %4908 = vmatpush.msra.mxu0 0.0
    %4909 = vmatpush.msra.mxu0 0.0
    %4910 = vmatpush.msra.mxu0 0.0
    %v4911 = vand.u32 %v3910, 4294901760
    %v4912 = vsub.f32 %v3910, %v4911
    %v4913 = vand.u32 %v4912, 4294901760
    %4914 = vmatpush.msra.mxu0 %v4913
    %v4915 = vand.u32 %v3483, 4294901760
    %v4916 = vsub.f32 %v3483, %v4915
    %v4917 = vand.u32 %v4916, 4294901760
    %4918 = vmatpush.msra.mxu0 %v4917
    %v4919 = vand.u32 %v3482, 4294901760
    %v4920 = vsub.f32 %v3482, %v4919
    %v4921 = vand.u32 %v4920, 4294901760
    %4922 = vmatpush.msra.mxu0 %v4921
    %v4923 = vand.u32 %v4778, 4294901760
    %4924 = vmatmul.f32.gmra.mxu0 %v4923
    %v4925 = vpop.f32.mrf.mxu0
    %v4926 = vadd.f32 %v4896, %v4925
    %4927 = vdwg.mxu0
    %4928 = vmatpush.msra.mxu0 0.0
    %4929 = vmatpush.msra.mxu0 0.0
    %4930 = vmatpush.msra.mxu0 0.0
    %4931 = vmatpush.msra.mxu0 0.0
    %4932 = vmatpush.msra.mxu0 0.0
    %4933 = vmatpush.msra.mxu0 0.0
    %4934 = vmatpush.msra.mxu0 0.0
    %4935 = vmatpush.msra.mxu0 0.0
    %4936 = vmatpush.msra.mxu0 0.0
    %4937 = vmatpush.msra.mxu0 0.0
    %4938 = vmatpush.msra.mxu0 0.0
    %4939 = vmatpush.msra.mxu0 0.0
    %4940 = vmatpush.msra.mxu0 0.0
    %v4941 = vand.u32 %v3910, 4294901760
    %4942 = vmatpush.msra.mxu0 %v4941
    %v4943 = vand.u32 %v3483, 4294901760
    %4944 = vmatpush.msra.mxu0 %v4943
    %v4945 = vand.u32 %v3482, 4294901760
    %4946 = vmatpush.msra.mxu0 %v4945
    %v4947 = vand.u32 %v4778, 4294901760
    %4948 = vmatmul.f32.gmra.mxu0 %v4947
    %v4949 = vpop.f32.mrf.mxu0
    %v4950 = vadd.f32 %v4926, %v4949
    %4951 = vdwg.mxu0
    %v4952 = vxor.u32 %v4950, 2147483648
    %v4953 = vmul.f32 %v4952, 1.442695
    %v4954 = vpow.pop %v4953
    %v4955 = vadd.f32 %v4954, 1.0
    %v4956 = vrcp.pop %v4955
    %v4957 = vmul.f32 %v4955, %v4956
    %v4958 = vsub.f32 1.0, %v4957
    %v4959 = vmul.f32 %v4956, %v4958
    %v4960 = vadd.f32 %v4956, %v4959
    %vm4961 = vweird.f32 %v4955
    %vm4962 = vweird.f32 %v4956
    %vm4963 = vmor %vm4961, %vm4962
    %v4964 = vsel %vm4963, %v4956, %v4960
    %v4965 = vand.u32 2147483647, %v4955
    %vm4966 = vcmp.eq.f32.partialorder %v4965, 8.507059e+37
    %v4967 = vand.u32 %v4955, 2147483648
    %v4968 = vor.u32 1.1754944e-38, %v4967
    %v4969 = vsel %vm4966, %v4968, %v4964
    %v4970 = vmul.f32 1.0, %v4969
    %v4971 = vtanh.pop %v4950
    %v4972 = vmul.f32 %v4970, %v4548
    %4974 = vrot.lane.b32.xlu0 %v4971, 98
    %v4975 = vpop.permute.xlu0 %4974
    %v4977 = vmul.f32 %v4970, %v4975
    %4979 = vrot.lane.b32.xlu0 %v4977, 10
    %v4980 = vpop.permute.xlu0 %4979
    %v4982 = vadd.f32 %v4972, %v4980
    %v4983 = vtanh.pop %v4982
    %4985 = vrot.lane.b32.xlu0 %v4983, 10
    %v4986 = vpop.permute.xlu0 %4985
    %v4988 = vmul.f32 %v4970, %v4986
    %4990 = vrot.lane.b32.xlu0 %v4988, 108
    %v4991 = vpop.permute.xlu0 %4990
    %v4993 = vsel %vm3682, %v4991, %v4774
    %v4995 = vsel %vm3685, %v4993, 0
    %4997 = vmatpush.msra.mxu0 0.0
    %4998 = vmatpush.msra.mxu0 0.0
    %4999 = vmatpush.msra.mxu0 0.0
    %5000 = vmatpush.msra.mxu0 0.0
    %5001 = vmatpush.msra.mxu0 0.0
    %5002 = vmatpush.msra.mxu0 0.0
    %5003 = vmatpush.msra.mxu0 0.0
    %5004 = vmatpush.msra.mxu0 0.0
    %5005 = vmatpush.msra.mxu0 0.0
    %5006 = vmatpush.msra.mxu0 0.0
    %5007 = vmatpush.msra.mxu0 0.0
    %5008 = vmatpush.msra.mxu0 0.0
    %5009 = vmatpush.msra.mxu0 0.0
    %v5010 = vand.u32 %v3690, 4294901760
    %5011 = vmatpush.msra.mxu0 %v5010
    %v5012 = vand.u32 %v3487, 4294901760
    %5013 = vmatpush.msra.mxu0 %v5012
    %v5014 = vand.u32 %v3486, 4294901760
    %5015 = vmatpush.msra.mxu0 %v5014
    %v5016 = vand.u32 %v4995, 4294901760
    %v5017 = vsub.f32 %v4995, %v5016
    %v5018 = vand.u32 %v5017, 4294901760
    %v5019 = vsub.f32 %v5017, %v5018
    %v5020 = vand.u32 %v5019, 4294901760
    %5021 = vmatmul.f32.gmra.mxu0 %v5020
    %v5022 = vpop.f32.mrf.mxu0
    %v5023 = vadd.f32 %v3684, %v5022
    %5024 = vdwg.mxu0
    %5025 = vmatpush.msra.mxu0 0.0
    %5026 = vmatpush.msra.mxu0 0.0
    %5027 = vmatpush.msra.mxu0 0.0
    %5028 = vmatpush.msra.mxu0 0.0
    %5029 = vmatpush.msra.mxu0 0.0
    %5030 = vmatpush.msra.mxu0 0.0
    %5031 = vmatpush.msra.mxu0 0.0
    %5032 = vmatpush.msra.mxu0 0.0
    %5033 = vmatpush.msra.mxu0 0.0
    %5034 = vmatpush.msra.mxu0 0.0
    %5035 = vmatpush.msra.mxu0 0.0
    %5036 = vmatpush.msra.mxu0 0.0
    %5037 = vmatpush.msra.mxu0 0.0
    %v5038 = vand.u32 %v3690, 4294901760
    %v5039 = vsub.f32 %v3690, %v5038
    %v5040 = vand.u32 %v5039, 4294901760
    %v5041 = vsub.f32 %v5039, %v5040
    %v5042 = vand.u32 %v5041, 4294901760
    %5043 = vmatpush.msra.mxu0 %v5042
    %v5044 = vand.u32 %v3487, 4294901760
    %v5045 = vsub.f32 %v3487, %v5044
    %v5046 = vand.u32 %v5045, 4294901760
    %v5047 = vsub.f32 %v5045, %v5046
    %v5048 = vand.u32 %v5047, 4294901760
    %5049 = vmatpush.msra.mxu0 %v5048
    %v5050 = vand.u32 %v3486, 4294901760
    %v5051 = vsub.f32 %v3486, %v5050
    %v5052 = vand.u32 %v5051, 4294901760
    %v5053 = vsub.f32 %v5051, %v5052
    %v5054 = vand.u32 %v5053, 4294901760
    %5055 = vmatpush.msra.mxu0 %v5054
    %v5056 = vand.u32 %v4995, 4294901760
    %5057 = vmatmul.f32.gmra.mxu0 %v5056
    %v5058 = vpop.f32.mrf.mxu0
    %v5059 = vadd.f32 %v5023, %v5058
    %5060 = vdwg.mxu0
    %5061 = vmatpush.msra.mxu0 0.0
    %5062 = vmatpush.msra.mxu0 0.0
    %5063 = vmatpush.msra.mxu0 0.0
    %5064 = vmatpush.msra.mxu0 0.0
    %5065 = vmatpush.msra.mxu0 0.0
    %5066 = vmatpush.msra.mxu0 0.0
    %5067 = vmatpush.msra.mxu0 0.0
    %5068 = vmatpush.msra.mxu0 0.0
    %5069 = vmatpush.msra.mxu0 0.0
    %5070 = vmatpush.msra.mxu0 0.0
    %5071 = vmatpush.msra.mxu0 0.0
    %5072 = vmatpush.msra.mxu0 0.0
    %5073 = vmatpush.msra.mxu0 0.0
    %v5074 = vand.u32 %v3690, 4294901760
    %v5075 = vsub.f32 %v3690, %v5074
    %5076 = vmatpush.msra.mxu0 %v5075
    %v5077 = vand.u32 %v3487, 4294901760
    %v5078 = vsub.f32 %v3487, %v5077
    %5079 = vmatpush.msra.mxu0 %v5078
    %v5080 = vand.u32 %v3486, 4294901760
    %v5081 = vsub.f32 %v3486, %v5080
    %5082 = vmatpush.msra.mxu0 %v5081
    %v5083 = vand.u32 %v4995, 4294901760
    %v5084 = vsub.f32 %v4995, %v5083
    %5085 = vmatmul.f32.gmra.mxu0 %v5084
    %v5086 = vpop.f32.mrf.mxu0
    %v5087 = vadd.f32 %v5059, %v5086
    %5088 = vdwg.mxu0
    %5089 = vmatpush.msra.mxu0 0.0
    %5090 = vmatpush.msra.mxu0 0.0
    %5091 = vmatpush.msra.mxu0 0.0
    %5092 = vmatpush.msra.mxu0 0.0
    %5093 = vmatpush.msra.mxu0 0.0
    %5094 = vmatpush.msra.mxu0 0.0
    %5095 = vmatpush.msra.mxu0 0.0
    %5096 = vmatpush.msra.mxu0 0.0
    %5097 = vmatpush.msra.mxu0 0.0
    %5098 = vmatpush.msra.mxu0 0.0
    %5099 = vmatpush.msra.mxu0 0.0
    %5100 = vmatpush.msra.mxu0 0.0
    %5101 = vmatpush.msra.mxu0 0.0
    %v5102 = vand.u32 %v3690, 4294901760
    %5103 = vmatpush.msra.mxu0 %v5102
    %v5104 = vand.u32 %v3487, 4294901760
    %5105 = vmatpush.msra.mxu0 %v5104
    %v5106 = vand.u32 %v3486, 4294901760
    %5107 = vmatpush.msra.mxu0 %v5106
    %v5108 = vand.u32 %v4995, 4294901760
    %v5109 = vsub.f32 %v4995, %v5108
    %v5110 = vand.u32 %v5109, 4294901760
    %5111 = vmatmul.f32.gmra.mxu0 %v5110
    %v5112 = vpop.f32.mrf.mxu0
    %v5113 = vadd.f32 %v5087, %v5112
    %5114 = vdwg.mxu0
    %5115 = vmatpush.msra.mxu0 0.0
    %5116 = vmatpush.msra.mxu0 0.0
    %5117 = vmatpush.msra.mxu0 0.0
    %5118 = vmatpush.msra.mxu0 0.0
    %5119 = vmatpush.msra.mxu0 0.0
    %5120 = vmatpush.msra.mxu0 0.0
    %5121 = vmatpush.msra.mxu0 0.0
    %5122 = vmatpush.msra.mxu0 0.0
    %5123 = vmatpush.msra.mxu0 0.0
    %5124 = vmatpush.msra.mxu0 0.0
    %5125 = vmatpush.msra.mxu0 0.0
    %5126 = vmatpush.msra.mxu0 0.0
    %5127 = vmatpush.msra.mxu0 0.0
    %v5128 = vand.u32 %v3690, 4294901760
    %v5129 = vsub.f32 %v3690, %v5128
    %v5130 = vand.u32 %v5129, 4294901760
    %5131 = vmatpush.msra.mxu0 %v5130
    %v5132 = vand.u32 %v3487, 4294901760
    %v5133 = vsub.f32 %v3487, %v5132
    %v5134 = vand.u32 %v5133, 4294901760
    %5135 = vmatpush.msra.mxu0 %v5134
    %v5136 = vand.u32 %v3486, 4294901760
    %v5137 = vsub.f32 %v3486, %v5136
    %v5138 = vand.u32 %v5137, 4294901760
    %5139 = vmatpush.msra.mxu0 %v5138
    %v5140 = vand.u32 %v4995, 4294901760
    %5141 = vmatmul.f32.gmra.mxu0 %v5140
    %v5142 = vpop.f32.mrf.mxu0
    %v5143 = vadd.f32 %v5113, %v5142
    %5144 = vdwg.mxu0
    %5145 = vmatpush.msra.mxu0 0.0
    %5146 = vmatpush.msra.mxu0 0.0
    %5147 = vmatpush.msra.mxu0 0.0
    %5148 = vmatpush.msra.mxu0 0.0
    %5149 = vmatpush.msra.mxu0 0.0
    %5150 = vmatpush.msra.mxu0 0.0
    %5151 = vmatpush.msra.mxu0 0.0
    %5152 = vmatpush.msra.mxu0 0.0
    %5153 = vmatpush.msra.mxu0 0.0
    %5154 = vmatpush.msra.mxu0 0.0
    %5155 = vmatpush.msra.mxu0 0.0
    %5156 = vmatpush.msra.mxu0 0.0
    %5157 = vmatpush.msra.mxu0 0.0
    %v5158 = vand.u32 %v3690, 4294901760
    %5159 = vmatpush.msra.mxu0 %v5158
    %v5160 = vand.u32 %v3487, 4294901760
    %5161 = vmatpush.msra.mxu0 %v5160
    %v5162 = vand.u32 %v3486, 4294901760
    %5163 = vmatpush.msra.mxu0 %v5162
    %v5164 = vand.u32 %v4995, 4294901760
    %5165 = vmatmul.f32.gmra.mxu0 %v5164
    %v5166 = vpop.f32.mrf.mxu0
    %v5167 = vadd.f32 %v5143, %v5166
    %5168 = vdwg.mxu0
    %v5169 = vxor.u32 %v5167, 2147483648
    %v5170 = vmul.f32 %v5169, 1.442695
    %v5171 = vpow.pop %v5170
    %v5172 = vadd.f32 %v5171, 1.0
    %v5173 = vrcp.pop %v5172
    %v5174 = vmul.f32 %v5172, %v5173
    %v5175 = vsub.f32 1.0, %v5174
    %v5176 = vmul.f32 %v5173, %v5175
    %v5177 = vadd.f32 %v5173, %v5176
    %vm5178 = vweird.f32 %v5172
    %vm5179 = vweird.f32 %v5173
    %vm5180 = vmor %vm5178, %vm5179
    %v5181 = vsel %vm5180, %v5173, %v5177
    %v5182 = vand.u32 2147483647, %v5172
    %vm5183 = vcmp.eq.f32.partialorder %v5182, 8.507059e+37
    %v5184 = vand.u32 %v5172, 2147483648
    %v5185 = vor.u32 1.1754944e-38, %v5184
    %v5186 = vsel %vm5183, %v5185, %v5181
    %v5187 = vmul.f32 1.0, %v5186
    %v5188 = vtanh.pop %v5167
    %v5189 = vmul.f32 %v5187, %v4765
    %5191 = vrot.lane.b32.xlu0 %v5188, 98
    %v5192 = vpop.permute.xlu0 %5191
    %v5194 = vmul.f32 %v5187, %v5192
    %5196 = vrot.lane.b32.xlu0 %v5194, 10
    %v5197 = vpop.permute.xlu0 %5196
    %v5199 = vadd.f32 %v5189, %v5197
    %v5200 = vtanh.pop %v5199
    %5202 = vrot.lane.b32.xlu0 %v5200, 10
    %v5203 = vpop.permute.xlu0 %5202
    %v5205 = vmul.f32 %v5187, %v5203
    %5207 = vrot.lane.b32.xlu0 %v5205, 118
    %v5208 = vpop.permute.xlu0 %5207
    %v5210 = vsel %vm3682, %v4991, %v5208
    %v5212 = vsel %vm3685, %v5210, 0
    %5214 = vmatpush.msra.mxu0 0.0
    %5215 = vmatpush.msra.mxu0 0.0
    %5216 = vmatpush.msra.mxu0 0.0
    %5217 = vmatpush.msra.mxu0 0.0
    %5218 = vmatpush.msra.mxu0 0.0
    %5219 = vmatpush.msra.mxu0 0.0
    %5220 = vmatpush.msra.mxu0 0.0
    %5221 = vmatpush.msra.mxu0 0.0
    %5222 = vmatpush.msra.mxu0 0.0
    %5223 = vmatpush.msra.mxu0 0.0
    %5224 = vmatpush.msra.mxu0 0.0
    %5225 = vmatpush.msra.mxu0 0.0
    %5226 = vmatpush.msra.mxu0 0.0
    %v5227 = vand.u32 %v3910, 4294901760
    %5228 = vmatpush.msra.mxu0 %v5227
    %v5229 = vand.u32 %v3483, 4294901760
    %5230 = vmatpush.msra.mxu0 %v5229
    %v5231 = vand.u32 %v3482, 4294901760
    %5232 = vmatpush.msra.mxu0 %v5231
    %v5233 = vand.u32 %v5212, 4294901760
    %v5234 = vsub.f32 %v5212, %v5233
    %v5235 = vand.u32 %v5234, 4294901760
    %v5236 = vsub.f32 %v5234, %v5235
    %v5237 = vand.u32 %v5236, 4294901760
    %5238 = vmatmul.f32.gmra.mxu0 %v5237
    %v5239 = vpop.f32.mrf.mxu0
    %v5240 = vadd.f32 %v3491, %v5239
    %5241 = vdwg.mxu0
    %5242 = vmatpush.msra.mxu0 0.0
    %5243 = vmatpush.msra.mxu0 0.0
    %5244 = vmatpush.msra.mxu0 0.0
    %5245 = vmatpush.msra.mxu0 0.0
    %5246 = vmatpush.msra.mxu0 0.0
    %5247 = vmatpush.msra.mxu0 0.0
    %5248 = vmatpush.msra.mxu0 0.0
    %5249 = vmatpush.msra.mxu0 0.0
    %5250 = vmatpush.msra.mxu0 0.0
    %5251 = vmatpush.msra.mxu0 0.0
    %5252 = vmatpush.msra.mxu0 0.0
    %5253 = vmatpush.msra.mxu0 0.0
    %5254 = vmatpush.msra.mxu0 0.0
    %v5255 = vand.u32 %v3910, 4294901760
    %v5256 = vsub.f32 %v3910, %v5255
    %v5257 = vand.u32 %v5256, 4294901760
    %v5258 = vsub.f32 %v5256, %v5257
    %v5259 = vand.u32 %v5258, 4294901760
    %5260 = vmatpush.msra.mxu0 %v5259
    %v5261 = vand.u32 %v3483, 4294901760
    %v5262 = vsub.f32 %v3483, %v5261
    %v5263 = vand.u32 %v5262, 4294901760
    %v5264 = vsub.f32 %v5262, %v5263
    %v5265 = vand.u32 %v5264, 4294901760
    %5266 = vmatpush.msra.mxu0 %v5265
    %v5267 = vand.u32 %v3482, 4294901760
    %v5268 = vsub.f32 %v3482, %v5267
    %v5269 = vand.u32 %v5268, 4294901760
    %v5270 = vsub.f32 %v5268, %v5269
    %v5271 = vand.u32 %v5270, 4294901760
    %5272 = vmatpush.msra.mxu0 %v5271
    %v5273 = vand.u32 %v5212, 4294901760
    %5274 = vmatmul.f32.gmra.mxu0 %v5273
    %v5275 = vpop.f32.mrf.mxu0
    %v5276 = vadd.f32 %v5240, %v5275
    %5277 = vdwg.mxu0
    %5278 = vmatpush.msra.mxu0 0.0
    %5279 = vmatpush.msra.mxu0 0.0
    %5280 = vmatpush.msra.mxu0 0.0
    %5281 = vmatpush.msra.mxu0 0.0
    %5282 = vmatpush.msra.mxu0 0.0
    %5283 = vmatpush.msra.mxu0 0.0
    %5284 = vmatpush.msra.mxu0 0.0
    %5285 = vmatpush.msra.mxu0 0.0
    %5286 = vmatpush.msra.mxu0 0.0
    %5287 = vmatpush.msra.mxu0 0.0
    %5288 = vmatpush.msra.mxu0 0.0
    %5289 = vmatpush.msra.mxu0 0.0
    %5290 = vmatpush.msra.mxu0 0.0
    %v5291 = vand.u32 %v3910, 4294901760
    %v5292 = vsub.f32 %v3910, %v5291
    %5293 = vmatpush.msra.mxu0 %v5292
    %v5294 = vand.u32 %v3483, 4294901760
    %v5295 = vsub.f32 %v3483, %v5294
    %5296 = vmatpush.msra.mxu0 %v5295
    %v5297 = vand.u32 %v3482, 4294901760
    %v5298 = vsub.f32 %v3482, %v5297
    %5299 = vmatpush.msra.mxu0 %v5298
    %v5300 = vand.u32 %v5212, 4294901760
    %v5301 = vsub.f32 %v5212, %v5300
    %5302 = vmatmul.f32.gmra.mxu0 %v5301
    %v5303 = vpop.f32.mrf.mxu0
    %v5304 = vadd.f32 %v5276, %v5303
    %5305 = vdwg.mxu0
    %5306 = vmatpush.msra.mxu0 0.0
    %5307 = vmatpush.msra.mxu0 0.0
    %5308 = vmatpush.msra.mxu0 0.0
    %5309 = vmatpush.msra.mxu0 0.0
    %5310 = vmatpush.msra.mxu0 0.0
    %5311 = vmatpush.msra.mxu0 0.0
    %5312 = vmatpush.msra.mxu0 0.0
    %5313 = vmatpush.msra.mxu0 0.0
    %5314 = vmatpush.msra.mxu0 0.0
    %5315 = vmatpush.msra.mxu0 0.0
    %5316 = vmatpush.msra.mxu0 0.0
    %5317 = vmatpush.msra.mxu0 0.0
    %5318 = vmatpush.msra.mxu0 0.0
    %v5319 = vand.u32 %v3910, 4294901760
    %5320 = vmatpush.msra.mxu0 %v5319
    %v5321 = vand.u32 %v3483, 4294901760
    %5322 = vmatpush.msra.mxu0 %v5321
    %v5323 = vand.u32 %v3482, 4294901760
    %5324 = vmatpush.msra.mxu0 %v5323
    %v5325 = vand.u32 %v5212, 4294901760
    %v5326 = vsub.f32 %v5212, %v5325
    %v5327 = vand.u32 %v5326, 4294901760
    %5328 = vmatmul.f32.gmra.mxu0 %v5327
    %v5329 = vpop.f32.mrf.mxu0
    %v5330 = vadd.f32 %v5304, %v5329
    %5331 = vdwg.mxu0
    %5332 = vmatpush.msra.mxu0 0.0
    %5333 = vmatpush.msra.mxu0 0.0
    %5334 = vmatpush.msra.mxu0 0.0
    %5335 = vmatpush.msra.mxu0 0.0
    %5336 = vmatpush.msra.mxu0 0.0
    %5337 = vmatpush.msra.mxu0 0.0
    %5338 = vmatpush.msra.mxu0 0.0
    %5339 = vmatpush.msra.mxu0 0.0
    %5340 = vmatpush.msra.mxu0 0.0
    %5341 = vmatpush.msra.mxu0 0.0
    %5342 = vmatpush.msra.mxu0 0.0
    %5343 = vmatpush.msra.mxu0 0.0
    %5344 = vmatpush.msra.mxu0 0.0
    %v5345 = vand.u32 %v3910, 4294901760
    %v5346 = vsub.f32 %v3910, %v5345
    %v5347 = vand.u32 %v5346, 4294901760
    %5348 = vmatpush.msra.mxu0 %v5347
    %v5349 = vand.u32 %v3483, 4294901760
    %v5350 = vsub.f32 %v3483, %v5349
    %v5351 = vand.u32 %v5350, 4294901760
    %5352 = vmatpush.msra.mxu0 %v5351
    %v5353 = vand.u32 %v3482, 4294901760
    %v5354 = vsub.f32 %v3482, %v5353
    %v5355 = vand.u32 %v5354, 4294901760
    %5356 = vmatpush.msra.mxu0 %v5355
    %v5357 = vand.u32 %v5212, 4294901760
    %5358 = vmatmul.f32.gmra.mxu0 %v5357
    %v5359 = vpop.f32.mrf.mxu0
    %v5360 = vadd.f32 %v5330, %v5359
    %5361 = vdwg.mxu0
    %5362 = vmatpush.msra.mxu0 0.0
    %5363 = vmatpush.msra.mxu0 0.0
    %5364 = vmatpush.msra.mxu0 0.0
    %5365 = vmatpush.msra.mxu0 0.0
    %5366 = vmatpush.msra.mxu0 0.0
    %5367 = vmatpush.msra.mxu0 0.0
    %5368 = vmatpush.msra.mxu0 0.0
    %5369 = vmatpush.msra.mxu0 0.0
    %5370 = vmatpush.msra.mxu0 0.0
    %5371 = vmatpush.msra.mxu0 0.0
    %5372 = vmatpush.msra.mxu0 0.0
    %5373 = vmatpush.msra.mxu0 0.0
    %5374 = vmatpush.msra.mxu0 0.0
    %v5375 = vand.u32 %v3910, 4294901760
    %5376 = vmatpush.msra.mxu0 %v5375
    %v5377 = vand.u32 %v3483, 4294901760
    %5378 = vmatpush.msra.mxu0 %v5377
    %v5379 = vand.u32 %v3482, 4294901760
    %5380 = vmatpush.msra.mxu0 %v5379
    %v5381 = vand.u32 %v5212, 4294901760
    %5382 = vmatmul.f32.gmra.mxu0 %v5381
    %v5383 = vpop.f32.mrf.mxu0
    %v5384 = vadd.f32 %v5360, %v5383
    %5385 = vdwg.mxu0
    %v5386 = vxor.u32 %v5384, 2147483648
    %v5387 = vmul.f32 %v5386, 1.442695
    %v5388 = vpow.pop %v5387
    %v5389 = vadd.f32 %v5388, 1.0
    %v5390 = vrcp.pop %v5389
    %v5391 = vmul.f32 %v5389, %v5390
    %v5392 = vsub.f32 1.0, %v5391
    %v5393 = vmul.f32 %v5390, %v5392
    %v5394 = vadd.f32 %v5390, %v5393
    %vm5395 = vweird.f32 %v5389
    %vm5396 = vweird.f32 %v5390
    %vm5397 = vmor %vm5395, %vm5396
    %v5398 = vsel %vm5397, %v5390, %v5394
    %v5399 = vand.u32 2147483647, %v5389
    %vm5400 = vcmp.eq.f32.partialorder %v5399, 8.507059e+37
    %v5401 = vand.u32 %v5389, 2147483648
    %v5402 = vor.u32 1.1754944e-38, %v5401
    %v5403 = vsel %vm5400, %v5402, %v5398
    %v5404 = vmul.f32 1.0, %v5403
    %v5405 = vtanh.pop %v5384
    %v5406 = vmul.f32 %v5404, %v4982
    %5408 = vrot.lane.b32.xlu0 %v5405, 98
    %v5409 = vpop.permute.xlu0 %5408
    %v5411 = vmul.f32 %v5404, %v5409
    %5413 = vrot.lane.b32.xlu0 %v5411, 10
    %v5414 = vpop.permute.xlu0 %5413
    %v5416 = vadd.f32 %v5406, %v5414
    %v5417 = vtanh.pop %v5416
    %5419 = vrot.lane.b32.xlu0 %v5417, 10
    %v5420 = vpop.permute.xlu0 %5419
    %v5422 = vmul.f32 %v5404, %v5420
    %5424 = vrot.lane.b32.xlu0 %v5422, 108
    %v5425 = vpop.permute.xlu0 %5424
    %v5427 = vsel %vm3682, %v5425, %v5208
    %v5429 = vsel %vm3685, %v5427, 0
    %5431 = vmatpush.msra.mxu0 0.0
    %5432 = vmatpush.msra.mxu0 0.0
    %5433 = vmatpush.msra.mxu0 0.0
    %5434 = vmatpush.msra.mxu0 0.0
    %5435 = vmatpush.msra.mxu0 0.0
    %5436 = vmatpush.msra.mxu0 0.0
    %5437 = vmatpush.msra.mxu0 0.0
    %5438 = vmatpush.msra.mxu0 0.0
    %5439 = vmatpush.msra.mxu0 0.0
    %5440 = vmatpush.msra.mxu0 0.0
    %5441 = vmatpush.msra.mxu0 0.0
    %5442 = vmatpush.msra.mxu0 0.0
    %5443 = vmatpush.msra.mxu0 0.0
    %v5444 = vand.u32 %v3690, 4294901760
    %5445 = vmatpush.msra.mxu0 %v5444
    %v5446 = vand.u32 %v3487, 4294901760
    %5447 = vmatpush.msra.mxu0 %v5446
    %v5448 = vand.u32 %v3486, 4294901760
    %5449 = vmatpush.msra.mxu0 %v5448
    %v5450 = vand.u32 %v5429, 4294901760
    %v5451 = vsub.f32 %v5429, %v5450
    %v5452 = vand.u32 %v5451, 4294901760
    %v5453 = vsub.f32 %v5451, %v5452
    %v5454 = vand.u32 %v5453, 4294901760
    %5455 = vmatmul.f32.gmra.mxu0 %v5454
    %v5456 = vpop.f32.mrf.mxu0
    %v5457 = vadd.f32 %v3684, %v5456
    %5458 = vdwg.mxu0
    %5459 = vmatpush.msra.mxu0 0.0
    %5460 = vmatpush.msra.mxu0 0.0
    %5461 = vmatpush.msra.mxu0 0.0
    %5462 = vmatpush.msra.mxu0 0.0
    %5463 = vmatpush.msra.mxu0 0.0
    %5464 = vmatpush.msra.mxu0 0.0
    %5465 = vmatpush.msra.mxu0 0.0
    %5466 = vmatpush.msra.mxu0 0.0
    %5467 = vmatpush.msra.mxu0 0.0
    %5468 = vmatpush.msra.mxu0 0.0
    %5469 = vmatpush.msra.mxu0 0.0
    %5470 = vmatpush.msra.mxu0 0.0
    %5471 = vmatpush.msra.mxu0 0.0
    %v5472 = vand.u32 %v3690, 4294901760
    %v5473 = vsub.f32 %v3690, %v5472
    %v5474 = vand.u32 %v5473, 4294901760
    %v5475 = vsub.f32 %v5473, %v5474
    %v5476 = vand.u32 %v5475, 4294901760
    %5477 = vmatpush.msra.mxu0 %v5476
    %v5478 = vand.u32 %v3487, 4294901760
    %v5479 = vsub.f32 %v3487, %v5478
    %v5480 = vand.u32 %v5479, 4294901760
    %v5481 = vsub.f32 %v5479, %v5480
    %v5482 = vand.u32 %v5481, 4294901760
    %5483 = vmatpush.msra.mxu0 %v5482
    %v5484 = vand.u32 %v3486, 4294901760
    %v5485 = vsub.f32 %v3486, %v5484
    %v5486 = vand.u32 %v5485, 4294901760
    %v5487 = vsub.f32 %v5485, %v5486
    %v5488 = vand.u32 %v5487, 4294901760
    %5489 = vmatpush.msra.mxu0 %v5488
    %v5490 = vand.u32 %v5429, 4294901760
    %5491 = vmatmul.f32.gmra.mxu0 %v5490
    %v5492 = vpop.f32.mrf.mxu0
    %v5493 = vadd.f32 %v5457, %v5492
    %5494 = vdwg.mxu0
    %5495 = vmatpush.msra.mxu0 0.0
    %5496 = vmatpush.msra.mxu0 0.0
    %5497 = vmatpush.msra.mxu0 0.0
    %5498 = vmatpush.msra.mxu0 0.0
    %5499 = vmatpush.msra.mxu0 0.0
    %5500 = vmatpush.msra.mxu0 0.0
    %5501 = vmatpush.msra.mxu0 0.0
    %5502 = vmatpush.msra.mxu0 0.0
    %5503 = vmatpush.msra.mxu0 0.0
    %5504 = vmatpush.msra.mxu0 0.0
    %5505 = vmatpush.msra.mxu0 0.0
    %5506 = vmatpush.msra.mxu0 0.0
    %5507 = vmatpush.msra.mxu0 0.0
    %v5508 = vand.u32 %v3690, 4294901760
    %v5509 = vsub.f32 %v3690, %v5508
    %5510 = vmatpush.msra.mxu0 %v5509
    %v5511 = vand.u32 %v3487, 4294901760
    %v5512 = vsub.f32 %v3487, %v5511
    %5513 = vmatpush.msra.mxu0 %v5512
    %v5514 = vand.u32 %v3486, 4294901760
    %v5515 = vsub.f32 %v3486, %v5514
    %5516 = vmatpush.msra.mxu0 %v5515
    %v5517 = vand.u32 %v5429, 4294901760
    %v5518 = vsub.f32 %v5429, %v5517
    %5519 = vmatmul.f32.gmra.mxu0 %v5518
    %v5520 = vpop.f32.mrf.mxu0
    %v5521 = vadd.f32 %v5493, %v5520
    %5522 = vdwg.mxu0
    %5523 = vmatpush.msra.mxu0 0.0
    %5524 = vmatpush.msra.mxu0 0.0
    %5525 = vmatpush.msra.mxu0 0.0
    %5526 = vmatpush.msra.mxu0 0.0
    %5527 = vmatpush.msra.mxu0 0.0
    %5528 = vmatpush.msra.mxu0 0.0
    %5529 = vmatpush.msra.mxu0 0.0
    %5530 = vmatpush.msra.mxu0 0.0
    %5531 = vmatpush.msra.mxu0 0.0
    %5532 = vmatpush.msra.mxu0 0.0
    %5533 = vmatpush.msra.mxu0 0.0
    %5534 = vmatpush.msra.mxu0 0.0
    %5535 = vmatpush.msra.mxu0 0.0
    %v5536 = vand.u32 %v3690, 4294901760
    %5537 = vmatpush.msra.mxu0 %v5536
    %v5538 = vand.u32 %v3487, 4294901760
    %5539 = vmatpush.msra.mxu0 %v5538
    %v5540 = vand.u32 %v3486, 4294901760
    %5541 = vmatpush.msra.mxu0 %v5540
    %v5542 = vand.u32 %v5429, 4294901760
    %v5543 = vsub.f32 %v5429, %v5542
    %v5544 = vand.u32 %v5543, 4294901760
    %5545 = vmatmul.f32.gmra.mxu0 %v5544
    %v5546 = vpop.f32.mrf.mxu0
    %v5547 = vadd.f32 %v5521, %v5546
    %5548 = vdwg.mxu0
    %5549 = vmatpush.msra.mxu0 0.0
    %5550 = vmatpush.msra.mxu0 0.0
    %5551 = vmatpush.msra.mxu0 0.0
    %5552 = vmatpush.msra.mxu0 0.0
    %5553 = vmatpush.msra.mxu0 0.0
    %5554 = vmatpush.msra.mxu0 0.0
    %5555 = vmatpush.msra.mxu0 0.0
    %5556 = vmatpush.msra.mxu0 0.0
    %5557 = vmatpush.msra.mxu0 0.0
    %5558 = vmatpush.msra.mxu0 0.0
    %5559 = vmatpush.msra.mxu0 0.0
    %5560 = vmatpush.msra.mxu0 0.0
    %5561 = vmatpush.msra.mxu0 0.0
    %v5562 = vand.u32 %v3690, 4294901760
    %v5563 = vsub.f32 %v3690, %v5562
    %v5564 = vand.u32 %v5563, 4294901760
    %5565 = vmatpush.msra.mxu0 %v5564
    %v5566 = vand.u32 %v3487, 4294901760
    %v5567 = vsub.f32 %v3487, %v5566
    %v5568 = vand.u32 %v5567, 4294901760
    %5569 = vmatpush.msra.mxu0 %v5568
    %v5570 = vand.u32 %v3486, 4294901760
    %v5571 = vsub.f32 %v3486, %v5570
    %v5572 = vand.u32 %v5571, 4294901760
    %5573 = vmatpush.msra.mxu0 %v5572
    %v5574 = vand.u32 %v5429, 4294901760
    %5575 = vmatmul.f32.gmra.mxu0 %v5574
    %v5576 = vpop.f32.mrf.mxu0
    %v5577 = vadd.f32 %v5547, %v5576
    %5578 = vdwg.mxu0
    %5579 = vmatpush.msra.mxu0 0.0
    %5580 = vmatpush.msra.mxu0 0.0
    %5581 = vmatpush.msra.mxu0 0.0
    %5582 = vmatpush.msra.mxu0 0.0
    %5583 = vmatpush.msra.mxu0 0.0
    %5584 = vmatpush.msra.mxu0 0.0
    %5585 = vmatpush.msra.mxu0 0.0
    %5586 = vmatpush.msra.mxu0 0.0
    %5587 = vmatpush.msra.mxu0 0.0
    %5588 = vmatpush.msra.mxu0 0.0
    %5589 = vmatpush.msra.mxu0 0.0
    %5590 = vmatpush.msra.mxu0 0.0
    %5591 = vmatpush.msra.mxu0 0.0
    %v5592 = vand.u32 %v3690, 4294901760
    %5593 = vmatpush.msra.mxu0 %v5592
    %v5594 = vand.u32 %v3487, 4294901760
    %5595 = vmatpush.msra.mxu0 %v5594
    %v5596 = vand.u32 %v3486, 4294901760
    %5597 = vmatpush.msra.mxu0 %v5596
    %v5598 = vand.u32 %v5429, 4294901760
    %5599 = vmatmul.f32.gmra.mxu0 %v5598
    %v5600 = vpop.f32.mrf.mxu0
    %v5601 = vadd.f32 %v5577, %v5600
    %5602 = vdwg.mxu0
    %v5603 = vxor.u32 %v5601, 2147483648
    %v5604 = vmul.f32 %v5603, 1.442695
    %v5605 = vpow.pop %v5604
    %v5606 = vadd.f32 %v5605, 1.0
    %v5607 = vrcp.pop %v5606
    %v5608 = vmul.f32 %v5606, %v5607
    %v5609 = vsub.f32 1.0, %v5608
    %v5610 = vmul.f32 %v5607, %v5609
    %v5611 = vadd.f32 %v5607, %v5610
    %vm5612 = vweird.f32 %v5606
    %vm5613 = vweird.f32 %v5607
    %vm5614 = vmor %vm5612, %vm5613
    %v5615 = vsel %vm5614, %v5607, %v5611
    %v5616 = vand.u32 2147483647, %v5606
    %vm5617 = vcmp.eq.f32.partialorder %v5616, 8.507059e+37
    %v5618 = vand.u32 %v5606, 2147483648
    %v5619 = vor.u32 1.1754944e-38, %v5618
    %v5620 = vsel %vm5617, %v5619, %v5615
    %v5621 = vmul.f32 1.0, %v5620
    %v5622 = vtanh.pop %v5601
    %v5623 = vmul.f32 %v5621, %v5199
    %5625 = vrot.lane.b32.xlu0 %v5622, 98
    %v5626 = vpop.permute.xlu0 %5625
    %v5628 = vmul.f32 %v5621, %v5626
    %5630 = vrot.lane.b32.xlu0 %v5628, 10
    %v5631 = vpop.permute.xlu0 %5630
    %v5633 = vadd.f32 %v5623, %v5631
    %v5634 = vtanh.pop %v5633
    %5636 = vrot.lane.b32.xlu0 %v5634, 10
    %v5637 = vpop.permute.xlu0 %5636
    %v5639 = vmul.f32 %v5621, %v5637
    %5641 = vrot.lane.b32.xlu0 %v5639, 118
    %v5642 = vpop.permute.xlu0 %5641
    %v5644 = vsel %vm3682, %v5425, %v5642
    %v5646 = vsel %vm3685, %v5644, 0
    %5648 = vmatpush.msra.mxu0 0.0
    %5649 = vmatpush.msra.mxu0 0.0
    %5650 = vmatpush.msra.mxu0 0.0
    %5651 = vmatpush.msra.mxu0 0.0
    %5652 = vmatpush.msra.mxu0 0.0
    %5653 = vmatpush.msra.mxu0 0.0
    %5654 = vmatpush.msra.mxu0 0.0
    %5655 = vmatpush.msra.mxu0 0.0
    %5656 = vmatpush.msra.mxu0 0.0
    %5657 = vmatpush.msra.mxu0 0.0
    %5658 = vmatpush.msra.mxu0 0.0
    %5659 = vmatpush.msra.mxu0 0.0
    %5660 = vmatpush.msra.mxu0 0.0
    %v5661 = vand.u32 %v3910, 4294901760
    %5662 = vmatpush.msra.mxu0 %v5661
    %v5663 = vand.u32 %v3483, 4294901760
    %5664 = vmatpush.msra.mxu0 %v5663
    %v5665 = vand.u32 %v3482, 4294901760
    %5666 = vmatpush.msra.mxu0 %v5665
    %v5667 = vand.u32 %v5646, 4294901760
    %v5668 = vsub.f32 %v5646, %v5667
    %v5669 = vand.u32 %v5668, 4294901760
    %v5670 = vsub.f32 %v5668, %v5669
    %v5671 = vand.u32 %v5670, 4294901760
    %5672 = vmatmul.f32.gmra.mxu0 %v5671
    %v5673 = vpop.f32.mrf.mxu0
    %v5674 = vadd.f32 %v3491, %v5673
    %5675 = vdwg.mxu0
    %5676 = vmatpush.msra.mxu0 0.0
    %5677 = vmatpush.msra.mxu0 0.0
    %5678 = vmatpush.msra.mxu0 0.0
    %5679 = vmatpush.msra.mxu0 0.0
    %5680 = vmatpush.msra.mxu0 0.0
    %5681 = vmatpush.msra.mxu0 0.0
    %5682 = vmatpush.msra.mxu0 0.0
    %5683 = vmatpush.msra.mxu0 0.0
    %5684 = vmatpush.msra.mxu0 0.0
    %5685 = vmatpush.msra.mxu0 0.0
    %5686 = vmatpush.msra.mxu0 0.0
    %5687 = vmatpush.msra.mxu0 0.0
    %5688 = vmatpush.msra.mxu0 0.0
    %v5689 = vand.u32 %v3910, 4294901760
    %v5690 = vsub.f32 %v3910, %v5689
    %v5691 = vand.u32 %v5690, 4294901760
    %v5692 = vsub.f32 %v5690, %v5691
    %v5693 = vand.u32 %v5692, 4294901760
    %5694 = vmatpush.msra.mxu0 %v5693
    %v5695 = vand.u32 %v3483, 4294901760
    %v5696 = vsub.f32 %v3483, %v5695
    %v5697 = vand.u32 %v5696, 4294901760
    %v5698 = vsub.f32 %v5696, %v5697
    %v5699 = vand.u32 %v5698, 4294901760
    %5700 = vmatpush.msra.mxu0 %v5699
    %v5701 = vand.u32 %v3482, 4294901760
    %v5702 = vsub.f32 %v3482, %v5701
    %v5703 = vand.u32 %v5702, 4294901760
    %v5704 = vsub.f32 %v5702, %v5703
    %v5705 = vand.u32 %v5704, 4294901760
    %5706 = vmatpush.msra.mxu0 %v5705
    %v5707 = vand.u32 %v5646, 4294901760
    %5708 = vmatmul.f32.gmra.mxu0 %v5707
    %v5709 = vpop.f32.mrf.mxu0
    %v5710 = vadd.f32 %v5674, %v5709
    %5711 = vdwg.mxu0
    %5712 = vmatpush.msra.mxu0 0.0
    %5713 = vmatpush.msra.mxu0 0.0
    %5714 = vmatpush.msra.mxu0 0.0
    %5715 = vmatpush.msra.mxu0 0.0
    %5716 = vmatpush.msra.mxu0 0.0
    %5717 = vmatpush.msra.mxu0 0.0
    %5718 = vmatpush.msra.mxu0 0.0
    %5719 = vmatpush.msra.mxu0 0.0
    %5720 = vmatpush.msra.mxu0 0.0
    %5721 = vmatpush.msra.mxu0 0.0
    %5722 = vmatpush.msra.mxu0 0.0
    %5723 = vmatpush.msra.mxu0 0.0
    %5724 = vmatpush.msra.mxu0 0.0
    %v5725 = vand.u32 %v3910, 4294901760
    %v5726 = vsub.f32 %v3910, %v5725
    %5727 = vmatpush.msra.mxu0 %v5726
    %v5728 = vand.u32 %v3483, 4294901760
    %v5729 = vsub.f32 %v3483, %v5728
    %5730 = vmatpush.msra.mxu0 %v5729
    %v5731 = vand.u32 %v3482, 4294901760
    %v5732 = vsub.f32 %v3482, %v5731
    %5733 = vmatpush.msra.mxu0 %v5732
    %v5734 = vand.u32 %v5646, 4294901760
    %v5735 = vsub.f32 %v5646, %v5734
    %5736 = vmatmul.f32.gmra.mxu0 %v5735
    %v5737 = vpop.f32.mrf.mxu0
    %v5738 = vadd.f32 %v5710, %v5737
    %5739 = vdwg.mxu0
    %5740 = vmatpush.msra.mxu0 0.0
    %5741 = vmatpush.msra.mxu0 0.0
    %5742 = vmatpush.msra.mxu0 0.0
    %5743 = vmatpush.msra.mxu0 0.0
    %5744 = vmatpush.msra.mxu0 0.0
    %5745 = vmatpush.msra.mxu0 0.0
    %5746 = vmatpush.msra.mxu0 0.0
    %5747 = vmatpush.msra.mxu0 0.0
    %5748 = vmatpush.msra.mxu0 0.0
    %5749 = vmatpush.msra.mxu0 0.0
    %5750 = vmatpush.msra.mxu0 0.0
    %5751 = vmatpush.msra.mxu0 0.0
    %5752 = vmatpush.msra.mxu0 0.0
    %v5753 = vand.u32 %v3910, 4294901760
    %5754 = vmatpush.msra.mxu0 %v5753
    %v5755 = vand.u32 %v3483, 4294901760
    %5756 = vmatpush.msra.mxu0 %v5755
    %v5757 = vand.u32 %v3482, 4294901760
    %5758 = vmatpush.msra.mxu0 %v5757
    %v5759 = vand.u32 %v5646, 4294901760
    %v5760 = vsub.f32 %v5646, %v5759
    %v5761 = vand.u32 %v5760, 4294901760
    %5762 = vmatmul.f32.gmra.mxu0 %v5761
    %v5763 = vpop.f32.mrf.mxu0
    %v5764 = vadd.f32 %v5738, %v5763
    %5765 = vdwg.mxu0
    %5766 = vmatpush.msra.mxu0 0.0
    %5767 = vmatpush.msra.mxu0 0.0
    %5768 = vmatpush.msra.mxu0 0.0
    %5769 = vmatpush.msra.mxu0 0.0
    %5770 = vmatpush.msra.mxu0 0.0
    %5771 = vmatpush.msra.mxu0 0.0
    %5772 = vmatpush.msra.mxu0 0.0
    %5773 = vmatpush.msra.mxu0 0.0
    %5774 = vmatpush.msra.mxu0 0.0
    %5775 = vmatpush.msra.mxu0 0.0
    %5776 = vmatpush.msra.mxu0 0.0
    %5777 = vmatpush.msra.mxu0 0.0
    %5778 = vmatpush.msra.mxu0 0.0
    %v5779 = vand.u32 %v3910, 4294901760
    %v5780 = vsub.f32 %v3910, %v5779
    %v5781 = vand.u32 %v5780, 4294901760
    %5782 = vmatpush.msra.mxu0 %v5781
    %v5783 = vand.u32 %v3483, 4294901760
    %v5784 = vsub.f32 %v3483, %v5783
    %v5785 = vand.u32 %v5784, 4294901760
    %5786 = vmatpush.msra.mxu0 %v5785
    %v5787 = vand.u32 %v3482, 4294901760
    %v5788 = vsub.f32 %v3482, %v5787
    %v5789 = vand.u32 %v5788, 4294901760
    %5790 = vmatpush.msra.mxu0 %v5789
    %v5791 = vand.u32 %v5646, 4294901760
    %5792 = vmatmul.f32.gmra.mxu0 %v5791
    %v5793 = vpop.f32.mrf.mxu0
    %v5794 = vadd.f32 %v5764, %v5793
    %5795 = vdwg.mxu0
    %5796 = vmatpush.msra.mxu0 0.0
    %5797 = vmatpush.msra.mxu0 0.0
    %5798 = vmatpush.msra.mxu0 0.0
    %5799 = vmatpush.msra.mxu0 0.0
    %5800 = vmatpush.msra.mxu0 0.0
    %5801 = vmatpush.msra.mxu0 0.0
    %5802 = vmatpush.msra.mxu0 0.0
    %5803 = vmatpush.msra.mxu0 0.0
    %5804 = vmatpush.msra.mxu0 0.0
    %5805 = vmatpush.msra.mxu0 0.0
    %5806 = vmatpush.msra.mxu0 0.0
    %5807 = vmatpush.msra.mxu0 0.0
    %5808 = vmatpush.msra.mxu0 0.0
    %v5809 = vand.u32 %v3910, 4294901760
    %5810 = vmatpush.msra.mxu0 %v5809
    %v5811 = vand.u32 %v3483, 4294901760
    %5812 = vmatpush.msra.mxu0 %v5811
    %v5813 = vand.u32 %v3482, 4294901760
    %5814 = vmatpush.msra.mxu0 %v5813
    %v5815 = vand.u32 %v5646, 4294901760
    %5816 = vmatmul.f32.gmra.mxu0 %v5815
    %v5817 = vpop.f32.mrf.mxu0
    %v5818 = vadd.f32 %v5794, %v5817
    %5819 = vdwg.mxu0
    %v5820 = vxor.u32 %v5818, 2147483648
    %v5821 = vmul.f32 %v5820, 1.442695
    %v5822 = vpow.pop %v5821
    %v5823 = vadd.f32 %v5822, 1.0
    %v5824 = vrcp.pop %v5823
    %v5825 = vmul.f32 %v5823, %v5824
    %v5826 = vsub.f32 1.0, %v5825
    %v5827 = vmul.f32 %v5824, %v5826
    %v5828 = vadd.f32 %v5824, %v5827
    %vm5829 = vweird.f32 %v5823
    %vm5830 = vweird.f32 %v5824
    %vm5831 = vmor %vm5829, %vm5830
    %v5832 = vsel %vm5831, %v5824, %v5828
    %v5833 = vand.u32 2147483647, %v5823
    %vm5834 = vcmp.eq.f32.partialorder %v5833, 8.507059e+37
    %v5835 = vand.u32 %v5823, 2147483648
    %v5836 = vor.u32 1.1754944e-38, %v5835
    %v5837 = vsel %vm5834, %v5836, %v5832
    %v5838 = vmul.f32 1.0, %v5837
    %v5839 = vtanh.pop %v5818
    %v5840 = vmul.f32 %v5838, %v5416
    %5842 = vrot.lane.b32.xlu0 %v5839, 98
    %v5843 = vpop.permute.xlu0 %5842
    %v5845 = vmul.f32 %v5838, %v5843
    %5847 = vrot.lane.b32.xlu0 %v5845, 10
    %v5848 = vpop.permute.xlu0 %5847
    %v5850 = vadd.f32 %v5840, %v5848
    %v5851 = vtanh.pop %v5850
    %5853 = vrot.lane.b32.xlu0 %v5851, 10
    %v5854 = vpop.permute.xlu0 %5853
    %v5856 = vmul.f32 %v5838, %v5854
    %5858 = vrot.lane.b32.xlu0 %v5856, 108
    %v5859 = vpop.permute.xlu0 %5858
    %v5861 = vsel %vm3682, %v5859, %v5642
    %v5863 = vsel %vm3685, %v5861, 0
    %5865 = vmatpush.msra.mxu0 0.0
    %5866 = vmatpush.msra.mxu0 0.0
    %5867 = vmatpush.msra.mxu0 0.0
    %5868 = vmatpush.msra.mxu0 0.0
    %5869 = vmatpush.msra.mxu0 0.0
    %5870 = vmatpush.msra.mxu0 0.0
    %5871 = vmatpush.msra.mxu0 0.0
    %5872 = vmatpush.msra.mxu0 0.0
    %5873 = vmatpush.msra.mxu0 0.0
    %5874 = vmatpush.msra.mxu0 0.0
    %5875 = vmatpush.msra.mxu0 0.0
    %5876 = vmatpush.msra.mxu0 0.0
    %5877 = vmatpush.msra.mxu0 0.0
    %v5878 = vand.u32 %v3690, 4294901760
    %5879 = vmatpush.msra.mxu0 %v5878
    %v5880 = vand.u32 %v3487, 4294901760
    %5881 = vmatpush.msra.mxu0 %v5880
    %v5882 = vand.u32 %v3486, 4294901760
    %5883 = vmatpush.msra.mxu0 %v5882
    %v5884 = vand.u32 %v5863, 4294901760
    %v5885 = vsub.f32 %v5863, %v5884
    %v5886 = vand.u32 %v5885, 4294901760
    %v5887 = vsub.f32 %v5885, %v5886
    %v5888 = vand.u32 %v5887, 4294901760
    %5889 = vmatmul.f32.gmra.mxu0 %v5888
    %v5890 = vpop.f32.mrf.mxu0
    %v5891 = vadd.f32 %v3684, %v5890
    %5892 = vdwg.mxu0
    %5893 = vmatpush.msra.mxu0 0.0
    %5894 = vmatpush.msra.mxu0 0.0
    %5895 = vmatpush.msra.mxu0 0.0
    %5896 = vmatpush.msra.mxu0 0.0
    %5897 = vmatpush.msra.mxu0 0.0
    %5898 = vmatpush.msra.mxu0 0.0
    %5899 = vmatpush.msra.mxu0 0.0
    %5900 = vmatpush.msra.mxu0 0.0
    %5901 = vmatpush.msra.mxu0 0.0
    %5902 = vmatpush.msra.mxu0 0.0
    %5903 = vmatpush.msra.mxu0 0.0
    %5904 = vmatpush.msra.mxu0 0.0
    %5905 = vmatpush.msra.mxu0 0.0
    %v5906 = vand.u32 %v3690, 4294901760
    %v5907 = vsub.f32 %v3690, %v5906
    %v5908 = vand.u32 %v5907, 4294901760
    %v5909 = vsub.f32 %v5907, %v5908
    %v5910 = vand.u32 %v5909, 4294901760
    %5911 = vmatpush.msra.mxu0 %v5910
    %v5912 = vand.u32 %v3487, 4294901760
    %v5913 = vsub.f32 %v3487, %v5912
    %v5914 = vand.u32 %v5913, 4294901760
    %v5915 = vsub.f32 %v5913, %v5914
    %v5916 = vand.u32 %v5915, 4294901760
    %5917 = vmatpush.msra.mxu0 %v5916
    %v5918 = vand.u32 %v3486, 4294901760
    %v5919 = vsub.f32 %v3486, %v5918
    %v5920 = vand.u32 %v5919, 4294901760
    %v5921 = vsub.f32 %v5919, %v5920
    %v5922 = vand.u32 %v5921, 4294901760
    %5923 = vmatpush.msra.mxu0 %v5922
    %v5924 = vand.u32 %v5863, 4294901760
    %5925 = vmatmul.f32.gmra.mxu0 %v5924
    %v5926 = vpop.f32.mrf.mxu0
    %v5927 = vadd.f32 %v5891, %v5926
    %5928 = vdwg.mxu0
    %5929 = vmatpush.msra.mxu0 0.0
    %5930 = vmatpush.msra.mxu0 0.0
    %5931 = vmatpush.msra.mxu0 0.0
    %5932 = vmatpush.msra.mxu0 0.0
    %5933 = vmatpush.msra.mxu0 0.0
    %5934 = vmatpush.msra.mxu0 0.0
    %5935 = vmatpush.msra.mxu0 0.0
    %5936 = vmatpush.msra.mxu0 0.0
    %5937 = vmatpush.msra.mxu0 0.0
    %5938 = vmatpush.msra.mxu0 0.0
    %5939 = vmatpush.msra.mxu0 0.0
    %5940 = vmatpush.msra.mxu0 0.0
    %5941 = vmatpush.msra.mxu0 0.0
    %v5942 = vand.u32 %v3690, 4294901760
    %v5943 = vsub.f32 %v3690, %v5942
    %5944 = vmatpush.msra.mxu0 %v5943
    %v5945 = vand.u32 %v3487, 4294901760
    %v5946 = vsub.f32 %v3487, %v5945
    %5947 = vmatpush.msra.mxu0 %v5946
    %v5948 = vand.u32 %v3486, 4294901760
    %v5949 = vsub.f32 %v3486, %v5948
    %5950 = vmatpush.msra.mxu0 %v5949
    %v5951 = vand.u32 %v5863, 4294901760
    %v5952 = vsub.f32 %v5863, %v5951
    %5953 = vmatmul.f32.gmra.mxu0 %v5952
    %v5954 = vpop.f32.mrf.mxu0
    %v5955 = vadd.f32 %v5927, %v5954
    %5956 = vdwg.mxu0
    %5957 = vmatpush.msra.mxu0 0.0
    %5958 = vmatpush.msra.mxu0 0.0
    %5959 = vmatpush.msra.mxu0 0.0
    %5960 = vmatpush.msra.mxu0 0.0
    %5961 = vmatpush.msra.mxu0 0.0
    %5962 = vmatpush.msra.mxu0 0.0
    %5963 = vmatpush.msra.mxu0 0.0
    %5964 = vmatpush.msra.mxu0 0.0
    %5965 = vmatpush.msra.mxu0 0.0
    %5966 = vmatpush.msra.mxu0 0.0
    %5967 = vmatpush.msra.mxu0 0.0
    %5968 = vmatpush.msra.mxu0 0.0
    %5969 = vmatpush.msra.mxu0 0.0
    %v5970 = vand.u32 %v3690, 4294901760
    %5971 = vmatpush.msra.mxu0 %v5970
    %v5972 = vand.u32 %v3487, 4294901760
    %5973 = vmatpush.msra.mxu0 %v5972
    %v5974 = vand.u32 %v3486, 4294901760
    %5975 = vmatpush.msra.mxu0 %v5974
    %v5976 = vand.u32 %v5863, 4294901760
    %v5977 = vsub.f32 %v5863, %v5976
    %v5978 = vand.u32 %v5977, 4294901760
    %5979 = vmatmul.f32.gmra.mxu0 %v5978
    %v5980 = vpop.f32.mrf.mxu0
    %v5981 = vadd.f32 %v5955, %v5980
    %5982 = vdwg.mxu0
    %5983 = vmatpush.msra.mxu0 0.0
    %5984 = vmatpush.msra.mxu0 0.0
    %5985 = vmatpush.msra.mxu0 0.0
    %5986 = vmatpush.msra.mxu0 0.0
    %5987 = vmatpush.msra.mxu0 0.0
    %5988 = vmatpush.msra.mxu0 0.0
    %5989 = vmatpush.msra.mxu0 0.0
    %5990 = vmatpush.msra.mxu0 0.0
    %5991 = vmatpush.msra.mxu0 0.0
    %5992 = vmatpush.msra.mxu0 0.0
    %5993 = vmatpush.msra.mxu0 0.0
    %5994 = vmatpush.msra.mxu0 0.0
    %5995 = vmatpush.msra.mxu0 0.0
    %v5996 = vand.u32 %v3690, 4294901760
    %v5997 = vsub.f32 %v3690, %v5996
    %v5998 = vand.u32 %v5997, 4294901760
    %5999 = vmatpush.msra.mxu0 %v5998
    %v6000 = vand.u32 %v3487, 4294901760
    %v6001 = vsub.f32 %v3487, %v6000
    %v6002 = vand.u32 %v6001, 4294901760
    %6003 = vmatpush.msra.mxu0 %v6002
    %v6004 = vand.u32 %v3486, 4294901760
    %v6005 = vsub.f32 %v3486, %v6004
    %v6006 = vand.u32 %v6005, 4294901760
    %6007 = vmatpush.msra.mxu0 %v6006
    %v6008 = vand.u32 %v5863, 4294901760
    %6009 = vmatmul.f32.gmra.mxu0 %v6008
    %v6010 = vpop.f32.mrf.mxu0
    %v6011 = vadd.f32 %v5981, %v6010
    %6012 = vdwg.mxu0
    %6013 = vmatpush.msra.mxu0 0.0
    %6014 = vmatpush.msra.mxu0 0.0
    %6015 = vmatpush.msra.mxu0 0.0
    %6016 = vmatpush.msra.mxu0 0.0
    %6017 = vmatpush.msra.mxu0 0.0
    %6018 = vmatpush.msra.mxu0 0.0
    %6019 = vmatpush.msra.mxu0 0.0
    %6020 = vmatpush.msra.mxu0 0.0
    %6021 = vmatpush.msra.mxu0 0.0
    %6022 = vmatpush.msra.mxu0 0.0
    %6023 = vmatpush.msra.mxu0 0.0
    %6024 = vmatpush.msra.mxu0 0.0
    %6025 = vmatpush.msra.mxu0 0.0
    %v6026 = vand.u32 %v3690, 4294901760
    %6027 = vmatpush.msra.mxu0 %v6026
    %v6028 = vand.u32 %v3487, 4294901760
    %6029 = vmatpush.msra.mxu0 %v6028
    %v6030 = vand.u32 %v3486, 4294901760
    %6031 = vmatpush.msra.mxu0 %v6030
    %v6032 = vand.u32 %v5863, 4294901760
    %6033 = vmatmul.f32.gmra.mxu0 %v6032
    %v6034 = vpop.f32.mrf.mxu0
    %v6035 = vadd.f32 %v6011, %v6034
    %6036 = vdwg.mxu0
    %v6037 = vxor.u32 %v6035, 2147483648
    %v6038 = vmul.f32 %v6037, 1.442695
    %v6039 = vpow.pop %v6038
    %v6040 = vadd.f32 %v6039, 1.0
    %v6041 = vrcp.pop %v6040
    %v6042 = vmul.f32 %v6040, %v6041
    %v6043 = vsub.f32 1.0, %v6042
    %v6044 = vmul.f32 %v6041, %v6043
    %v6045 = vadd.f32 %v6041, %v6044
    %vm6046 = vweird.f32 %v6040
    %vm6047 = vweird.f32 %v6041
    %vm6048 = vmor %vm6046, %vm6047
    %v6049 = vsel %vm6048, %v6041, %v6045
    %v6050 = vand.u32 2147483647, %v6040
    %vm6051 = vcmp.eq.f32.partialorder %v6050, 8.507059e+37
    %v6052 = vand.u32 %v6040, 2147483648
    %v6053 = vor.u32 1.1754944e-38, %v6052
    %v6054 = vsel %vm6051, %v6053, %v6049
    %v6055 = vmul.f32 1.0, %v6054
    %v6056 = vtanh.pop %v6035
    %v6057 = vmul.f32 %v6055, %v5633
    %6059 = vrot.lane.b32.xlu0 %v6056, 98
    %v6060 = vpop.permute.xlu0 %6059
    %v6062 = vmul.f32 %v6055, %v6060
    %6064 = vrot.lane.b32.xlu0 %v6062, 10
    %v6065 = vpop.permute.xlu0 %6064
    %v6067 = vadd.f32 %v6057, %v6065
    %v6068 = vtanh.pop %v6067
    %6070 = vrot.lane.b32.xlu0 %v6068, 10
    %v6071 = vpop.permute.xlu0 %6070
    %v6073 = vmul.f32 %v6055, %v6071
    %6075 = vrot.lane.b32.xlu0 %v6073, 118
    %v6076 = vpop.permute.xlu0 %6075
    %v6078 = vsel %vm3682, %v5859, %v6076
    %v6080 = vsel %vm3685, %v6078, 0
    %6082 = vmatpush.msra.mxu0 0.0
    %6083 = vmatpush.msra.mxu0 0.0
    %6084 = vmatpush.msra.mxu0 0.0
    %6085 = vmatpush.msra.mxu0 0.0
    %6086 = vmatpush.msra.mxu0 0.0
    %6087 = vmatpush.msra.mxu0 0.0
    %6088 = vmatpush.msra.mxu0 0.0
    %6089 = vmatpush.msra.mxu0 0.0
    %6090 = vmatpush.msra.mxu0 0.0
    %6091 = vmatpush.msra.mxu0 0.0
    %6092 = vmatpush.msra.mxu0 0.0
    %6093 = vmatpush.msra.mxu0 0.0
    %6094 = vmatpush.msra.mxu0 0.0
    %v6095 = vand.u32 %v3910, 4294901760
    %6096 = vmatpush.msra.mxu0 %v6095
    %v6097 = vand.u32 %v3483, 4294901760
    %6098 = vmatpush.msra.mxu0 %v6097
    %v6099 = vand.u32 %v3482, 4294901760
    %6100 = vmatpush.msra.mxu0 %v6099
    %v6101 = vand.u32 %v6080, 4294901760
    %v6102 = vsub.f32 %v6080, %v6101
    %v6103 = vand.u32 %v6102, 4294901760
    %v6104 = vsub.f32 %v6102, %v6103
    %v6105 = vand.u32 %v6104, 4294901760
    %6106 = vmatmul.f32.gmra.mxu0 %v6105
    %v6107 = vpop.f32.mrf.mxu0
    %v6108 = vadd.f32 %v3491, %v6107
    %6109 = vdwg.mxu0
    %6110 = vmatpush.msra.mxu0 0.0
    %6111 = vmatpush.msra.mxu0 0.0
    %6112 = vmatpush.msra.mxu0 0.0
    %6113 = vmatpush.msra.mxu0 0.0
    %6114 = vmatpush.msra.mxu0 0.0
    %6115 = vmatpush.msra.mxu0 0.0
    %6116 = vmatpush.msra.mxu0 0.0
    %6117 = vmatpush.msra.mxu0 0.0
    %6118 = vmatpush.msra.mxu0 0.0
    %6119 = vmatpush.msra.mxu0 0.0
    %6120 = vmatpush.msra.mxu0 0.0
    %6121 = vmatpush.msra.mxu0 0.0
    %6122 = vmatpush.msra.mxu0 0.0
    %v6123 = vand.u32 %v3910, 4294901760
    %v6124 = vsub.f32 %v3910, %v6123
    %v6125 = vand.u32 %v6124, 4294901760
    %v6126 = vsub.f32 %v6124, %v6125
    %v6127 = vand.u32 %v6126, 4294901760
    %6128 = vmatpush.msra.mxu0 %v6127
    %v6129 = vand.u32 %v3483, 4294901760
    %v6130 = vsub.f32 %v3483, %v6129
    %v6131 = vand.u32 %v6130, 4294901760
    %v6132 = vsub.f32 %v6130, %v6131
    %v6133 = vand.u32 %v6132, 4294901760
    %6134 = vmatpush.msra.mxu0 %v6133
    %v6135 = vand.u32 %v3482, 4294901760
    %v6136 = vsub.f32 %v3482, %v6135
    %v6137 = vand.u32 %v6136, 4294901760
    %v6138 = vsub.f32 %v6136, %v6137
    %v6139 = vand.u32 %v6138, 4294901760
    %6140 = vmatpush.msra.mxu0 %v6139
    %v6141 = vand.u32 %v6080, 4294901760
    %6142 = vmatmul.f32.gmra.mxu0 %v6141
    %v6143 = vpop.f32.mrf.mxu0
    %v6144 = vadd.f32 %v6108, %v6143
    %6145 = vdwg.mxu0
    %6146 = vmatpush.msra.mxu0 0.0
    %6147 = vmatpush.msra.mxu0 0.0
    %6148 = vmatpush.msra.mxu0 0.0
    %6149 = vmatpush.msra.mxu0 0.0
    %6150 = vmatpush.msra.mxu0 0.0
    %6151 = vmatpush.msra.mxu0 0.0
    %6152 = vmatpush.msra.mxu0 0.0
    %6153 = vmatpush.msra.mxu0 0.0
    %6154 = vmatpush.msra.mxu0 0.0
    %6155 = vmatpush.msra.mxu0 0.0
    %6156 = vmatpush.msra.mxu0 0.0
    %6157 = vmatpush.msra.mxu0 0.0
    %6158 = vmatpush.msra.mxu0 0.0
    %v6159 = vand.u32 %v3910, 4294901760
    %v6160 = vsub.f32 %v3910, %v6159
    %6161 = vmatpush.msra.mxu0 %v6160
    %v6162 = vand.u32 %v3483, 4294901760
    %v6163 = vsub.f32 %v3483, %v6162
    %6164 = vmatpush.msra.mxu0 %v6163
    %v6165 = vand.u32 %v3482, 4294901760
    %v6166 = vsub.f32 %v3482, %v6165
    %6167 = vmatpush.msra.mxu0 %v6166
    %v6168 = vand.u32 %v6080, 4294901760
    %v6169 = vsub.f32 %v6080, %v6168
    %6170 = vmatmul.f32.gmra.mxu0 %v6169
    %v6171 = vpop.f32.mrf.mxu0
    %v6172 = vadd.f32 %v6144, %v6171
    %6173 = vdwg.mxu0
    %6174 = vmatpush.msra.mxu0 0.0
    %6175 = vmatpush.msra.mxu0 0.0
    %6176 = vmatpush.msra.mxu0 0.0
    %6177 = vmatpush.msra.mxu0 0.0
    %6178 = vmatpush.msra.mxu0 0.0
    %6179 = vmatpush.msra.mxu0 0.0
    %6180 = vmatpush.msra.mxu0 0.0
    %6181 = vmatpush.msra.mxu0 0.0
    %6182 = vmatpush.msra.mxu0 0.0
    %6183 = vmatpush.msra.mxu0 0.0
    %6184 = vmatpush.msra.mxu0 0.0
    %6185 = vmatpush.msra.mxu0 0.0
    %6186 = vmatpush.msra.mxu0 0.0
    %v6187 = vand.u32 %v3910, 4294901760
    %6188 = vmatpush.msra.mxu0 %v6187
    %v6189 = vand.u32 %v3483, 4294901760
    %6190 = vmatpush.msra.mxu0 %v6189
    %v6191 = vand.u32 %v3482, 4294901760
    %6192 = vmatpush.msra.mxu0 %v6191
    %v6193 = vand.u32 %v6080, 4294901760
    %v6194 = vsub.f32 %v6080, %v6193
    %v6195 = vand.u32 %v6194, 4294901760
    %6196 = vmatmul.f32.gmra.mxu0 %v6195
    %v6197 = vpop.f32.mrf.mxu0
    %v6198 = vadd.f32 %v6172, %v6197
    %6199 = vdwg.mxu0
    %6200 = vmatpush.msra.mxu0 0.0
    %6201 = vmatpush.msra.mxu0 0.0
    %6202 = vmatpush.msra.mxu0 0.0
    %6203 = vmatpush.msra.mxu0 0.0
    %6204 = vmatpush.msra.mxu0 0.0
    %6205 = vmatpush.msra.mxu0 0.0
    %6206 = vmatpush.msra.mxu0 0.0
    %6207 = vmatpush.msra.mxu0 0.0
    %6208 = vmatpush.msra.mxu0 0.0
    %6209 = vmatpush.msra.mxu0 0.0
    %6210 = vmatpush.msra.mxu0 0.0
    %6211 = vmatpush.msra.mxu0 0.0
    %6212 = vmatpush.msra.mxu0 0.0
    %v6213 = vand.u32 %v3910, 4294901760
    %v6214 = vsub.f32 %v3910, %v6213
    %v6215 = vand.u32 %v6214, 4294901760
    %6216 = vmatpush.msra.mxu0 %v6215
    %v6217 = vand.u32 %v3483, 4294901760
    %v6218 = vsub.f32 %v3483, %v6217
    %v6219 = vand.u32 %v6218, 4294901760
    %6220 = vmatpush.msra.mxu0 %v6219
    %v6221 = vand.u32 %v3482, 4294901760
    %v6222 = vsub.f32 %v3482, %v6221
    %v6223 = vand.u32 %v6222, 4294901760
    %6224 = vmatpush.msra.mxu0 %v6223
    %v6225 = vand.u32 %v6080, 4294901760
    %6226 = vmatmul.f32.gmra.mxu0 %v6225
    %v6227 = vpop.f32.mrf.mxu0
    %v6228 = vadd.f32 %v6198, %v6227
    %6229 = vdwg.mxu0
    %6230 = vmatpush.msra.mxu0 0.0
    %6231 = vmatpush.msra.mxu0 0.0
    %6232 = vmatpush.msra.mxu0 0.0
    %6233 = vmatpush.msra.mxu0 0.0
    %6234 = vmatpush.msra.mxu0 0.0
    %6235 = vmatpush.msra.mxu0 0.0
    %6236 = vmatpush.msra.mxu0 0.0
    %6237 = vmatpush.msra.mxu0 0.0
    %6238 = vmatpush.msra.mxu0 0.0
    %6239 = vmatpush.msra.mxu0 0.0
    %6240 = vmatpush.msra.mxu0 0.0
    %6241 = vmatpush.msra.mxu0 0.0
    %6242 = vmatpush.msra.mxu0 0.0
    %v6243 = vand.u32 %v3910, 4294901760
    %6244 = vmatpush.msra.mxu0 %v6243
    %v6245 = vand.u32 %v3483, 4294901760
    %6246 = vmatpush.msra.mxu0 %v6245
    %v6247 = vand.u32 %v3482, 4294901760
    %6248 = vmatpush.msra.mxu0 %v6247
    %v6249 = vand.u32 %v6080, 4294901760
    %6250 = vmatmul.f32.gmra.mxu0 %v6249
    %v6251 = vpop.f32.mrf.mxu0
    %v6252 = vadd.f32 %v6228, %v6251
    %6253 = vdwg.mxu0
    %v6254 = vxor.u32 %v6252, 2147483648
    %v6255 = vmul.f32 %v6254, 1.442695
    %v6256 = vpow.pop %v6255
    %v6257 = vadd.f32 %v6256, 1.0
    %v6258 = vrcp.pop %v6257
    %v6259 = vmul.f32 %v6257, %v6258
    %v6260 = vsub.f32 1.0, %v6259
    %v6261 = vmul.f32 %v6258, %v6260
    %v6262 = vadd.f32 %v6258, %v6261
    %vm6263 = vweird.f32 %v6257
    %vm6264 = vweird.f32 %v6258
    %vm6265 = vmor %vm6263, %vm6264
    %v6266 = vsel %vm6265, %v6258, %v6262
    %v6267 = vand.u32 2147483647, %v6257
    %vm6268 = vcmp.eq.f32.partialorder %v6267, 8.507059e+37
    %v6269 = vand.u32 %v6257, 2147483648
    %v6270 = vor.u32 1.1754944e-38, %v6269
    %v6271 = vsel %vm6268, %v6270, %v6266
    %v6272 = vmul.f32 1.0, %v6271
    %v6273 = vtanh.pop %v6252
    %v6274 = vmul.f32 %v6272, %v5850
    %6276 = vrot.lane.b32.xlu0 %v6273, 98
    %v6277 = vpop.permute.xlu0 %6276
    %v6279 = vmul.f32 %v6272, %v6277
    %6281 = vrot.lane.b32.xlu0 %v6279, 10
    %v6282 = vpop.permute.xlu0 %6281
    %v6284 = vadd.f32 %v6274, %v6282
    %v6285 = vtanh.pop %v6284
    %6287 = vrot.lane.b32.xlu0 %v6285, 10
    %v6288 = vpop.permute.xlu0 %6287
    %v6290 = vmul.f32 %v6272, %v6288
    %6292 = vrot.lane.b32.xlu0 %v6290, 108
    %v6293 = vpop.permute.xlu0 %6292
    %v6295 = vsel %vm3682, %v6293, %v6076
    %v6297 = vsel %vm3685, %v6295, 0
    %6299 = vmatpush.msra.mxu0 0.0
    %6300 = vmatpush.msra.mxu0 0.0
    %6301 = vmatpush.msra.mxu0 0.0
    %6302 = vmatpush.msra.mxu0 0.0
    %6303 = vmatpush.msra.mxu0 0.0
    %6304 = vmatpush.msra.mxu0 0.0
    %6305 = vmatpush.msra.mxu0 0.0
    %6306 = vmatpush.msra.mxu0 0.0
    %6307 = vmatpush.msra.mxu0 0.0
    %6308 = vmatpush.msra.mxu0 0.0
    %6309 = vmatpush.msra.mxu0 0.0
    %6310 = vmatpush.msra.mxu0 0.0
    %6311 = vmatpush.msra.mxu0 0.0
    %v6312 = vand.u32 %v3690, 4294901760
    %6313 = vmatpush.msra.mxu0 %v6312
    %v6314 = vand.u32 %v3487, 4294901760
    %6315 = vmatpush.msra.mxu0 %v6314
    %v6316 = vand.u32 %v3486, 4294901760
    %6317 = vmatpush.msra.mxu0 %v6316
    %v6318 = vand.u32 %v6297, 4294901760
    %v6319 = vsub.f32 %v6297, %v6318
    %v6320 = vand.u32 %v6319, 4294901760
    %v6321 = vsub.f32 %v6319, %v6320
    %v6322 = vand.u32 %v6321, 4294901760
    %6323 = vmatmul.f32.gmra.mxu0 %v6322
    %v6324 = vpop.f32.mrf.mxu0
    %v6325 = vadd.f32 %v3684, %v6324
    %6326 = vdwg.mxu0
    %6327 = vmatpush.msra.mxu0 0.0
    %6328 = vmatpush.msra.mxu0 0.0
    %6329 = vmatpush.msra.mxu0 0.0
    %6330 = vmatpush.msra.mxu0 0.0
    %6331 = vmatpush.msra.mxu0 0.0
    %6332 = vmatpush.msra.mxu0 0.0
    %6333 = vmatpush.msra.mxu0 0.0
    %6334 = vmatpush.msra.mxu0 0.0
    %6335 = vmatpush.msra.mxu0 0.0
    %6336 = vmatpush.msra.mxu0 0.0
    %6337 = vmatpush.msra.mxu0 0.0
    %6338 = vmatpush.msra.mxu0 0.0
    %6339 = vmatpush.msra.mxu0 0.0
    %v6340 = vand.u32 %v3690, 4294901760
    %v6341 = vsub.f32 %v3690, %v6340
    %v6342 = vand.u32 %v6341, 4294901760
    %v6343 = vsub.f32 %v6341, %v6342
    %v6344 = vand.u32 %v6343, 4294901760
    %6345 = vmatpush.msra.mxu0 %v6344
    %v6346 = vand.u32 %v3487, 4294901760
    %v6347 = vsub.f32 %v3487, %v6346
    %v6348 = vand.u32 %v6347, 4294901760
    %v6349 = vsub.f32 %v6347, %v6348
    %v6350 = vand.u32 %v6349, 4294901760
    %6351 = vmatpush.msra.mxu0 %v6350
    %v6352 = vand.u32 %v3486, 4294901760
    %v6353 = vsub.f32 %v3486, %v6352
    %v6354 = vand.u32 %v6353, 4294901760
    %v6355 = vsub.f32 %v6353, %v6354
    %v6356 = vand.u32 %v6355, 4294901760
    %6357 = vmatpush.msra.mxu0 %v6356
    %v6358 = vand.u32 %v6297, 4294901760
    %6359 = vmatmul.f32.gmra.mxu0 %v6358
    %v6360 = vpop.f32.mrf.mxu0
    %v6361 = vadd.f32 %v6325, %v6360
    %6362 = vdwg.mxu0
    %6363 = vmatpush.msra.mxu0 0.0
    %6364 = vmatpush.msra.mxu0 0.0
    %6365 = vmatpush.msra.mxu0 0.0
    %6366 = vmatpush.msra.mxu0 0.0
    %6367 = vmatpush.msra.mxu0 0.0
    %6368 = vmatpush.msra.mxu0 0.0
    %6369 = vmatpush.msra.mxu0 0.0
    %6370 = vmatpush.msra.mxu0 0.0
    %6371 = vmatpush.msra.mxu0 0.0
    %6372 = vmatpush.msra.mxu0 0.0
    %6373 = vmatpush.msra.mxu0 0.0
    %6374 = vmatpush.msra.mxu0 0.0
    %6375 = vmatpush.msra.mxu0 0.0
    %v6376 = vand.u32 %v3690, 4294901760
    %v6377 = vsub.f32 %v3690, %v6376
    %6378 = vmatpush.msra.mxu0 %v6377
    %v6379 = vand.u32 %v3487, 4294901760
    %v6380 = vsub.f32 %v3487, %v6379
    %6381 = vmatpush.msra.mxu0 %v6380
    %v6382 = vand.u32 %v3486, 4294901760
    %v6383 = vsub.f32 %v3486, %v6382
    %6384 = vmatpush.msra.mxu0 %v6383
    %v6385 = vand.u32 %v6297, 4294901760
    %v6386 = vsub.f32 %v6297, %v6385
    %6387 = vmatmul.f32.gmra.mxu0 %v6386
    %v6388 = vpop.f32.mrf.mxu0
    %v6389 = vadd.f32 %v6361, %v6388
    %6390 = vdwg.mxu0
    %6391 = vmatpush.msra.mxu0 0.0
    %6392 = vmatpush.msra.mxu0 0.0
    %6393 = vmatpush.msra.mxu0 0.0
    %6394 = vmatpush.msra.mxu0 0.0
    %6395 = vmatpush.msra.mxu0 0.0
    %6396 = vmatpush.msra.mxu0 0.0
    %6397 = vmatpush.msra.mxu0 0.0
    %6398 = vmatpush.msra.mxu0 0.0
    %6399 = vmatpush.msra.mxu0 0.0
    %6400 = vmatpush.msra.mxu0 0.0
    %6401 = vmatpush.msra.mxu0 0.0
    %6402 = vmatpush.msra.mxu0 0.0
    %6403 = vmatpush.msra.mxu0 0.0
    %v6404 = vand.u32 %v3690, 4294901760
    %6405 = vmatpush.msra.mxu0 %v6404
    %v6406 = vand.u32 %v3487, 4294901760
    %6407 = vmatpush.msra.mxu0 %v6406
    %v6408 = vand.u32 %v3486, 4294901760
    %6409 = vmatpush.msra.mxu0 %v6408
    %v6410 = vand.u32 %v6297, 4294901760
    %v6411 = vsub.f32 %v6297, %v6410
    %v6412 = vand.u32 %v6411, 4294901760
    %6413 = vmatmul.f32.gmra.mxu0 %v6412
    %v6414 = vpop.f32.mrf.mxu0
    %v6415 = vadd.f32 %v6389, %v6414
    %6416 = vdwg.mxu0
    %6417 = vmatpush.msra.mxu0 0.0
    %6418 = vmatpush.msra.mxu0 0.0
    %6419 = vmatpush.msra.mxu0 0.0
    %6420 = vmatpush.msra.mxu0 0.0
    %6421 = vmatpush.msra.mxu0 0.0
    %6422 = vmatpush.msra.mxu0 0.0
    %6423 = vmatpush.msra.mxu0 0.0
    %6424 = vmatpush.msra.mxu0 0.0
    %6425 = vmatpush.msra.mxu0 0.0
    %6426 = vmatpush.msra.mxu0 0.0
    %6427 = vmatpush.msra.mxu0 0.0
    %6428 = vmatpush.msra.mxu0 0.0
    %6429 = vmatpush.msra.mxu0 0.0
    %v6430 = vand.u32 %v3690, 4294901760
    %v6431 = vsub.f32 %v3690, %v6430
    %v6432 = vand.u32 %v6431, 4294901760
    %6433 = vmatpush.msra.mxu0 %v6432
    %v6434 = vand.u32 %v3487, 4294901760
    %v6435 = vsub.f32 %v3487, %v6434
    %v6436 = vand.u32 %v6435, 4294901760
    %6437 = vmatpush.msra.mxu0 %v6436
    %v6438 = vand.u32 %v3486, 4294901760
    %v6439 = vsub.f32 %v3486, %v6438
    %v6440 = vand.u32 %v6439, 4294901760
    %6441 = vmatpush.msra.mxu0 %v6440
    %v6442 = vand.u32 %v6297, 4294901760
    %6443 = vmatmul.f32.gmra.mxu0 %v6442
    %v6444 = vpop.f32.mrf.mxu0
    %v6445 = vadd.f32 %v6415, %v6444
    %6446 = vdwg.mxu0
    %6447 = vmatpush.msra.mxu0 0.0
    %6448 = vmatpush.msra.mxu0 0.0
    %6449 = vmatpush.msra.mxu0 0.0
    %6450 = vmatpush.msra.mxu0 0.0
    %6451 = vmatpush.msra.mxu0 0.0
    %6452 = vmatpush.msra.mxu0 0.0
    %6453 = vmatpush.msra.mxu0 0.0
    %6454 = vmatpush.msra.mxu0 0.0
    %6455 = vmatpush.msra.mxu0 0.0
    %6456 = vmatpush.msra.mxu0 0.0
    %6457 = vmatpush.msra.mxu0 0.0
    %6458 = vmatpush.msra.mxu0 0.0
    %6459 = vmatpush.msra.mxu0 0.0
    %v6460 = vand.u32 %v3690, 4294901760
    %6461 = vmatpush.msra.mxu0 %v6460
    %v6462 = vand.u32 %v3487, 4294901760
    %6463 = vmatpush.msra.mxu0 %v6462
    %v6464 = vand.u32 %v3486, 4294901760
    %6465 = vmatpush.msra.mxu0 %v6464
    %v6466 = vand.u32 %v6297, 4294901760
    %6467 = vmatmul.f32.gmra.mxu0 %v6466
    %v6468 = vpop.f32.mrf.mxu0
    %v6469 = vadd.f32 %v6445, %v6468
    %6470 = vdwg.mxu0
    %v6471 = vxor.u32 %v6469, 2147483648
    %v6472 = vmul.f32 %v6471, 1.442695
    %v6473 = vpow.pop %v6472
    %v6474 = vadd.f32 %v6473, 1.0
    %v6475 = vrcp.pop %v6474
    %v6476 = vmul.f32 %v6474, %v6475
    %v6477 = vsub.f32 1.0, %v6476
    %v6478 = vmul.f32 %v6475, %v6477
    %v6479 = vadd.f32 %v6475, %v6478
    %vm6480 = vweird.f32 %v6474
    %vm6481 = vweird.f32 %v6475
    %vm6482 = vmor %vm6480, %vm6481
    %v6483 = vsel %vm6482, %v6475, %v6479
    %v6484 = vand.u32 2147483647, %v6474
    %vm6485 = vcmp.eq.f32.partialorder %v6484, 8.507059e+37
    %v6486 = vand.u32 %v6474, 2147483648
    %v6487 = vor.u32 1.1754944e-38, %v6486
    %v6488 = vsel %vm6485, %v6487, %v6483
    %v6489 = vmul.f32 1.0, %v6488
    %v6490 = vtanh.pop %v6469
    %v6491 = vmul.f32 %v6489, %v6067
    %6493 = vrot.lane.b32.xlu0 %v6490, 98
    %v6494 = vpop.permute.xlu0 %6493
    %v6496 = vmul.f32 %v6489, %v6494
    %6498 = vrot.lane.b32.xlu0 %v6496, 10
    %v6499 = vpop.permute.xlu0 %6498
    %v6501 = vadd.f32 %v6491, %v6499
    %v6502 = vtanh.pop %v6501
    %6504 = vrot.lane.b32.xlu0 %v6502, 10
    %v6505 = vpop.permute.xlu0 %6504
    %v6507 = vmul.f32 %v6489, %v6505
    %6509 = vrot.lane.b32.xlu0 %v6507, 118
    %v6510 = vpop.permute.xlu0 %6509
    %v6512 = vsel %vm3682, %v6293, %v6510
    %v6514 = vsel %vm3685, %v6512, 0
    %6516 = vmatpush.msra.mxu0 0.0
    %6517 = vmatpush.msra.mxu0 0.0
    %6518 = vmatpush.msra.mxu0 0.0
    %6519 = vmatpush.msra.mxu0 0.0
    %6520 = vmatpush.msra.mxu0 0.0
    %6521 = vmatpush.msra.mxu0 0.0
    %6522 = vmatpush.msra.mxu0 0.0
    %6523 = vmatpush.msra.mxu0 0.0
    %6524 = vmatpush.msra.mxu0 0.0
    %6525 = vmatpush.msra.mxu0 0.0
    %6526 = vmatpush.msra.mxu0 0.0
    %6527 = vmatpush.msra.mxu0 0.0
    %6528 = vmatpush.msra.mxu0 0.0
    %v6529 = vand.u32 %v3910, 4294901760
    %6530 = vmatpush.msra.mxu0 %v6529
    %v6531 = vand.u32 %v3483, 4294901760
    %6532 = vmatpush.msra.mxu0 %v6531
    %v6533 = vand.u32 %v3482, 4294901760
    %6534 = vmatpush.msra.mxu0 %v6533
    %v6535 = vand.u32 %v6514, 4294901760
    %v6536 = vsub.f32 %v6514, %v6535
    %v6537 = vand.u32 %v6536, 4294901760
    %v6538 = vsub.f32 %v6536, %v6537
    %v6539 = vand.u32 %v6538, 4294901760
    %6540 = vmatmul.f32.gmra.mxu0 %v6539
    %v6541 = vpop.f32.mrf.mxu0
    %v6542 = vadd.f32 %v3491, %v6541
    %6543 = vdwg.mxu0
    %6544 = vmatpush.msra.mxu0 0.0
    %6545 = vmatpush.msra.mxu0 0.0
    %6546 = vmatpush.msra.mxu0 0.0
    %6547 = vmatpush.msra.mxu0 0.0
    %6548 = vmatpush.msra.mxu0 0.0
    %6549 = vmatpush.msra.mxu0 0.0
    %6550 = vmatpush.msra.mxu0 0.0
    %6551 = vmatpush.msra.mxu0 0.0
    %6552 = vmatpush.msra.mxu0 0.0
    %6553 = vmatpush.msra.mxu0 0.0
    %6554 = vmatpush.msra.mxu0 0.0
    %6555 = vmatpush.msra.mxu0 0.0
    %6556 = vmatpush.msra.mxu0 0.0
    %v6557 = vand.u32 %v3910, 4294901760
    %v6558 = vsub.f32 %v3910, %v6557
    %v6559 = vand.u32 %v6558, 4294901760
    %v6560 = vsub.f32 %v6558, %v6559
    %v6561 = vand.u32 %v6560, 4294901760
    %6562 = vmatpush.msra.mxu0 %v6561
    %v6563 = vand.u32 %v3483, 4294901760
    %v6564 = vsub.f32 %v3483, %v6563
    %v6565 = vand.u32 %v6564, 4294901760
    %v6566 = vsub.f32 %v6564, %v6565
    %v6567 = vand.u32 %v6566, 4294901760
    %6568 = vmatpush.msra.mxu0 %v6567
    %v6569 = vand.u32 %v3482, 4294901760
    %v6570 = vsub.f32 %v3482, %v6569
    %v6571 = vand.u32 %v6570, 4294901760
    %v6572 = vsub.f32 %v6570, %v6571
    %v6573 = vand.u32 %v6572, 4294901760
    %6574 = vmatpush.msra.mxu0 %v6573
    %v6575 = vand.u32 %v6514, 4294901760
    %6576 = vmatmul.f32.gmra.mxu0 %v6575
    %v6577 = vpop.f32.mrf.mxu0
    %v6578 = vadd.f32 %v6542, %v6577
    %6579 = vdwg.mxu0
    %6580 = vmatpush.msra.mxu0 0.0
    %6581 = vmatpush.msra.mxu0 0.0
    %6582 = vmatpush.msra.mxu0 0.0
    %6583 = vmatpush.msra.mxu0 0.0
    %6584 = vmatpush.msra.mxu0 0.0
    %6585 = vmatpush.msra.mxu0 0.0
    %6586 = vmatpush.msra.mxu0 0.0
    %6587 = vmatpush.msra.mxu0 0.0
    %6588 = vmatpush.msra.mxu0 0.0
    %6589 = vmatpush.msra.mxu0 0.0
    %6590 = vmatpush.msra.mxu0 0.0
    %6591 = vmatpush.msra.mxu0 0.0
    %6592 = vmatpush.msra.mxu0 0.0
    %v6593 = vand.u32 %v3910, 4294901760
    %v6594 = vsub.f32 %v3910, %v6593
    %6595 = vmatpush.msra.mxu0 %v6594
    %v6596 = vand.u32 %v3483, 4294901760
    %v6597 = vsub.f32 %v3483, %v6596
    %6598 = vmatpush.msra.mxu0 %v6597
    %v6599 = vand.u32 %v3482, 4294901760
    %v6600 = vsub.f32 %v3482, %v6599
    %6601 = vmatpush.msra.mxu0 %v6600
    %v6602 = vand.u32 %v6514, 4294901760
    %v6603 = vsub.f32 %v6514, %v6602
    %6604 = vmatmul.f32.gmra.mxu0 %v6603
    %v6605 = vpop.f32.mrf.mxu0
    %v6606 = vadd.f32 %v6578, %v6605
    %6607 = vdwg.mxu0
    %6608 = vmatpush.msra.mxu0 0.0
    %6609 = vmatpush.msra.mxu0 0.0
    %6610 = vmatpush.msra.mxu0 0.0
    %6611 = vmatpush.msra.mxu0 0.0
    %6612 = vmatpush.msra.mxu0 0.0
    %6613 = vmatpush.msra.mxu0 0.0
    %6614 = vmatpush.msra.mxu0 0.0
    %6615 = vmatpush.msra.mxu0 0.0
    %6616 = vmatpush.msra.mxu0 0.0
    %6617 = vmatpush.msra.mxu0 0.0
    %6618 = vmatpush.msra.mxu0 0.0
    %6619 = vmatpush.msra.mxu0 0.0
    %6620 = vmatpush.msra.mxu0 0.0
    %v6621 = vand.u32 %v3910, 4294901760
    %6622 = vmatpush.msra.mxu0 %v6621
    %v6623 = vand.u32 %v3483, 4294901760
    %6624 = vmatpush.msra.mxu0 %v6623
    %v6625 = vand.u32 %v3482, 4294901760
    %6626 = vmatpush.msra.mxu0 %v6625
    %v6627 = vand.u32 %v6514, 4294901760
    %v6628 = vsub.f32 %v6514, %v6627
    %v6629 = vand.u32 %v6628, 4294901760
    %6630 = vmatmul.f32.gmra.mxu0 %v6629
    %v6631 = vpop.f32.mrf.mxu0
    %v6632 = vadd.f32 %v6606, %v6631
    %6633 = vdwg.mxu0
    %6634 = vmatpush.msra.mxu0 0.0
    %6635 = vmatpush.msra.mxu0 0.0
    %6636 = vmatpush.msra.mxu0 0.0
    %6637 = vmatpush.msra.mxu0 0.0
    %6638 = vmatpush.msra.mxu0 0.0
    %6639 = vmatpush.msra.mxu0 0.0
    %6640 = vmatpush.msra.mxu0 0.0
    %6641 = vmatpush.msra.mxu0 0.0
    %6642 = vmatpush.msra.mxu0 0.0
    %6643 = vmatpush.msra.mxu0 0.0
    %6644 = vmatpush.msra.mxu0 0.0
    %6645 = vmatpush.msra.mxu0 0.0
    %6646 = vmatpush.msra.mxu0 0.0
    %v6647 = vand.u32 %v3910, 4294901760
    %v6648 = vsub.f32 %v3910, %v6647
    %v6649 = vand.u32 %v6648, 4294901760
    %6650 = vmatpush.msra.mxu0 %v6649
    %v6651 = vand.u32 %v3483, 4294901760
    %v6652 = vsub.f32 %v3483, %v6651
    %v6653 = vand.u32 %v6652, 4294901760
    %6654 = vmatpush.msra.mxu0 %v6653
    %v6655 = vand.u32 %v3482, 4294901760
    %v6656 = vsub.f32 %v3482, %v6655
    %v6657 = vand.u32 %v6656, 4294901760
    %6658 = vmatpush.msra.mxu0 %v6657
    %v6659 = vand.u32 %v6514, 4294901760
    %6660 = vmatmul.f32.gmra.mxu0 %v6659
    %v6661 = vpop.f32.mrf.mxu0
    %v6662 = vadd.f32 %v6632, %v6661
    %6663 = vdwg.mxu0
    %6664 = vmatpush.msra.mxu0 0.0
    %6665 = vmatpush.msra.mxu0 0.0
    %6666 = vmatpush.msra.mxu0 0.0
    %6667 = vmatpush.msra.mxu0 0.0
    %6668 = vmatpush.msra.mxu0 0.0
    %6669 = vmatpush.msra.mxu0 0.0
    %6670 = vmatpush.msra.mxu0 0.0
    %6671 = vmatpush.msra.mxu0 0.0
    %6672 = vmatpush.msra.mxu0 0.0
    %6673 = vmatpush.msra.mxu0 0.0
    %6674 = vmatpush.msra.mxu0 0.0
    %6675 = vmatpush.msra.mxu0 0.0
    %6676 = vmatpush.msra.mxu0 0.0
    %v6677 = vand.u32 %v3910, 4294901760
    %6678 = vmatpush.msra.mxu0 %v6677
    %v6679 = vand.u32 %v3483, 4294901760
    %6680 = vmatpush.msra.mxu0 %v6679
    %v6681 = vand.u32 %v3482, 4294901760
    %6682 = vmatpush.msra.mxu0 %v6681
    %v6683 = vand.u32 %v6514, 4294901760
    %6684 = vmatmul.f32.gmra.mxu0 %v6683
    %v6685 = vpop.f32.mrf.mxu0
    %v6686 = vadd.f32 %v6662, %v6685
    %6687 = vdwg.mxu0
    %v6688 = vxor.u32 %v6686, 2147483648
    %v6689 = vmul.f32 %v6688, 1.442695
    %v6690 = vpow.pop %v6689
    %v6691 = vadd.f32 %v6690, 1.0
    %v6692 = vrcp.pop %v6691
    %v6693 = vmul.f32 %v6691, %v6692
    %v6694 = vsub.f32 1.0, %v6693
    %v6695 = vmul.f32 %v6692, %v6694
    %v6696 = vadd.f32 %v6692, %v6695
    %vm6697 = vweird.f32 %v6691
    %vm6698 = vweird.f32 %v6692
    %vm6699 = vmor %vm6697, %vm6698
    %v6700 = vsel %vm6699, %v6692, %v6696
    %v6701 = vand.u32 2147483647, %v6691
    %vm6702 = vcmp.eq.f32.partialorder %v6701, 8.507059e+37
    %v6703 = vand.u32 %v6691, 2147483648
    %v6704 = vor.u32 1.1754944e-38, %v6703
    %v6705 = vsel %vm6702, %v6704, %v6700
    %v6706 = vmul.f32 1.0, %v6705
    %v6707 = vtanh.pop %v6686
    %v6708 = vmul.f32 %v6706, %v6284
    %6710 = vrot.lane.b32.xlu0 %v6707, 98
    %v6711 = vpop.permute.xlu0 %6710
    %v6713 = vmul.f32 %v6706, %v6711
    %6715 = vrot.lane.b32.xlu0 %v6713, 10
    %v6716 = vpop.permute.xlu0 %6715
    %v6718 = vadd.f32 %v6708, %v6716
    %v6719 = vtanh.pop %v6718
    %6721 = vrot.lane.b32.xlu0 %v6719, 10
    %v6722 = vpop.permute.xlu0 %6721
    %v6724 = vmul.f32 %v6706, %v6722
    %6726 = vrot.lane.b32.xlu0 %v6724, 108
    %v6727 = vpop.permute.xlu0 %6726
    %v6729 = vsel %vm3682, %v6727, %v6510
    %v6731 = vsel %vm3685, %v6729, 0
    %6733 = vmatpush.msra.mxu0 0.0
    %6734 = vmatpush.msra.mxu0 0.0
    %6735 = vmatpush.msra.mxu0 0.0
    %6736 = vmatpush.msra.mxu0 0.0
    %6737 = vmatpush.msra.mxu0 0.0
    %6738 = vmatpush.msra.mxu0 0.0
    %6739 = vmatpush.msra.mxu0 0.0
    %6740 = vmatpush.msra.mxu0 0.0
    %6741 = vmatpush.msra.mxu0 0.0
    %6742 = vmatpush.msra.mxu0 0.0
    %6743 = vmatpush.msra.mxu0 0.0
    %6744 = vmatpush.msra.mxu0 0.0
    %6745 = vmatpush.msra.mxu0 0.0
    %v6746 = vand.u32 %v3690, 4294901760
    %6747 = vmatpush.msra.mxu0 %v6746
    %v6748 = vand.u32 %v3487, 4294901760
    %6749 = vmatpush.msra.mxu0 %v6748
    %v6750 = vand.u32 %v3486, 4294901760
    %6751 = vmatpush.msra.mxu0 %v6750
    %v6752 = vand.u32 %v6731, 4294901760
    %v6753 = vsub.f32 %v6731, %v6752
    %v6754 = vand.u32 %v6753, 4294901760
    %v6755 = vsub.f32 %v6753, %v6754
    %v6756 = vand.u32 %v6755, 4294901760
    %6757 = vmatmul.f32.gmra.mxu0 %v6756
    %v6758 = vpop.f32.mrf.mxu0
    %v6759 = vadd.f32 %v3684, %v6758
    %6760 = vdwg.mxu0
    %6761 = vmatpush.msra.mxu0 0.0
    %6762 = vmatpush.msra.mxu0 0.0
    %6763 = vmatpush.msra.mxu0 0.0
    %6764 = vmatpush.msra.mxu0 0.0
    %6765 = vmatpush.msra.mxu0 0.0
    %6766 = vmatpush.msra.mxu0 0.0
    %6767 = vmatpush.msra.mxu0 0.0
    %6768 = vmatpush.msra.mxu0 0.0
    %6769 = vmatpush.msra.mxu0 0.0
    %6770 = vmatpush.msra.mxu0 0.0
    %6771 = vmatpush.msra.mxu0 0.0
    %6772 = vmatpush.msra.mxu0 0.0
    %6773 = vmatpush.msra.mxu0 0.0
    %v6774 = vand.u32 %v3690, 4294901760
    %v6775 = vsub.f32 %v3690, %v6774
    %v6776 = vand.u32 %v6775, 4294901760
    %v6777 = vsub.f32 %v6775, %v6776
    %v6778 = vand.u32 %v6777, 4294901760
    %6779 = vmatpush.msra.mxu0 %v6778
    %v6780 = vand.u32 %v3487, 4294901760
    %v6781 = vsub.f32 %v3487, %v6780
    %v6782 = vand.u32 %v6781, 4294901760
    %v6783 = vsub.f32 %v6781, %v6782
    %v6784 = vand.u32 %v6783, 4294901760
    %6785 = vmatpush.msra.mxu0 %v6784
    %v6786 = vand.u32 %v3486, 4294901760
    %v6787 = vsub.f32 %v3486, %v6786
    %v6788 = vand.u32 %v6787, 4294901760
    %v6789 = vsub.f32 %v6787, %v6788
    %v6790 = vand.u32 %v6789, 4294901760
    %6791 = vmatpush.msra.mxu0 %v6790
    %v6792 = vand.u32 %v6731, 4294901760
    %6793 = vmatmul.f32.gmra.mxu0 %v6792
    %v6794 = vpop.f32.mrf.mxu0
    %v6795 = vadd.f32 %v6759, %v6794
    %6796 = vdwg.mxu0
    %6797 = vmatpush.msra.mxu0 0.0
    %6798 = vmatpush.msra.mxu0 0.0
    %6799 = vmatpush.msra.mxu0 0.0
    %6800 = vmatpush.msra.mxu0 0.0
    %6801 = vmatpush.msra.mxu0 0.0
    %6802 = vmatpush.msra.mxu0 0.0
    %6803 = vmatpush.msra.mxu0 0.0
    %6804 = vmatpush.msra.mxu0 0.0
    %6805 = vmatpush.msra.mxu0 0.0
    %6806 = vmatpush.msra.mxu0 0.0
    %6807 = vmatpush.msra.mxu0 0.0
    %6808 = vmatpush.msra.mxu0 0.0
    %6809 = vmatpush.msra.mxu0 0.0
    %v6810 = vand.u32 %v3690, 4294901760
    %v6811 = vsub.f32 %v3690, %v6810
    %6812 = vmatpush.msra.mxu0 %v6811
    %v6813 = vand.u32 %v3487, 4294901760
    %v6814 = vsub.f32 %v3487, %v6813
    %6815 = vmatpush.msra.mxu0 %v6814
    %v6816 = vand.u32 %v3486, 4294901760
    %v6817 = vsub.f32 %v3486, %v6816
    %6818 = vmatpush.msra.mxu0 %v6817
    %v6819 = vand.u32 %v6731, 4294901760
    %v6820 = vsub.f32 %v6731, %v6819
    %6821 = vmatmul.f32.gmra.mxu0 %v6820
    %v6822 = vpop.f32.mrf.mxu0
    %v6823 = vadd.f32 %v6795, %v6822
    %6824 = vdwg.mxu0
    %6825 = vmatpush.msra.mxu0 0.0
    %6826 = vmatpush.msra.mxu0 0.0
    %6827 = vmatpush.msra.mxu0 0.0
    %6828 = vmatpush.msra.mxu0 0.0
    %6829 = vmatpush.msra.mxu0 0.0
    %6830 = vmatpush.msra.mxu0 0.0
    %6831 = vmatpush.msra.mxu0 0.0
    %6832 = vmatpush.msra.mxu0 0.0
    %6833 = vmatpush.msra.mxu0 0.0
    %6834 = vmatpush.msra.mxu0 0.0
    %6835 = vmatpush.msra.mxu0 0.0
    %6836 = vmatpush.msra.mxu0 0.0
    %6837 = vmatpush.msra.mxu0 0.0
    %v6838 = vand.u32 %v3690, 4294901760
    %6839 = vmatpush.msra.mxu0 %v6838
    %v6840 = vand.u32 %v3487, 4294901760
    %6841 = vmatpush.msra.mxu0 %v6840
    %v6842 = vand.u32 %v3486, 4294901760
    %6843 = vmatpush.msra.mxu0 %v6842
    %v6844 = vand.u32 %v6731, 4294901760
    %v6845 = vsub.f32 %v6731, %v6844
    %v6846 = vand.u32 %v6845, 4294901760
    %6847 = vmatmul.f32.gmra.mxu0 %v6846
    %v6848 = vpop.f32.mrf.mxu0
    %v6849 = vadd.f32 %v6823, %v6848
    %6850 = vdwg.mxu0
    %6851 = vmatpush.msra.mxu0 0.0
    %6852 = vmatpush.msra.mxu0 0.0
    %6853 = vmatpush.msra.mxu0 0.0
    %6854 = vmatpush.msra.mxu0 0.0
    %6855 = vmatpush.msra.mxu0 0.0
    %6856 = vmatpush.msra.mxu0 0.0
    %6857 = vmatpush.msra.mxu0 0.0
    %6858 = vmatpush.msra.mxu0 0.0
    %6859 = vmatpush.msra.mxu0 0.0
    %6860 = vmatpush.msra.mxu0 0.0
    %6861 = vmatpush.msra.mxu0 0.0
    %6862 = vmatpush.msra.mxu0 0.0
    %6863 = vmatpush.msra.mxu0 0.0
    %v6864 = vand.u32 %v3690, 4294901760
    %v6865 = vsub.f32 %v3690, %v6864
    %v6866 = vand.u32 %v6865, 4294901760
    %6867 = vmatpush.msra.mxu0 %v6866
    %v6868 = vand.u32 %v3487, 4294901760
    %v6869 = vsub.f32 %v3487, %v6868
    %v6870 = vand.u32 %v6869, 4294901760
    %6871 = vmatpush.msra.mxu0 %v6870
    %v6872 = vand.u32 %v3486, 4294901760
    %v6873 = vsub.f32 %v3486, %v6872
    %v6874 = vand.u32 %v6873, 4294901760
    %6875 = vmatpush.msra.mxu0 %v6874
    %v6876 = vand.u32 %v6731, 4294901760
    %6877 = vmatmul.f32.gmra.mxu0 %v6876
    %v6878 = vpop.f32.mrf.mxu0
    %v6879 = vadd.f32 %v6849, %v6878
    %6880 = vdwg.mxu0
    %6881 = vmatpush.msra.mxu0 0.0
    %6882 = vmatpush.msra.mxu0 0.0
    %6883 = vmatpush.msra.mxu0 0.0
    %6884 = vmatpush.msra.mxu0 0.0
    %6885 = vmatpush.msra.mxu0 0.0
    %6886 = vmatpush.msra.mxu0 0.0
    %6887 = vmatpush.msra.mxu0 0.0
    %6888 = vmatpush.msra.mxu0 0.0
    %6889 = vmatpush.msra.mxu0 0.0
    %6890 = vmatpush.msra.mxu0 0.0
    %6891 = vmatpush.msra.mxu0 0.0
    %6892 = vmatpush.msra.mxu0 0.0
    %6893 = vmatpush.msra.mxu0 0.0
    %v6894 = vand.u32 %v3690, 4294901760
    %6895 = vmatpush.msra.mxu0 %v6894
    %v6896 = vand.u32 %v3487, 4294901760
    %6897 = vmatpush.msra.mxu0 %v6896
    %v6898 = vand.u32 %v3486, 4294901760
    %6899 = vmatpush.msra.mxu0 %v6898
    %v6900 = vand.u32 %v6731, 4294901760
    %6901 = vmatmul.f32.gmra.mxu0 %v6900
    %v6902 = vpop.f32.mrf.mxu0
    %v6903 = vadd.f32 %v6879, %v6902
    %6904 = vdwg.mxu0
    %v6905 = vxor.u32 %v6903, 2147483648
    %v6906 = vmul.f32 %v6905, 1.442695
    %v6907 = vpow.pop %v6906
    %v6908 = vadd.f32 %v6907, 1.0
    %v6909 = vrcp.pop %v6908
    %v6910 = vmul.f32 %v6908, %v6909
    %v6911 = vsub.f32 1.0, %v6910
    %v6912 = vmul.f32 %v6909, %v6911
    %v6913 = vadd.f32 %v6909, %v6912
    %vm6914 = vweird.f32 %v6908
    %vm6915 = vweird.f32 %v6909
    %vm6916 = vmor %vm6914, %vm6915
    %v6917 = vsel %vm6916, %v6909, %v6913
    %v6918 = vand.u32 2147483647, %v6908
    %vm6919 = vcmp.eq.f32.partialorder %v6918, 8.507059e+37
    %v6920 = vand.u32 %v6908, 2147483648
    %v6921 = vor.u32 1.1754944e-38, %v6920
    %v6922 = vsel %vm6919, %v6921, %v6917
    %v6923 = vmul.f32 1.0, %v6922
    %v6924 = vtanh.pop %v6903
    %v6925 = vmul.f32 %v6923, %v6501
    %6927 = vrot.lane.b32.xlu0 %v6924, 98
    %v6928 = vpop.permute.xlu0 %6927
    %v6930 = vmul.f32 %v6923, %v6928
    %6932 = vrot.lane.b32.xlu0 %v6930, 10
    %v6933 = vpop.permute.xlu0 %6932
    %v6935 = vadd.f32 %v6925, %v6933
    %v6936 = vtanh.pop %v6935
    %6938 = vrot.lane.b32.xlu0 %v6936, 10
    %v6939 = vpop.permute.xlu0 %6938
    %v6941 = vmul.f32 %v6923, %v6939
    %6942 = vrot.lane.b32.xlu0 %v3900, 108
    %v6943 = vpop.permute.xlu0 %6942
    %6945 = vrot.lane.b32.xlu0 %v5205, 10
    %v6946 = vpop.permute.xlu0 %6945
    %6948 = vrot.lane.b32.xlu0 %v5639, 20
    %v6949 = vpop.permute.xlu0 %6948
    %6951 = vrot.lane.b32.xlu0 %v6073, 30
    %v6952 = vpop.permute.xlu0 %6951
    %6954 = vrot.lane.b32.xlu0 %v6507, 40
    %v6955 = vpop.permute.xlu0 %6954
    %6958 = vrot.lane.b32.xlu0 %v6941, 50
    %v6959 = vpop.permute.xlu0 %6958
    %v6961 = vsel %vm3682, %v6943, %v4340
    %v6962 = vsel %vm3685, %v6961, %v4771
    %vm6963 = vcmask 244736
    %v6964 = vsel %vm6963, %v6962, %v6946
    %vm6965 = vcmask 326656
    %v6966 = vsel %vm6965, %v6964, %v6949
    %vm6967 = vcmask 408576
    %v6968 = vsel %vm6967, %v6966, %v6952
    %vm6969 = vcmask 490496
    %v6970 = vsel %vm6969, %v6968, %v6955
    %vm6971 = vcmask 572416
    %v6972 = vsel %vm6971, %v6970, %v6959
    %v6973 = vld [vmem:[#allocation2 + $0x80] sm:$0xff]
    %v6974 = vld [vmem:[#allocation2 + $0x88] sm:$0xff]
    %v6975 = vld [vmem:[#allocation2 + $0x90] sm:$0xff]
    %v6976 = vld [vmem:[#allocation2 + $0x98] sm:$0xff]
    %v6977 = vld [vmem:[#allocation2 + $0xa0] sm:$0xff]
    %v6978 = vld [vmem:[#allocation2 + $0xa8] sm:$0xff]
    %v6979 = vld [vmem:[#allocation2 + $0xb0] sm:$0xff]
    %v6980 = vld [vmem:[#allocation2 + $0xb8] sm:$0xff]
    %v6981 = vld [vmem:[#allocation2 + $0xc0] sm:$0xff]
    %v6982 = vld [vmem:[#allocation2 + $0xc8] sm:$0xff]
    %v6983 = vld [vmem:[#allocation2 + $0xd0] sm:$0x1]
    %s6985 = vtos %v6983
    %v6986 = vstv %s6985
    %vm6988 = vcmask 654336
    %v6990 = vsel %vm6988, %v6972, 0
    %6992 = vmatpush.msra.mxu0 0.0
    %6993 = vmatpush.msra.mxu0 0.0
    %6994 = vmatpush.msra.mxu0 0.0
    %6995 = vmatpush.msra.mxu0 0.0
    %6996 = vmatpush.msra.mxu0 0.0
    %6997 = vmatpush.msra.mxu0 0.0
    %v6998 = vand.u32 %v6982, 4294901760
    %6999 = vmatpush.msra.mxu0 %v6998
    %v7000 = vand.u32 %v6981, 4294901760
    %7001 = vmatpush.msra.mxu0 %v7000
    %v7002 = vand.u32 %v6980, 4294901760
    %7003 = vmatpush.msra.mxu0 %v7002
    %v7004 = vand.u32 %v6979, 4294901760
    %7005 = vmatpush.msra.mxu0 %v7004
    %v7006 = vand.u32 %v6978, 4294901760
    %7007 = vmatpush.msra.mxu0 %v7006
    %v7008 = vand.u32 %v6977, 4294901760
    %7009 = vmatpush.msra.mxu0 %v7008
    %v7010 = vand.u32 %v6976, 4294901760
    %7011 = vmatpush.msra.mxu0 %v7010
    %v7012 = vand.u32 %v6975, 4294901760
    %7013 = vmatpush.msra.mxu0 %v7012
    %v7014 = vand.u32 %v6974, 4294901760
    %7015 = vmatpush.msra.mxu0 %v7014
    %v7016 = vand.u32 %v6973, 4294901760
    %7017 = vmatpush.msra.mxu0 %v7016
    %v7018 = vand.u32 %v6990, 4294901760
    %v7019 = vsub.f32 %v6990, %v7018
    %v7020 = vand.u32 %v7019, 4294901760
    %v7021 = vsub.f32 %v7019, %v7020
    %v7022 = vand.u32 %v7021, 4294901760
    %7023 = vmatmul.f32.gmra.mxu0 %v7022
    %v7024 = vpop.f32.mrf.mxu0
    %v7025 = vadd.f32 %v6986, %v7024
    %7026 = vdwg.mxu0
    %7027 = vmatpush.msra.mxu0 0.0
    %7028 = vmatpush.msra.mxu0 0.0
    %7029 = vmatpush.msra.mxu0 0.0
    %7030 = vmatpush.msra.mxu0 0.0
    %7031 = vmatpush.msra.mxu0 0.0
    %7032 = vmatpush.msra.mxu0 0.0
    %v7033 = vand.u32 %v6982, 4294901760
    %v7034 = vsub.f32 %v6982, %v7033
    %v7035 = vand.u32 %v7034, 4294901760
    %v7036 = vsub.f32 %v7034, %v7035
    %v7037 = vand.u32 %v7036, 4294901760
    %7038 = vmatpush.msra.mxu0 %v7037
    %v7039 = vand.u32 %v6981, 4294901760
    %v7040 = vsub.f32 %v6981, %v7039
    %v7041 = vand.u32 %v7040, 4294901760
    %v7042 = vsub.f32 %v7040, %v7041
    %v7043 = vand.u32 %v7042, 4294901760
    %7044 = vmatpush.msra.mxu0 %v7043
    %v7045 = vand.u32 %v6980, 4294901760
    %v7046 = vsub.f32 %v6980, %v7045
    %v7047 = vand.u32 %v7046, 4294901760
    %v7048 = vsub.f32 %v7046, %v7047
    %v7049 = vand.u32 %v7048, 4294901760
    %7050 = vmatpush.msra.mxu0 %v7049
    %v7051 = vand.u32 %v6979, 4294901760
    %v7052 = vsub.f32 %v6979, %v7051
    %v7053 = vand.u32 %v7052, 4294901760
    %v7054 = vsub.f32 %v7052, %v7053
    %v7055 = vand.u32 %v7054, 4294901760
    %7056 = vmatpush.msra.mxu0 %v7055
    %v7057 = vand.u32 %v6978, 4294901760
    %v7058 = vsub.f32 %v6978, %v7057
    %v7059 = vand.u32 %v7058, 4294901760
    %v7060 = vsub.f32 %v7058, %v7059
    %v7061 = vand.u32 %v7060, 4294901760
    %7062 = vmatpush.msra.mxu0 %v7061
    %v7063 = vand.u32 %v6977, 4294901760
    %v7064 = vsub.f32 %v6977, %v7063
    %v7065 = vand.u32 %v7064, 4294901760
    %v7066 = vsub.f32 %v7064, %v7065
    %v7067 = vand.u32 %v7066, 4294901760
    %7068 = vmatpush.msra.mxu0 %v7067
    %v7069 = vand.u32 %v6976, 4294901760
    %v7070 = vsub.f32 %v6976, %v7069
    %v7071 = vand.u32 %v7070, 4294901760
    %v7072 = vsub.f32 %v7070, %v7071
    %v7073 = vand.u32 %v7072, 4294901760
    %7074 = vmatpush.msra.mxu0 %v7073
    %v7075 = vand.u32 %v6975, 4294901760
    %v7076 = vsub.f32 %v6975, %v7075
    %v7077 = vand.u32 %v7076, 4294901760
    %v7078 = vsub.f32 %v7076, %v7077
    %v7079 = vand.u32 %v7078, 4294901760
    %7080 = vmatpush.msra.mxu0 %v7079
    %v7081 = vand.u32 %v6974, 4294901760
    %v7082 = vsub.f32 %v6974, %v7081
    %v7083 = vand.u32 %v7082, 4294901760
    %v7084 = vsub.f32 %v7082, %v7083
    %v7085 = vand.u32 %v7084, 4294901760
    %7086 = vmatpush.msra.mxu0 %v7085
    %v7087 = vand.u32 %v6973, 4294901760
    %v7088 = vsub.f32 %v6973, %v7087
    %v7089 = vand.u32 %v7088, 4294901760
    %v7090 = vsub.f32 %v7088, %v7089
    %v7091 = vand.u32 %v7090, 4294901760
    %7092 = vmatpush.msra.mxu0 %v7091
    %v7093 = vand.u32 %v6990, 4294901760
    %7094 = vmatmul.f32.gmra.mxu0 %v7093
    %v7095 = vpop.f32.mrf.mxu0
    %v7096 = vadd.f32 %v7025, %v7095
    %7097 = vdwg.mxu0
    %7098 = vmatpush.msra.mxu0 0.0
    %7099 = vmatpush.msra.mxu0 0.0
    %7100 = vmatpush.msra.mxu0 0.0
    %7101 = vmatpush.msra.mxu0 0.0
    %7102 = vmatpush.msra.mxu0 0.0
    %7103 = vmatpush.msra.mxu0 0.0
    %v7104 = vand.u32 %v6982, 4294901760
    %v7105 = vsub.f32 %v6982, %v7104
    %7106 = vmatpush.msra.mxu0 %v7105
    %v7107 = vand.u32 %v6981, 4294901760
    %v7108 = vsub.f32 %v6981, %v7107
    %7109 = vmatpush.msra.mxu0 %v7108
    %v7110 = vand.u32 %v6980, 4294901760
    %v7111 = vsub.f32 %v6980, %v7110
    %7112 = vmatpush.msra.mxu0 %v7111
    %v7113 = vand.u32 %v6979, 4294901760
    %v7114 = vsub.f32 %v6979, %v7113
    %7115 = vmatpush.msra.mxu0 %v7114
    %v7116 = vand.u32 %v6978, 4294901760
    %v7117 = vsub.f32 %v6978, %v7116
    %7118 = vmatpush.msra.mxu0 %v7117
    %v7119 = vand.u32 %v6977, 4294901760
    %v7120 = vsub.f32 %v6977, %v7119
    %7121 = vmatpush.msra.mxu0 %v7120
    %v7122 = vand.u32 %v6976, 4294901760
    %v7123 = vsub.f32 %v6976, %v7122
    %7124 = vmatpush.msra.mxu0 %v7123
    %v7125 = vand.u32 %v6975, 4294901760
    %v7126 = vsub.f32 %v6975, %v7125
    %7127 = vmatpush.msra.mxu0 %v7126
    %v7128 = vand.u32 %v6974, 4294901760
    %v7129 = vsub.f32 %v6974, %v7128
    %7130 = vmatpush.msra.mxu0 %v7129
    %v7131 = vand.u32 %v6973, 4294901760
    %v7132 = vsub.f32 %v6973, %v7131
    %7133 = vmatpush.msra.mxu0 %v7132
    %v7134 = vand.u32 %v6990, 4294901760
    %v7135 = vsub.f32 %v6990, %v7134
    %7136 = vmatmul.f32.gmra.mxu0 %v7135
    %v7137 = vpop.f32.mrf.mxu0
    %v7138 = vadd.f32 %v7096, %v7137
    %7139 = vdwg.mxu0
    %7140 = vmatpush.msra.mxu0 0.0
    %7141 = vmatpush.msra.mxu0 0.0
    %7142 = vmatpush.msra.mxu0 0.0
    %7143 = vmatpush.msra.mxu0 0.0
    %7144 = vmatpush.msra.mxu0 0.0
    %7145 = vmatpush.msra.mxu0 0.0
    %v7146 = vand.u32 %v6982, 4294901760
    %7147 = vmatpush.msra.mxu0 %v7146
    %v7148 = vand.u32 %v6981, 4294901760
    %7149 = vmatpush.msra.mxu0 %v7148
    %v7150 = vand.u32 %v6980, 4294901760
    %7151 = vmatpush.msra.mxu0 %v7150
    %v7152 = vand.u32 %v6979, 4294901760
    %7153 = vmatpush.msra.mxu0 %v7152
    %v7154 = vand.u32 %v6978, 4294901760
    %7155 = vmatpush.msra.mxu0 %v7154
    %v7156 = vand.u32 %v6977, 4294901760
    %7157 = vmatpush.msra.mxu0 %v7156
    %v7158 = vand.u32 %v6976, 4294901760
    %7159 = vmatpush.msra.mxu0 %v7158
    %v7160 = vand.u32 %v6975, 4294901760
    %7161 = vmatpush.msra.mxu0 %v7160
    %v7162 = vand.u32 %v6974, 4294901760
    %7163 = vmatpush.msra.mxu0 %v7162
    %v7164 = vand.u32 %v6973, 4294901760
    %7165 = vmatpush.msra.mxu0 %v7164
    %v7166 = vand.u32 %v6990, 4294901760
    %v7167 = vsub.f32 %v6990, %v7166
    %v7168 = vand.u32 %v7167, 4294901760
    %7169 = vmatmul.f32.gmra.mxu0 %v7168
    %v7170 = vpop.f32.mrf.mxu0
    %v7171 = vadd.f32 %v7138, %v7170
    %7172 = vdwg.mxu0
    %7173 = vmatpush.msra.mxu0 0.0
    %7174 = vmatpush.msra.mxu0 0.0
    %7175 = vmatpush.msra.mxu0 0.0
    %7176 = vmatpush.msra.mxu0 0.0
    %7177 = vmatpush.msra.mxu0 0.0
    %7178 = vmatpush.msra.mxu0 0.0
    %v7179 = vand.u32 %v6982, 4294901760
    %v7180 = vsub.f32 %v6982, %v7179
    %v7181 = vand.u32 %v7180, 4294901760
    %7182 = vmatpush.msra.mxu0 %v7181
    %v7183 = vand.u32 %v6981, 4294901760
    %v7184 = vsub.f32 %v6981, %v7183
    %v7185 = vand.u32 %v7184, 4294901760
    %7186 = vmatpush.msra.mxu0 %v7185
    %v7187 = vand.u32 %v6980, 4294901760
    %v7188 = vsub.f32 %v6980, %v7187
    %v7189 = vand.u32 %v7188, 4294901760
    %7190 = vmatpush.msra.mxu0 %v7189
    %v7191 = vand.u32 %v6979, 4294901760
    %v7192 = vsub.f32 %v6979, %v7191
    %v7193 = vand.u32 %v7192, 4294901760
    %7194 = vmatpush.msra.mxu0 %v7193
    %v7195 = vand.u32 %v6978, 4294901760
    %v7196 = vsub.f32 %v6978, %v7195
    %v7197 = vand.u32 %v7196, 4294901760
    %7198 = vmatpush.msra.mxu0 %v7197
    %v7199 = vand.u32 %v6977, 4294901760
    %v7200 = vsub.f32 %v6977, %v7199
    %v7201 = vand.u32 %v7200, 4294901760
    %7202 = vmatpush.msra.mxu0 %v7201
    %v7203 = vand.u32 %v6976, 4294901760
    %v7204 = vsub.f32 %v6976, %v7203
    %v7205 = vand.u32 %v7204, 4294901760
    %7206 = vmatpush.msra.mxu0 %v7205
    %v7207 = vand.u32 %v6975, 4294901760
    %v7208 = vsub.f32 %v6975, %v7207
    %v7209 = vand.u32 %v7208, 4294901760
    %7210 = vmatpush.msra.mxu0 %v7209
    %v7211 = vand.u32 %v6974, 4294901760
    %v7212 = vsub.f32 %v6974, %v7211
    %v7213 = vand.u32 %v7212, 4294901760
    %7214 = vmatpush.msra.mxu0 %v7213
    %v7215 = vand.u32 %v6973, 4294901760
    %v7216 = vsub.f32 %v6973, %v7215
    %v7217 = vand.u32 %v7216, 4294901760
    %7218 = vmatpush.msra.mxu0 %v7217
    %v7219 = vand.u32 %v6990, 4294901760
    %7220 = vmatmul.f32.gmra.mxu0 %v7219
    %v7221 = vpop.f32.mrf.mxu0
    %v7222 = vadd.f32 %v7171, %v7221
    %7223 = vdwg.mxu0
    %7224 = vmatpush.msra.mxu0 0.0
    %7225 = vmatpush.msra.mxu0 0.0
    %7226 = vmatpush.msra.mxu0 0.0
    %7227 = vmatpush.msra.mxu0 0.0
    %7228 = vmatpush.msra.mxu0 0.0
    %7229 = vmatpush.msra.mxu0 0.0
    %v7230 = vand.u32 %v6982, 4294901760
    %7231 = vmatpush.msra.mxu0 %v7230
    %v7232 = vand.u32 %v6981, 4294901760
    %7233 = vmatpush.msra.mxu0 %v7232
    %v7234 = vand.u32 %v6980, 4294901760
    %7235 = vmatpush.msra.mxu0 %v7234
    %v7236 = vand.u32 %v6979, 4294901760
    %7237 = vmatpush.msra.mxu0 %v7236
    %v7238 = vand.u32 %v6978, 4294901760
    %7239 = vmatpush.msra.mxu0 %v7238
    %v7240 = vand.u32 %v6977, 4294901760
    %7241 = vmatpush.msra.mxu0 %v7240
    %v7242 = vand.u32 %v6976, 4294901760
    %7243 = vmatpush.msra.mxu0 %v7242
    %v7244 = vand.u32 %v6975, 4294901760
    %7245 = vmatpush.msra.mxu0 %v7244
    %v7246 = vand.u32 %v6974, 4294901760
    %7247 = vmatpush.msra.mxu0 %v7246
    %v7248 = vand.u32 %v6973, 4294901760
    %7249 = vmatpush.msra.mxu0 %v7248
    %v7250 = vand.u32 %v6990, 4294901760
    %7251 = vmatmul.f32.gmra.mxu0 %v7250
    %v7252 = vpop.f32.mrf.mxu0
    %v7253 = vadd.f32 %v7222, %v7252
    %7254 = vdwg.mxu0
    %7255 = vst.msk [vmem:[%s3] sm:$0xff] %vm35, %v7253
    // Predicated region
    $region14: #{seq2seq_forward.1} parent=1 // pred_check
      _
    $region15: #{seq2seq_forward.1} parent=1 // pred_check_branch
      %7257 = sbr.rel (0) target = $region17
    $region16: #{seq2seq_forward.1} parent=1 // pred_region
      _
    $region17: #{seq2seq_forward.1} parent=1 // pred_fallthru
      _
    // Predicated region
    $region18: #{seq2seq_forward.1} parent=1 // pred_check
      _
    $region19: #{seq2seq_forward.1} parent=1 // pred_check_branch
      %7259 = sbr.rel (0) target = $region21
    $region20: #{seq2seq_forward.1} parent=1 // pred_region
      _
    $region21: #{seq2seq_forward.1} parent=1 // pred_fallthru
      _
    // Predicated region
    $region22: #{seq2seq_forward.1} parent=1 // pred_check
      _
    $region23: #{seq2seq_forward.1} parent=1 // pred_check_branch
      %7261 = sbr.rel (0) target = $region25
    $region24: #{seq2seq_forward.1} parent=1 // pred_region
      _
    $region25: #{seq2seq_forward.1} parent=1 // pred_fallthru
      _
    // Predicated region
    $region26: #{seq2seq_forward.1} parent=1 // pred_check
      _
    $region27: #{seq2seq_forward.1} parent=1 // pred_check_branch
      %7263 = sbr.rel (0) target = $region29
    $region28: #{seq2seq_forward.1} parent=1 // pred_region
      _
    $region29: #{seq2seq_forward.1} parent=1 // pred_fallthru
      _
    %7264 = vsyncpa [#allocation3], 1

</llo_original>
